<compile_context>
chip_gen: v7x
topology: tpu7x:2x2x1
jax: 0.10.0
libtpu: 0.0.40
codegen_flags: <defaults>
</compile_context>

<pallas_src>
import functools

import jax
import jax.numpy as jnp
from jax import lax
from jax.experimental import pallas as pl
from jax.experimental.pallas import tpu as pltpu

# ----------------------------- hyperparameters ------------------------------
ENC_DIM = 16        # enc_dim
FEAT_DIM = 16       # feature_dim
HID_DIM = 16        # hidden_dim (LSTM hidden size)
LAYER = 1           # number of DPRNN-TAC blocks
SEG_SIZE = 4        # segment_size
NSPK = 2            # num_spk
WIN_LEN = 16        # ms
CONTEXT_LEN = 16    # ms
SR = 1000           # small sample rate so window = 16 samples
WINDOW = int(SR * WIN_LEN / 1000)        # 16
STRIDE = WINDOW // 2                     # 8
CONTEXT = CONTEXT_LEN * 2 // WIN_LEN     # 2
CT = 2 * CONTEXT + 1                     # 5
EPS = 1e-8


# ----------------------------- common helpers -------------------------------
def _round_up(n, m):
    return ((n + m - 1) // m) * m


def _cparams(sem):
    return pltpu.CompilerParams(dimension_semantics=sem,
                                vmem_limit_bytes=32 * 1024 * 1024)


def _full_spec(shape):
    nd = len(shape)
    return pl.BlockSpec(shape, lambda i, _nd=nd: (0,) * _nd)


# ----------------------------- Pallas kernels -------------------------------
def _linear_kernel(x_ref, w_ref, b_ref, *rest, prelu_act):
    if prelu_act:
        a_ref, o_ref = rest
    else:
        (o_ref,) = rest
    y = jnp.dot(x_ref[...], w_ref[...],
                preferred_element_type=jnp.float32) + b_ref[...]
    if prelu_act:
        a = a_ref[...]                      # (1, 1) broadcast
        y = jnp.where(y >= 0.0, y, y * a)
    o_ref[...] = y


def pl_linear(x, w, b=None, alpha=None):
    """(M, K) @ (K, N) + b with optional fused PReLU.  M-tiled, parallel grid."""
    x = x.astype(jnp.float32)
    w = w.astype(jnp.float32)
    M, K = x.shape
    N = w.shape[1]
    b2 = (jnp.zeros((1, N), jnp.float32) if b is None
          else b.reshape(1, N).astype(jnp.float32))
    tm = min(_round_up(M, 8), 512)
    Mp = _round_up(M, tm)
    if Mp != M:
        x = jnp.concatenate([x, jnp.zeros((Mp - M, K), jnp.float32)], axis=0)
    has_act = alpha is not None
    inputs = [x, w, b2]
    in_specs = [pl.BlockSpec((tm, K), lambda i: (i, 0)),
                pl.BlockSpec((K, N), lambda i: (0, 0)),
                pl.BlockSpec((1, N), lambda i: (0, 0))]
    if has_act:
        inputs.append(jnp.asarray(alpha, jnp.float32).reshape(1, 1))
        in_specs.append(pl.BlockSpec((1, 1), lambda i: (0, 0)))
    out = pl.pallas_call(
        functools.partial(_linear_kernel, prelu_act=has_act),
        out_shape=jax.ShapeDtypeStruct((Mp, N), jnp.float32),
        grid=(Mp // tm,),
        in_specs=in_specs,
        out_specs=pl.BlockSpec((tm, N), lambda i: (i, 0)),
        compiler_params=_cparams(("parallel",)),
    )(*inputs)
    return out[:M] if Mp != M else out


def _gn_kernel(x_ref, g_ref, b_ref, *rest, has_res):
    if has_res:
        r_ref, o_ref = rest
    else:
        (o_ref,) = rest
    x = x_ref[...]                                         # (BB, C*T)
    mean = jnp.mean(x, axis=1, keepdims=True)
    var = jnp.mean(jnp.square(x - mean), axis=1, keepdims=True)
    y = (x - mean) * lax.rsqrt(var + EPS) * g_ref[...] + b_ref[...]
    if has_res:
        y = y + r_ref[...]
    o_ref[...] = y


def group_norm(x, gamma, beta, residual=None):
    """GroupNorm(1, C) over (B, C, T): per-sample stats, per-channel affine.

    Samples are flattened to (B, C*T) so the whole batch runs in a handful of
    lane-dense grid steps; an optional residual add is fused into the kernel."""
    B_, C_, T_ = x.shape
    D = C_ * T_
    gf = jnp.broadcast_to(gamma.reshape(C_, 1).astype(jnp.float32),
                          (C_, T_)).reshape(1, D)
    bf = jnp.broadcast_to(beta.reshape(C_, 1).astype(jnp.float32),
                          (C_, T_)).reshape(1, D)
    x2 = x.reshape(B_, D).astype(jnp.float32)
    has_res = residual is not None
    res2 = residual.reshape(B_, D).astype(jnp.float32) if has_res else None
    BB = min(_round_up(B_, 8), 256)
    Bp = _round_up(B_, BB)
    if Bp != B_:
        pad = jnp.zeros((Bp - B_, D), jnp.float32)
        x2 = jnp.concatenate([x2, pad], axis=0)
        if has_res:
            res2 = jnp.concatenate([res2, pad], axis=0)
    inputs = [x2, gf, bf]
    in_specs = [pl.BlockSpec((BB, D), lambda i: (i, 0)),
                pl.BlockSpec((1, D), lambda i: (0, 0)),
                pl.BlockSpec((1, D), lambda i: (0, 0))]
    if has_res:
        inputs.append(res2)
        in_specs.append(pl.BlockSpec((BB, D), lambda i: (i, 0)))
    out = pl.pallas_call(
        functools.partial(_gn_kernel, has_res=has_res),
        out_shape=jax.ShapeDtypeStruct((Bp, D), jnp.float32),
        grid=(Bp // BB,),
        in_specs=in_specs,
        out_specs=pl.BlockSpec((BB, D), lambda i: (i, 0)),
        compiler_params=_cparams(("parallel",)),
    )(*inputs)
    out = out[:B_] if Bp != B_ else out
    return out.reshape(B_, C_, T_)


def _ncc_kernel(ctx_ref, ref_ref, o_ref):
    ctx = ctx_ref[...]                                     # (BB, nmic*CT, E)
    ref = ref_ref[...]                                     # (BB, CT, E)
    ctx = ctx * lax.rsqrt(jnp.sum(ctx * ctx, axis=-1, keepdims=True) + EPS)
    ref = ref * lax.rsqrt(jnp.sum(ref * ref, axis=-1, keepdims=True) + EPS)
    o_ref[...] = jnp.einsum('bme,bce->bmc', ctx, ref,
                            preferred_element_type=jnp.float32)


def ncc_pallas(ctx, ref_t):
    """ctx: (BL, nmic, CT, E); ref_t: (BL, CT, E) -> normalized NCC (BL, nmic, CT, CT)."""
    BL, M_, C_, E_ = ctx.shape
    ctx2 = ctx.reshape(BL, M_ * C_, E_).astype(jnp.float32)
    ref_t = ref_t.astype(jnp.float32)
    BB = min(BL, 256)
    BLp = _round_up(BL, BB)
    if BLp != BL:
        ctx2 = jnp.concatenate(
            [ctx2, jnp.zeros((BLp - BL, M_ * C_, E_), jnp.float32)], axis=0)
        ref_t = jnp.concatenate(
            [ref_t, jnp.zeros((BLp - BL, C_, E_), jnp.float32)], axis=0)
    out = pl.pallas_call(
        _ncc_kernel,
        out_shape=jax.ShapeDtypeStruct((BLp, M_ * C_, C_), jnp.float32),
        grid=(BLp // BB,),
        in_specs=[pl.BlockSpec((BB, M_ * C_, E_), lambda i: (i, 0, 0)),
                  pl.BlockSpec((BB, C_, E_), lambda i: (i, 0, 0))],
        out_specs=pl.BlockSpec((BB, M_ * C_, C_), lambda i: (i, 0, 0)),
        compiler_params=_cparams(("parallel",)),
    )(ctx2, ref_t)
    out = out[:BL] if BLp != BL else out
    return out.reshape(BL, M_, C_, C_)


def _bilstm_kernel(xp_ref, whh_ref, o_ref, *, T, H2):
    # xp_ref: (T, B, 4*H2) pre-computed input gates, gate-major [i|f|g|o],
    #         each H2 = 2H wide = [fwd H | bwd H] (bwd already time-reversed).
    # whh_ref: (H2, 4*H2) block-structured so fwd/bwd hidden only feed their gates.
    whh = whh_ref[...]                                     # hoisted weight load
    B = o_ref.shape[1]
    h = jnp.zeros((B, H2), jnp.float32)
    c = jnp.zeros((B, H2), jnp.float32)
    for s in range(T):                                     # static unrolled recurrence
        gates = xp_ref[s] + jnp.dot(h, whh, preferred_element_type=jnp.float32)
        i_g = jax.nn.sigmoid(gates[:, 0 * H2:1 * H2])
        f_g = jax.nn.sigmoid(gates[:, 1 * H2:2 * H2])
        g_g = jnp.tanh(gates[:, 2 * H2:3 * H2])
        o_g = jax.nn.sigmoid(gates[:, 3 * H2:4 * H2])
        c = f_g * c + i_g * g_g
        h = o_g * jnp.tanh(c)
        o_ref[s] = h


def _filter_decode_kernel(ctx_ref, flt_ref, w_ref, o_ref):
    q = ctx_ref[...] * flt_ref[...]                        # (MB, E*CT)
    o_ref[...] = jnp.dot(q, w_ref[...], preferred_element_type=jnp.float32)


def filter_and_decode(ctx, flt, dec_w, ct):
    """Fused (context * filter).mean(CT) + decoder ConvTranspose frame matmul.

    ctx, flt: (M, E*CT) flattened row-major over (E, CT); dec_w: (E, W)."""
    M, ECT = ctx.shape
    W_ = dec_w.shape[1]
    w_exp = jnp.repeat(dec_w.astype(jnp.float32), ct, axis=0) * (1.0 / ct)  # (E*CT, W)
    ctx = ctx.astype(jnp.float32)
    flt = flt.astype(jnp.float32)
    MB = min(_round_up(M, 8), 512)
    Mp = _round_up(M, MB)
    if Mp != M:
        pad = jnp.zeros((Mp - M, ECT), jnp.float32)
        ctx = jnp.concatenate([ctx, pad], axis=0)
        flt = jnp.concatenate([flt, pad], axis=0)
    out = pl.pallas_call(
        _filter_decode_kernel,
        out_shape=jax.ShapeDtypeStruct((Mp, W_), jnp.float32),
        grid=(Mp // MB,),
        in_specs=[pl.BlockSpec((MB, ECT), lambda i: (i, 0)),
                  pl.BlockSpec((MB, ECT), lambda i: (i, 0)),
                  pl.BlockSpec((ECT, W_), lambda i: (0, 0))],
        out_specs=pl.BlockSpec((MB, W_), lambda i: (i, 0)),
        compiler_params=_cparams(("parallel",)),
    )(ctx, flt, w_exp)
    return out[:M] if Mp != M else out


# ----------------------------- small helpers --------------------------------
def prelu(x, a):
    return jnp.where(x >= 0, x, a * x)


def conv1x1(x, w, b=None):
    """1x1 Conv1d: x (B, Cin, T), torch-style w (Cout, Cin) -> (B, Cout, T)."""
    B_, Cin, T_ = x.shape
    y = pl_linear(x.transpose(0, 2, 1).reshape(-1, Cin), w.T, b)
    return y.reshape(B_, T_, -1).transpose(0, 2, 1)


def _pack_gate_cols(wf, wb, H):
    """Interleave fwd/bwd gate blocks -> columns [i_f i_b f_f f_b g_f g_b o_f o_b]."""
    lead = wf.shape[0]
    return jnp.stack([wf.reshape(lead, 4, H), wb.reshape(lead, 4, H)],
                     axis=2).reshape(lead, 8 * H)


def single_rnn(p, x):
    """SingleRNN('LSTM', Fin, H, bidirectional=True) + Linear proj back to Fin.

    Both directions run inside ONE Pallas kernel.  x: (B, T, Fin)."""
    B_, T_, Fin = x.shape
    H = p['w_hh_f'].shape[1]
    H2 = 2 * H
    # packed input projection (N = 8H = 128, lane-dense); fwd/bwd share raw x
    w_ih = _pack_gate_cols(p['w_ih_f'].T.astype(jnp.float32),
                           p['w_ih_b'].T.astype(jnp.float32), H)          # (Fin, 8H)
    b_ih = jnp.stack([(p['b_ih_f'] + p['b_hh_f']).reshape(4, H),
                      (p['b_ih_b'] + p['b_hh_b']).reshape(4, H)],
                     axis=1).reshape(8 * H).astype(jnp.float32)
    gx = pl_linear(x.reshape(-1, Fin), w_ih, b_ih).reshape(B_, T_, 4, 2, H)
    # backward direction consumes the time-reversed input
    gx = jnp.stack([gx[:, :, :, 0], jnp.flip(gx[:, :, :, 1], axis=1)],
                   axis=3).reshape(B_, T_, 8 * H)
    xp = jnp.transpose(gx, (1, 0, 2))                                     # (T, B, 8H)
    # block-structured recurrent weights (2H, 8H)
    zero = jnp.zeros((H, 4 * H), jnp.float32)
    whh = jnp.concatenate(
        [_pack_gate_cols(p['w_hh_f'].T.astype(jnp.float32), zero, H),
         _pack_gate_cols(zero, p['w_hh_b'].T.astype(jnp.float32), H)], axis=0)
    out = pl.pallas_call(
        functools.partial(_bilstm_kernel, T=T_, H2=H2),
        out_shape=jax.ShapeDtypeStruct((T_, B_, H2), jnp.float32),
        grid=(1,),
        in_specs=[_full_spec((T_, B_, 8 * H)), _full_spec((H2, 8 * H))],
        out_specs=_full_spec((T_, B_, H2)),
        compiler_params=_cparams(("arbitrary",)),
    )(xp.astype(jnp.float32), whh)
    h_f = out[:, :, :H]                                    # fwd hidden at time t
    h_b = jnp.flip(out[:, :, H:], axis=0)                  # bwd hidden re-aligned to t
    h = jnp.concatenate([h_f, h_b], axis=-1).transpose(1, 0, 2)            # (B, T, 2H)
    y = pl_linear(h.reshape(-1, H2), p['proj_w'].T, p['proj_b'])
    return y.reshape(B_, T_, Fin)


# ----------------------------- model glue (reshapes) ------------------------
def pad_input(x, window, stride):
    B_, M_, T_ = x.shape
    rest = window - (stride + T_ % window) % window
    if rest > 0:
        x = jnp.concatenate([x, jnp.zeros((B_, M_, rest), x.dtype)], axis=2)
    pad_aux = jnp.zeros((B_, M_, stride), x.dtype)
    x = jnp.concatenate([pad_aux, x, pad_aux], axis=2)
    return x, rest


def signal_context(x, context):
    """x: (B, D, T) -> (B, D, 2*context+1, T) with zero-padded past/future shifts."""
    B_, D_, T_ = x.shape
    zero = jnp.zeros((B_, D_, context), x.dtype)
    pads_past, pads_future = [], []
    for i in range(context):
        pads_past.append(jnp.concatenate([zero[:, :, i:], x[:, :, :-context + i]],
                                         axis=2)[:, :, None, :])
        pads_future.append(jnp.concatenate([x[:, :, i + 1:], zero[:, :, :i + 1]],
                                           axis=2)[:, :, None, :])
    return jnp.concatenate(pads_past + [x[:, :, None, :]] + pads_future, axis=2)


def split_feature(x, K):
    """x: (B, N, T) -> ((B, N, K, S), rest) 50%-overlap segmentation."""
    B_, N_, T_ = x.shape
    stride = K // 2
    rest = K - (stride + T_ % K) % K
    if rest > 0:
        x = jnp.concatenate([x, jnp.zeros((B_, N_, rest), x.dtype)], axis=2)
    pad_aux = jnp.zeros((B_, N_, stride), x.dtype)
    x = jnp.concatenate([pad_aux, x, pad_aux], axis=2)
    seg1 = x[:, :, :-stride].reshape(B_, N_, -1, K)
    seg2 = x[:, :, stride:].reshape(B_, N_, -1, K)
    segs = jnp.concatenate([seg1, seg2], axis=3).reshape(B_, N_, -1, K).transpose(0, 1, 3, 2)
    return segs, rest


def merge_feature(x, rest):
    """x: (B, N, K, S) -> (B, N, T) overlap-add merge."""
    B_, N_, K, S = x.shape
    stride = K // 2
    x = x.transpose(0, 1, 3, 2).reshape(B_, N_, -1, K * 2)
    x1 = x[:, :, :, :K].reshape(B_, N_, -1)[:, :, stride:]
    x2 = x[:, :, :, K:].reshape(B_, N_, -1)[:, :, :-stride]
    out = x1 + x2
    if rest > 0:
        out = out[:, :, :-rest]
    return out


# ----------------------------- TAC / DPRNN-TAC / BF -------------------------
def tac_forward(p, x, num_mic):
    """Transform-average-concatenate across channels. x: (B, G, N, T).

    Returns the pre-norm TAC output; caller applies ch_norm + residual."""
    # TODO(synk): variable num_mic (per-sample valid-channel mean) not implemented;
    # only the fixed-geometry path (num_mic == 0) is supported.
    B_, G_, N_, T_ = x.shape
    H3 = p['w_in'].shape[0]
    gi = x.transpose(0, 1, 3, 2).reshape(-1, N_)                            # (B*G*T, N)
    go = pl_linear(gi, p['w_in'].T, p['b_in'], alpha=p['a_in']).reshape(B_, G_, T_, H3)
    gmean = jnp.mean(go, axis=1).reshape(B_ * T_, H3)
    gmean = pl_linear(gmean, p['w_mean'].T, p['b_mean'], alpha=p['a_mean'])
    gmean = jnp.broadcast_to(gmean.reshape(B_, 1, T_, H3), (B_, G_, T_, H3)).reshape(-1, H3)
    gcat = jnp.concatenate([go.reshape(-1, H3), gmean], axis=1)             # (B*G*T, 6H)
    gout = pl_linear(gcat, p['w_out'].T, p['b_out'], alpha=p['a_out'])
    return gout.reshape(B_, G_, T_, N_).transpose(0, 1, 3, 2)               # (B, G, N, T)


def dprnn_tac_forward(p, x5, num_mic):
    """x5: (B, ch, N, d1, d2) -> (B*ch, F*nspk, d1, d2)."""
    B_, ch, N_, d1, d2 = x5.shape
    output = x5.reshape(B_ * ch, N_, d1, d2)
    for lp in p['layers']:
        # intra-segment (row) RNN over d1
        inp_row = output.transpose(0, 3, 2, 1).reshape(B_ * ch * d2, d1, N_)
        out_row = single_rnn(lp['row_rnn'], inp_row)
        out_row = out_row.reshape(B_ * ch, d2, d1, N_).transpose(0, 3, 2, 1)
        output = group_norm(out_row.reshape(B_ * ch, N_, d1 * d2),
                            lp['row_norm']['g'], lp['row_norm']['b'],
                            residual=output.reshape(B_ * ch, N_, d1 * d2)
                            ).reshape(B_ * ch, N_, d1, d2)
        # inter-segment (col) RNN over d2
        inp_col = output.transpose(0, 2, 3, 1).reshape(B_ * ch * d1, d2, N_)
        out_col = single_rnn(lp['col_rnn'], inp_col)
        out_col = out_col.reshape(B_ * ch, d1, d2, N_).transpose(0, 3, 1, 2)
        output = group_norm(out_col.reshape(B_ * ch, N_, d1 * d2),
                            lp['col_norm']['g'], lp['col_norm']['b'],
                            residual=output.reshape(B_ * ch, N_, d1 * d2)
                            ).reshape(B_ * ch, N_, d1, d2)
        # TAC across channels: output = output + ch_norm(TAC(output))
        ch_in = output.reshape(B_, ch, N_, d1 * d2)
        ch_out = tac_forward(lp['tac'], ch_in, num_mic)
        output = group_norm(ch_out.reshape(B_ * ch, N_, d1 * d2),
                            lp['ch_norm']['g'], lp['ch_norm']['b'],
                            residual=output.reshape(B_ * ch, N_, d1 * d2)
                            ).reshape(B_ * ch, N_, d1, d2)
    out = prelu(output, p['out_prelu'])
    out = conv1x1(out.reshape(B_ * ch, N_, d1 * d2), p['out_w'], p['out_b'])
    return out.reshape(B_ * ch, -1, d1, d2)


def bf_module_forward(p, x, num_mic):
    """BF_module forward (model_type='DPRNN_TAC'). x: (B, ch, N_in, L)."""
    B_, ch, Nin, L_ = x.shape
    xin = x.reshape(B_ * ch, Nin, L_)
    enc_feature = conv1x1(xin, p['BN_w'], None)                         # (B*ch, F, L)
    enc_segments, enc_rest = split_feature(enc_feature, SEG_SIZE)
    K_, S_ = enc_segments.shape[2], enc_segments.shape[3]
    seg5 = enc_segments.reshape(B_, ch, FEAT_DIM, K_, S_)
    out = dprnn_tac_forward(p['dprnn'], seg5, num_mic)                  # (B*ch, F*nspk, K, S)
    out = out.reshape(B_ * ch * NSPK, FEAT_DIM, K_, S_)
    out = merge_feature(out, enc_rest)                                  # (B*ch*nspk, F, L)
    bf_filter = conv1x1(out, p['out_w'], p['out_b'])                    # (B*ch*nspk, E, L)
    return bf_filter.reshape(B_, ch, NSPK, ENC_DIM, -1)


# ----------------------------- iFaSNet forward ------------------------------
def ifasnet_forward(params, inp, num_mic):
    B_, nmic, T_ = inp.shape
    x, rest = pad_input(inp, WINDOW, STRIDE)
    Tp = x.shape[-1]
    L_ = (Tp - WINDOW) // STRIDE + 1
    frame_idx = jnp.arange(L_)[:, None] * STRIDE + jnp.arange(WINDOW)[None, :]

    # encoder Conv1d(1, E, W, stride=W/2, bias=False) as a framed matmul
    frames = x.reshape(B_ * nmic, Tp)[:, frame_idx]                     # (B*nmic, L, W)
    enc_output = pl_linear(frames.reshape(-1, WINDOW), params['enc_w'].T, None)
    enc_output = enc_output.reshape(B_ * nmic, L_, ENC_DIM).transpose(0, 2, 1)  # (B*nmic, E, L)

    # context windows of the raw encoder output
    enc_context = signal_context(enc_output, CONTEXT)                   # (B*nmic, E, CT, L)
    enc_context = enc_context.reshape(B_, nmic, ENC_DIM, CT, L_)

    # normalized cross-correlation features (single batched Pallas kernel)
    ref_enc_t = enc_context[:, 0].transpose(0, 3, 2, 1).reshape(B_ * L_, CT, ENC_DIM)
    enc_context_copy = enc_context.transpose(0, 4, 1, 3, 2).reshape(B_ * L_, nmic, CT, ENC_DIM)
    ncc = ncc_pallas(enc_context_copy, ref_enc_t)                       # (B*L, nmic, CT, CT)
    ncc = ncc.reshape(B_, L_, nmic, CT * CT).transpose(0, 2, 3, 1)      # (B, nmic, CT^2, L)

    # context summarization branch
    norm_output = group_norm(enc_output, params['enc_LN']['g'], params['enc_LN']['b'])
    norm_context = signal_context(norm_output, CONTEXT)                 # (B*nmic, E, CT, L)
    norm_context = norm_context.transpose(0, 3, 2, 1).reshape(-1, CT, ENC_DIM)  # (B*nmic*L, CT, E)
    norm_context_BN = pl_linear(norm_context.reshape(-1, ENC_DIM),
                                params['summ_BN_w'].T, params['summ_BN_b']
                                ).reshape(-1, CT, FEAT_DIM)
    embedding = single_rnn(params['summ_RNN'], norm_context_BN).transpose(0, 2, 1)  # (BnmL, F, CT)
    embedding = group_norm(embedding, params['summ_LN']['g'], params['summ_LN']['b'],
                           residual=norm_context_BN.transpose(0, 2, 1))
    embedding = pl_linear(jnp.mean(embedding, axis=2),
                          params['summ_out_w'].T, params['summ_out_b']
                          ).reshape(B_, nmic, L_, ENC_DIM).transpose(0, 1, 3, 2)     # (B, nmic, E, L)

    # separator (DPRNN-TAC BF_module)
    input_feature = jnp.concatenate([embedding, ncc], axis=2)           # (B, nmic, E+CT^2, L)
    emb = bf_module_forward(params['separator'], input_feature, num_mic)[:, 0]       # (B, nspk, E, L)

    # filter generation
    norm_context2 = norm_context.reshape(B_, nmic, L_, CT, ENC_DIM)
    norm_context2 = norm_context2.transpose(0, 1, 4, 3, 2)[:, :1]       # (B, 1, E, CT, L)
    norm_context2 = jnp.broadcast_to(norm_context2, (B_, NSPK, ENC_DIM, CT, L_))
    emb_exp = jnp.broadcast_to(emb[:, :, :, None, :], (B_, NSPK, ENC_DIM, CT, L_))
    emb_cat = jnp.concatenate([norm_context2, emb_exp], axis=2)         # (B, nspk, 2E, CT, L)
    emb_cat = emb_cat.transpose(0, 1, 4, 2, 3).reshape(-1, 2 * ENC_DIM, CT)

    all_filter = conv1x1(emb_cat, params['gen_BN_w'], params['gen_BN_b'])            # (BnsL, F, CT)
    rnn_out = single_rnn(params['gen_RNN'], all_filter.transpose(0, 2, 1)).transpose(0, 2, 1)
    all_filter = group_norm(rnn_out, params['gen_LN']['g'], params['gen_LN']['b'],
                            residual=all_filter)
    all_filter = conv1x1(all_filter, params['gen_out_w'], params['gen_out_b'])       # (BnsL, E, CT)

    # apply filters on the reference-mic context and decode (fused Pallas kernel)
    ref_ctx = jnp.broadcast_to(enc_context[:, 0:1], (B_, NSPK, ENC_DIM, CT, L_))
    ref_ctx = ref_ctx.transpose(0, 1, 4, 2, 3).reshape(-1, ENC_DIM * CT)             # (BnsL, E*CT)
    dec_frames = filter_and_decode(ref_ctx, all_filter.reshape(-1, ENC_DIM * CT),
                                   params['dec_w'], CT)                              # (BnsL, W)
    dec_frames = dec_frames.reshape(B_ * NSPK, L_, WINDOW)
    Tout = (L_ - 1) * STRIDE + WINDOW
    bf = jnp.zeros((B_ * NSPK, Tout), jnp.float32).at[:, frame_idx].add(dec_frames)
    if rest > 0:
        bf = bf[:, STRIDE:Tout - rest - STRIDE]
    return bf.reshape(B_, NSPK, -1)


# ----------------------------- parameter init -------------------------------
class _KeyGen:
    def __init__(self, key):
        self._key = key

    def __call__(self):
        self._key, sub = jax.random.split(self._key)
        return sub


def init_params(key):
    kg = _KeyGen(key)

    def P(*shape):
        return 0.1 * jax.random.normal(kg(), shape, jnp.float32)

    def lstm_p(in_dim, hid):
        return dict(w_ih_f=P(4 * hid, in_dim), w_hh_f=P(4 * hid, hid),
                    b_ih_f=P(4 * hid), b_hh_f=P(4 * hid),
                    w_ih_b=P(4 * hid, in_dim), w_hh_b=P(4 * hid, hid),
                    b_ih_b=P(4 * hid), b_hh_b=P(4 * hid),
                    proj_w=P(in_dim, 2 * hid), proj_b=P(in_dim))

    def gn_p(c):
        return dict(g=jnp.ones((c,), jnp.float32), b=jnp.zeros((c,), jnp.float32))

    E, F, H = ENC_DIM, FEAT_DIM, HID_DIM
    layers = []
    for _ in range(LAYER):
        layers.append(dict(
            row_rnn=lstm_p(F, H), col_rnn=lstm_p(F, H),
            row_norm=gn_p(F), col_norm=gn_p(F), ch_norm=gn_p(F),
            tac=dict(w_in=P(3 * H, F), b_in=P(3 * H), a_in=jnp.float32(0.25),
                     w_mean=P(3 * H, 3 * H), b_mean=P(3 * H), a_mean=jnp.float32(0.25),
                     w_out=P(F, 6 * H), b_out=P(F), a_out=jnp.float32(0.25))))
    return dict(
        enc_w=P(E, WINDOW),                       # Conv1d(1, E, W) weight squeezed
        dec_w=P(E, WINDOW),                       # ConvTranspose1d(E, 1, W) weight squeezed
        enc_LN=gn_p(E),
        summ_BN_w=P(F, E), summ_BN_b=P(F),
        summ_RNN=lstm_p(F, H),
        summ_LN=gn_p(F),
        summ_out_w=P(E, F), summ_out_b=P(E),
        separator=dict(
            BN_w=P(F, E + CT * CT),               # Conv1d(E+CT^2, F, 1, bias=False)
            dprnn=dict(layers=layers,
                       out_prelu=jnp.float32(0.25),
                       out_w=P(F * NSPK, F), out_b=P(F * NSPK)),
            out_w=P(E, F), out_b=P(E)),           # BF_module.output Conv1d(F, E, 1)
        gen_BN_w=P(F, 2 * E), gen_BN_b=P(F),
        gen_RNN=lstm_p(F, H),
        gen_LN=gn_p(F),
        gen_out_w=P(E, F), gen_out_b=P(E))


# ----------------------------- driver ---------------------------------------
if __name__ == "__main__":
    key = jax.random.PRNGKey(0)
    B, NMIC, T = 2, 2, 64
    mixture = jax.random.normal(key, (B, NMIC, T), jnp.float32)
    num_mic = jnp.zeros((B,), jnp.int32)          # fixed-geometry array
    params = init_params(jax.random.PRNGKey(42))

    fwd = jax.jit(lambda inp, nm: ifasnet_forward(params, inp, nm))
    out = fwd(mixture, num_mic)
    jax.block_until_ready(out)
    assert out.shape == (B, NSPK, T), out.shape
    assert bool(jnp.all(jnp.isfinite(out)))
    print("KERNEL_OK")
</pallas_src>

<mosaic_0001>
module attributes {stable_mosaic.version = 11 : i64} {
  func.func @_linear_kernel(%arg0: i32, %arg1: memref<40x16xf32, #tpu.memory_space<vmem>>, %arg2: memref<16x16xf32, #tpu.memory_space<vmem>>, %arg3: memref<1x16xf32, #tpu.memory_space<vmem>>, %arg4: memref<40x16xf32, #tpu.memory_space<vmem>>) attributes {dimension_semantics = [#tpu.dimension_semantics<parallel>], iteration_bounds = array<i64: 1>, scalar_prefetch = 0 : i64, scratch_operands = 0 : i64, tpu.core_type = #tpu.core_type<tc>, window_params = [{transform_indices = @transform_0, window_bounds = array<i64: 40, 16>}, {pipeline_mode = #tpu.pipeline_mode<synchronous>, transform_indices = @transform_1, window_bounds = array<i64: 16, 16>}, {pipeline_mode = #tpu.pipeline_mode<synchronous>, transform_indices = @transform_2, window_bounds = array<i64: 1, 16>}, {transform_indices = @transform_3, window_bounds = array<i64: 40, 16>}]} {
    %c0 = arith.constant 0 : index
    %c0_0 = arith.constant 0 : index
    %0 = vector.load %arg1[%c0, %c0_0] : memref<40x16xf32, #tpu.memory_space<vmem>>, vector<40x16xf32>
    %c0_1 = arith.constant 0 : index
    %c0_2 = arith.constant 0 : index
    %1 = vector.load %arg2[%c0_1, %c0_2] : memref<16x16xf32, #tpu.memory_space<vmem>>, vector<16x16xf32>
    %cst = arith.constant dense<0.000000e+00> : vector<40x16xf32>
    %2 = tpu.matmul %0, %1, %cst {dimension_numbers = #tpu.dot_dimension_numbers<[1], [0], [0], [1], [0, 0, 1, 1], [], []>} : vector<40x16xf32>, vector<16x16xf32>, vector<40x16xf32> -> vector<40x16xf32>
    %c0_3 = arith.constant 0 : index
    %c0_4 = arith.constant 0 : index
    %3 = vector.load %arg3[%c0_3, %c0_4] : memref<1x16xf32, #tpu.memory_space<vmem>>, vector<1x16xf32>
    %4 = vector.broadcast %3 : vector<1x16xf32> to vector<40x16xf32>
    %5 = arith.addf %2, %4 : vector<40x16xf32>
    %c0_5 = arith.constant 0 : index
    %c0_6 = arith.constant 0 : index
    %6 = vector.load %arg4[%c0_5, %c0_6] : memref<40x16xf32, #tpu.memory_space<vmem>>, vector<40x16xf32>
    tpu.vector_store %arg4[%c0_5, %c0_6], %5 {strides = array<i32>} : memref<40x16xf32, #tpu.memory_space<vmem>>, vector<40x16xf32>,
    return
  }
  func.func @transform_0(%arg0: i32) -> (i32, i32) {
    %c0_i32 = arith.constant 0 : i32
    %c0_i32_0 = arith.constant 0 : i32
    return %arg0, %c0_i32 : i32, i32
  }
  func.func @transform_1(%arg0: i32) -> (i32, i32) {
    %c0_i32 = arith.constant 0 : i32
    %c0_i32_0 = arith.constant 0 : i32
    %c0_i32_1 = arith.constant 0 : i32
    return %c0_i32, %c0_i32_0 : i32, i32
  }
  func.func @transform_2(%arg0: i32) -> (i32, i32) {
    %c0_i32 = arith.constant 0 : i32
    %c0_i32_0 = arith.constant 0 : i32
    %c0_i32_1 = arith.constant 0 : i32
    return %c0_i32, %c0_i32_0 : i32, i32
  }
  func.func @transform_3(%arg0: i32) -> (i32, i32) {
    %c0_i32 = arith.constant 0 : i32
    %c0_i32_0 = arith.constant 0 : i32
    return %arg0, %c0_i32 : i32, i32
  }
}

module attributes {stable_mosaic.version = 11 : i64} {
  func.func @_gn_kernel(%arg0: i32, %arg1: memref<8x160xf32, #tpu.memory_space<vmem>>, %arg2: memref<1x160xf32, #tpu.memory_space<vmem>>, %arg3: memref<1x160xf32, #tpu.memory_space<vmem>>, %arg4: memref<8x160xf32, #tpu.memory_space<vmem>>) attributes {dimension_semantics = [#tpu.dimension_semantics<parallel>], iteration_bounds = array<i64: 1>, scalar_prefetch = 0 : i64, scratch_operands = 0 : i64, tpu.core_type = #tpu.core_type<tc>, window_params = [{transform_indices = @transform_0, window_bounds = array<i64: 8, 160>}, {pipeline_mode = #tpu.pipeline_mode<synchronous>, transform_indices = @transform_1, window_bounds = array<i64: 1, 160>}, {pipeline_mode = #tpu.pipeline_mode<synchronous>, transform_indices = @transform_2, window_bounds = array<i64: 1, 160>}, {transform_indices = @transform_3, window_bounds = array<i64: 8, 160>}]} {
    %c0 = arith.constant 0 : index
    %c0_0 = arith.constant 0 : index
    %0 = vector.load %arg1[%c0, %c0_0] : memref<8x160xf32, #tpu.memory_space<vmem>>, vector<8x160xf32>
    %cst = arith.constant dense<0.000000e+00> : vector<8xf32>
    %1 = vector.multi_reduction <add>, %0, %cst [1] : vector<8x160xf32> to vector<8xf32>
    %2 = vector.shape_cast %1 : vector<8xf32> to vector<8x1xf32>
    %cst_1 = arith.constant 1.600000e+02 : f32
    %3 = vector.broadcast %cst_1 : f32 to vector<8x1xf32>
    %4 = arith.divf %2, %3 : vector<8x1xf32>
    %5 = vector.broadcast %4 : vector<8x1xf32> to vector<8x160xf32>
    %6 = arith.subf %0, %5 : vector<8x160xf32>
    %7 = arith.mulf %6, %6 : vector<8x160xf32>
    %cst_2 = arith.constant dense<0.000000e+00> : vector<8xf32>
    %8 = vector.multi_reduction <add>, %7, %cst_2 [1] : vector<8x160xf32> to vector<8xf32>
    %9 = vector.shape_cast %8 : vector<8xf32> to vector<8x1xf32>
    %cst_3 = arith.constant 1.600000e+02 : f32
    %10 = vector.broadcast %cst_3 : f32 to vector<8x1xf32>
    %11 = arith.divf %9, %10 : vector<8x1xf32>
    %12 = vector.broadcast %4 : vector<8x1xf32> to vector<8x160xf32>
    %13 = arith.subf %0, %12 : vector<8x160xf32>
    %cst_4 = arith.constant 9.99999993E-9 : f32
    %14 = vector.broadcast %cst_4 : f32 to vector<8x1xf32>
    %15 = arith.addf %11, %14 : vector<8x1xf32>
    %16 = math.rsqrt %15 : vector<8x1xf32>
    %17 = vector.broadcast %16 : vector<8x1xf32> to vector<8x160xf32>
    %18 = arith.mulf %13, %17 : vector<8x160xf32>
    %c0_5 = arith.constant 0 : index
    %c0_6 = arith.constant 0 : index
    %19 = vector.load %arg2[%c0_5, %c0_6] : memref<1x160xf32, #tpu.memory_space<vmem>>, vector<1x160xf32>
    %20 = vector.broadcast %19 : vector<1x160xf32> to vector<8x160xf32>
    %21 = arith.mulf %18, %20 : vector<8x160xf32>
    %c0_7 = arith.constant 0 : index
    %c0_8 = arith.constant 0 : index
    %22 = vector.load %arg3[%c0_7, %c0_8] : memref<1x160xf32, #tpu.memory_space<vmem>>, vector<1x160xf32>
    %23 = vector.broadcast %22 : vector<1x160xf32> to vector<8x160xf32>
    %24 = arith.addf %21, %23 : vector<8x160xf32>
    %c0_9 = arith.constant 0 : index
    %c0_10 = arith.constant 0 : index
    %25 = vector.load %arg4[%c0_9, %c0_10] : memref<8x160xf32, #tpu.memory_space<vmem>>, vector<8x160xf32>
    tpu.vector_store %arg4[%c0_9, %c0_10], %24 {strides = array<i32>} : memref<8x160xf32, #tpu.memory_space<vmem>>, vector<8x160xf32>,
    return
  }
  func.func @transform_0(%arg0: i32) -> (i32, i32) {
    %c0_i32 = arith.constant 0 : i32
    %c0_i32_0 = arith.constant 0 : i32
    return %arg0, %c0_i32 : i32, i32
  }
  func.func @transform_1(%arg0: i32) -> (i32, i32) {
    %c0_i32 = arith.constant 0 : i32
    %c0_i32_0 = arith.constant 0 : i32
    %c0_i32_1 = arith.constant 0 : i32
    return %c0_i32, %c0_i32_0 : i32, i32
  }
  func.func @transform_2(%arg0: i32) -> (i32, i32) {
    %c0_i32 = arith.constant 0 : i32
    %c0_i32_0 = arith.constant 0 : i32
    %c0_i32_1 = arith.constant 0 : i32
    return %c0_i32, %c0_i32_0 : i32, i32
  }
  func.func @transform_3(%arg0: i32) -> (i32, i32) {
    %c0_i32 = arith.constant 0 : i32
    %c0_i32_0 = arith.constant 0 : i32
    return %arg0, %c0_i32 : i32, i32
  }
}

module attributes {stable_mosaic.version = 11 : i64} {
  func.func @_linear_kernel(%arg0: i32, %arg1: memref<200x16xf32, #tpu.memory_space<vmem>>, %arg2: memref<16x16xf32, #tpu.memory_space<vmem>>, %arg3: memref<1x16xf32, #tpu.memory_space<vmem>>, %arg4: memref<200x16xf32, #tpu.memory_space<vmem>>) attributes {dimension_semantics = [#tpu.dimension_semantics<parallel>], iteration_bounds = array<i64: 1>, scalar_prefetch = 0 : i64, scratch_operands = 0 : i64, tpu.core_type = #tpu.core_type<tc>, window_params = [{transform_indices = @transform_0, window_bounds = array<i64: 200, 16>}, {pipeline_mode = #tpu.pipeline_mode<synchronous>, transform_indices = @transform_1, window_bounds = array<i64: 16, 16>}, {pipeline_mode = #tpu.pipeline_mode<synchronous>, transform_indices = @transform_2, window_bounds = array<i64: 1, 16>}, {transform_indices = @transform_3, window_bounds = array<i64: 200, 16>}]} {
    %c0 = arith.constant 0 : index
    %c0_0 = arith.constant 0 : index
    %0 = vector.load %arg1[%c0, %c0_0] : memref<200x16xf32, #tpu.memory_space<vmem>>, vector<200x16xf32>
    %c0_1 = arith.constant 0 : index
    %c0_2 = arith.constant 0 : index
    %1 = vector.load %arg2[%c0_1, %c0_2] : memref<16x16xf32, #tpu.memory_space<vmem>>, vector<16x16xf32>
    %cst = arith.constant dense<0.000000e+00> : vector<200x16xf32>
    %2 = tpu.matmul %0, %1, %cst {dimension_numbers = #tpu.dot_dimension_numbers<[1], [0], [0], [1], [0, 0, 1, 1], [], []>} : vector<200x16xf32>, vector<16x16xf32>, vector<200x16xf32> -> vector<200x16xf32>
    %c0_3 = arith.constant 0 : index
    %c0_4 = arith.constant 0 : index
    %3 = vector.load %arg3[%c0_3, %c0_4] : memref<1x16xf32, #tpu.memory_space<vmem>>, vector<1x16xf32>
    %4 = vector.broadcast %3 : vector<1x16xf32> to vector<200x16xf32>
    %5 = arith.addf %2, %4 : vector<200x16xf32>
    %c0_5 = arith.constant 0 : index
    %c0_6 = arith.constant 0 : index
    %6 = vector.load %arg4[%c0_5, %c0_6] : memref<200x16xf32, #tpu.memory_space<vmem>>, vector<200x16xf32>
    tpu.vector_store %arg4[%c0_5, %c0_6], %5 {strides = array<i32>} : memref<200x16xf32, #tpu.memory_space<vmem>>, vector<200x16xf32>,
    return
  }
  func.func @transform_0(%arg0: i32) -> (i32, i32) {
    %c0_i32 = arith.constant 0 : i32
    %c0_i32_0 = arith.constant 0 : i32
    return %arg0, %c0_i32 : i32, i32
  }
  func.func @transform_1(%arg0: i32) -> (i32, i32) {
    %c0_i32 = arith.constant 0 : i32
    %c0_i32_0 = arith.constant 0 : i32
    %c0_i32_1 = arith.constant 0 : i32
    return %c0_i32, %c0_i32_0 : i32, i32
  }
  func.func @transform_2(%arg0: i32) -> (i32, i32) {
    %c0_i32 = arith.constant 0 : i32
    %c0_i32_0 = arith.constant 0 : i32
    %c0_i32_1 = arith.constant 0 : i32
    return %c0_i32, %c0_i32_0 : i32, i32
  }
  func.func @transform_3(%arg0: i32) -> (i32, i32) {
    %c0_i32 = arith.constant 0 : i32
    %c0_i32_0 = arith.constant 0 : i32
    return %arg0, %c0_i32 : i32, i32
  }
}

module attributes {stable_mosaic.version = 11 : i64} {
  func.func @_linear_kernel(%arg0: i32, %arg1: memref<200x16xf32, #tpu.memory_space<vmem>>, %arg2: memref<16x128xf32, #tpu.memory_space<vmem>>, %arg3: memref<1x128xf32, #tpu.memory_space<vmem>>, %arg4: memref<200x128xf32, #tpu.memory_space<vmem>>) attributes {dimension_semantics = [#tpu.dimension_semantics<parallel>], iteration_bounds = array<i64: 1>, scalar_prefetch = 0 : i64, scratch_operands = 0 : i64, tpu.core_type = #tpu.core_type<tc>, window_params = [{transform_indices = @transform_0, window_bounds = array<i64: 200, 16>}, {pipeline_mode = #tpu.pipeline_mode<synchronous>, transform_indices = @transform_1, window_bounds = array<i64: 16, 128>}, {pipeline_mode = #tpu.pipeline_mode<synchronous>, transform_indices = @transform_2, window_bounds = array<i64: 1, 128>}, {transform_indices = @transform_3, window_bounds = array<i64: 200, 128>}]} {
    %c0 = arith.constant 0 : index
    %c0_0 = arith.constant 0 : index
    %0 = vector.load %arg1[%c0, %c0_0] : memref<200x16xf32, #tpu.memory_space<vmem>>, vector<200x16xf32>
    %c0_1 = arith.constant 0 : index
    %c0_2 = arith.constant 0 : index
    %1 = vector.load %arg2[%c0_1, %c0_2] : memref<16x128xf32, #tpu.memory_space<vmem>>, vector<16x128xf32>
    %cst = arith.constant dense<0.000000e+00> : vector<200x128xf32>
    %2 = tpu.matmul %0, %1, %cst {dimension_numbers = #tpu.dot_dimension_numbers<[1], [0], [0], [1], [0, 0, 1, 1], [], []>} : vector<200x16xf32>, vector<16x128xf32>, vector<200x128xf32> -> vector<200x128xf32>
    %c0_3 = arith.constant 0 : index
    %c0_4 = arith.constant 0 : index
    %3 = vector.load %arg3[%c0_3, %c0_4] : memref<1x128xf32, #tpu.memory_space<vmem>>, vector<1x128xf32>
    %4 = vector.broadcast %3 : vector<1x128xf32> to vector<200x128xf32>
    %5 = arith.addf %2, %4 : vector<200x128xf32>
    %c0_5 = arith.constant 0 : index
    %c0_6 = arith.constant 0 : index
    %6 = vector.load %arg4[%c0_5, %c0_6] : memref<200x128xf32, #tpu.memory_space<vmem>>, vector<200x128xf32>
    tpu.vector_store %arg4[%c0_5, %c0_6], %5 {strides = array<i32>} : memref<200x128xf32, #tpu.memory_space<vmem>>, vector<200x128xf32>,
    return
  }
  func.func @transform_0(%arg0: i32) -> (i32, i32) {
    %c0_i32 = arith.constant 0 : i32
    %c0_i32_0 = arith.constant 0 : i32
    return %arg0, %c0_i32 : i32, i32
  }
  func.func @transform_1(%arg0: i32) -> (i32, i32) {
    %c0_i32 = arith.constant 0 : i32
    %c0_i32_0 = arith.constant 0 : i32
    %c0_i32_1 = arith.constant 0 : i32
    return %c0_i32, %c0_i32_0 : i32, i32
  }
  func.func @transform_2(%arg0: i32) -> (i32, i32) {
    %c0_i32 = arith.constant 0 : i32
    %c0_i32_0 = arith.constant 0 : i32
    %c0_i32_1 = arith.constant 0 : i32
    return %c0_i32, %c0_i32_0 : i32, i32
  }
  func.func @transform_3(%arg0: i32) -> (i32, i32) {
    %c0_i32 = arith.constant 0 : i32
    %c0_i32_0 = arith.constant 0 : i32
    return %arg0, %c0_i32 : i32, i32
  }
}

module attributes {stable_mosaic.version = 11 : i64} {
  func.func @_bilstm_kernel(%arg0: i32, %arg1: memref<5x40x128xf32, #tpu.memory_space<vmem>>, %arg2: memref<32x128xf32, #tpu.memory_space<vmem>>, %arg3: memref<5x40x32xf32, #tpu.memory_space<vmem>>) attributes {dimension_semantics = [#tpu.dimension_semantics<arbitrary>], iteration_bounds = array<i64: 1>, scalar_prefetch = 0 : i64, scratch_operands = 0 : i64, tpu.core_type = #tpu.core_type<tc>, window_params = [{pipeline_mode = #tpu.pipeline_mode<synchronous>, transform_indices = @transform_0, window_bounds = array<i64: 5, 40, 128>}, {pipeline_mode = #tpu.pipeline_mode<synchronous>, transform_indices = @transform_1, window_bounds = array<i64: 32, 128>}, {pipeline_mode = #tpu.pipeline_mode<synchronous>, transform_indices = @transform_2, window_bounds = array<i64: 5, 40, 32>}]} {
    %c0 = arith.constant 0 : index
    %c0_0 = arith.constant 0 : index
    %0 = vector.load %arg2[%c0, %c0_0] : memref<32x128xf32, #tpu.memory_space<vmem>>, vector<32x128xf32>
    %cst = arith.constant 0.000000e+00 : f32
    %1 = vector.broadcast %cst : f32 to vector<40x32xf32>
    %cst_1 = arith.constant 0.000000e+00 : f32
    %2 = vector.broadcast %cst_1 : f32 to vector<40x32xf32>
    %c0_2 = arith.constant 0 : index
    %c0_3 = arith.constant 0 : index
    %c0_4 = arith.constant 0 : index
    %3 = vector.load %arg1[%c0_2, %c0_3, %c0_4] : memref<5x40x128xf32, #tpu.memory_space<vmem>>, vector<1x40x128xf32>
    %4 = vector.shape_cast %3 : vector<1x40x128xf32> to vector<40x128xf32>
    %cst_5 = arith.constant dense<0.000000e+00> : vector<40x128xf32>
    %5 = tpu.matmul %1, %0, %cst_5 {dimension_numbers = #tpu.dot_dimension_numbers<[1], [0], [0], [1], [0, 0, 1, 1], [], []>} : vector<40x32xf32>, vector<32x128xf32>, vector<40x128xf32> -> vector<40x128xf32>
    %6 = arith.addf %4, %5 : vector<40x128xf32>
    %7 = vector.extract_strided_slice %6 {offsets = [0, 0], sizes = [40, 32], strides = [1, 1]} : vector<40x128xf32> to vector<40x32xf32>
    %8 = arith.negf %7 : vector<40x32xf32>
    %9 = math.exp %8 : vector<40x32xf32>
    %cst_6 = arith.constant 1.000000e+00 : f32
    %10 = vector.broadcast %cst_6 : f32 to vector<40x32xf32>
    %11 = arith.addf %10, %9 : vector<40x32xf32>
    %12 = arith.divf %10, %11 : vector<40x32xf32>
    %13 = vector.extract_strided_slice %6 {offsets = [0, 32], sizes = [40, 32], strides = [1, 1]} : vector<40x128xf32> to vector<40x32xf32>
    %14 = arith.negf %13 : vector<40x32xf32>
    %15 = math.exp %14 : vector<40x32xf32>
    %cst_7 = arith.constant 1.000000e+00 : f32
    %16 = vector.broadcast %cst_7 : f32 to vector<40x32xf32>
    %17 = arith.addf %16, %15 : vector<40x32xf32>
    %18 = arith.divf %16, %17 : vector<40x32xf32>
    %19 = vector.extract_strided_slice %6 {offsets = [0, 64], sizes = [40, 32], strides = [1, 1]} : vector<40x128xf32> to vector<40x32xf32>
    %20 = math.tanh %19 : vector<40x32xf32>
    %21 = vector.extract_strided_slice %6 {offsets = [0, 96], sizes = [40, 32], strides = [1, 1]} : vector<40x128xf32> to vector<40x32xf32>
    %22 = arith.negf %21 : vector<40x32xf32>
    %23 = math.exp %22 : vector<40x32xf32>
    %cst_8 = arith.constant 1.000000e+00 : f32
    %24 = vector.broadcast %cst_8 : f32 to vector<40x32xf32>
    %25 = arith.addf %24, %23 : vector<40x32xf32>
    %26 = arith.divf %24, %25 : vector<40x32xf32>
    %27 = arith.mulf %18, %2 : vector<40x32xf32>
    %28 = arith.mulf %12, %20 : vector<40x32xf32>
    %29 = arith.addf %27, %28 : vector<40x32xf32>
    %30 = math.tanh %29 : vector<40x32xf32>
    %31 = arith.mulf %26, %30 : vector<40x32xf32>
    %c0_9 = arith.constant 0 : index
    %c0_10 = arith.constant 0 : index
    %c0_11 = arith.constant 0 : index
    %32 = vector.load %arg3[%c0_9, %c0_10, %c0_11] : memref<5x40x32xf32, #tpu.memory_space<vmem>>, vector<1x40x32xf32>
    %33 = vector.shape_cast %32 : vector<1x40x32xf32> to vector<40x32xf32>
    %34 = vector.shape_cast %31 : vector<40x32xf32> to vector<1x40x32xf32>
    tpu.vector_store %arg3[%c0_9, %c0_10, %c0_11], %34 {strides = array<i32>} : memref<5x40x32xf32, #tpu.memory_space<vmem>>, vector<1x40x32xf32>,
    %c1 = arith.constant 1 : index
    %c0_12 = arith.constant 0 : index
    %c0_13 = arith.constant 0 : index
    %35 = vector.load %arg1[%c1, %c0_12, %c0_13] : memref<5x40x128xf32, #tpu.memory_space<vmem>>, vector<1x40x128xf32>
    %36 = vector.shape_cast %35 : vector<1x40x128xf32> to vector<40x128xf32>
    %cst_14 = arith.constant dense<0.000000e+00> : vector<40x128xf32>
    %37 = tpu.matmul %31, %0, %cst_14 {dimension_numbers = #tpu.dot_dimension_numbers<[1], [0], [0], [1], [0, 0, 1, 1], [], []>} : vector<40x32xf32>, vector<32x128xf32>, vector<40x128xf32> -> vector<40x128xf32>
    %38 = arith.addf %36, %37 : vector<40x128xf32>
    %39 = vector.extract_strided_slice %38 {offsets = [0, 0], sizes = [40, 32], strides = [1, 1]} : vector<40x128xf32> to vector<40x32xf32>
    %40 = arith.negf %39 : vector<40x32xf32>
    %41 = math.exp %40 : vector<40x32xf32>
    %cst_15 = arith.constant 1.000000e+00 : f32
    %42 = vector.broadcast %cst_15 : f32 to vector<40x32xf32>
    %43 = arith.addf %42, %41 : vector<40x32xf32>
    %44 = arith.divf %42, %43 : vector<40x32xf32>
    %45 = vector.extract_strided_slice %38 {offsets = [0, 32], sizes = [40, 32], strides = [1, 1]} : vector<40x128xf32> to vector<40x32xf32>
    %46 = arith.negf %45 : vector<40x32xf32>
    %47 = math.exp %46 : vector<40x32xf32>
    %cst_16 = arith.constant 1.000000e+00 : f32
    %48 = vector.broadcast %cst_16 : f32 to vector<40x32xf32>
    %49 = arith.addf %48, %47 : vector<40x32xf32>
    %50 = arith.divf %48, %49 : vector<40x32xf32>
    %51 = vector.extract_strided_slice %38 {offsets = [0, 64], sizes = [40, 32], strides = [1, 1]} : vector<40x128xf32> to vector<40x32xf32>
    %52 = math.tanh %51 : vector<40x32xf32>
    %53 = vector.extract_strided_slice %38 {offsets = [0, 96], sizes = [40, 32], strides = [1, 1]} : vector<40x128xf32> to vector<40x32xf32>
    %54 = arith.negf %53 : vector<40x32xf32>
    %55 = math.exp %54 : vector<40x32xf32>
    %cst_17 = arith.constant 1.000000e+00 : f32
    %56 = vector.broadcast %cst_17 : f32 to vector<40x32xf32>
    %57 = arith.addf %56, %55 : vector<40x32xf32>
    %58 = arith.divf %56, %57 : vector<40x32xf32>
    %59 = arith.mulf %50, %29 : vector<40x32xf32>
    %60 = arith.mulf %44, %52 : vector<40x32xf32>
    %61 = arith.addf %59, %60 : vector<40x32xf32>
    %62 = math.tanh %61 : vector<40x32xf32>
    %63 = arith.mulf %58, %62 : vector<40x32xf32>
    %c1_18 = arith.constant 1 : index
    %c0_19 = arith.constant 0 : index
    %c0_20 = arith.constant 0 : index
    %64 = vector.load %arg3[%c1_18, %c0_19, %c0_20] : memref<5x40x32xf32, #tpu.memory_space<vmem>>, vector<1x40x32xf32>
    %65 = vector.shape_cast %64 : vector<1x40x32xf32> to vector<40x32xf32>
    %66 = vector.shape_cast %63 : vector<40x32xf32> to vector<1x40x32xf32>
    tpu.vector_store %arg3[%c1_18, %c0_19, %c0_20], %66 {strides = array<i32>} : memref<5x40x32xf32, #tpu.memory_space<vmem>>, vector<1x40x32xf32>,
    %c2 = arith.constant 2 : index
    %c0_21 = arith.constant 0 : index
    %c0_22 = arith.constant 0 : index
    %67 = vector.load %arg1[%c2, %c0_21, %c0_22] : memref<5x40x128xf32, #tpu.memory_space<vmem>>, vector<1x40x128xf32>
    %68 = vector.shape_cast %67 : vector<1x40x128xf32> to vector<40x128xf32>
    %cst_23 = arith.constant dense<0.000000e+00> : vector<40x128xf32>
    %69 = tpu.matmul %63, %0, %cst_23 {dimension_numbers = #tpu.dot_dimension_numbers<[1], [0], [0], [1], [0, 0, 1, 1], [], []>} : vector<40x32xf32>, vector<32x128xf32>, vector<40x128xf32> -> vector<40x128xf32>
    %70 = arith.addf %68, %69 : vector<40x128xf32>
    %71 = vector.extract_strided_slice %70 {offsets = [0, 0], sizes = [40, 32], strides = [1, 1]} : vector<40x128xf32> to vector<40x32xf32>
    %72 = arith.negf %71 : vector<40x32xf32>
    %73 = math.exp %72 : vector<40x32xf32>
    %cst_24 = arith.constant 1.000000e+00 : f32
    %74 = vector.broadcast %cst_24 : f32 to vector<40x32xf32>
    %75 = arith.addf %74, %73 : vector<40x32xf32>
    %76 = arith.divf %74, %75 : vector<40x32xf32>
    %77 = vector.extract_strided_slice %70 {offsets = [0, 32], sizes = [40, 32], strides = [1, 1]} : vector<40x128xf32> to vector<40x32xf32>
    %78 = arith.negf %77 : vector<40x32xf32>
    %79 = math.exp %78 : vector<40x32xf32>
    %cst_25 = arith.constant 1.000000e+00 : f32
    %80 = vector.broadcast %cst_25 : f32 to vector<40x32xf32>
    %81 = arith.addf %80, %79 : vector<40x32xf32>
    %82 = arith.divf %80, %81 : vector<40x32xf32>
    %83 = vector.extract_strided_slice %70 {offsets = [0, 64], sizes = [40, 32], strides = [1, 1]} : vector<40x128xf32> to vector<40x32xf32>
    %84 = math.tanh %83 : vector<40x32xf32>
    %85 = vector.extract_strided_slice %70 {offsets = [0, 96], sizes = [40, 32], strides = [1, 1]} : vector<40x128xf32> to vector<40x32xf32>
    %86 = arith.negf %85 : vector<40x32xf32>
    %87 = math.exp %86 : vector<40x32xf32>
    %cst_26 = arith.constant 1.000000e+00 : f32
    %88 = vector.broadcast %cst_26 : f32 to vector<40x32xf32>
    %89 = arith.addf %88, %87 : vector<40x32xf32>
    %90 = arith.divf %88, %89 : vector<40x32xf32>
    %91 = arith.mulf %82, %61 : vector<40x32xf32>
    %92 = arith.mulf %76, %84 : vector<40x32xf32>
    %93 = arith.addf %91, %92 : vector<40x32xf32>
    %94 = math.tanh %93 : vector<40x32xf32>
    %95 = arith.mulf %90, %94 : vector<40x32xf32>
    %c2_27 = arith.constant 2 : index
    %c0_28 = arith.constant 0 : index
    %c0_29 = arith.constant 0 : index
    %96 = vector.load %arg3[%c2_27, %c0_28, %c0_29] : memref<5x40x32xf32, #tpu.memory_space<vmem>>, vector<1x40x32xf32>
    %97 = vector.shape_cast %96 : vector<1x40x32xf32> to vector<40x32xf32>
    %98 = vector.shape_cast %95 : vector<40x32xf32> to vector<1x40x32xf32>
    tpu.vector_store %arg3[%c2_27, %c0_28, %c0_29], %98 {strides = array<i32>} : memref<5x40x32xf32, #tpu.memory_space<vmem>>, vector<1x40x32xf32>,
    %c3 = arith.constant 3 : index
    %c0_30 = arith.constant 0 : index
    %c0_31 = arith.constant 0 : index
    %99 = vector.load %arg1[%c3, %c0_30, %c0_31] : memref<5x40x128xf32, #tpu.memory_space<vmem>>, vector<1x40x128xf32>
    %100 = vector.shape_cast %99 : vector<1x40x128xf32> to vector<40x128xf32>
    %cst_32 = arith.constant dense<0.000000e+00> : vector<40x128xf32>
    %101 = tpu.matmul %95, %0, %cst_32 {dimension_numbers = #tpu.dot_dimension_numbers<[1], [0], [0], [1], [0, 0, 1, 1], [], []>} : vector<40x32xf32>, vector<32x128xf32>, vector<40x128xf32> -> vector<40x128xf32>
    %102 = arith.addf %100, %101 : vector<40x128xf32>
    %103 = vector.extract_strided_slice %102 {offsets = [0, 0], sizes = [40, 32], strides = [1, 1]} : vector<40x128xf32> to vector<40x32xf32>
    %104 = arith.negf %103 : vector<40x32xf32>
    %105 = math.exp %104 : vector<40x32xf32>
    %cst_33 = arith.constant 1.000000e+00 : f32
    %106 = vector.broadcast %cst_33 : f32 to vector<40x32xf32>
    %107 = arith.addf %106, %105 : vector<40x32xf32>
    %108 = arith.divf %106, %107 : vector<40x32xf32>
    %109 = vector.extract_strided_slice %102 {offsets = [0, 32], sizes = [40, 32], strides = [1, 1]} : vector<40x128xf32> to vector<40x32xf32>
    %110 = arith.negf %109 : vector<40x32xf32>
    %111 = math.exp %110 : vector<40x32xf32>
    %cst_34 = arith.constant 1.000000e+00 : f32
    %112 = vector.broadcast %cst_34 : f32 to vector<40x32xf32>
    %113 = arith.addf %112, %111 : vector<40x32xf32>
    %114 = arith.divf %112, %113 : vector<40x32xf32>
    %115 = vector.extract_strided_slice %102 {offsets = [0, 64], sizes = [40, 32], strides = [1, 1]} : vector<40x128xf32> to vector<40x32xf32>
    %116 = math.tanh %115 : vector<40x32xf32>
    %117 = vector.extract_strided_slice %102 {offsets = [0, 96], sizes = [40, 32], strides = [1, 1]} : vector<40x128xf32> to vector<40x32xf32>
    %118 = arith.negf %117 : vector<40x32xf32>
    %119 = math.exp %118 : vector<40x32xf32>
    %cst_35 = arith.constant 1.000000e+00 : f32
    %120 = vector.broadcast %cst_35 : f32 to vector<40x32xf32>
    %121 = arith.addf %120, %119 : vector<40x32xf32>
    %122 = arith.divf %120, %121 : vector<40x32xf32>
    %123 = arith.mulf %114, %93 : vector<40x32xf32>
    %124 = arith.mulf %108, %116 : vector<40x32xf32>
    %125 = arith.addf %123, %124 : vector<40x32xf32>
    %126 = math.tanh %125 : vector<40x32xf32>
    %127 = arith.mulf %122, %126 : vector<40x32xf32>
    %c3_36 = arith.constant 3 : index
    %c0_37 = arith.constant 0 : index
    %c0_38 = arith.constant 0 : index
    %128 = vector.load %arg3[%c3_36, %c0_37, %c0_38] : memref<5x40x32xf32, #tpu.memory_space<vmem>>, vector<1x40x32xf32>
    %129 = vector.shape_cast %128 : vector<1x40x32xf32> to vector<40x32xf32>
    %130 = vector.shape_cast %127 : vector<40x32xf32> to vector<1x40x32xf32>
    tpu.vector_store %arg3[%c3_36, %c0_37, %c0_38], %130 {strides = array<i32>} : memref<5x40x32xf32, #tpu.memory_space<vmem>>, vector<1x40x32xf32>,
    %c4 = arith.constant 4 : index
    %c0_39 = arith.constant 0 : index
    %c0_40 = arith.constant 0 : index
    %131 = vector.load %arg1[%c4, %c0_39, %c0_40] : memref<5x40x128xf32, #tpu.memory_space<vmem>>, vector<1x40x128xf32>
    %132 = vector.shape_cast %131 : vector<1x40x128xf32> to vector<40x128xf32>
    %cst_41 = arith.constant dense<0.000000e+00> : vector<40x128xf32>
    %133 = tpu.matmul %127, %0, %cst_41 {dimension_numbers = #tpu.dot_dimension_numbers<[1], [0], [0], [1], [0, 0, 1, 1], [], []>} : vector<40x32xf32>, vector<32x128xf32>, vector<40x128xf32> -> vector<40x128xf32>
    %134 = arith.addf %132, %133 : vector<40x128xf32>
    %135 = vector.extract_strided_slice %134 {offsets = [0, 0], sizes = [40, 32], strides = [1, 1]} : vector<40x128xf32> to vector<40x32xf32>
    %136 = arith.negf %135 : vector<40x32xf32>
    %137 = math.exp %136 : vector<40x32xf32>
    %cst_42 = arith.constant 1.000000e+00 : f32
    %138 = vector.broadcast %cst_42 : f32 to vector<40x32xf32>
    %139 = arith.addf %138, %137 : vector<40x32xf32>
    %140 = arith.divf %138, %139 : vector<40x32xf32>
    %141 = vector.extract_strided_slice %134 {offsets = [0, 32], sizes = [40, 32], strides = [1, 1]} : vector<40x128xf32> to vector<40x32xf32>
    %142 = arith.negf %141 : vector<40x32xf32>
    %143 = math.exp %142 : vector<40x32xf32>
    %cst_43 = arith.constant 1.000000e+00 : f32
    %144 = vector.broadcast %cst_43 : f32 to vector<40x32xf32>
    %145 = arith.addf %144, %143 : vector<40x32xf32>
    %146 = arith.divf %144, %145 : vector<40x32xf32>
    %147 = vector.extract_strided_slice %134 {offsets = [0, 64], sizes = [40, 32], strides = [1, 1]} : vector<40x128xf32> to vector<40x32xf32>
    %148 = math.tanh %147 : vector<40x32xf32>
    %149 = vector.extract_strided_slice %134 {offsets = [0, 96], sizes = [40, 32], strides = [1, 1]} : vector<40x128xf32> to vector<40x32xf32>
    %150 = arith.negf %149 : vector<40x32xf32>
    %151 = math.exp %150 : vector<40x32xf32>
    %cst_44 = arith.constant 1.000000e+00 : f32
    %152 = vector.broadcast %cst_44 : f32 to vector<40x32xf32>
    %153 = arith.addf %152, %151 : vector<40x32xf32>
    %154 = arith.divf %152, %153 : vector<40x32xf32>
    %155 = arith.mulf %146, %125 : vector<40x32xf32>
    %156 = arith.mulf %140, %148 : vector<40x32xf32>
    %157 = arith.addf %155, %156 : vector<40x32xf32>
    %158 = math.tanh %157 : vector<40x32xf32>
    %159 = arith.mulf %154, %158 : vector<40x32xf32>
    %c4_45 = arith.constant 4 : index
    %c0_46 = arith.constant 0 : index
    %c0_47 = arith.constant 0 : index
    %160 = vector.load %arg3[%c4_45, %c0_46, %c0_47] : memref<5x40x32xf32, #tpu.memory_space<vmem>>, vector<1x40x32xf32>
    %161 = vector.shape_cast %160 : vector<1x40x32xf32> to vector<40x32xf32>
    %162 = vector.shape_cast %159 : vector<40x32xf32> to vector<1x40x32xf32>
    tpu.vector_store %arg3[%c4_45, %c0_46, %c0_47], %162 {strides = array<i32>} : memref<5x40x32xf32, #tpu.memory_space<vmem>>, vector<1x40x32xf32>,
    return
  }
  func.func @transform_0(%arg0: i32) -> (i32, i32, i32) {
    %c0_i32 = arith.constant 0 : i32
    %c0_i32_0 = arith.constant 0 : i32
    %c0_i32_1 = arith.constant 0 : i32
    %c0_i32_2 = arith.constant 0 : i32
    return %c0_i32, %c0_i32_0, %c0_i32_1 : i32, i32, i32
  }
  func.func @transform_1(%arg0: i32) -> (i32, i32) {
    %c0_i32 = arith.constant 0 : i32
    %c0_i32_0 = arith.constant 0 : i32
    %c0_i32_1 = arith.constant 0 : i32
    return %c0_i32, %c0_i32_0 : i32, i32
  }
  func.func @transform_2(%arg0: i32) -> (i32, i32, i32) {
    %c0_i32 = arith.constant 0 : i32
    %c0_i32_0 = arith.constant 0 : i32
    %c0_i32_1 = arith.constant 0 : i32
    %c0_i32_2 = arith.constant 0 : i32
    return %c0_i32, %c0_i32_0, %c0_i32_1 : i32, i32, i32
  }
}

module attributes {stable_mosaic.version = 11 : i64} {
  func.func @_linear_kernel(%arg0: i32, %arg1: memref<200x32xf32, #tpu.memory_space<vmem>>, %arg2: memref<32x16xf32, #tpu.memory_space<vmem>>, %arg3: memref<1x16xf32, #tpu.memory_space<vmem>>, %arg4: memref<200x16xf32, #tpu.memory_space<vmem>>) attributes {dimension_semantics = [#tpu.dimension_semantics<parallel>], iteration_bounds = array<i64: 1>, scalar_prefetch = 0 : i64, scratch_operands = 0 : i64, tpu.core_type = #tpu.core_type<tc>, window_params = [{transform_indices = @transform_0, window_bounds = array<i64: 200, 32>}, {pipeline_mode = #tpu.pipeline_mode<synchronous>, transform_indices = @transform_1, window_bounds = array<i64: 32, 16>}, {pipeline_mode = #tpu.pipeline_mode<synchronous>, transform_indices = @transform_2, window_bounds = array<i64: 1, 16>}, {transform_indices = @transform_3, window_bounds = array<i64: 200, 16>}]} {
    %c0 = arith.constant 0 : index
    %c0_0 = arith.constant 0 : index
    %0 = vector.load %arg1[%c0, %c0_0] : memref<200x32xf32, #tpu.memory_space<vmem>>, vector<200x32xf32>
    %c0_1 = arith.constant 0 : index
    %c0_2 = arith.constant 0 : index
    %1 = vector.load %arg2[%c0_1, %c0_2] : memref<32x16xf32, #tpu.memory_space<vmem>>, vector<32x16xf32>
    %cst = arith.constant dense<0.000000e+00> : vector<200x16xf32>
    %2 = tpu.matmul %0, %1, %cst {dimension_numbers = #tpu.dot_dimension_numbers<[1], [0], [0], [1], [0, 0, 1, 1], [], []>} : vector<200x32xf32>, vector<32x16xf32>, vector<200x16xf32> -> vector<200x16xf32>
    %c0_3 = arith.constant 0 : index
    %c0_4 = arith.constant 0 : index
    %3 = vector.load %arg3[%c0_3, %c0_4] : memref<1x16xf32, #tpu.memory_space<vmem>>, vector<1x16xf32>
    %4 = vector.broadcast %3 : vector<1x16xf32> to vector<200x16xf32>
    %5 = arith.addf %2, %4 : vector<200x16xf32>
    %c0_5 = arith.constant 0 : index
    %c0_6 = arith.constant 0 : index
    %6 = vector.load %arg4[%c0_5, %c0_6] : memref<200x16xf32, #tpu.memory_space<vmem>>, vector<200x16xf32>
    tpu.vector_store %arg4[%c0_5, %c0_6], %5 {strides = array<i32>} : memref<200x16xf32, #tpu.memory_space<vmem>>, vector<200x16xf32>,
    return
  }
  func.func @transform_0(%arg0: i32) -> (i32, i32) {
    %c0_i32 = arith.constant 0 : i32
    %c0_i32_0 = arith.constant 0 : i32
    return %arg0, %c0_i32 : i32, i32
  }
  func.func @transform_1(%arg0: i32) -> (i32, i32) {
    %c0_i32 = arith.constant 0 : i32
    %c0_i32_0 = arith.constant 0 : i32
    %c0_i32_1 = arith.constant 0 : i32
    return %c0_i32, %c0_i32_0 : i32, i32
  }
  func.func @transform_2(%arg0: i32) -> (i32, i32) {
    %c0_i32 = arith.constant 0 : i32
    %c0_i32_0 = arith.constant 0 : i32
    %c0_i32_1 = arith.constant 0 : i32
    return %c0_i32, %c0_i32_0 : i32, i32
  }
  func.func @transform_3(%arg0: i32) -> (i32, i32) {
    %c0_i32 = arith.constant 0 : i32
    %c0_i32_0 = arith.constant 0 : i32
    return %arg0, %c0_i32 : i32, i32
  }
}

module attributes {stable_mosaic.version = 11 : i64} {
  func.func @_gn_kernel(%arg0: i32, %arg1: memref<40x80xf32, #tpu.memory_space<vmem>>, %arg2: memref<1x80xf32, #tpu.memory_space<vmem>>, %arg3: memref<1x80xf32, #tpu.memory_space<vmem>>, %arg4: memref<40x80xf32, #tpu.memory_space<vmem>>, %arg5: memref<40x80xf32, #tpu.memory_space<vmem>>) attributes {dimension_semantics = [#tpu.dimension_semantics<parallel>], iteration_bounds = array<i64: 1>, scalar_prefetch = 0 : i64, scratch_operands = 0 : i64, tpu.core_type = #tpu.core_type<tc>, window_params = [{transform_indices = @transform_0, window_bounds = array<i64: 40, 80>}, {pipeline_mode = #tpu.pipeline_mode<synchronous>, transform_indices = @transform_1, window_bounds = array<i64: 1, 80>}, {pipeline_mode = #tpu.pipeline_mode<synchronous>, transform_indices = @transform_2, window_bounds = array<i64: 1, 80>}, {transform_indices = @transform_3, window_bounds = array<i64: 40, 80>}, {transform_indices = @transform_4, window_bounds = array<i64: 40, 80>}]} {
    %c0 = arith.constant 0 : index
    %c0_0 = arith.constant 0 : index
    %0 = vector.load %arg1[%c0, %c0_0] : memref<40x80xf32, #tpu.memory_space<vmem>>, vector<40x80xf32>
    %cst = arith.constant dense<0.000000e+00> : vector<40xf32>
    %1 = vector.multi_reduction <add>, %0, %cst [1] : vector<40x80xf32> to vector<40xf32>
    %2 = vector.shape_cast %1 : vector<40xf32> to vector<40x1xf32>
    %cst_1 = arith.constant 8.000000e+01 : f32
    %3 = vector.broadcast %cst_1 : f32 to vector<40x1xf32>
    %4 = arith.divf %2, %3 : vector<40x1xf32>
    %5 = vector.broadcast %4 : vector<40x1xf32> to vector<40x80xf32>
    %6 = arith.subf %0, %5 : vector<40x80xf32>
    %7 = arith.mulf %6, %6 : vector<40x80xf32>
    %cst_2 = arith.constant dense<0.000000e+00> : vector<40xf32>
    %8 = vector.multi_reduction <add>, %7, %cst_2 [1] : vector<40x80xf32> to vector<40xf32>
    %9 = vector.shape_cast %8 : vector<40xf32> to vector<40x1xf32>
    %cst_3 = arith.constant 8.000000e+01 : f32
    %10 = vector.broadcast %cst_3 : f32 to vector<40x1xf32>
    %11 = arith.divf %9, %10 : vector<40x1xf32>
    %12 = vector.broadcast %4 : vector<40x1xf32> to vector<40x80xf32>
    %13 = arith.subf %0, %12 : vector<40x80xf32>
    %cst_4 = arith.constant 9.99999993E-9 : f32
    %14 = vector.broadcast %cst_4 : f32 to vector<40x1xf32>
    %15 = arith.addf %11, %14 : vector<40x1xf32>
    %16 = math.rsqrt %15 : vector<40x1xf32>
    %17 = vector.broadcast %16 : vector<40x1xf32> to vector<40x80xf32>
    %18 = arith.mulf %13, %17 : vector<40x80xf32>
    %c0_5 = arith.constant 0 : index
    %c0_6 = arith.constant 0 : index
    %19 = vector.load %arg2[%c0_5, %c0_6] : memref<1x80xf32, #tpu.memory_space<vmem>>, vector<1x80xf32>
    %20 = vector.broadcast %19 : vector<1x80xf32> to vector<40x80xf32>
    %21 = arith.mulf %18, %20 : vector<40x80xf32>
    %c0_7 = arith.constant 0 : index
    %c0_8 = arith.constant 0 : index
    %22 = vector.load %arg3[%c0_7, %c0_8] : memref<1x80xf32, #tpu.memory_space<vmem>>, vector<1x80xf32>
    %23 = vector.broadcast %22 : vector<1x80xf32> to vector<40x80xf32>
    %24 = arith.addf %21, %23 : vector<40x80xf32>
    %c0_9 = arith.constant 0 : index
    %c0_10 = arith.constant 0 : index
    %25 = vector.load %arg4[%c0_9, %c0_10] : memref<40x80xf32, #tpu.memory_space<vmem>>, vector<40x80xf32>
    %26 = arith.addf %24, %25 : vector<40x80xf32>
    %c0_11 = arith.constant 0 : index
    %c0_12 = arith.constant 0 : index
    %27 = vector.load %arg5[%c0_11, %c0_12] : memref<40x80xf32, #tpu.memory_space<vmem>>, vector<40x80xf32>
    tpu.vector_store %arg5[%c0_11, %c0_12], %26 {strides = array<i32>} : memref<40x80xf32, #tpu.memory_space<vmem>>, vector<40x80xf32>,
    return
  }
  func.func @transform_0(%arg0: i32) -> (i32, i32) {
    %c0_i32 = arith.constant 0 : i32
    %c0_i32_0 = arith.constant 0 : i32
    return %arg0, %c0_i32 : i32, i32
  }
  func.func @transform_1(%arg0: i32) -> (i32, i32) {
    %c0_i32 = arith.constant 0 : i32
    %c0_i32_0 = arith.constant 0 : i32
    %c0_i32_1 = arith.constant 0 : i32
    return %c0_i32, %c0_i32_0 : i32, i32
  }
  func.func @transform_2(%arg0: i32) -> (i32, i32) {
    %c0_i32 = arith.constant 0 : i32
    %c0_i32_0 = arith.constant 0 : i32
    %c0_i32_1 = arith.constant 0 : i32
    return %c0_i32, %c0_i32_0 : i32, i32
  }
  func.func @transform_3(%arg0: i32) -> (i32, i32) {
    %c0_i32 = arith.constant 0 : i32
    %c0_i32_0 = arith.constant 0 : i32
    return %arg0, %c0_i32 : i32, i32
  }
  func.func @transform_4(%arg0: i32) -> (i32, i32) {
    %c0_i32 = arith.constant 0 : i32
    %c0_i32_0 = arith.constant 0 : i32
    return %arg0, %c0_i32 : i32, i32
  }
}

module attributes {stable_mosaic.version = 11 : i64} {
  func.func @_ncc_kernel(%arg0: i32, %arg1: memref<20x10x16xf32, #tpu.memory_space<vmem>>, %arg2: memref<20x5x16xf32, #tpu.memory_space<vmem>>, %arg3: memref<20x10x5xf32, #tpu.memory_space<vmem>>) attributes {dimension_semantics = [#tpu.dimension_semantics<parallel>], iteration_bounds = array<i64: 1>, scalar_prefetch = 0 : i64, scratch_operands = 0 : i64, tpu.core_type = #tpu.core_type<tc>, window_params = [{transform_indices = @transform_0, window_bounds = array<i64: 20, 10, 16>}, {transform_indices = @transform_1, window_bounds = array<i64: 20, 5, 16>}, {transform_indices = @transform_2, window_bounds = array<i64: 20, 10, 5>}]} {
    %c0 = arith.constant 0 : index
    %c0_0 = arith.constant 0 : index
    %c0_1 = arith.constant 0 : index
    %0 = vector.load %arg1[%c0, %c0_0, %c0_1] : memref<20x10x16xf32, #tpu.memory_space<vmem>>, vector<20x10x16xf32>
    %c0_2 = arith.constant 0 : index
    %c0_3 = arith.constant 0 : index
    %c0_4 = arith.constant 0 : index
    %1 = vector.load %arg2[%c0_2, %c0_3, %c0_4] : memref<20x5x16xf32, #tpu.memory_space<vmem>>, vector<20x5x16xf32>
    %2 = arith.mulf %0, %0 : vector<20x10x16xf32>
    %cst = arith.constant dense<0.000000e+00> : vector<20x10xf32>
    %3 = vector.multi_reduction <add>, %2, %cst [2] : vector<20x10x16xf32> to vector<20x10xf32>
    %4 = vector.shape_cast %3 : vector<20x10xf32> to vector<20x10x1xf32>
    %cst_5 = arith.constant 9.99999993E-9 : f32
    %5 = vector.broadcast %cst_5 : f32 to vector<20x10x1xf32>
    %6 = arith.addf %4, %5 : vector<20x10x1xf32>
    %7 = math.rsqrt %6 : vector<20x10x1xf32>
    %8 = vector.broadcast %7 : vector<20x10x1xf32> to vector<20x10x16xf32>
    %9 = arith.mulf %0, %8 : vector<20x10x16xf32>
    %10 = arith.mulf %1, %1 : vector<20x5x16xf32>
    %cst_6 = arith.constant dense<0.000000e+00> : vector<20x5xf32>
    %11 = vector.multi_reduction <add>, %10, %cst_6 [2] : vector<20x5x16xf32> to vector<20x5xf32>
    %12 = vector.shape_cast %11 : vector<20x5xf32> to vector<20x5x1xf32>
    %cst_7 = arith.constant 9.99999993E-9 : f32
    %13 = vector.broadcast %cst_7 : f32 to vector<20x5x1xf32>
    %14 = arith.addf %12, %13 : vector<20x5x1xf32>
    %15 = math.rsqrt %14 : vector<20x5x1xf32>
    %16 = vector.broadcast %15 : vector<20x5x1xf32> to vector<20x5x16xf32>
    %17 = arith.mulf %1, %16 : vector<20x5x16xf32>
    "tpu.trace_start"() <{level = 10 : i32, message = "bme,bce->bmc"}> : () -> ()
    %cst_8 = arith.constant dense<0.000000e+00> : vector<20x10x5xf32>
    %18 = tpu.matmul %9, %17, %cst_8 {dimension_numbers = #tpu.dot_dimension_numbers<[2], [2], [1], [1], [0, 0, 0, 1, 1, 1], [0], [0]>} : vector<20x10x16xf32>, vector<20x5x16xf32>, vector<20x10x5xf32> -> vector<20x10x5xf32>
    "tpu.trace_stop"() : () -> ()
    %c0_9 = arith.constant 0 : index
    %c0_10 = arith.constant 0 : index
    %c0_11 = arith.constant 0 : index
    %19 = vector.load %arg3[%c0_9, %c0_10, %c0_11] : memref<20x10x5xf32, #tpu.memory_space<vmem>>, vector<20x10x5xf32>
    tpu.vector_store %arg3[%c0_9, %c0_10, %c0_11], %18 {strides = array<i32>} : memref<20x10x5xf32, #tpu.memory_space<vmem>>, vector<20x10x5xf32>,
    return
  }
  func.func @transform_0(%arg0: i32) -> (i32, i32, i32) {
    %c0_i32 = arith.constant 0 : i32
    %c0_i32_0 = arith.constant 0 : i32
    %c0_i32_1 = arith.constant 0 : i32
    return %arg0, %c0_i32, %c0_i32_0 : i32, i32, i32
  }
  func.func @transform_1(%arg0: i32) -> (i32, i32, i32) {
    %c0_i32 = arith.constant 0 : i32
    %c0_i32_0 = arith.constant 0 : i32
    %c0_i32_1 = arith.constant 0 : i32
    return %arg0, %c0_i32, %c0_i32_0 : i32, i32, i32
  }
  func.func @transform_2(%arg0: i32) -> (i32, i32, i32) {
    %c0_i32 = arith.constant 0 : i32
    %c0_i32_0 = arith.constant 0 : i32
    %c0_i32_1 = arith.constant 0 : i32
    return %arg0, %c0_i32, %c0_i32_0 : i32, i32, i32
  }
}

module attributes {stable_mosaic.version = 11 : i64} {
  func.func @_linear_kernel(%arg0: i32, %arg1: memref<40x41xf32, #tpu.memory_space<vmem>>, %arg2: memref<41x16xf32, #tpu.memory_space<vmem>>, %arg3: memref<1x16xf32, #tpu.memory_space<vmem>>, %arg4: memref<40x16xf32, #tpu.memory_space<vmem>>) attributes {dimension_semantics = [#tpu.dimension_semantics<parallel>], iteration_bounds = array<i64: 1>, scalar_prefetch = 0 : i64, scratch_operands = 0 : i64, tpu.core_type = #tpu.core_type<tc>, window_params = [{transform_indices = @transform_0, window_bounds = array<i64: 40, 41>}, {pipeline_mode = #tpu.pipeline_mode<synchronous>, transform_indices = @transform_1, window_bounds = array<i64: 41, 16>}, {pipeline_mode = #tpu.pipeline_mode<synchronous>, transform_indices = @transform_2, window_bounds = array<i64: 1, 16>}, {transform_indices = @transform_3, window_bounds = array<i64: 40, 16>}]} {
    %c0 = arith.constant 0 : index
    %c0_0 = arith.constant 0 : index
    %0 = vector.load %arg1[%c0, %c0_0] : memref<40x41xf32, #tpu.memory_space<vmem>>, vector<40x41xf32>
    %c0_1 = arith.constant 0 : index
    %c0_2 = arith.constant 0 : index
    %1 = vector.load %arg2[%c0_1, %c0_2] : memref<41x16xf32, #tpu.memory_space<vmem>>, vector<41x16xf32>
    %cst = arith.constant dense<0.000000e+00> : vector<40x16xf32>
    %2 = tpu.matmul %0, %1, %cst {dimension_numbers = #tpu.dot_dimension_numbers<[1], [0], [0], [1], [0, 0, 1, 1], [], []>} : vector<40x41xf32>, vector<41x16xf32>, vector<40x16xf32> -> vector<40x16xf32>
    %c0_3 = arith.constant 0 : index
    %c0_4 = arith.constant 0 : index
    %3 = vector.load %arg3[%c0_3, %c0_4] : memref<1x16xf32, #tpu.memory_space<vmem>>, vector<1x16xf32>
    %4 = vector.broadcast %3 : vector<1x16xf32> to vector<40x16xf32>
    %5 = arith.addf %2, %4 : vector<40x16xf32>
    %c0_5 = arith.constant 0 : index
    %c0_6 = arith.constant 0 : index
    %6 = vector.load %arg4[%c0_5, %c0_6] : memref<40x16xf32, #tpu.memory_space<vmem>>, vector<40x16xf32>
    tpu.vector_store %arg4[%c0_5, %c0_6], %5 {strides = array<i32>} : memref<40x16xf32, #tpu.memory_space<vmem>>, vector<40x16xf32>,
    return
  }
  func.func @transform_0(%arg0: i32) -> (i32, i32) {
    %c0_i32 = arith.constant 0 : i32
    %c0_i32_0 = arith.constant 0 : i32
    return %arg0, %c0_i32 : i32, i32
  }
  func.func @transform_1(%arg0: i32) -> (i32, i32) {
    %c0_i32 = arith.constant 0 : i32
    %c0_i32_0 = arith.constant 0 : i32
    %c0_i32_1 = arith.constant 0 : i32
    return %c0_i32, %c0_i32_0 : i32, i32
  }
  func.func @transform_2(%arg0: i32) -> (i32, i32) {
    %c0_i32 = arith.constant 0 : i32
    %c0_i32_0 = arith.constant 0 : i32
    %c0_i32_1 = arith.constant 0 : i32
    return %c0_i32, %c0_i32_0 : i32, i32
  }
  func.func @transform_3(%arg0: i32) -> (i32, i32) {
    %c0_i32 = arith.constant 0 : i32
    %c0_i32_0 = arith.constant 0 : i32
    return %arg0, %c0_i32 : i32, i32
  }
}

module attributes {stable_mosaic.version = 11 : i64} {
  func.func @_linear_kernel(%arg0: i32, %arg1: memref<128x16xf32, #tpu.memory_space<vmem>>, %arg2: memref<16x128xf32, #tpu.memory_space<vmem>>, %arg3: memref<1x128xf32, #tpu.memory_space<vmem>>, %arg4: memref<128x128xf32, #tpu.memory_space<vmem>>) attributes {dimension_semantics = [#tpu.dimension_semantics<parallel>], iteration_bounds = array<i64: 1>, scalar_prefetch = 0 : i64, scratch_operands = 0 : i64, tpu.core_type = #tpu.core_type<tc>, window_params = [{transform_indices = @transform_0, window_bounds = array<i64: 128, 16>}, {pipeline_mode = #tpu.pipeline_mode<synchronous>, transform_indices = @transform_1, window_bounds = array<i64: 16, 128>}, {pipeline_mode = #tpu.pipeline_mode<synchronous>, transform_indices = @transform_2, window_bounds = array<i64: 1, 128>}, {transform_indices = @transform_3, window_bounds = array<i64: 128, 128>}]} {
    %c0 = arith.constant 0 : index
    %c0_0 = arith.constant 0 : index
    %0 = vector.load %arg1[%c0, %c0_0] : memref<128x16xf32, #tpu.memory_space<vmem>>, vector<128x16xf32>
    %c0_1 = arith.constant 0 : index
    %c0_2 = arith.constant 0 : index
    %1 = vector.load %arg2[%c0_1, %c0_2] : memref<16x128xf32, #tpu.memory_space<vmem>>, vector<16x128xf32>
    %cst = arith.constant dense<0.000000e+00> : vector<128x128xf32>
    %2 = tpu.matmul %0, %1, %cst {dimension_numbers = #tpu.dot_dimension_numbers<[1], [0], [0], [1], [0, 0, 1, 1], [], []>} : vector<128x16xf32>, vector<16x128xf32>, vector<128x128xf32> -> vector<128x128xf32>
    %c0_3 = arith.constant 0 : index
    %c0_4 = arith.constant 0 : index
    %3 = vector.load %arg3[%c0_3, %c0_4] : memref<1x128xf32, #tpu.memory_space<vmem>>, vector<1x128xf32>
    %4 = vector.broadcast %3 : vector<1x128xf32> to vector<128x128xf32>
    %5 = arith.addf %2, %4 : vector<128x128xf32>
    %c0_5 = arith.constant 0 : index
    %c0_6 = arith.constant 0 : index
    %6 = vector.load %arg4[%c0_5, %c0_6] : memref<128x128xf32, #tpu.memory_space<vmem>>, vector<128x128xf32>
    tpu.vector_store %arg4[%c0_5, %c0_6], %5 {strides = array<i32>} : memref<128x128xf32, #tpu.memory_space<vmem>>, vector<128x128xf32>,
    return
  }
  func.func @transform_0(%arg0: i32) -> (i32, i32) {
    %c0_i32 = arith.constant 0 : i32
    %c0_i32_0 = arith.constant 0 : i32
    return %arg0, %c0_i32 : i32, i32
  }
  func.func @transform_1(%arg0: i32) -> (i32, i32) {
    %c0_i32 = arith.constant 0 : i32
    %c0_i32_0 = arith.constant 0 : i32
    %c0_i32_1 = arith.constant 0 : i32
    return %c0_i32, %c0_i32_0 : i32, i32
  }
  func.func @transform_2(%arg0: i32) -> (i32, i32) {
    %c0_i32 = arith.constant 0 : i32
    %c0_i32_0 = arith.constant 0 : i32
    %c0_i32_1 = arith.constant 0 : i32
    return %c0_i32, %c0_i32_0 : i32, i32
  }
  func.func @transform_3(%arg0: i32) -> (i32, i32) {
    %c0_i32 = arith.constant 0 : i32
    %c0_i32_0 = arith.constant 0 : i32
    return %arg0, %c0_i32 : i32, i32
  }
}

module attributes {stable_mosaic.version = 11 : i64} {
  func.func @_bilstm_kernel(%arg0: i32, %arg1: memref<4x32x128xf32, #tpu.memory_space<vmem>>, %arg2: memref<32x128xf32, #tpu.memory_space<vmem>>, %arg3: memref<4x32x32xf32, #tpu.memory_space<vmem>>) attributes {dimension_semantics = [#tpu.dimension_semantics<arbitrary>], iteration_bounds = array<i64: 1>, scalar_prefetch = 0 : i64, scratch_operands = 0 : i64, tpu.core_type = #tpu.core_type<tc>, window_params = [{pipeline_mode = #tpu.pipeline_mode<synchronous>, transform_indices = @transform_0, window_bounds = array<i64: 4, 32, 128>}, {pipeline_mode = #tpu.pipeline_mode<synchronous>, transform_indices = @transform_1, window_bounds = array<i64: 32, 128>}, {pipeline_mode = #tpu.pipeline_mode<synchronous>, transform_indices = @transform_2, window_bounds = array<i64: 4, 32, 32>}]} {
    %c0 = arith.constant 0 : index
    %c0_0 = arith.constant 0 : index
    %0 = vector.load %arg2[%c0, %c0_0] : memref<32x128xf32, #tpu.memory_space<vmem>>, vector<32x128xf32>
    %cst = arith.constant 0.000000e+00 : f32
    %1 = vector.broadcast %cst : f32 to vector<32x32xf32>
    %cst_1 = arith.constant 0.000000e+00 : f32
    %2 = vector.broadcast %cst_1 : f32 to vector<32x32xf32>
    %c0_2 = arith.constant 0 : index
    %c0_3 = arith.constant 0 : index
    %c0_4 = arith.constant 0 : index
    %3 = vector.load %arg1[%c0_2, %c0_3, %c0_4] : memref<4x32x128xf32, #tpu.memory_space<vmem>>, vector<1x32x128xf32>
    %4 = vector.shape_cast %3 : vector<1x32x128xf32> to vector<32x128xf32>
    %cst_5 = arith.constant dense<0.000000e+00> : vector<32x128xf32>
    %5 = tpu.matmul %1, %0, %cst_5 {dimension_numbers = #tpu.dot_dimension_numbers<[1], [0], [0], [1], [0, 0, 1, 1], [], []>} : vector<32x32xf32>, vector<32x128xf32>, vector<32x128xf32> -> vector<32x128xf32>
    %6 = arith.addf %4, %5 : vector<32x128xf32>
    %7 = vector.extract_strided_slice %6 {offsets = [0, 0], sizes = [32, 32], strides = [1, 1]} : vector<32x128xf32> to vector<32x32xf32>
    %8 = arith.negf %7 : vector<32x32xf32>
    %9 = math.exp %8 : vector<32x32xf32>
    %cst_6 = arith.constant 1.000000e+00 : f32
    %10 = vector.broadcast %cst_6 : f32 to vector<32x32xf32>
    %11 = arith.addf %10, %9 : vector<32x32xf32>
    %12 = arith.divf %10, %11 : vector<32x32xf32>
    %13 = vector.extract_strided_slice %6 {offsets = [0, 32], sizes = [32, 32], strides = [1, 1]} : vector<32x128xf32> to vector<32x32xf32>
    %14 = arith.negf %13 : vector<32x32xf32>
    %15 = math.exp %14 : vector<32x32xf32>
    %cst_7 = arith.constant 1.000000e+00 : f32
    %16 = vector.broadcast %cst_7 : f32 to vector<32x32xf32>
    %17 = arith.addf %16, %15 : vector<32x32xf32>
    %18 = arith.divf %16, %17 : vector<32x32xf32>
    %19 = vector.extract_strided_slice %6 {offsets = [0, 64], sizes = [32, 32], strides = [1, 1]} : vector<32x128xf32> to vector<32x32xf32>
    %20 = math.tanh %19 : vector<32x32xf32>
    %21 = vector.extract_strided_slice %6 {offsets = [0, 96], sizes = [32, 32], strides = [1, 1]} : vector<32x128xf32> to vector<32x32xf32>
    %22 = arith.negf %21 : vector<32x32xf32>
    %23 = math.exp %22 : vector<32x32xf32>
    %cst_8 = arith.constant 1.000000e+00 : f32
    %24 = vector.broadcast %cst_8 : f32 to vector<32x32xf32>
    %25 = arith.addf %24, %23 : vector<32x32xf32>
    %26 = arith.divf %24, %25 : vector<32x32xf32>
    %27 = arith.mulf %18, %2 : vector<32x32xf32>
    %28 = arith.mulf %12, %20 : vector<32x32xf32>
    %29 = arith.addf %27, %28 : vector<32x32xf32>
    %30 = math.tanh %29 : vector<32x32xf32>
    %31 = arith.mulf %26, %30 : vector<32x32xf32>
    %c0_9 = arith.constant 0 : index
    %c0_10 = arith.constant 0 : index
    %c0_11 = arith.constant 0 : index
    %32 = vector.load %arg3[%c0_9, %c0_10, %c0_11] : memref<4x32x32xf32, #tpu.memory_space<vmem>>, vector<1x32x32xf32>
    %33 = vector.shape_cast %32 : vector<1x32x32xf32> to vector<32x32xf32>
    %34 = vector.shape_cast %31 : vector<32x32xf32> to vector<1x32x32xf32>
    tpu.vector_store %arg3[%c0_9, %c0_10, %c0_11], %34 {strides = array<i32>} : memref<4x32x32xf32, #tpu.memory_space<vmem>>, vector<1x32x32xf32>,
    %c1 = arith.constant 1 : index
    %c0_12 = arith.constant 0 : index
    %c0_13 = arith.constant 0 : index
    %35 = vector.load %arg1[%c1, %c0_12, %c0_13] : memref<4x32x128xf32, #tpu.memory_space<vmem>>, vector<1x32x128xf32>
    %36 = vector.shape_cast %35 : vector<1x32x128xf32> to vector<32x128xf32>
    %cst_14 = arith.constant dense<0.000000e+00> : vector<32x128xf32>
    %37 = tpu.matmul %31, %0, %cst_14 {dimension_numbers = #tpu.dot_dimension_numbers<[1], [0], [0], [1], [0, 0, 1, 1], [], []>} : vector<32x32xf32>, vector<32x128xf32>, vector<32x128xf32> -> vector<32x128xf32>
    %38 = arith.addf %36, %37 : vector<32x128xf32>
    %39 = vector.extract_strided_slice %38 {offsets = [0, 0], sizes = [32, 32], strides = [1, 1]} : vector<32x128xf32> to vector<32x32xf32>
    %40 = arith.negf %39 : vector<32x32xf32>
    %41 = math.exp %40 : vector<32x32xf32>
    %cst_15 = arith.constant 1.000000e+00 : f32
    %42 = vector.broadcast %cst_15 : f32 to vector<32x32xf32>
    %43 = arith.addf %42, %41 : vector<32x32xf32>
    %44 = arith.divf %42, %43 : vector<32x32xf32>
    %45 = vector.extract_strided_slice %38 {offsets = [0, 32], sizes = [32, 32], strides = [1, 1]} : vector<32x128xf32> to vector<32x32xf32>
    %46 = arith.negf %45 : vector<32x32xf32>
    %47 = math.exp %46 : vector<32x32xf32>
    %cst_16 = arith.constant 1.000000e+00 : f32
    %48 = vector.broadcast %cst_16 : f32 to vector<32x32xf32>
    %49 = arith.addf %48, %47 : vector<32x32xf32>
    %50 = arith.divf %48, %49 : vector<32x32xf32>
    %51 = vector.extract_strided_slice %38 {offsets = [0, 64], sizes = [32, 32], strides = [1, 1]} : vector<32x128xf32> to vector<32x32xf32>
    %52 = math.tanh %51 : vector<32x32xf32>
    %53 = vector.extract_strided_slice %38 {offsets = [0, 96], sizes = [32, 32], strides = [1, 1]} : vector<32x128xf32> to vector<32x32xf32>
    %54 = arith.negf %53 : vector<32x32xf32>
    %55 = math.exp %54 : vector<32x32xf32>
    %cst_17 = arith.constant 1.000000e+00 : f32
    %56 = vector.broadcast %cst_17 : f32 to vector<32x32xf32>
    %57 = arith.addf %56, %55 : vector<32x32xf32>
    %58 = arith.divf %56, %57 : vector<32x32xf32>
    %59 = arith.mulf %50, %29 : vector<32x32xf32>
    %60 = arith.mulf %44, %52 : vector<32x32xf32>
    %61 = arith.addf %59, %60 : vector<32x32xf32>
    %62 = math.tanh %61 : vector<32x32xf32>
    %63 = arith.mulf %58, %62 : vector<32x32xf32>
    %c1_18 = arith.constant 1 : index
    %c0_19 = arith.constant 0 : index
    %c0_20 = arith.constant 0 : index
    %64 = vector.load %arg3[%c1_18, %c0_19, %c0_20] : memref<4x32x32xf32, #tpu.memory_space<vmem>>, vector<1x32x32xf32>
    %65 = vector.shape_cast %64 : vector<1x32x32xf32> to vector<32x32xf32>
    %66 = vector.shape_cast %63 : vector<32x32xf32> to vector<1x32x32xf32>
    tpu.vector_store %arg3[%c1_18, %c0_19, %c0_20], %66 {strides = array<i32>} : memref<4x32x32xf32, #tpu.memory_space<vmem>>, vector<1x32x32xf32>,
    %c2 = arith.constant 2 : index
    %c0_21 = arith.constant 0 : index
    %c0_22 = arith.constant 0 : index
    %67 = vector.load %arg1[%c2, %c0_21, %c0_22] : memref<4x32x128xf32, #tpu.memory_space<vmem>>, vector<1x32x128xf32>
    %68 = vector.shape_cast %67 : vector<1x32x128xf32> to vector<32x128xf32>
    %cst_23 = arith.constant dense<0.000000e+00> : vector<32x128xf32>
    %69 = tpu.matmul %63, %0, %cst_23 {dimension_numbers = #tpu.dot_dimension_numbers<[1], [0], [0], [1], [0, 0, 1, 1], [], []>} : vector<32x32xf32>, vector<32x128xf32>, vector<32x128xf32> -> vector<32x128xf32>
    %70 = arith.addf %68, %69 : vector<32x128xf32>
    %71 = vector.extract_strided_slice %70 {offsets = [0, 0], sizes = [32, 32], strides = [1, 1]} : vector<32x128xf32> to vector<32x32xf32>
    %72 = arith.negf %71 : vector<32x32xf32>
    %73 = math.exp %72 : vector<32x32xf32>
    %cst_24 = arith.constant 1.000000e+00 : f32
    %74 = vector.broadcast %cst_24 : f32 to vector<32x32xf32>
    %75 = arith.addf %74, %73 : vector<32x32xf32>
    %76 = arith.divf %74, %75 : vector<32x32xf32>
    %77 = vector.extract_strided_slice %70 {offsets = [0, 32], sizes = [32, 32], strides = [1, 1]} : vector<32x128xf32> to vector<32x32xf32>
    %78 = arith.negf %77 : vector<32x32xf32>
    %79 = math.exp %78 : vector<32x32xf32>
    %cst_25 = arith.constant 1.000000e+00 : f32
    %80 = vector.broadcast %cst_25 : f32 to vector<32x32xf32>
    %81 = arith.addf %80, %79 : vector<32x32xf32>
    %82 = arith.divf %80, %81 : vector<32x32xf32>
    %83 = vector.extract_strided_slice %70 {offsets = [0, 64], sizes = [32, 32], strides = [1, 1]} : vector<32x128xf32> to vector<32x32xf32>
    %84 = math.tanh %83 : vector<32x32xf32>
    %85 = vector.extract_strided_slice %70 {offsets = [0, 96], sizes = [32, 32], strides = [1, 1]} : vector<32x128xf32> to vector<32x32xf32>
    %86 = arith.negf %85 : vector<32x32xf32>
    %87 = math.exp %86 : vector<32x32xf32>
    %cst_26 = arith.constant 1.000000e+00 : f32
    %88 = vector.broadcast %cst_26 : f32 to vector<32x32xf32>
    %89 = arith.addf %88, %87 : vector<32x32xf32>
    %90 = arith.divf %88, %89 : vector<32x32xf32>
    %91 = arith.mulf %82, %61 : vector<32x32xf32>
    %92 = arith.mulf %76, %84 : vector<32x32xf32>
    %93 = arith.addf %91, %92 : vector<32x32xf32>
    %94 = math.tanh %93 : vector<32x32xf32>
    %95 = arith.mulf %90, %94 : vector<32x32xf32>
    %c2_27 = arith.constant 2 : index
    %c0_28 = arith.constant 0 : index
    %c0_29 = arith.constant 0 : index
    %96 = vector.load %arg3[%c2_27, %c0_28, %c0_29] : memref<4x32x32xf32, #tpu.memory_space<vmem>>, vector<1x32x32xf32>
    %97 = vector.shape_cast %96 : vector<1x32x32xf32> to vector<32x32xf32>
    %98 = vector.shape_cast %95 : vector<32x32xf32> to vector<1x32x32xf32>
    tpu.vector_store %arg3[%c2_27, %c0_28, %c0_29], %98 {strides = array<i32>} : memref<4x32x32xf32, #tpu.memory_space<vmem>>, vector<1x32x32xf32>,
    %c3 = arith.constant 3 : index
    %c0_30 = arith.constant 0 : index
    %c0_31 = arith.constant 0 : index
    %99 = vector.load %arg1[%c3, %c0_30, %c0_31] : memref<4x32x128xf32, #tpu.memory_space<vmem>>, vector<1x32x128xf32>
    %100 = vector.shape_cast %99 : vector<1x32x128xf32> to vector<32x128xf32>
    %cst_32 = arith.constant dense<0.000000e+00> : vector<32x128xf32>
    %101 = tpu.matmul %95, %0, %cst_32 {dimension_numbers = #tpu.dot_dimension_numbers<[1], [0], [0], [1], [0, 0, 1, 1], [], []>} : vector<32x32xf32>, vector<32x128xf32>, vector<32x128xf32> -> vector<32x128xf32>
    %102 = arith.addf %100, %101 : vector<32x128xf32>
    %103 = vector.extract_strided_slice %102 {offsets = [0, 0], sizes = [32, 32], strides = [1, 1]} : vector<32x128xf32> to vector<32x32xf32>
    %104 = arith.negf %103 : vector<32x32xf32>
    %105 = math.exp %104 : vector<32x32xf32>
    %cst_33 = arith.constant 1.000000e+00 : f32
    %106 = vector.broadcast %cst_33 : f32 to vector<32x32xf32>
    %107 = arith.addf %106, %105 : vector<32x32xf32>
    %108 = arith.divf %106, %107 : vector<32x32xf32>
    %109 = vector.extract_strided_slice %102 {offsets = [0, 32], sizes = [32, 32], strides = [1, 1]} : vector<32x128xf32> to vector<32x32xf32>
    %110 = arith.negf %109 : vector<32x32xf32>
    %111 = math.exp %110 : vector<32x32xf32>
    %cst_34 = arith.constant 1.000000e+00 : f32
    %112 = vector.broadcast %cst_34 : f32 to vector<32x32xf32>
    %113 = arith.addf %112, %111 : vector<32x32xf32>
    %114 = arith.divf %112, %113 : vector<32x32xf32>
    %115 = vector.extract_strided_slice %102 {offsets = [0, 64], sizes = [32, 32], strides = [1, 1]} : vector<32x128xf32> to vector<32x32xf32>
    %116 = math.tanh %115 : vector<32x32xf32>
    %117 = vector.extract_strided_slice %102 {offsets = [0, 96], sizes = [32, 32], strides = [1, 1]} : vector<32x128xf32> to vector<32x32xf32>
    %118 = arith.negf %117 : vector<32x32xf32>
    %119 = math.exp %118 : vector<32x32xf32>
    %cst_35 = arith.constant 1.000000e+00 : f32
    %120 = vector.broadcast %cst_35 : f32 to vector<32x32xf32>
    %121 = arith.addf %120, %119 : vector<32x32xf32>
    %122 = arith.divf %120, %121 : vector<32x32xf32>
    %123 = arith.mulf %114, %93 : vector<32x32xf32>
    %124 = arith.mulf %108, %116 : vector<32x32xf32>
    %125 = arith.addf %123, %124 : vector<32x32xf32>
    %126 = math.tanh %125 : vector<32x32xf32>
    %127 = arith.mulf %122, %126 : vector<32x32xf32>
    %c3_36 = arith.constant 3 : index
    %c0_37 = arith.constant 0 : index
    %c0_38 = arith.constant 0 : index
    %128 = vector.load %arg3[%c3_36, %c0_37, %c0_38] : memref<4x32x32xf32, #tpu.memory_space<vmem>>, vector<1x32x32xf32>
    %129 = vector.shape_cast %128 : vector<1x32x32xf32> to vector<32x32xf32>
    %130 = vector.shape_cast %127 : vector<32x32xf32> to vector<1x32x32xf32>
    tpu.vector_store %arg3[%c3_36, %c0_37, %c0_38], %130 {strides = array<i32>} : memref<4x32x32xf32, #tpu.memory_space<vmem>>, vector<1x32x32xf32>,
    return
  }
  func.func @transform_0(%arg0: i32) -> (i32, i32, i32) {
    %c0_i32 = arith.constant 0 : i32
    %c0_i32_0 = arith.constant 0 : i32
    %c0_i32_1 = arith.constant 0 : i32
    %c0_i32_2 = arith.constant 0 : i32
    return %c0_i32, %c0_i32_0, %c0_i32_1 : i32, i32, i32
  }
  func.func @transform_1(%arg0: i32) -> (i32, i32) {
    %c0_i32 = arith.constant 0 : i32
    %c0_i32_0 = arith.constant 0 : i32
    %c0_i32_1 = arith.constant 0 : i32
    return %c0_i32, %c0_i32_0 : i32, i32
  }
  func.func @transform_2(%arg0: i32) -> (i32, i32, i32) {
    %c0_i32 = arith.constant 0 : i32
    %c0_i32_0 = arith.constant 0 : i32
    %c0_i32_1 = arith.constant 0 : i32
    %c0_i32_2 = arith.constant 0 : i32
    return %c0_i32, %c0_i32_0, %c0_i32_1 : i32, i32, i32
  }
}

module attributes {stable_mosaic.version = 11 : i64} {
  func.func @_linear_kernel(%arg0: i32, %arg1: memref<128x32xf32, #tpu.memory_space<vmem>>, %arg2: memref<32x16xf32, #tpu.memory_space<vmem>>, %arg3: memref<1x16xf32, #tpu.memory_space<vmem>>, %arg4: memref<128x16xf32, #tpu.memory_space<vmem>>) attributes {dimension_semantics = [#tpu.dimension_semantics<parallel>], iteration_bounds = array<i64: 1>, scalar_prefetch = 0 : i64, scratch_operands = 0 : i64, tpu.core_type = #tpu.core_type<tc>, window_params = [{transform_indices = @transform_0, window_bounds = array<i64: 128, 32>}, {pipeline_mode = #tpu.pipeline_mode<synchronous>, transform_indices = @transform_1, window_bounds = array<i64: 32, 16>}, {pipeline_mode = #tpu.pipeline_mode<synchronous>, transform_indices = @transform_2, window_bounds = array<i64: 1, 16>}, {transform_indices = @transform_3, window_bounds = array<i64: 128, 16>}]} {
    %c0 = arith.constant 0 : index
    %c0_0 = arith.constant 0 : index
    %0 = vector.load %arg1[%c0, %c0_0] : memref<128x32xf32, #tpu.memory_space<vmem>>, vector<128x32xf32>
    %c0_1 = arith.constant 0 : index
    %c0_2 = arith.constant 0 : index
    %1 = vector.load %arg2[%c0_1, %c0_2] : memref<32x16xf32, #tpu.memory_space<vmem>>, vector<32x16xf32>
    %cst = arith.constant dense<0.000000e+00> : vector<128x16xf32>
    %2 = tpu.matmul %0, %1, %cst {dimension_numbers = #tpu.dot_dimension_numbers<[1], [0], [0], [1], [0, 0, 1, 1], [], []>} : vector<128x32xf32>, vector<32x16xf32>, vector<128x16xf32> -> vector<128x16xf32>
    %c0_3 = arith.constant 0 : index
    %c0_4 = arith.constant 0 : index
    %3 = vector.load %arg3[%c0_3, %c0_4] : memref<1x16xf32, #tpu.memory_space<vmem>>, vector<1x16xf32>
    %4 = vector.broadcast %3 : vector<1x16xf32> to vector<128x16xf32>
    %5 = arith.addf %2, %4 : vector<128x16xf32>
    %c0_5 = arith.constant 0 : index
    %c0_6 = arith.constant 0 : index
    %6 = vector.load %arg4[%c0_5, %c0_6] : memref<128x16xf32, #tpu.memory_space<vmem>>, vector<128x16xf32>
    tpu.vector_store %arg4[%c0_5, %c0_6], %5 {strides = array<i32>} : memref<128x16xf32, #tpu.memory_space<vmem>>, vector<128x16xf32>,
    return
  }
  func.func @transform_0(%arg0: i32) -> (i32, i32) {
    %c0_i32 = arith.constant 0 : i32
    %c0_i32_0 = arith.constant 0 : i32
    return %arg0, %c0_i32 : i32, i32
  }
  func.func @transform_1(%arg0: i32) -> (i32, i32) {
    %c0_i32 = arith.constant 0 : i32
    %c0_i32_0 = arith.constant 0 : i32
    %c0_i32_1 = arith.constant 0 : i32
    return %c0_i32, %c0_i32_0 : i32, i32
  }
  func.func @transform_2(%arg0: i32) -> (i32, i32) {
    %c0_i32 = arith.constant 0 : i32
    %c0_i32_0 = arith.constant 0 : i32
    %c0_i32_1 = arith.constant 0 : i32
    return %c0_i32, %c0_i32_0 : i32, i32
  }
  func.func @transform_3(%arg0: i32) -> (i32, i32) {
    %c0_i32 = arith.constant 0 : i32
    %c0_i32_0 = arith.constant 0 : i32
    return %arg0, %c0_i32 : i32, i32
  }
}

module attributes {stable_mosaic.version = 11 : i64} {
  func.func @_gn_kernel(%arg0: i32, %arg1: memref<8x512xf32, #tpu.memory_space<vmem>>, %arg2: memref<1x512xf32, #tpu.memory_space<vmem>>, %arg3: memref<1x512xf32, #tpu.memory_space<vmem>>, %arg4: memref<8x512xf32, #tpu.memory_space<vmem>>, %arg5: memref<8x512xf32, #tpu.memory_space<vmem>>) attributes {dimension_semantics = [#tpu.dimension_semantics<parallel>], iteration_bounds = array<i64: 1>, scalar_prefetch = 0 : i64, scratch_operands = 0 : i64, tpu.core_type = #tpu.core_type<tc>, window_params = [{transform_indices = @transform_0, window_bounds = array<i64: 8, 512>}, {pipeline_mode = #tpu.pipeline_mode<synchronous>, transform_indices = @transform_1, window_bounds = array<i64: 1, 512>}, {pipeline_mode = #tpu.pipeline_mode<synchronous>, transform_indices = @transform_2, window_bounds = array<i64: 1, 512>}, {transform_indices = @transform_3, window_bounds = array<i64: 8, 512>}, {transform_indices = @transform_4, window_bounds = array<i64: 8, 512>}]} {
    %c0 = arith.constant 0 : index
    %c0_0 = arith.constant 0 : index
    %0 = vector.load %arg1[%c0, %c0_0] : memref<8x512xf32, #tpu.memory_space<vmem>>, vector<8x512xf32>
    %cst = arith.constant dense<0.000000e+00> : vector<8xf32>
    %1 = vector.multi_reduction <add>, %0, %cst [1] : vector<8x512xf32> to vector<8xf32>
    %2 = vector.shape_cast %1 : vector<8xf32> to vector<8x1xf32>
    %cst_1 = arith.constant 5.120000e+02 : f32
    %3 = vector.broadcast %cst_1 : f32 to vector<8x1xf32>
    %4 = arith.divf %2, %3 : vector<8x1xf32>
    %5 = vector.broadcast %4 : vector<8x1xf32> to vector<8x512xf32>
    %6 = arith.subf %0, %5 : vector<8x512xf32>
    %7 = arith.mulf %6, %6 : vector<8x512xf32>
    %cst_2 = arith.constant dense<0.000000e+00> : vector<8xf32>
    %8 = vector.multi_reduction <add>, %7, %cst_2 [1] : vector<8x512xf32> to vector<8xf32>
    %9 = vector.shape_cast %8 : vector<8xf32> to vector<8x1xf32>
    %cst_3 = arith.constant 5.120000e+02 : f32
    %10 = vector.broadcast %cst_3 : f32 to vector<8x1xf32>
    %11 = arith.divf %9, %10 : vector<8x1xf32>
    %12 = vector.broadcast %4 : vector<8x1xf32> to vector<8x512xf32>
    %13 = arith.subf %0, %12 : vector<8x512xf32>
    %cst_4 = arith.constant 9.99999993E-9 : f32
    %14 = vector.broadcast %cst_4 : f32 to vector<8x1xf32>
    %15 = arith.addf %11, %14 : vector<8x1xf32>
    %16 = math.rsqrt %15 : vector<8x1xf32>
    %17 = vector.broadcast %16 : vector<8x1xf32> to vector<8x512xf32>
    %18 = arith.mulf %13, %17 : vector<8x512xf32>
    %c0_5 = arith.constant 0 : index
    %c0_6 = arith.constant 0 : index
    %19 = vector.load %arg2[%c0_5, %c0_6] : memref<1x512xf32, #tpu.memory_space<vmem>>, vector<1x512xf32>
    %20 = vector.broadcast %19 : vector<1x512xf32> to vector<8x512xf32>
    %21 = arith.mulf %18, %20 : vector<8x512xf32>
    %c0_7 = arith.constant 0 : index
    %c0_8 = arith.constant 0 : index
    %22 = vector.load %arg3[%c0_7, %c0_8] : memref<1x512xf32, #tpu.memory_space<vmem>>, vector<1x512xf32>
    %23 = vector.broadcast %22 : vector<1x512xf32> to vector<8x512xf32>
    %24 = arith.addf %21, %23 : vector<8x512xf32>
    %c0_9 = arith.constant 0 : index
    %c0_10 = arith.constant 0 : index
    %25 = vector.load %arg4[%c0_9, %c0_10] : memref<8x512xf32, #tpu.memory_space<vmem>>, vector<8x512xf32>
    %26 = arith.addf %24, %25 : vector<8x512xf32>
    %c0_11 = arith.constant 0 : index
    %c0_12 = arith.constant 0 : index
    %27 = vector.load %arg5[%c0_11, %c0_12] : memref<8x512xf32, #tpu.memory_space<vmem>>, vector<8x512xf32>
    tpu.vector_store %arg5[%c0_11, %c0_12], %26 {strides = array<i32>} : memref<8x512xf32, #tpu.memory_space<vmem>>, vector<8x512xf32>,
    return
  }
  func.func @transform_0(%arg0: i32) -> (i32, i32) {
    %c0_i32 = arith.constant 0 : i32
    %c0_i32_0 = arith.constant 0 : i32
    return %arg0, %c0_i32 : i32, i32
  }
  func.func @transform_1(%arg0: i32) -> (i32, i32) {
    %c0_i32 = arith.constant 0 : i32
    %c0_i32_0 = arith.constant 0 : i32
    %c0_i32_1 = arith.constant 0 : i32
    return %c0_i32, %c0_i32_0 : i32, i32
  }
  func.func @transform_2(%arg0: i32) -> (i32, i32) {
    %c0_i32 = arith.constant 0 : i32
    %c0_i32_0 = arith.constant 0 : i32
    %c0_i32_1 = arith.constant 0 : i32
    return %c0_i32, %c0_i32_0 : i32, i32
  }
  func.func @transform_3(%arg0: i32) -> (i32, i32) {
    %c0_i32 = arith.constant 0 : i32
    %c0_i32_0 = arith.constant 0 : i32
    return %arg0, %c0_i32 : i32, i32
  }
  func.func @transform_4(%arg0: i32) -> (i32, i32) {
    %c0_i32 = arith.constant 0 : i32
    %c0_i32_0 = arith.constant 0 : i32
    return %arg0, %c0_i32 : i32, i32
  }
}

module attributes {stable_mosaic.version = 11 : i64} {
  func.func @_bilstm_kernel(%arg0: i32, %arg1: memref<8x16x128xf32, #tpu.memory_space<vmem>>, %arg2: memref<32x128xf32, #tpu.memory_space<vmem>>, %arg3: memref<8x16x32xf32, #tpu.memory_space<vmem>>) attributes {dimension_semantics = [#tpu.dimension_semantics<arbitrary>], iteration_bounds = array<i64: 1>, scalar_prefetch = 0 : i64, scratch_operands = 0 : i64, tpu.core_type = #tpu.core_type<tc>, window_params = [{pipeline_mode = #tpu.pipeline_mode<synchronous>, transform_indices = @transform_0, window_bounds = array<i64: 8, 16, 128>}, {pipeline_mode = #tpu.pipeline_mode<synchronous>, transform_indices = @transform_1, window_bounds = array<i64: 32, 128>}, {pipeline_mode = #tpu.pipeline_mode<synchronous>, transform_indices = @transform_2, window_bounds = array<i64: 8, 16, 32>}]} {
    %c0 = arith.constant 0 : index
    %c0_0 = arith.constant 0 : index
    %0 = vector.load %arg2[%c0, %c0_0] : memref<32x128xf32, #tpu.memory_space<vmem>>, vector<32x128xf32>
    %cst = arith.constant 0.000000e+00 : f32
    %1 = vector.broadcast %cst : f32 to vector<16x32xf32>
    %cst_1 = arith.constant 0.000000e+00 : f32
    %2 = vector.broadcast %cst_1 : f32 to vector<16x32xf32>
    %c0_2 = arith.constant 0 : index
    %c0_3 = arith.constant 0 : index
    %c0_4 = arith.constant 0 : index
    %3 = vector.load %arg1[%c0_2, %c0_3, %c0_4] : memref<8x16x128xf32, #tpu.memory_space<vmem>>, vector<1x16x128xf32>
    %4 = vector.shape_cast %3 : vector<1x16x128xf32> to vector<16x128xf32>
    %cst_5 = arith.constant dense<0.000000e+00> : vector<16x128xf32>
    %5 = tpu.matmul %1, %0, %cst_5 {dimension_numbers = #tpu.dot_dimension_numbers<[1], [0], [0], [1], [0, 0, 1, 1], [], []>} : vector<16x32xf32>, vector<32x128xf32>, vector<16x128xf32> -> vector<16x128xf32>
    %6 = arith.addf %4, %5 : vector<16x128xf32>
    %7 = vector.extract_strided_slice %6 {offsets = [0, 0], sizes = [16, 32], strides = [1, 1]} : vector<16x128xf32> to vector<16x32xf32>
    %8 = arith.negf %7 : vector<16x32xf32>
    %9 = math.exp %8 : vector<16x32xf32>
    %cst_6 = arith.constant 1.000000e+00 : f32
    %10 = vector.broadcast %cst_6 : f32 to vector<16x32xf32>
    %11 = arith.addf %10, %9 : vector<16x32xf32>
    %12 = arith.divf %10, %11 : vector<16x32xf32>
    %13 = vector.extract_strided_slice %6 {offsets = [0, 32], sizes = [16, 32], strides = [1, 1]} : vector<16x128xf32> to vector<16x32xf32>
    %14 = arith.negf %13 : vector<16x32xf32>
    %15 = math.exp %14 : vector<16x32xf32>
    %cst_7 = arith.constant 1.000000e+00 : f32
    %16 = vector.broadcast %cst_7 : f32 to vector<16x32xf32>
    %17 = arith.addf %16, %15 : vector<16x32xf32>
    %18 = arith.divf %16, %17 : vector<16x32xf32>
    %19 = vector.extract_strided_slice %6 {offsets = [0, 64], sizes = [16, 32], strides = [1, 1]} : vector<16x128xf32> to vector<16x32xf32>
    %20 = math.tanh %19 : vector<16x32xf32>
    %21 = vector.extract_strided_slice %6 {offsets = [0, 96], sizes = [16, 32], strides = [1, 1]} : vector<16x128xf32> to vector<16x32xf32>
    %22 = arith.negf %21 : vector<16x32xf32>
    %23 = math.exp %22 : vector<16x32xf32>
    %cst_8 = arith.constant 1.000000e+00 : f32
    %24 = vector.broadcast %cst_8 : f32 to vector<16x32xf32>
    %25 = arith.addf %24, %23 : vector<16x32xf32>
    %26 = arith.divf %24, %25 : vector<16x32xf32>
    %27 = arith.mulf %18, %2 : vector<16x32xf32>
    %28 = arith.mulf %12, %20 : vector<16x32xf32>
    %29 = arith.addf %27, %28 : vector<16x32xf32>
    %30 = math.tanh %29 : vector<16x32xf32>
    %31 = arith.mulf %26, %30 : vector<16x32xf32>
    %c0_9 = arith.constant 0 : index
    %c0_10 = arith.constant 0 : index
    %c0_11 = arith.constant 0 : index
    %32 = vector.load %arg3[%c0_9, %c0_10, %c0_11] : memref<8x16x32xf32, #tpu.memory_space<vmem>>, vector<1x16x32xf32>
    %33 = vector.shape_cast %32 : vector<1x16x32xf32> to vector<16x32xf32>
    %34 = vector.shape_cast %31 : vector<16x32xf32> to vector<1x16x32xf32>
    tpu.vector_store %arg3[%c0_9, %c0_10, %c0_11], %34 {strides = array<i32>} : memref<8x16x32xf32, #tpu.memory_space<vmem>>, vector<1x16x32xf32>,
    %c1 = arith.constant 1 : index
    %c0_12 = arith.constant 0 : index
    %c0_13 = arith.constant 0 : index
    %35 = vector.load %arg1[%c1, %c0_12, %c0_13] : memref<8x16x128xf32, #tpu.memory_space<vmem>>, vector<1x16x128xf32>
    %36 = vector.shape_cast %35 : vector<1x16x128xf32> to vector<16x128xf32>
    %cst_14 = arith.constant dense<0.000000e+00> : vector<16x128xf32>
    %37 = tpu.matmul %31, %0, %cst_14 {dimension_numbers = #tpu.dot_dimension_numbers<[1], [0], [0], [1], [0, 0, 1, 1], [], []>} : vector<16x32xf32>, vector<32x128xf32>, vector<16x128xf32> -> vector<16x128xf32>
    %38 = arith.addf %36, %37 : vector<16x128xf32>
    %39 = vector.extract_strided_slice %38 {offsets = [0, 0], sizes = [16, 32], strides = [1, 1]} : vector<16x128xf32> to vector<16x32xf32>
    %40 = arith.negf %39 : vector<16x32xf32>
    %41 = math.exp %40 : vector<16x32xf32>
    %cst_15 = arith.constant 1.000000e+00 : f32
    %42 = vector.broadcast %cst_15 : f32 to vector<16x32xf32>
    %43 = arith.addf %42, %41 : vector<16x32xf32>
    %44 = arith.divf %42, %43 : vector<16x32xf32>
    %45 = vector.extract_strided_slice %38 {offsets = [0, 32], sizes = [16, 32], strides = [1, 1]} : vector<16x128xf32> to vector<16x32xf32>
    %46 = arith.negf %45 : vector<16x32xf32>
    %47 = math.exp %46 : vector<16x32xf32>
    %cst_16 = arith.constant 1.000000e+00 : f32
    %48 = vector.broadcast %cst_16 : f32 to vector<16x32xf32>
    %49 = arith.addf %48, %47 : vector<16x32xf32>
    %50 = arith.divf %48, %49 : vector<16x32xf32>
    %51 = vector.extract_strided_slice %38 {offsets = [0, 64], sizes = [16, 32], strides = [1, 1]} : vector<16x128xf32> to vector<16x32xf32>
    %52 = math.tanh %51 : vector<16x32xf32>
    %53 = vector.extract_strided_slice %38 {offsets = [0, 96], sizes = [16, 32], strides = [1, 1]} : vector<16x128xf32> to vector<16x32xf32>
    %54 = arith.negf %53 : vector<16x32xf32>
    %55 = math.exp %54 : vector<16x32xf32>
    %cst_17 = arith.constant 1.000000e+00 : f32
    %56 = vector.broadcast %cst_17 : f32 to vector<16x32xf32>
    %57 = arith.addf %56, %55 : vector<16x32xf32>
    %58 = arith.divf %56, %57 : vector<16x32xf32>
    %59 = arith.mulf %50, %29 : vector<16x32xf32>
    %60 = arith.mulf %44, %52 : vector<16x32xf32>
    %61 = arith.addf %59, %60 : vector<16x32xf32>
    %62 = math.tanh %61 : vector<16x32xf32>
    %63 = arith.mulf %58, %62 : vector<16x32xf32>
    %c1_18 = arith.constant 1 : index
    %c0_19 = arith.constant 0 : index
    %c0_20 = arith.constant 0 : index
    %64 = vector.load %arg3[%c1_18, %c0_19, %c0_20] : memref<8x16x32xf32, #tpu.memory_space<vmem>>, vector<1x16x32xf32>
    %65 = vector.shape_cast %64 : vector<1x16x32xf32> to vector<16x32xf32>
    %66 = vector.shape_cast %63 : vector<16x32xf32> to vector<1x16x32xf32>
    tpu.vector_store %arg3[%c1_18, %c0_19, %c0_20], %66 {strides = array<i32>} : memref<8x16x32xf32, #tpu.memory_space<vmem>>, vector<1x16x32xf32>,
    %c2 = arith.constant 2 : index
    %c0_21 = arith.constant 0 : index
    %c0_22 = arith.constant 0 : index
    %67 = vector.load %arg1[%c2, %c0_21, %c0_22] : memref<8x16x128xf32, #tpu.memory_space<vmem>>, vector<1x16x128xf32>
    %68 = vector.shape_cast %67 : vector<1x16x128xf32> to vector<16x128xf32>
    %cst_23 = arith.constant dense<0.000000e+00> : vector<16x128xf32>
    %69 = tpu.matmul %63, %0, %cst_23 {dimension_numbers = #tpu.dot_dimension_numbers<[1], [0], [0], [1], [0, 0, 1, 1], [], []>} : vector<16x32xf32>, vector<32x128xf32>, vector<16x128xf32> -> vector<16x128xf32>
    %70 = arith.addf %68, %69 : vector<16x128xf32>
    %71 = vector.extract_strided_slice %70 {offsets = [0, 0], sizes = [16, 32], strides = [1, 1]} : vector<16x128xf32> to vector<16x32xf32>
    %72 = arith.negf %71 : vector<16x32xf32>
    %73 = math.exp %72 : vector<16x32xf32>
    %cst_24 = arith.constant 1.000000e+00 : f32
    %74 = vector.broadcast %cst_24 : f32 to vector<16x32xf32>
    %75 = arith.addf %74, %73 : vector<16x32xf32>
    %76 = arith.divf %74, %75 : vector<16x32xf32>
    %77 = vector.extract_strided_slice %70 {offsets = [0, 32], sizes = [16, 32], strides = [1, 1]} : vector<16x128xf32> to vector<16x32xf32>
    %78 = arith.negf %77 : vector<16x32xf32>
    %79 = math.exp %78 : vector<16x32xf32>
    %cst_25 = arith.constant 1.000000e+00 : f32
    %80 = vector.broadcast %cst_25 : f32 to vector<16x32xf32>
    %81 = arith.addf %80, %79 : vector<16x32xf32>
    %82 = arith.divf %80, %81 : vector<16x32xf32>
    %83 = vector.extract_strided_slice %70 {offsets = [0, 64], sizes = [16, 32], strides = [1, 1]} : vector<16x128xf32> to vector<16x32xf32>
    %84 = math.tanh %83 : vector<16x32xf32>
    %85 = vector.extract_strided_slice %70 {offsets = [0, 96], sizes = [16, 32], strides = [1, 1]} : vector<16x128xf32> to vector<16x32xf32>
    %86 = arith.negf %85 : vector<16x32xf32>
    %87 = math.exp %86 : vector<16x32xf32>
    %cst_26 = arith.constant 1.000000e+00 : f32
    %88 = vector.broadcast %cst_26 : f32 to vector<16x32xf32>
    %89 = arith.addf %88, %87 : vector<16x32xf32>
    %90 = arith.divf %88, %89 : vector<16x32xf32>
    %91 = arith.mulf %82, %61 : vector<16x32xf32>
    %92 = arith.mulf %76, %84 : vector<16x32xf32>
    %93 = arith.addf %91, %92 : vector<16x32xf32>
    %94 = math.tanh %93 : vector<16x32xf32>
    %95 = arith.mulf %90, %94 : vector<16x32xf32>
    %c2_27 = arith.constant 2 : index
    %c0_28 = arith.constant 0 : index
    %c0_29 = arith.constant 0 : index
    %96 = vector.load %arg3[%c2_27, %c0_28, %c0_29] : memref<8x16x32xf32, #tpu.memory_space<vmem>>, vector<1x16x32xf32>
    %97 = vector.shape_cast %96 : vector<1x16x32xf32> to vector<16x32xf32>
    %98 = vector.shape_cast %95 : vector<16x32xf32> to vector<1x16x32xf32>
    tpu.vector_store %arg3[%c2_27, %c0_28, %c0_29], %98 {strides = array<i32>} : memref<8x16x32xf32, #tpu.memory_space<vmem>>, vector<1x16x32xf32>,
    %c3 = arith.constant 3 : index
    %c0_30 = arith.constant 0 : index
    %c0_31 = arith.constant 0 : index
    %99 = vector.load %arg1[%c3, %c0_30, %c0_31] : memref<8x16x128xf32, #tpu.memory_space<vmem>>, vector<1x16x128xf32>
    %100 = vector.shape_cast %99 : vector<1x16x128xf32> to vector<16x128xf32>
    %cst_32 = arith.constant dense<0.000000e+00> : vector<16x128xf32>
    %101 = tpu.matmul %95, %0, %cst_32 {dimension_numbers = #tpu.dot_dimension_numbers<[1], [0], [0], [1], [0, 0, 1, 1], [], []>} : vector<16x32xf32>, vector<32x128xf32>, vector<16x128xf32> -> vector<16x128xf32>
    %102 = arith.addf %100, %101 : vector<16x128xf32>
    %103 = vector.extract_strided_slice %102 {offsets = [0, 0], sizes = [16, 32], strides = [1, 1]} : vector<16x128xf32> to vector<16x32xf32>
    %104 = arith.negf %103 : vector<16x32xf32>
    %105 = math.exp %104 : vector<16x32xf32>
    %cst_33 = arith.constant 1.000000e+00 : f32
    %106 = vector.broadcast %cst_33 : f32 to vector<16x32xf32>
    %107 = arith.addf %106, %105 : vector<16x32xf32>
    %108 = arith.divf %106, %107 : vector<16x32xf32>
    %109 = vector.extract_strided_slice %102 {offsets = [0, 32], sizes = [16, 32], strides = [1, 1]} : vector<16x128xf32> to vector<16x32xf32>
    %110 = arith.negf %109 : vector<16x32xf32>
    %111 = math.exp %110 : vector<16x32xf32>
    %cst_34 = arith.constant 1.000000e+00 : f32
    %112 = vector.broadcast %cst_34 : f32 to vector<16x32xf32>
    %113 = arith.addf %112, %111 : vector<16x32xf32>
    %114 = arith.divf %112, %113 : vector<16x32xf32>
    %115 = vector.extract_strided_slice %102 {offsets = [0, 64], sizes = [16, 32], strides = [1, 1]} : vector<16x128xf32> to vector<16x32xf32>
    %116 = math.tanh %115 : vector<16x32xf32>
    %117 = vector.extract_strided_slice %102 {offsets = [0, 96], sizes = [16, 32], strides = [1, 1]} : vector<16x128xf32> to vector<16x32xf32>
    %118 = arith.negf %117 : vector<16x32xf32>
    %119 = math.exp %118 : vector<16x32xf32>
    %cst_35 = arith.constant 1.000000e+00 : f32
    %120 = vector.broadcast %cst_35 : f32 to vector<16x32xf32>
    %121 = arith.addf %120, %119 : vector<16x32xf32>
    %122 = arith.divf %120, %121 : vector<16x32xf32>
    %123 = arith.mulf %114, %93 : vector<16x32xf32>
    %124 = arith.mulf %108, %116 : vector<16x32xf32>
    %125 = arith.addf %123, %124 : vector<16x32xf32>
    %126 = math.tanh %125 : vector<16x32xf32>
    %127 = arith.mulf %122, %126 : vector<16x32xf32>
    %c3_36 = arith.constant 3 : index
    %c0_37 = arith.constant 0 : index
    %c0_38 = arith.constant 0 : index
    %128 = vector.load %arg3[%c3_36, %c0_37, %c0_38] : memref<8x16x32xf32, #tpu.memory_space<vmem>>, vector<1x16x32xf32>
    %129 = vector.shape_cast %128 : vector<1x16x32xf32> to vector<16x32xf32>
    %130 = vector.shape_cast %127 : vector<16x32xf32> to vector<1x16x32xf32>
    tpu.vector_store %arg3[%c3_36, %c0_37, %c0_38], %130 {strides = array<i32>} : memref<8x16x32xf32, #tpu.memory_space<vmem>>, vector<1x16x32xf32>,
    %c4 = arith.constant 4 : index
    %c0_39 = arith.constant 0 : index
    %c0_40 = arith.constant 0 : index
    %131 = vector.load %arg1[%c4, %c0_39, %c0_40] : memref<8x16x128xf32, #tpu.memory_space<vmem>>, vector<1x16x128xf32>
    %132 = vector.shape_cast %131 : vector<1x16x128xf32> to vector<16x128xf32>
    %cst_41 = arith.constant dense<0.000000e+00> : vector<16x128xf32>
    %133 = tpu.matmul %127, %0, %cst_41 {dimension_numbers = #tpu.dot_dimension_numbers<[1], [0], [0], [1], [0, 0, 1, 1], [], []>} : vector<16x32xf32>, vector<32x128xf32>, vector<16x128xf32> -> vector<16x128xf32>
    %134 = arith.addf %132, %133 : vector<16x128xf32>
    %135 = vector.extract_strided_slice %134 {offsets = [0, 0], sizes = [16, 32], strides = [1, 1]} : vector<16x128xf32> to vector<16x32xf32>
    %136 = arith.negf %135 : vector<16x32xf32>
    %137 = math.exp %136 : vector<16x32xf32>
    %cst_42 = arith.constant 1.000000e+00 : f32
    %138 = vector.broadcast %cst_42 : f32 to vector<16x32xf32>
    %139 = arith.addf %138, %137 : vector<16x32xf32>
    %140 = arith.divf %138, %139 : vector<16x32xf32>
    %141 = vector.extract_strided_slice %134 {offsets = [0, 32], sizes = [16, 32], strides = [1, 1]} : vector<16x128xf32> to vector<16x32xf32>
    %142 = arith.negf %141 : vector<16x32xf32>
    %143 = math.exp %142 : vector<16x32xf32>
    %cst_43 = arith.constant 1.000000e+00 : f32
    %144 = vector.broadcast %cst_43 : f32 to vector<16x32xf32>
    %145 = arith.addf %144, %143 : vector<16x32xf32>
    %146 = arith.divf %144, %145 : vector<16x32xf32>
    %147 = vector.extract_strided_slice %134 {offsets = [0, 64], sizes = [16, 32], strides = [1, 1]} : vector<16x128xf32> to vector<16x32xf32>
    %148 = math.tanh %147 : vector<16x32xf32>
    %149 = vector.extract_strided_slice %134 {offsets = [0, 96], sizes = [16, 32], strides = [1, 1]} : vector<16x128xf32> to vector<16x32xf32>
    %150 = arith.negf %149 : vector<16x32xf32>
    %151 = math.exp %150 : vector<16x32xf32>
    %cst_44 = arith.constant 1.000000e+00 : f32
    %152 = vector.broadcast %cst_44 : f32 to vector<16x32xf32>
    %153 = arith.addf %152, %151 : vector<16x32xf32>
    %154 = arith.divf %152, %153 : vector<16x32xf32>
    %155 = arith.mulf %146, %125 : vector<16x32xf32>
    %156 = arith.mulf %140, %148 : vector<16x32xf32>
    %157 = arith.addf %155, %156 : vector<16x32xf32>
    %158 = math.tanh %157 : vector<16x32xf32>
    %159 = arith.mulf %154, %158 : vector<16x32xf32>
    %c4_45 = arith.constant 4 : index
    %c0_46 = arith.constant 0 : index
    %c0_47 = arith.constant 0 : index
    %160 = vector.load %arg3[%c4_45, %c0_46, %c0_47] : memref<8x16x32xf32, #tpu.memory_space<vmem>>, vector<1x16x32xf32>
    %161 = vector.shape_cast %160 : vector<1x16x32xf32> to vector<16x32xf32>
    %162 = vector.shape_cast %159 : vector<16x32xf32> to vector<1x16x32xf32>
    tpu.vector_store %arg3[%c4_45, %c0_46, %c0_47], %162 {strides = array<i32>} : memref<8x16x32xf32, #tpu.memory_space<vmem>>, vector<1x16x32xf32>,
    %c5 = arith.constant 5 : index
    %c0_48 = arith.constant 0 : index
    %c0_49 = arith.constant 0 : index
    %163 = vector.load %arg1[%c5, %c0_48, %c0_49] : memref<8x16x128xf32, #tpu.memory_space<vmem>>, vector<1x16x128xf32>
    %164 = vector.shape_cast %163 : vector<1x16x128xf32> to vector<16x128xf32>
    %cst_50 = arith.constant dense<0.000000e+00> : vector<16x128xf32>
    %165 = tpu.matmul %159, %0, %cst_50 {dimension_numbers = #tpu.dot_dimension_numbers<[1], [0], [0], [1], [0, 0, 1, 1], [], []>} : vector<16x32xf32>, vector<32x128xf32>, vector<16x128xf32> -> vector<16x128xf32>
    %166 = arith.addf %164, %165 : vector<16x128xf32>
    %167 = vector.extract_strided_slice %166 {offsets = [0, 0], sizes = [16, 32], strides = [1, 1]} : vector<16x128xf32> to vector<16x32xf32>
    %168 = arith.negf %167 : vector<16x32xf32>
    %169 = math.exp %168 : vector<16x32xf32>
    %cst_51 = arith.constant 1.000000e+00 : f32
    %170 = vector.broadcast %cst_51 : f32 to vector<16x32xf32>
    %171 = arith.addf %170, %169 : vector<16x32xf32>
    %172 = arith.divf %170, %171 : vector<16x32xf32>
    %173 = vector.extract_strided_slice %166 {offsets = [0, 32], sizes = [16, 32], strides = [1, 1]} : vector<16x128xf32> to vector<16x32xf32>
    %174 = arith.negf %173 : vector<16x32xf32>
    %175 = math.exp %174 : vector<16x32xf32>
    %cst_52 = arith.constant 1.000000e+00 : f32
    %176 = vector.broadcast %cst_52 : f32 to vector<16x32xf32>
    %177 = arith.addf %176, %175 : vector<16x32xf32>
    %178 = arith.divf %176, %177 : vector<16x32xf32>
    %179 = vector.extract_strided_slice %166 {offsets = [0, 64], sizes = [16, 32], strides = [1, 1]} : vector<16x128xf32> to vector<16x32xf32>
    %180 = math.tanh %179 : vector<16x32xf32>
    %181 = vector.extract_strided_slice %166 {offsets = [0, 96], sizes = [16, 32], strides = [1, 1]} : vector<16x128xf32> to vector<16x32xf32>
    %182 = arith.negf %181 : vector<16x32xf32>
    %183 = math.exp %182 : vector<16x32xf32>
    %cst_53 = arith.constant 1.000000e+00 : f32
    %184 = vector.broadcast %cst_53 : f32 to vector<16x32xf32>
    %185 = arith.addf %184, %183 : vector<16x32xf32>
    %186 = arith.divf %184, %185 : vector<16x32xf32>
    %187 = arith.mulf %178, %157 : vector<16x32xf32>
    %188 = arith.mulf %172, %180 : vector<16x32xf32>
    %189 = arith.addf %187, %188 : vector<16x32xf32>
    %190 = math.tanh %189 : vector<16x32xf32>
    %191 = arith.mulf %186, %190 : vector<16x32xf32>
    %c5_54 = arith.constant 5 : index
    %c0_55 = arith.constant 0 : index
    %c0_56 = arith.constant 0 : index
    %192 = vector.load %arg3[%c5_54, %c0_55, %c0_56] : memref<8x16x32xf32, #tpu.memory_space<vmem>>, vector<1x16x32xf32>
    %193 = vector.shape_cast %192 : vector<1x16x32xf32> to vector<16x32xf32>
    %194 = vector.shape_cast %191 : vector<16x32xf32> to vector<1x16x32xf32>
    tpu.vector_store %arg3[%c5_54, %c0_55, %c0_56], %194 {strides = array<i32>} : memref<8x16x32xf32, #tpu.memory_space<vmem>>, vector<1x16x32xf32>,
    %c6 = arith.constant 6 : index
    %c0_57 = arith.constant 0 : index
    %c0_58 = arith.constant 0 : index
    %195 = vector.load %arg1[%c6, %c0_57, %c0_58] : memref<8x16x128xf32, #tpu.memory_space<vmem>>, vector<1x16x128xf32>
    %196 = vector.shape_cast %195 : vector<1x16x128xf32> to vector<16x128xf32>
    %cst_59 = arith.constant dense<0.000000e+00> : vector<16x128xf32>
    %197 = tpu.matmul %191, %0, %cst_59 {dimension_numbers = #tpu.dot_dimension_numbers<[1], [0], [0], [1], [0, 0, 1, 1], [], []>} : vector<16x32xf32>, vector<32x128xf32>, vector<16x128xf32> -> vector<16x128xf32>
    %198 = arith.addf %196, %197 : vector<16x128xf32>
    %199 = vector.extract_strided_slice %198 {offsets = [0, 0], sizes = [16, 32], strides = [1, 1]} : vector<16x128xf32> to vector<16x32xf32>
    %200 = arith.negf %199 : vector<16x32xf32>
    %201 = math.exp %200 : vector<16x32xf32>
    %cst_60 = arith.constant 1.000000e+00 : f32
    %202 = vector.broadcast %cst_60 : f32 to vector<16x32xf32>
    %203 = arith.addf %202, %201 : vector<16x32xf32>
    %204 = arith.divf %202, %203 : vector<16x32xf32>
    %205 = vector.extract_strided_slice %198 {offsets = [0, 32], sizes = [16, 32], strides = [1, 1]} : vector<16x128xf32> to vector<16x32xf32>
    %206 = arith.negf %205 : vector<16x32xf32>
    %207 = math.exp %206 : vector<16x32xf32>
    %cst_61 = arith.constant 1.000000e+00 : f32
    %208 = vector.broadcast %cst_61 : f32 to vector<16x32xf32>
    %209 = arith.addf %208, %207 : vector<16x32xf32>
    %210 = arith.divf %208, %209 : vector<16x32xf32>
    %211 = vector.extract_strided_slice %198 {offsets = [0, 64], sizes = [16, 32], strides = [1, 1]} : vector<16x128xf32> to vector<16x32xf32>
    %212 = math.tanh %211 : vector<16x32xf32>
    %213 = vector.extract_strided_slice %198 {offsets = [0, 96], sizes = [16, 32], strides = [1, 1]} : vector<16x128xf32> to vector<16x32xf32>
    %214 = arith.negf %213 : vector<16x32xf32>
    %215 = math.exp %214 : vector<16x32xf32>
    %cst_62 = arith.constant 1.000000e+00 : f32
    %216 = vector.broadcast %cst_62 : f32 to vector<16x32xf32>
    %217 = arith.addf %216, %215 : vector<16x32xf32>
    %218 = arith.divf %216, %217 : vector<16x32xf32>
    %219 = arith.mulf %210, %189 : vector<16x32xf32>
    %220 = arith.mulf %204, %212 : vector<16x32xf32>
    %221 = arith.addf %219, %220 : vector<16x32xf32>
    %222 = math.tanh %221 : vector<16x32xf32>
    %223 = arith.mulf %218, %222 : vector<16x32xf32>
    %c6_63 = arith.constant 6 : index
    %c0_64 = arith.constant 0 : index
    %c0_65 = arith.constant 0 : index
    %224 = vector.load %arg3[%c6_63, %c0_64, %c0_65] : memref<8x16x32xf32, #tpu.memory_space<vmem>>, vector<1x16x32xf32>
    %225 = vector.shape_cast %224 : vector<1x16x32xf32> to vector<16x32xf32>
    %226 = vector.shape_cast %223 : vector<16x32xf32> to vector<1x16x32xf32>
    tpu.vector_store %arg3[%c6_63, %c0_64, %c0_65], %226 {strides = array<i32>} : memref<8x16x32xf32, #tpu.memory_space<vmem>>, vector<1x16x32xf32>,
    %c7 = arith.constant 7 : index
    %c0_66 = arith.constant 0 : index
    %c0_67 = arith.constant 0 : index
    %227 = vector.load %arg1[%c7, %c0_66, %c0_67] : memref<8x16x128xf32, #tpu.memory_space<vmem>>, vector<1x16x128xf32>
    %228 = vector.shape_cast %227 : vector<1x16x128xf32> to vector<16x128xf32>
    %cst_68 = arith.constant dense<0.000000e+00> : vector<16x128xf32>
    %229 = tpu.matmul %223, %0, %cst_68 {dimension_numbers = #tpu.dot_dimension_numbers<[1], [0], [0], [1], [0, 0, 1, 1], [], []>} : vector<16x32xf32>, vector<32x128xf32>, vector<16x128xf32> -> vector<16x128xf32>
    %230 = arith.addf %228, %229 : vector<16x128xf32>
    %231 = vector.extract_strided_slice %230 {offsets = [0, 0], sizes = [16, 32], strides = [1, 1]} : vector<16x128xf32> to vector<16x32xf32>
    %232 = arith.negf %231 : vector<16x32xf32>
    %233 = math.exp %232 : vector<16x32xf32>
    %cst_69 = arith.constant 1.000000e+00 : f32
    %234 = vector.broadcast %cst_69 : f32 to vector<16x32xf32>
    %235 = arith.addf %234, %233 : vector<16x32xf32>
    %236 = arith.divf %234, %235 : vector<16x32xf32>
    %237 = vector.extract_strided_slice %230 {offsets = [0, 32], sizes = [16, 32], strides = [1, 1]} : vector<16x128xf32> to vector<16x32xf32>
    %238 = arith.negf %237 : vector<16x32xf32>
    %239 = math.exp %238 : vector<16x32xf32>
    %cst_70 = arith.constant 1.000000e+00 : f32
    %240 = vector.broadcast %cst_70 : f32 to vector<16x32xf32>
    %241 = arith.addf %240, %239 : vector<16x32xf32>
    %242 = arith.divf %240, %241 : vector<16x32xf32>
    %243 = vector.extract_strided_slice %230 {offsets = [0, 64], sizes = [16, 32], strides = [1, 1]} : vector<16x128xf32> to vector<16x32xf32>
    %244 = math.tanh %243 : vector<16x32xf32>
    %245 = vector.extract_strided_slice %230 {offsets = [0, 96], sizes = [16, 32], strides = [1, 1]} : vector<16x128xf32> to vector<16x32xf32>
    %246 = arith.negf %245 : vector<16x32xf32>
    %247 = math.exp %246 : vector<16x32xf32>
    %cst_71 = arith.constant 1.000000e+00 : f32
    %248 = vector.broadcast %cst_71 : f32 to vector<16x32xf32>
    %249 = arith.addf %248, %247 : vector<16x32xf32>
    %250 = arith.divf %248, %249 : vector<16x32xf32>
    %251 = arith.mulf %242, %221 : vector<16x32xf32>
    %252 = arith.mulf %236, %244 : vector<16x32xf32>
    %253 = arith.addf %251, %252 : vector<16x32xf32>
    %254 = math.tanh %253 : vector<16x32xf32>
    %255 = arith.mulf %250, %254 : vector<16x32xf32>
    %c7_72 = arith.constant 7 : index
    %c0_73 = arith.constant 0 : index
    %c0_74 = arith.constant 0 : index
    %256 = vector.load %arg3[%c7_72, %c0_73, %c0_74] : memref<8x16x32xf32, #tpu.memory_space<vmem>>, vector<1x16x32xf32>
    %257 = vector.shape_cast %256 : vector<1x16x32xf32> to vector<16x32xf32>
    %258 = vector.shape_cast %255 : vector<16x32xf32> to vector<1x16x32xf32>
    tpu.vector_store %arg3[%c7_72, %c0_73, %c0_74], %258 {strides = array<i32>} : memref<8x16x32xf32, #tpu.memory_space<vmem>>, vector<1x16x32xf32>,
    return
  }
  func.func @transform_0(%arg0: i32) -> (i32, i32, i32) {
    %c0_i32 = arith.constant 0 : i32
    %c0_i32_0 = arith.constant 0 : i32
    %c0_i32_1 = arith.constant 0 : i32
    %c0_i32_2 = arith.constant 0 : i32
    return %c0_i32, %c0_i32_0, %c0_i32_1 : i32, i32, i32
  }
  func.func @transform_1(%arg0: i32) -> (i32, i32) {
    %c0_i32 = arith.constant 0 : i32
    %c0_i32_0 = arith.constant 0 : i32
    %c0_i32_1 = arith.constant 0 : i32
    return %c0_i32, %c0_i32_0 : i32, i32
  }
  func.func @transform_2(%arg0: i32) -> (i32, i32, i32) {
    %c0_i32 = arith.constant 0 : i32
    %c0_i32_0 = arith.constant 0 : i32
    %c0_i32_1 = arith.constant 0 : i32
    %c0_i32_2 = arith.constant 0 : i32
    return %c0_i32, %c0_i32_0, %c0_i32_1 : i32, i32, i32
  }
}

module attributes {stable_mosaic.version = 11 : i64} {
  func.func @_linear_kernel(%arg0: i32, %arg1: memref<128x16xf32, #tpu.memory_space<vmem>>, %arg2: memref<16x48xf32, #tpu.memory_space<vmem>>, %arg3: memref<1x48xf32, #tpu.memory_space<vmem>>, %arg4: memref<1x1xf32, #tpu.memory_space<vmem>>, %arg5: memref<128x48xf32, #tpu.memory_space<vmem>>) attributes {dimension_semantics = [#tpu.dimension_semantics<parallel>], iteration_bounds = array<i64: 1>, scalar_prefetch = 0 : i64, scratch_operands = 0 : i64, tpu.core_type = #tpu.core_type<tc>, window_params = [{transform_indices = @transform_0, window_bounds = array<i64: 128, 16>}, {pipeline_mode = #tpu.pipeline_mode<synchronous>, transform_indices = @transform_1, window_bounds = array<i64: 16, 48>}, {pipeline_mode = #tpu.pipeline_mode<synchronous>, transform_indices = @transform_2, window_bounds = array<i64: 1, 48>}, {pipeline_mode = #tpu.pipeline_mode<synchronous>, transform_indices = @transform_3, window_bounds = array<i64: 1, 1>}, {transform_indices = @transform_4, window_bounds = array<i64: 128, 48>}]} {
    %c0 = arith.constant 0 : index
    %c0_0 = arith.constant 0 : index
    %0 = vector.load %arg1[%c0, %c0_0] : memref<128x16xf32, #tpu.memory_space<vmem>>, vector<128x16xf32>
    %c0_1 = arith.constant 0 : index
    %c0_2 = arith.constant 0 : index
    %1 = vector.load %arg2[%c0_1, %c0_2] : memref<16x48xf32, #tpu.memory_space<vmem>>, vector<16x48xf32>
    %cst = arith.constant dense<0.000000e+00> : vector<128x48xf32>
    %2 = tpu.matmul %0, %1, %cst {dimension_numbers = #tpu.dot_dimension_numbers<[1], [0], [0], [1], [0, 0, 1, 1], [], []>} : vector<128x16xf32>, vector<16x48xf32>, vector<128x48xf32> -> vector<128x48xf32>
    %c0_3 = arith.constant 0 : index
    %c0_4 = arith.constant 0 : index
    %3 = vector.load %arg3[%c0_3, %c0_4] : memref<1x48xf32, #tpu.memory_space<vmem>>, vector<1x48xf32>
    %4 = vector.broadcast %3 : vector<1x48xf32> to vector<128x48xf32>
    %5 = arith.addf %2, %4 : vector<128x48xf32>
    %c0_5 = arith.constant 0 : index
    %c0_6 = arith.constant 0 : index
    %6 = vector.load %arg4[%c0_5, %c0_6] : memref<1x1xf32, #tpu.memory_space<vmem>>, vector<1x1xf32>
    %cst_7 = arith.constant 0.000000e+00 : f32
    %7 = vector.broadcast %cst_7 : f32 to vector<128x48xf32>
    %8 = arith.cmpf oge, %5, %7 : vector<128x48xf32>
    %9 = vector.broadcast %6 : vector<1x1xf32> to vector<128x48xf32>
    %10 = arith.mulf %5, %9 : vector<128x48xf32>
    %11 = arith.select %8, %5, %10 : vector<128x48xi1>, vector<128x48xf32>
    %c0_8 = arith.constant 0 : index
    %c0_9 = arith.constant 0 : index
    %12 = vector.load %arg5[%c0_8, %c0_9] : memref<128x48xf32, #tpu.memory_space<vmem>>, vector<128x48xf32>
    tpu.vector_store %arg5[%c0_8, %c0_9], %11 {strides = array<i32>} : memref<128x48xf32, #tpu.memory_space<vmem>>, vector<128x48xf32>,
    return
  }
  func.func @transform_0(%arg0: i32) -> (i32, i32) {
    %c0_i32 = arith.constant 0 : i32
    %c0_i32_0 = arith.constant 0 : i32
    return %arg0, %c0_i32 : i32, i32
  }
  func.func @transform_1(%arg0: i32) -> (i32, i32) {
    %c0_i32 = arith.constant 0 : i32
    %c0_i32_0 = arith.constant 0 : i32
    %c0_i32_1 = arith.constant 0 : i32
    return %c0_i32, %c0_i32_0 : i32, i32
  }
  func.func @transform_2(%arg0: i32) -> (i32, i32) {
    %c0_i32 = arith.constant 0 : i32
    %c0_i32_0 = arith.constant 0 : i32
    %c0_i32_1 = arith.constant 0 : i32
    return %c0_i32, %c0_i32_0 : i32, i32
  }
  func.func @transform_3(%arg0: i32) -> (i32, i32) {
    %c0_i32 = arith.constant 0 : i32
    %c0_i32_0 = arith.constant 0 : i32
    %c0_i32_1 = arith.constant 0 : i32
    return %c0_i32, %c0_i32_0 : i32, i32
  }
  func.func @transform_4(%arg0: i32) -> (i32, i32) {
    %c0_i32 = arith.constant 0 : i32
    %c0_i32_0 = arith.constant 0 : i32
    return %arg0, %c0_i32 : i32, i32
  }
}

module attributes {stable_mosaic.version = 11 : i64} {
  func.func @_linear_kernel(%arg0: i32, %arg1: memref<64x48xf32, #tpu.memory_space<vmem>>, %arg2: memref<48x48xf32, #tpu.memory_space<vmem>>, %arg3: memref<1x48xf32, #tpu.memory_space<vmem>>, %arg4: memref<1x1xf32, #tpu.memory_space<vmem>>, %arg5: memref<64x48xf32, #tpu.memory_space<vmem>>) attributes {dimension_semantics = [#tpu.dimension_semantics<parallel>], iteration_bounds = array<i64: 1>, scalar_prefetch = 0 : i64, scratch_operands = 0 : i64, tpu.core_type = #tpu.core_type<tc>, window_params = [{transform_indices = @transform_0, window_bounds = array<i64: 64, 48>}, {pipeline_mode = #tpu.pipeline_mode<synchronous>, transform_indices = @transform_1, window_bounds = array<i64: 48, 48>}, {pipeline_mode = #tpu.pipeline_mode<synchronous>, transform_indices = @transform_2, window_bounds = array<i64: 1, 48>}, {pipeline_mode = #tpu.pipeline_mode<synchronous>, transform_indices = @transform_3, window_bounds = array<i64: 1, 1>}, {transform_indices = @transform_4, window_bounds = array<i64: 64, 48>}]} {
    %c0 = arith.constant 0 : index
    %c0_0 = arith.constant 0 : index
    %0 = vector.load %arg1[%c0, %c0_0] : memref<64x48xf32, #tpu.memory_space<vmem>>, vector<64x48xf32>
    %c0_1 = arith.constant 0 : index
    %c0_2 = arith.constant 0 : index
    %1 = vector.load %arg2[%c0_1, %c0_2] : memref<48x48xf32, #tpu.memory_space<vmem>>, vector<48x48xf32>
    %cst = arith.constant dense<0.000000e+00> : vector<64x48xf32>
    %2 = tpu.matmul %0, %1, %cst {dimension_numbers = #tpu.dot_dimension_numbers<[1], [0], [0], [1], [0, 0, 1, 1], [], []>} : vector<64x48xf32>, vector<48x48xf32>, vector<64x48xf32> -> vector<64x48xf32>
    %c0_3 = arith.constant 0 : index
    %c0_4 = arith.constant 0 : index
    %3 = vector.load %arg3[%c0_3, %c0_4] : memref<1x48xf32, #tpu.memory_space<vmem>>, vector<1x48xf32>
    %4 = vector.broadcast %3 : vector<1x48xf32> to vector<64x48xf32>
    %5 = arith.addf %2, %4 : vector<64x48xf32>
    %c0_5 = arith.constant 0 : index
    %c0_6 = arith.constant 0 : index
    %6 = vector.load %arg4[%c0_5, %c0_6] : memref<1x1xf32, #tpu.memory_space<vmem>>, vector<1x1xf32>
    %cst_7 = arith.constant 0.000000e+00 : f32
    %7 = vector.broadcast %cst_7 : f32 to vector<64x48xf32>
    %8 = arith.cmpf oge, %5, %7 : vector<64x48xf32>
    %9 = vector.broadcast %6 : vector<1x1xf32> to vector<64x48xf32>
    %10 = arith.mulf %5, %9 : vector<64x48xf32>
    %11 = arith.select %8, %5, %10 : vector<64x48xi1>, vector<64x48xf32>
    %c0_8 = arith.constant 0 : index
    %c0_9 = arith.constant 0 : index
    %12 = vector.load %arg5[%c0_8, %c0_9] : memref<64x48xf32, #tpu.memory_space<vmem>>, vector<64x48xf32>
    tpu.vector_store %arg5[%c0_8, %c0_9], %11 {strides = array<i32>} : memref<64x48xf32, #tpu.memory_space<vmem>>, vector<64x48xf32>,
    return
  }
  func.func @transform_0(%arg0: i32) -> (i32, i32) {
    %c0_i32 = arith.constant 0 : i32
    %c0_i32_0 = arith.constant 0 : i32
    return %arg0, %c0_i32 : i32, i32
  }
  func.func @transform_1(%arg0: i32) -> (i32, i32) {
    %c0_i32 = arith.constant 0 : i32
    %c0_i32_0 = arith.constant 0 : i32
    %c0_i32_1 = arith.constant 0 : i32
    return %c0_i32, %c0_i32_0 : i32, i32
  }
  func.func @transform_2(%arg0: i32) -> (i32, i32) {
    %c0_i32 = arith.constant 0 : i32
    %c0_i32_0 = arith.constant 0 : i32
    %c0_i32_1 = arith.constant 0 : i32
    return %c0_i32, %c0_i32_0 : i32, i32
  }
  func.func @transform_3(%arg0: i32) -> (i32, i32) {
    %c0_i32 = arith.constant 0 : i32
    %c0_i32_0 = arith.constant 0 : i32
    %c0_i32_1 = arith.constant 0 : i32
    return %c0_i32, %c0_i32_0 : i32, i32
  }
  func.func @transform_4(%arg0: i32) -> (i32, i32) {
    %c0_i32 = arith.constant 0 : i32
    %c0_i32_0 = arith.constant 0 : i32
    return %arg0, %c0_i32 : i32, i32
  }
}

module attributes {stable_mosaic.version = 11 : i64} {
  func.func @_linear_kernel(%arg0: i32, %arg1: memref<128x96xf32, #tpu.memory_space<vmem>>, %arg2: memref<96x16xf32, #tpu.memory_space<vmem>>, %arg3: memref<1x16xf32, #tpu.memory_space<vmem>>, %arg4: memref<1x1xf32, #tpu.memory_space<vmem>>, %arg5: memref<128x16xf32, #tpu.memory_space<vmem>>) attributes {dimension_semantics = [#tpu.dimension_semantics<parallel>], iteration_bounds = array<i64: 1>, scalar_prefetch = 0 : i64, scratch_operands = 0 : i64, tpu.core_type = #tpu.core_type<tc>, window_params = [{transform_indices = @transform_0, window_bounds = array<i64: 128, 96>}, {pipeline_mode = #tpu.pipeline_mode<synchronous>, transform_indices = @transform_1, window_bounds = array<i64: 96, 16>}, {pipeline_mode = #tpu.pipeline_mode<synchronous>, transform_indices = @transform_2, window_bounds = array<i64: 1, 16>}, {pipeline_mode = #tpu.pipeline_mode<synchronous>, transform_indices = @transform_3, window_bounds = array<i64: 1, 1>}, {transform_indices = @transform_4, window_bounds = array<i64: 128, 16>}]} {
    %c0 = arith.constant 0 : index
    %c0_0 = arith.constant 0 : index
    %0 = vector.load %arg1[%c0, %c0_0] : memref<128x96xf32, #tpu.memory_space<vmem>>, vector<128x96xf32>
    %c0_1 = arith.constant 0 : index
    %c0_2 = arith.constant 0 : index
    %1 = vector.load %arg2[%c0_1, %c0_2] : memref<96x16xf32, #tpu.memory_space<vmem>>, vector<96x16xf32>
    %cst = arith.constant dense<0.000000e+00> : vector<128x16xf32>
    %2 = tpu.matmul %0, %1, %cst {dimension_numbers = #tpu.dot_dimension_numbers<[1], [0], [0], [1], [0, 0, 1, 1], [], []>} : vector<128x96xf32>, vector<96x16xf32>, vector<128x16xf32> -> vector<128x16xf32>
    %c0_3 = arith.constant 0 : index
    %c0_4 = arith.constant 0 : index
    %3 = vector.load %arg3[%c0_3, %c0_4] : memref<1x16xf32, #tpu.memory_space<vmem>>, vector<1x16xf32>
    %4 = vector.broadcast %3 : vector<1x16xf32> to vector<128x16xf32>
    %5 = arith.addf %2, %4 : vector<128x16xf32>
    %c0_5 = arith.constant 0 : index
    %c0_6 = arith.constant 0 : index
    %6 = vector.load %arg4[%c0_5, %c0_6] : memref<1x1xf32, #tpu.memory_space<vmem>>, vector<1x1xf32>
    %cst_7 = arith.constant 0.000000e+00 : f32
    %7 = vector.broadcast %cst_7 : f32 to vector<128x16xf32>
    %8 = arith.cmpf oge, %5, %7 : vector<128x16xf32>
    %9 = vector.broadcast %6 : vector<1x1xf32> to vector<128x16xf32>
    %10 = arith.mulf %5, %9 : vector<128x16xf32>
    %11 = arith.select %8, %5, %10 : vector<128x16xi1>, vector<128x16xf32>
    %c0_8 = arith.constant 0 : index
    %c0_9 = arith.constant 0 : index
    %12 = vector.load %arg5[%c0_8, %c0_9] : memref<128x16xf32, #tpu.memory_space<vmem>>, vector<128x16xf32>
    tpu.vector_store %arg5[%c0_8, %c0_9], %11 {strides = array<i32>} : memref<128x16xf32, #tpu.memory_space<vmem>>, vector<128x16xf32>,
    return
  }
  func.func @transform_0(%arg0: i32) -> (i32, i32) {
    %c0_i32 = arith.constant 0 : i32
    %c0_i32_0 = arith.constant 0 : i32
    return %arg0, %c0_i32 : i32, i32
  }
  func.func @transform_1(%arg0: i32) -> (i32, i32) {
    %c0_i32 = arith.constant 0 : i32
    %c0_i32_0 = arith.constant 0 : i32
    %c0_i32_1 = arith.constant 0 : i32
    return %c0_i32, %c0_i32_0 : i32, i32
  }
  func.func @transform_2(%arg0: i32) -> (i32, i32) {
    %c0_i32 = arith.constant 0 : i32
    %c0_i32_0 = arith.constant 0 : i32
    %c0_i32_1 = arith.constant 0 : i32
    return %c0_i32, %c0_i32_0 : i32, i32
  }
  func.func @transform_3(%arg0: i32) -> (i32, i32) {
    %c0_i32 = arith.constant 0 : i32
    %c0_i32_0 = arith.constant 0 : i32
    %c0_i32_1 = arith.constant 0 : i32
    return %c0_i32, %c0_i32_0 : i32, i32
  }
  func.func @transform_4(%arg0: i32) -> (i32, i32) {
    %c0_i32 = arith.constant 0 : i32
    %c0_i32_0 = arith.constant 0 : i32
    return %arg0, %c0_i32 : i32, i32
  }
}

module attributes {stable_mosaic.version = 11 : i64} {
  func.func @_linear_kernel(%arg0: i32, %arg1: memref<128x16xf32, #tpu.memory_space<vmem>>, %arg2: memref<16x32xf32, #tpu.memory_space<vmem>>, %arg3: memref<1x32xf32, #tpu.memory_space<vmem>>, %arg4: memref<128x32xf32, #tpu.memory_space<vmem>>) attributes {dimension_semantics = [#tpu.dimension_semantics<parallel>], iteration_bounds = array<i64: 1>, scalar_prefetch = 0 : i64, scratch_operands = 0 : i64, tpu.core_type = #tpu.core_type<tc>, window_params = [{transform_indices = @transform_0, window_bounds = array<i64: 128, 16>}, {pipeline_mode = #tpu.pipeline_mode<synchronous>, transform_indices = @transform_1, window_bounds = array<i64: 16, 32>}, {pipeline_mode = #tpu.pipeline_mode<synchronous>, transform_indices = @transform_2, window_bounds = array<i64: 1, 32>}, {transform_indices = @transform_3, window_bounds = array<i64: 128, 32>}]} {
    %c0 = arith.constant 0 : index
    %c0_0 = arith.constant 0 : index
    %0 = vector.load %arg1[%c0, %c0_0] : memref<128x16xf32, #tpu.memory_space<vmem>>, vector<128x16xf32>
    %c0_1 = arith.constant 0 : index
    %c0_2 = arith.constant 0 : index
    %1 = vector.load %arg2[%c0_1, %c0_2] : memref<16x32xf32, #tpu.memory_space<vmem>>, vector<16x32xf32>
    %cst = arith.constant dense<0.000000e+00> : vector<128x32xf32>
    %2 = tpu.matmul %0, %1, %cst {dimension_numbers = #tpu.dot_dimension_numbers<[1], [0], [0], [1], [0, 0, 1, 1], [], []>} : vector<128x16xf32>, vector<16x32xf32>, vector<128x32xf32> -> vector<128x32xf32>
    %c0_3 = arith.constant 0 : index
    %c0_4 = arith.constant 0 : index
    %3 = vector.load %arg3[%c0_3, %c0_4] : memref<1x32xf32, #tpu.memory_space<vmem>>, vector<1x32xf32>
    %4 = vector.broadcast %3 : vector<1x32xf32> to vector<128x32xf32>
    %5 = arith.addf %2, %4 : vector<128x32xf32>
    %c0_5 = arith.constant 0 : index
    %c0_6 = arith.constant 0 : index
    %6 = vector.load %arg4[%c0_5, %c0_6] : memref<128x32xf32, #tpu.memory_space<vmem>>, vector<128x32xf32>
    tpu.vector_store %arg4[%c0_5, %c0_6], %5 {strides = array<i32>} : memref<128x32xf32, #tpu.memory_space<vmem>>, vector<128x32xf32>,
    return
  }
  func.func @transform_0(%arg0: i32) -> (i32, i32) {
    %c0_i32 = arith.constant 0 : i32
    %c0_i32_0 = arith.constant 0 : i32
    return %arg0, %c0_i32 : i32, i32
  }
  func.func @transform_1(%arg0: i32) -> (i32, i32) {
    %c0_i32 = arith.constant 0 : i32
    %c0_i32_0 = arith.constant 0 : i32
    %c0_i32_1 = arith.constant 0 : i32
    return %c0_i32, %c0_i32_0 : i32, i32
  }
  func.func @transform_2(%arg0: i32) -> (i32, i32) {
    %c0_i32 = arith.constant 0 : i32
    %c0_i32_0 = arith.constant 0 : i32
    %c0_i32_1 = arith.constant 0 : i32
    return %c0_i32, %c0_i32_0 : i32, i32
  }
  func.func @transform_3(%arg0: i32) -> (i32, i32) {
    %c0_i32 = arith.constant 0 : i32
    %c0_i32_0 = arith.constant 0 : i32
    return %arg0, %c0_i32 : i32, i32
  }
}

module attributes {stable_mosaic.version = 11 : i64} {
  func.func @_linear_kernel(%arg0: i32, %arg1: memref<80x16xf32, #tpu.memory_space<vmem>>, %arg2: memref<16x16xf32, #tpu.memory_space<vmem>>, %arg3: memref<1x16xf32, #tpu.memory_space<vmem>>, %arg4: memref<80x16xf32, #tpu.memory_space<vmem>>) attributes {dimension_semantics = [#tpu.dimension_semantics<parallel>], iteration_bounds = array<i64: 1>, scalar_prefetch = 0 : i64, scratch_operands = 0 : i64, tpu.core_type = #tpu.core_type<tc>, window_params = [{transform_indices = @transform_0, window_bounds = array<i64: 80, 16>}, {pipeline_mode = #tpu.pipeline_mode<synchronous>, transform_indices = @transform_1, window_bounds = array<i64: 16, 16>}, {pipeline_mode = #tpu.pipeline_mode<synchronous>, transform_indices = @transform_2, window_bounds = array<i64: 1, 16>}, {transform_indices = @transform_3, window_bounds = array<i64: 80, 16>}]} {
    %c0 = arith.constant 0 : index
    %c0_0 = arith.constant 0 : index
    %0 = vector.load %arg1[%c0, %c0_0] : memref<80x16xf32, #tpu.memory_space<vmem>>, vector<80x16xf32>
    %c0_1 = arith.constant 0 : index
    %c0_2 = arith.constant 0 : index
    %1 = vector.load %arg2[%c0_1, %c0_2] : memref<16x16xf32, #tpu.memory_space<vmem>>, vector<16x16xf32>
    %cst = arith.constant dense<0.000000e+00> : vector<80x16xf32>
    %2 = tpu.matmul %0, %1, %cst {dimension_numbers = #tpu.dot_dimension_numbers<[1], [0], [0], [1], [0, 0, 1, 1], [], []>} : vector<80x16xf32>, vector<16x16xf32>, vector<80x16xf32> -> vector<80x16xf32>
    %c0_3 = arith.constant 0 : index
    %c0_4 = arith.constant 0 : index
    %3 = vector.load %arg3[%c0_3, %c0_4] : memref<1x16xf32, #tpu.memory_space<vmem>>, vector<1x16xf32>
    %4 = vector.broadcast %3 : vector<1x16xf32> to vector<80x16xf32>
    %5 = arith.addf %2, %4 : vector<80x16xf32>
    %c0_5 = arith.constant 0 : index
    %c0_6 = arith.constant 0 : index
    %6 = vector.load %arg4[%c0_5, %c0_6] : memref<80x16xf32, #tpu.memory_space<vmem>>, vector<80x16xf32>
    tpu.vector_store %arg4[%c0_5, %c0_6], %5 {strides = array<i32>} : memref<80x16xf32, #tpu.memory_space<vmem>>, vector<80x16xf32>,
    return
  }
  func.func @transform_0(%arg0: i32) -> (i32, i32) {
    %c0_i32 = arith.constant 0 : i32
    %c0_i32_0 = arith.constant 0 : i32
    return %arg0, %c0_i32 : i32, i32
  }
  func.func @transform_1(%arg0: i32) -> (i32, i32) {
    %c0_i32 = arith.constant 0 : i32
    %c0_i32_0 = arith.constant 0 : i32
    %c0_i32_1 = arith.constant 0 : i32
    return %c0_i32, %c0_i32_0 : i32, i32
  }
  func.func @transform_2(%arg0: i32) -> (i32, i32) {
    %c0_i32 = arith.constant 0 : i32
    %c0_i32_0 = arith.constant 0 : i32
    %c0_i32_1 = arith.constant 0 : i32
    return %c0_i32, %c0_i32_0 : i32, i32
  }
  func.func @transform_3(%arg0: i32) -> (i32, i32) {
    %c0_i32 = arith.constant 0 : i32
    %c0_i32_0 = arith.constant 0 : i32
    return %arg0, %c0_i32 : i32, i32
  }
}

module attributes {stable_mosaic.version = 11 : i64} {
  func.func @_filter_decode_kernel(%arg0: i32, %arg1: memref<40x80xf32, #tpu.memory_space<vmem>>, %arg2: memref<40x80xf32, #tpu.memory_space<vmem>>, %arg3: memref<80x16xf32, #tpu.memory_space<vmem>>, %arg4: memref<40x16xf32, #tpu.memory_space<vmem>>) attributes {dimension_semantics = [#tpu.dimension_semantics<parallel>], iteration_bounds = array<i64: 1>, scalar_prefetch = 0 : i64, scratch_operands = 0 : i64, tpu.core_type = #tpu.core_type<tc>, window_params = [{transform_indices = @transform_0, window_bounds = array<i64: 40, 80>}, {transform_indices = @transform_1, window_bounds = array<i64: 40, 80>}, {pipeline_mode = #tpu.pipeline_mode<synchronous>, transform_indices = @transform_2, window_bounds = array<i64: 80, 16>}, {transform_indices = @transform_3, window_bounds = array<i64: 40, 16>}]} {
    %c0 = arith.constant 0 : index
    %c0_0 = arith.constant 0 : index
    %0 = vector.load %arg1[%c0, %c0_0] : memref<40x80xf32, #tpu.memory_space<vmem>>, vector<40x80xf32>
    %c0_1 = arith.constant 0 : index
    %c0_2 = arith.constant 0 : index
    %1 = vector.load %arg2[%c0_1, %c0_2] : memref<40x80xf32, #tpu.memory_space<vmem>>, vector<40x80xf32>
    %2 = arith.mulf %0, %1 : vector<40x80xf32>
    %c0_3 = arith.constant 0 : index
    %c0_4 = arith.constant 0 : index
    %3 = vector.load %arg3[%c0_3, %c0_4] : memref<80x16xf32, #tpu.memory_space<vmem>>, vector<80x16xf32>
    %cst = arith.constant dense<0.000000e+00> : vector<40x16xf32>
    %4 = tpu.matmul %2, %3, %cst {dimension_numbers = #tpu.dot_dimension_numbers<[1], [0], [0], [1], [0, 0, 1, 1], [], []>} : vector<40x80xf32>, vector<80x16xf32>, vector<40x16xf32> -> vector<40x16xf32>
    %c0_5 = arith.constant 0 : index
    %c0_6 = arith.constant 0 : index
    %5 = vector.load %arg4[%c0_5, %c0_6] : memref<40x16xf32, #tpu.memory_space<vmem>>, vector<40x16xf32>
    tpu.vector_store %arg4[%c0_5, %c0_6], %4 {strides = array<i32>} : memref<40x16xf32, #tpu.memory_space<vmem>>, vector<40x16xf32>,
    return
  }
  func.func @transform_0(%arg0: i32) -> (i32, i32) {
    %c0_i32 = arith.constant 0 : i32
    %c0_i32_0 = arith.constant 0 : i32
    return %arg0, %c0_i32 : i32, i32
  }
  func.func @transform_1(%arg0: i32) -> (i32, i32) {
    %c0_i32 = arith.constant 0 : i32
    %c0_i32_0 = arith.constant 0 : i32
    return %arg0, %c0_i32 : i32, i32
  }
  func.func @transform_2(%arg0: i32) -> (i32, i32) {
    %c0_i32 = arith.constant 0 : i32
    %c0_i32_0 = arith.constant 0 : i32
    %c0_i32_1 = arith.constant 0 : i32
    return %c0_i32, %c0_i32_0 : i32, i32
  }
  func.func @transform_3(%arg0: i32) -> (i32, i32) {
    %c0_i32 = arith.constant 0 : i32
    %c0_i32_0 = arith.constant 0 : i32
    return %arg0, %c0_i32 : i32, i32
  }
}

</mosaic_0001>

<llo_original>
// kernel: _lambda_.31
$region0: #{_lambda_.31}
  #allocation0 [shape = 'u32[]', space=smem, size = 0x4, offset = 0x4, fixed_abs, tag = 'smem constant byte address 0x4 - core index']
  #allocation1 [shape = 'u32[144,128]{1,0:T(1,128)}', space=vmem, size = 0x12000, scoped, tag = 'internal scratch']
  %s0 = inlined_call_operand.vmem [shape: f32[40,16], index: 0, kind: input, shape index: {}]
  %s1 = inlined_call_operand.vmem [shape: f32[16,16], index: 1, kind: input, shape index: {}]
  %s2 = inlined_call_operand.vmem [shape: f32[1,16], index: 2, kind: input, shape index: {}]
  %s3 = inlined_call_operand.vmem [shape: f32[40,16], index: 3, kind: output, shape index: {}]
  %s4 = sld [smem:[#allocation0]]
  $region22: #{_lambda_.31} parent=0
    _
  %s6 = ssub.s32 1, %s4
  %s7 = scalar_select 0, %s6, %s4
  // Predicated region
  $region2: #{_lambda_.31} parent=0 // pred_check
    _
  $region3: #{_lambda_.31} parent=0 // pred_check_branch
    %9 = sbr.rel (0) target = $region5
  $region4: #{_lambda_.31} parent=0 // pred_region
    _
  $region5: #{_lambda_.31} parent=0 // pred_fallthru
    _
  // Predicated region
  $region6: #{_lambda_.31} parent=0 // pred_check
    _
  $region7: #{_lambda_.31} parent=0 // pred_check_branch
    %11 = sbr.rel (0) target = $region9
  $region8: #{_lambda_.31} parent=0 // pred_region
    _
  $region9: #{_lambda_.31} parent=0 // pred_fallthru
    _
  // Predicated region
  $region10: #{_lambda_.31} parent=0 // pred_check
    _
  $region11: #{_lambda_.31} parent=0 // pred_check_branch
    %13 = sbr.rel (0) target = $region13
  $region12: #{_lambda_.31} parent=0 // pred_region
    _
  $region13: #{_lambda_.31} parent=0 // pred_fallthru
    _
  %v14 = vld [vmem:[%s0] sm:$0xff]
  %v15 = vld [vmem:[%s0 + $0x8] sm:$0xff]
  %v16 = vld [vmem:[%s0 + $0x10] sm:$0xff]
  %v17 = vld [vmem:[%s0 + $0x18] sm:$0xff]
  %v18 = vld [vmem:[%s0 + $0x20] sm:$0xff]
  %v19 = vld [vmem:[%s1] sm:$0xff]
  %v20 = vld [vmem:[%s1 + $0x8] sm:$0xff]
  %v21 = vld [vmem:[%s2] sm:$0x1]
  %v23 = vlaneseq
  %v24 = vshrl.u32 %v23, 7
  %v25 = vsub.s32 0, %v24
  %v26 = vrot.slane %v21, %v25
  %vm28 = vcmask 130048
  %v30 = vsel %vm28, %v14, 0
  %v33 = vsel %vm28, %v15, 0
  %v36 = vsel %vm28, %v16, 0
  %v39 = vsel %vm28, %v17, 0
  %v42 = vsel %vm28, %v18, 0
  %44 = vmatprep.subr.mxu0 0.0
  %45 = vmatpush1.msra.mxu0 %v19
  %46 = vmatprep.subr.mxu0 0.0
  %47 = vmatpush1.msra.mxu0 %v20
  %48 = vmatprep.subr.mxu0 0.0
  %49 = vmatpush1.msra.mxu0 0.0
  %50 = vmatprep.subr.mxu0 0.0
  %51 = vmatpush1.msra.mxu0 0.0
  %52 = vmatprep.subr.mxu0 0.0
  %53 = vmatpush1.msra.mxu0 0.0
  %54 = vmatprep.subr.mxu0 0.0
  %55 = vmatpush1.msra.mxu0 0.0
  %56 = vmatprep.subr.mxu0 0.0
  %57 = vmatpush1.msra.mxu0 0.0
  %58 = vmatprep.subr.mxu0 0.0
  %59 = vmatpush1.msra.mxu0 0.0
  %60 = vmatprep.subr.mxu0 0.0
  %61 = vmatpush1.msra.mxu0 0.0
  %62 = vmatprep.subr.mxu0 0.0
  %63 = vmatpush1.msra.mxu0 0.0
  %64 = vmatprep.subr.mxu0 0.0
  %65 = vmatpush1.msra.mxu0 0.0
  %66 = vmatprep.subr.mxu0 0.0
  %67 = vmatpush1.msra.mxu0 0.0
  %68 = vmatprep.subr.mxu0 0.0
  %69 = vmatpush1.msra.mxu0 0.0
  %70 = vmatprep.subr.mxu0 0.0
  %71 = vmatpush1.msra.mxu0 0.0
  %72 = vmatprep.subr.mxu0 0.0
  %73 = vmatpush1.msra.mxu0 0.0
  %74 = vmatprep.subr.mxu0 0.0
  %75 = vmatpush1.msra.mxu0 0.0
  %76 = vmatprep.subr.mxu0 0.0
  %77 = vmatpush1.msra.mxu0 0.0
  %78 = vmatprep.subr.mxu0 0.0
  %79 = vmatpush1.msra.mxu0 0.0
  %80 = vmatprep.subr.mxu0 0.0
  %81 = vmatpush1.msra.mxu0 0.0
  %82 = vmatprep.subr.mxu0 0.0
  %83 = vmatpush1.msra.mxu0 0.0
  %84 = vmatprep.subr.mxu0 0.0
  %85 = vmatpush1.msra.mxu0 0.0
  %86 = vmatprep.subr.mxu0 0.0
  %87 = vmatpush1.msra.mxu0 0.0
  %88 = vmatprep.subr.mxu0 0.0
  %89 = vmatpush1.msra.mxu0 0.0
  %90 = vmatprep.subr.mxu0 0.0
  %91 = vmatpush1.msra.mxu0 0.0
  %92 = vmatprep.subr.mxu0 0.0
  %93 = vmatpush1.msra.mxu0 0.0
  %94 = vmatprep.subr.mxu0 0.0
  %95 = vmatpush1.msra.mxu0 0.0
  %96 = vmatprep.subr.mxu0 0.0
  %97 = vmatpush1.msra.mxu0 0.0
  %98 = vmatprep.subr.mxu0 0.0
  %99 = vmatpush1.msra.mxu0 0.0
  %100 = vmatprep.subr.mxu0 0.0
  %101 = vmatpush1.msra.mxu0 0.0
  %102 = vmatprep.subr.mxu0 0.0
  %103 = vmatpush1.msra.mxu0 0.0
  %104 = vmatprep.subr.mxu0 0.0
  %105 = vmatpush1.msra.mxu0 0.0
  %106 = vmatprep.subr.mxu0 0.0
  %107 = vmatpush1.msra.mxu0 0.0
  %108 = vmatprep.mubr.f32.mxu0 0.0
  %109 = vmatmul.mubr.f32.gmra.mrb[0].mxu0 %v30
  %v110 = vpop.f32.mrb[0].mxu0
  %v111 = vadd.f32 %v26, %v110
  %v112 = vpop.f32.mrb[0].mxu0
  %113 = vmatprep.mubr.f32.mxu0 0.0
  %114 = vmatmul.mubr.f32.gmra.mrb[0].mxu0 %v33
  %v115 = vpop.f32.mrb[0].mxu0
  %v116 = vadd.f32 %v26, %v115
  %v117 = vpop.f32.mrb[0].mxu0
  %118 = vmatprep.mubr.f32.mxu0 0.0
  %119 = vmatmul.mubr.f32.gmra.mrb[0].mxu0 %v36
  %v120 = vpop.f32.mrb[0].mxu0
  %v121 = vadd.f32 %v26, %v120
  %v122 = vpop.f32.mrb[0].mxu0
  %123 = vmatprep.mubr.f32.mxu0 0.0
  %124 = vmatmul.mubr.f32.gmra.mrb[0].mxu0 %v39
  %v125 = vpop.f32.mrb[0].mxu0
  %v126 = vadd.f32 %v26, %v125
  %v127 = vpop.f32.mrb[0].mxu0
  %128 = vmatprep.mubr.f32.mxu0 0.0
  %129 = vmatmul.mubr.f32.gmra.mrb[0].mxu0 %v42
  %v130 = vpop.f32.mrb[0].mxu0
  %v131 = vadd.f32 %v26, %v130
  %v132 = vpop.f32.mrb[0].mxu0
  %133 = vdwg.mxu0
  %134 = vst.msk [vmem:[%s3] sm:$0xff] %vm28, %v111
  %135 = vst.msk [vmem:[%s3 + $0x8] sm:$0xff] %vm28, %v116
  %136 = vst.msk [vmem:[%s3 + $0x10] sm:$0xff] %vm28, %v121
  %137 = vst.msk [vmem:[%s3 + $0x18] sm:$0xff] %vm28, %v126
  %138 = vst.msk [vmem:[%s3 + $0x20] sm:$0xff] %vm28, %v131
  // Predicated region
  $region14: #{_lambda_.31} parent=0 // pred_check
    _
  $region15: #{_lambda_.31} parent=0 // pred_check_branch
    %140 = sbr.rel (0) target = $region17
  $region16: #{_lambda_.31} parent=0 // pred_region
    _
  $region17: #{_lambda_.31} parent=0 // pred_fallthru
    _
  // Predicated region
  $region18: #{_lambda_.31} parent=0 // pred_check
    _
  $region19: #{_lambda_.31} parent=0 // pred_check_branch
    %142 = sbr.rel (0) target = $region21
  $region20: #{_lambda_.31} parent=0 // pred_region
    _
  $region21: #{_lambda_.31} parent=0 // pred_fallthru
    _

// kernel: _lambda_.33
$region0: #{_lambda_.33}
  #allocation0 [shape = 'u32[]', space=smem, size = 0x4, offset = 0x4, fixed_abs, tag = 'smem constant byte address 0x4 - core index']
  #allocation1 [shape = 'u32[144,128]{1,0:T(1,128)}', space=vmem, size = 0x12000, scoped, tag = 'internal scratch']
  %s0 = inlined_call_operand.vmem [shape: f32[8,160], index: 0, kind: input, shape index: {}]
  %s1 = inlined_call_operand.vmem [shape: f32[1,160], index: 1, kind: input, shape index: {}]
  %s2 = inlined_call_operand.vmem [shape: f32[1,160], index: 2, kind: input, shape index: {}]
  %s3 = inlined_call_operand.vmem [shape: f32[8,160], index: 3, kind: output, shape index: {}]
  %s4 = sld [smem:[#allocation0]]
  $region22: #{_lambda_.33} parent=0
    _
  %s6 = ssub.s32 1, %s4
  %s7 = scalar_select 0, %s6, %s4
  // Predicated region
  $region2: #{_lambda_.33} parent=0 // pred_check
    _
  $region3: #{_lambda_.33} parent=0 // pred_check_branch
    %9 = sbr.rel (0) target = $region5
  $region4: #{_lambda_.33} parent=0 // pred_region
    _
  $region5: #{_lambda_.33} parent=0 // pred_fallthru
    _
  // Predicated region
  $region6: #{_lambda_.33} parent=0 // pred_check
    _
  $region7: #{_lambda_.33} parent=0 // pred_check_branch
    %11 = sbr.rel (0) target = $region9
  $region8: #{_lambda_.33} parent=0 // pred_region
    _
  $region9: #{_lambda_.33} parent=0 // pred_fallthru
    _
  // Predicated region
  $region10: #{_lambda_.33} parent=0 // pred_check
    _
  $region11: #{_lambda_.33} parent=0 // pred_check_branch
    %13 = sbr.rel (0) target = $region13
  $region12: #{_lambda_.33} parent=0 // pred_region
    _
  $region13: #{_lambda_.33} parent=0 // pred_fallthru
    _
  %v14 = vld [vmem:[%s0] sm:$0xff]
  %v15 = vld [vmem:[%s0 + $0x8] sm:$0xff]
  %vm16 = vcmask 261120
  %v17 = vsel %vm16, %v15, 0.0
  %v18 = vadd.f32 %v14, %v17
  %19 = vadd.xlane.f32.xlu0 %v18
  %v20 = vpop.xlane.xlu0 %19
  %v21 = vrcp.pop 160.0
  %v22 = vmul.f32 %v20, %v21
  %v23 = vsub.f32 %v14, %v22
  %v24 = vsub.f32 %v15, %v22
  %v25 = vmul.f32 %v23, %v23
  %v26 = vmul.f32 %v24, %v24
  %v27 = vsel %vm16, %v26, 0.0
  %v28 = vadd.f32 %v25, %v27
  %29 = vadd.xlane.f32.xlu0 %v28
  %v30 = vpop.xlane.xlu0 %29
  %v31 = vmul.f32 %v30, %v21
  %v32 = vadd.f32 %v31, 1e-08
  %v33 = vrsqrt.pop %v32
  %v34 = vmul.f32 %v23, %v33
  %v35 = vmul.f32 %v24, %v33
  %v36 = vld [vmem:[%s1] sm:$0x3]
  %v38 = vlaneseq
  %v39 = vshrl.u32 %v38, 7
  %v40 = vsub.s32 0, %v39
  %v41 = vrot.slane %v36, %v40
  %v42 = vlaneseq
  %v43 = vshrl.u32 %v42, 7
  %v44 = vsub.s32 1, %v43
  %v45 = vrot.slane %v36, %v44
  %v48 = vmul.f32 %v34, %v41
  %v49 = vmul.f32 %v35, %v45
  %v50 = vld [vmem:[%s2] sm:$0x3]
  %v52 = vlaneseq
  %v53 = vshrl.u32 %v52, 7
  %v54 = vsub.s32 0, %v53
  %v55 = vrot.slane %v50, %v54
  %v56 = vlaneseq
  %v57 = vshrl.u32 %v56, 7
  %v58 = vsub.s32 1, %v57
  %v59 = vrot.slane %v50, %v58
  %v62 = vadd.f32 %v48, %v55
  %v63 = vadd.f32 %v49, %v59
  %64 = vst [vmem:[%s3] sm:$0xff] %v62
  %65 = vst.msk [vmem:[%s3 + $0x8] sm:$0xff] %vm16, %v63
  // Predicated region
  $region14: #{_lambda_.33} parent=0 // pred_check
    _
  $region15: #{_lambda_.33} parent=0 // pred_check_branch
    %67 = sbr.rel (0) target = $region17
  $region16: #{_lambda_.33} parent=0 // pred_region
    _
  $region17: #{_lambda_.33} parent=0 // pred_fallthru
    _
  // Predicated region
  $region18: #{_lambda_.33} parent=0 // pred_check
    _
  $region19: #{_lambda_.33} parent=0 // pred_check_branch
    %69 = sbr.rel (0) target = $region21
  $region20: #{_lambda_.33} parent=0 // pred_region
    _
  $region21: #{_lambda_.33} parent=0 // pred_fallthru
    _

// kernel: _lambda_.34
$region0: #{_lambda_.34}
  #allocation0 [shape = 'u32[]', space=smem, size = 0x4, offset = 0x4, fixed_abs, tag = 'smem constant byte address 0x4 - core index']
  #allocation1 [shape = 'u32[144,128]{1,0:T(1,128)}', space=vmem, size = 0x12000, scoped, tag = 'internal scratch']
  %s0 = inlined_call_operand.vmem [shape: f32[200,16], index: 0, kind: input, shape index: {}]
  %s1 = inlined_call_operand.vmem [shape: f32[16,16], index: 1, kind: input, shape index: {}]
  %s2 = inlined_call_operand.vmem [shape: f32[1,16], index: 2, kind: input, shape index: {}]
  %s3 = inlined_call_operand.vmem [shape: f32[200,16], index: 3, kind: output, shape index: {}]
  %s4 = sld [smem:[#allocation0]]
  $region22: #{_lambda_.34} parent=0
    _
  %s6 = ssub.s32 1, %s4
  %s7 = scalar_select 0, %s6, %s4
  // Predicated region
  $region2: #{_lambda_.34} parent=0 // pred_check
    _
  $region3: #{_lambda_.34} parent=0 // pred_check_branch
    %9 = sbr.rel (0) target = $region5
  $region4: #{_lambda_.34} parent=0 // pred_region
    _
  $region5: #{_lambda_.34} parent=0 // pred_fallthru
    _
  // Predicated region
  $region6: #{_lambda_.34} parent=0 // pred_check
    _
  $region7: #{_lambda_.34} parent=0 // pred_check_branch
    %11 = sbr.rel (0) target = $region9
  $region8: #{_lambda_.34} parent=0 // pred_region
    _
  $region9: #{_lambda_.34} parent=0 // pred_fallthru
    _
  // Predicated region
  $region10: #{_lambda_.34} parent=0 // pred_check
    _
  $region11: #{_lambda_.34} parent=0 // pred_check_branch
    %13 = sbr.rel (0) target = $region13
  $region12: #{_lambda_.34} parent=0 // pred_region
    _
  $region13: #{_lambda_.34} parent=0 // pred_fallthru
    _
  %v14 = vld [vmem:[%s0] sm:$0xff]
  %v15 = vld [vmem:[%s0 + $0x8] sm:$0xff]
  %v16 = vld [vmem:[%s0 + $0x10] sm:$0xff]
  %v17 = vld [vmem:[%s0 + $0x18] sm:$0xff]
  %v18 = vld [vmem:[%s0 + $0x20] sm:$0xff]
  %v19 = vld [vmem:[%s0 + $0x28] sm:$0xff]
  %v20 = vld [vmem:[%s0 + $0x30] sm:$0xff]
  %v21 = vld [vmem:[%s0 + $0x38] sm:$0xff]
  %v22 = vld [vmem:[%s0 + $0x40] sm:$0xff]
  %v23 = vld [vmem:[%s0 + $0x48] sm:$0xff]
  %v24 = vld [vmem:[%s0 + $0x50] sm:$0xff]
  %v25 = vld [vmem:[%s0 + $0x58] sm:$0xff]
  %v26 = vld [vmem:[%s0 + $0x60] sm:$0xff]
  %v27 = vld [vmem:[%s0 + $0x68] sm:$0xff]
  %v28 = vld [vmem:[%s0 + $0x70] sm:$0xff]
  %v29 = vld [vmem:[%s0 + $0x78] sm:$0xff]
  %v30 = vld [vmem:[%s0 + $0x80] sm:$0xff]
  %v31 = vld [vmem:[%s0 + $0x88] sm:$0xff]
  %v32 = vld [vmem:[%s0 + $0x90] sm:$0xff]
  %v33 = vld [vmem:[%s0 + $0x98] sm:$0xff]
  %v34 = vld [vmem:[%s0 + $0xa0] sm:$0xff]
  %v35 = vld [vmem:[%s0 + $0xa8] sm:$0xff]
  %v36 = vld [vmem:[%s0 + $0xb0] sm:$0xff]
  %v37 = vld [vmem:[%s0 + $0xb8] sm:$0xff]
  %v38 = vld [vmem:[%s0 + $0xc0] sm:$0xff]
  %v39 = vld [vmem:[%s1] sm:$0xff]
  %v40 = vld [vmem:[%s1 + $0x8] sm:$0xff]
  %v41 = vld [vmem:[%s2] sm:$0x1]
  %v43 = vlaneseq
  %v44 = vshrl.u32 %v43, 7
  %v45 = vsub.s32 0, %v44
  %v46 = vrot.slane %v41, %v45
  %vm48 = vcmask 130048
  %v50 = vsel %vm48, %v14, 0
  %v53 = vsel %vm48, %v15, 0
  %v56 = vsel %vm48, %v16, 0
  %v59 = vsel %vm48, %v17, 0
  %v62 = vsel %vm48, %v18, 0
  %v65 = vsel %vm48, %v19, 0
  %v68 = vsel %vm48, %v20, 0
  %v71 = vsel %vm48, %v21, 0
  %v74 = vsel %vm48, %v22, 0
  %v77 = vsel %vm48, %v23, 0
  %v80 = vsel %vm48, %v24, 0
  %v83 = vsel %vm48, %v25, 0
  %v86 = vsel %vm48, %v26, 0
  %v89 = vsel %vm48, %v27, 0
  %v92 = vsel %vm48, %v28, 0
  %v95 = vsel %vm48, %v29, 0
  %v98 = vsel %vm48, %v30, 0
  %v101 = vsel %vm48, %v31, 0
  %v104 = vsel %vm48, %v32, 0
  %v107 = vsel %vm48, %v33, 0
  %v110 = vsel %vm48, %v34, 0
  %v113 = vsel %vm48, %v35, 0
  %v116 = vsel %vm48, %v36, 0
  %v119 = vsel %vm48, %v37, 0
  %v122 = vsel %vm48, %v38, 0
  %124 = vmatprep.subr.mxu0 0.0
  %125 = vmatpush1.msra.mxu0 %v39
  %126 = vmatprep.subr.mxu0 0.0
  %127 = vmatpush1.msra.mxu0 %v40
  %128 = vmatprep.subr.mxu0 0.0
  %129 = vmatpush1.msra.mxu0 0.0
  %130 = vmatprep.subr.mxu0 0.0
  %131 = vmatpush1.msra.mxu0 0.0
  %132 = vmatprep.subr.mxu0 0.0
  %133 = vmatpush1.msra.mxu0 0.0
  %134 = vmatprep.subr.mxu0 0.0
  %135 = vmatpush1.msra.mxu0 0.0
  %136 = vmatprep.subr.mxu0 0.0
  %137 = vmatpush1.msra.mxu0 0.0
  %138 = vmatprep.subr.mxu0 0.0
  %139 = vmatpush1.msra.mxu0 0.0
  %140 = vmatprep.subr.mxu0 0.0
  %141 = vmatpush1.msra.mxu0 0.0
  %142 = vmatprep.subr.mxu0 0.0
  %143 = vmatpush1.msra.mxu0 0.0
  %144 = vmatprep.subr.mxu0 0.0
  %145 = vmatpush1.msra.mxu0 0.0
  %146 = vmatprep.subr.mxu0 0.0
  %147 = vmatpush1.msra.mxu0 0.0
  %148 = vmatprep.subr.mxu0 0.0
  %149 = vmatpush1.msra.mxu0 0.0
  %150 = vmatprep.subr.mxu0 0.0
  %151 = vmatpush1.msra.mxu0 0.0
  %152 = vmatprep.subr.mxu0 0.0
  %153 = vmatpush1.msra.mxu0 0.0
  %154 = vmatprep.subr.mxu0 0.0
  %155 = vmatpush1.msra.mxu0 0.0
  %156 = vmatprep.subr.mxu0 0.0
  %157 = vmatpush1.msra.mxu0 0.0
  %158 = vmatprep.subr.mxu0 0.0
  %159 = vmatpush1.msra.mxu0 0.0
  %160 = vmatprep.subr.mxu0 0.0
  %161 = vmatpush1.msra.mxu0 0.0
  %162 = vmatprep.subr.mxu0 0.0
  %163 = vmatpush1.msra.mxu0 0.0
  %164 = vmatprep.subr.mxu0 0.0
  %165 = vmatpush1.msra.mxu0 0.0
  %166 = vmatprep.subr.mxu0 0.0
  %167 = vmatpush1.msra.mxu0 0.0
  %168 = vmatprep.subr.mxu0 0.0
  %169 = vmatpush1.msra.mxu0 0.0
  %170 = vmatprep.subr.mxu0 0.0
  %171 = vmatpush1.msra.mxu0 0.0
  %172 = vmatprep.subr.mxu0 0.0
  %173 = vmatpush1.msra.mxu0 0.0
  %174 = vmatprep.subr.mxu0 0.0
  %175 = vmatpush1.msra.mxu0 0.0
  %176 = vmatprep.subr.mxu0 0.0
  %177 = vmatpush1.msra.mxu0 0.0
  %178 = vmatprep.subr.mxu0 0.0
  %179 = vmatpush1.msra.mxu0 0.0
  %180 = vmatprep.subr.mxu0 0.0
  %181 = vmatpush1.msra.mxu0 0.0
  %182 = vmatprep.subr.mxu0 0.0
  %183 = vmatpush1.msra.mxu0 0.0
  %184 = vmatprep.subr.mxu0 0.0
  %185 = vmatpush1.msra.mxu0 0.0
  %186 = vmatprep.subr.mxu0 0.0
  %187 = vmatpush1.msra.mxu0 0.0
  %188 = vmatprep.mubr.f32.mxu0 0.0
  %189 = vmatmul.mubr.f32.gmra.mrb[0].mxu0 %v50
  %v190 = vpop.f32.mrb[0].mxu0
  %v191 = vadd.f32 %v46, %v190
  %v192 = vpop.f32.mrb[0].mxu0
  %193 = vmatprep.mubr.f32.mxu0 0.0
  %194 = vmatmul.mubr.f32.gmra.mrb[0].mxu0 %v53
  %v195 = vpop.f32.mrb[0].mxu0
  %v196 = vadd.f32 %v46, %v195
  %v197 = vpop.f32.mrb[0].mxu0
  %198 = vmatprep.mubr.f32.mxu0 0.0
  %199 = vmatmul.mubr.f32.gmra.mrb[0].mxu0 %v56
  %v200 = vpop.f32.mrb[0].mxu0
  %v201 = vadd.f32 %v46, %v200
  %v202 = vpop.f32.mrb[0].mxu0
  %203 = vmatprep.mubr.f32.mxu0 0.0
  %204 = vmatmul.mubr.f32.gmra.mrb[0].mxu0 %v59
  %v205 = vpop.f32.mrb[0].mxu0
  %v206 = vadd.f32 %v46, %v205
  %v207 = vpop.f32.mrb[0].mxu0
  %208 = vmatprep.mubr.f32.mxu0 0.0
  %209 = vmatmul.mubr.f32.gmra.mrb[0].mxu0 %v62
  %v210 = vpop.f32.mrb[0].mxu0
  %v211 = vadd.f32 %v46, %v210
  %v212 = vpop.f32.mrb[0].mxu0
  %213 = vmatprep.mubr.f32.mxu0 0.0
  %214 = vmatmul.mubr.f32.gmra.mrb[0].mxu0 %v65
  %v215 = vpop.f32.mrb[0].mxu0
  %v216 = vadd.f32 %v46, %v215
  %v217 = vpop.f32.mrb[0].mxu0
  %218 = vmatprep.mubr.f32.mxu0 0.0
  %219 = vmatmul.mubr.f32.gmra.mrb[0].mxu0 %v68
  %v220 = vpop.f32.mrb[0].mxu0
  %v221 = vadd.f32 %v46, %v220
  %v222 = vpop.f32.mrb[0].mxu0
  %223 = vmatprep.mubr.f32.mxu0 0.0
  %224 = vmatmul.mubr.f32.gmra.mrb[0].mxu0 %v71
  %v225 = vpop.f32.mrb[0].mxu0
  %v226 = vadd.f32 %v46, %v225
  %v227 = vpop.f32.mrb[0].mxu0
  %228 = vmatprep.mubr.f32.mxu0 0.0
  %229 = vmatmul.mubr.f32.gmra.mrb[0].mxu0 %v74
  %v230 = vpop.f32.mrb[0].mxu0
  %v231 = vadd.f32 %v46, %v230
  %v232 = vpop.f32.mrb[0].mxu0
  %233 = vmatprep.mubr.f32.mxu0 0.0
  %234 = vmatmul.mubr.f32.gmra.mrb[0].mxu0 %v77
  %v235 = vpop.f32.mrb[0].mxu0
  %v236 = vadd.f32 %v46, %v235
  %v237 = vpop.f32.mrb[0].mxu0
  %238 = vmatprep.mubr.f32.mxu0 0.0
  %239 = vmatmul.mubr.f32.gmra.mrb[0].mxu0 %v80
  %v240 = vpop.f32.mrb[0].mxu0
  %v241 = vadd.f32 %v46, %v240
  %v242 = vpop.f32.mrb[0].mxu0
  %243 = vmatprep.mubr.f32.mxu0 0.0
  %244 = vmatmul.mubr.f32.gmra.mrb[0].mxu0 %v83
  %v245 = vpop.f32.mrb[0].mxu0
  %v246 = vadd.f32 %v46, %v245
  %v247 = vpop.f32.mrb[0].mxu0
  %248 = vmatprep.mubr.f32.mxu0 0.0
  %249 = vmatmul.mubr.f32.gmra.mrb[0].mxu0 %v86
  %v250 = vpop.f32.mrb[0].mxu0
  %v251 = vadd.f32 %v46, %v250
  %v252 = vpop.f32.mrb[0].mxu0
  %253 = vmatprep.mubr.f32.mxu0 0.0
  %254 = vmatmul.mubr.f32.gmra.mrb[0].mxu0 %v89
  %v255 = vpop.f32.mrb[0].mxu0
  %v256 = vadd.f32 %v46, %v255
  %v257 = vpop.f32.mrb[0].mxu0
  %258 = vmatprep.mubr.f32.mxu0 0.0
  %259 = vmatmul.mubr.f32.gmra.mrb[0].mxu0 %v92
  %v260 = vpop.f32.mrb[0].mxu0
  %v261 = vadd.f32 %v46, %v260
  %v262 = vpop.f32.mrb[0].mxu0
  %263 = vmatprep.mubr.f32.mxu0 0.0
  %264 = vmatmul.mubr.f32.gmra.mrb[0].mxu0 %v95
  %v265 = vpop.f32.mrb[0].mxu0
  %v266 = vadd.f32 %v46, %v265
  %v267 = vpop.f32.mrb[0].mxu0
  %268 = vmatprep.mubr.f32.mxu0 0.0
  %269 = vmatmul.mubr.f32.gmra.mrb[0].mxu0 %v98
  %v270 = vpop.f32.mrb[0].mxu0
  %v271 = vadd.f32 %v46, %v270
  %v272 = vpop.f32.mrb[0].mxu0
  %273 = vmatprep.mubr.f32.mxu0 0.0
  %274 = vmatmul.mubr.f32.gmra.mrb[0].mxu0 %v101
  %v275 = vpop.f32.mrb[0].mxu0
  %v276 = vadd.f32 %v46, %v275
  %v277 = vpop.f32.mrb[0].mxu0
  %278 = vmatprep.mubr.f32.mxu0 0.0
  %279 = vmatmul.mubr.f32.gmra.mrb[0].mxu0 %v104
  %v280 = vpop.f32.mrb[0].mxu0
  %v281 = vadd.f32 %v46, %v280
  %v282 = vpop.f32.mrb[0].mxu0
  %283 = vmatprep.mubr.f32.mxu0 0.0
  %284 = vmatmul.mubr.f32.gmra.mrb[0].mxu0 %v107
  %v285 = vpop.f32.mrb[0].mxu0
  %v286 = vadd.f32 %v46, %v285
  %v287 = vpop.f32.mrb[0].mxu0
  %288 = vmatprep.mubr.f32.mxu0 0.0
  %289 = vmatmul.mubr.f32.gmra.mrb[0].mxu0 %v110
  %v290 = vpop.f32.mrb[0].mxu0
  %v291 = vadd.f32 %v46, %v290
  %v292 = vpop.f32.mrb[0].mxu0
  %293 = vmatprep.mubr.f32.mxu0 0.0
  %294 = vmatmul.mubr.f32.gmra.mrb[0].mxu0 %v113
  %v295 = vpop.f32.mrb[0].mxu0
  %v296 = vadd.f32 %v46, %v295
  %v297 = vpop.f32.mrb[0].mxu0
  %298 = vmatprep.mubr.f32.mxu0 0.0
  %299 = vmatmul.mubr.f32.gmra.mrb[0].mxu0 %v116
  %v300 = vpop.f32.mrb[0].mxu0
  %v301 = vadd.f32 %v46, %v300
  %v302 = vpop.f32.mrb[0].mxu0
  %303 = vmatprep.mubr.f32.mxu0 0.0
  %304 = vmatmul.mubr.f32.gmra.mrb[0].mxu0 %v119
  %v305 = vpop.f32.mrb[0].mxu0
  %v306 = vadd.f32 %v46, %v305
  %v307 = vpop.f32.mrb[0].mxu0
  %308 = vmatprep.mubr.f32.mxu0 0.0
  %309 = vmatmul.mubr.f32.gmra.mrb[0].mxu0 %v122
  %v310 = vpop.f32.mrb[0].mxu0
  %v311 = vadd.f32 %v46, %v310
  %v312 = vpop.f32.mrb[0].mxu0
  %313 = vdwg.mxu0
  %314 = vst.msk [vmem:[%s3] sm:$0xff] %vm48, %v191
  %315 = vst.msk [vmem:[%s3 + $0x8] sm:$0xff] %vm48, %v196
  %316 = vst.msk [vmem:[%s3 + $0x10] sm:$0xff] %vm48, %v201
  %317 = vst.msk [vmem:[%s3 + $0x18] sm:$0xff] %vm48, %v206
  %318 = vst.msk [vmem:[%s3 + $0x20] sm:$0xff] %vm48, %v211
  %319 = vst.msk [vmem:[%s3 + $0x28] sm:$0xff] %vm48, %v216
  %320 = vst.msk [vmem:[%s3 + $0x30] sm:$0xff] %vm48, %v221
  %321 = vst.msk [vmem:[%s3 + $0x38] sm:$0xff] %vm48, %v226
  %322 = vst.msk [vmem:[%s3 + $0x40] sm:$0xff] %vm48, %v231
  %323 = vst.msk [vmem:[%s3 + $0x48] sm:$0xff] %vm48, %v236
  %324 = vst.msk [vmem:[%s3 + $0x50] sm:$0xff] %vm48, %v241
  %325 = vst.msk [vmem:[%s3 + $0x58] sm:$0xff] %vm48, %v246
  %326 = vst.msk [vmem:[%s3 + $0x60] sm:$0xff] %vm48, %v251
  %327 = vst.msk [vmem:[%s3 + $0x68] sm:$0xff] %vm48, %v256
  %328 = vst.msk [vmem:[%s3 + $0x70] sm:$0xff] %vm48, %v261
  %329 = vst.msk [vmem:[%s3 + $0x78] sm:$0xff] %vm48, %v266
  %330 = vst.msk [vmem:[%s3 + $0x80] sm:$0xff] %vm48, %v271
  %331 = vst.msk [vmem:[%s3 + $0x88] sm:$0xff] %vm48, %v276
  %332 = vst.msk [vmem:[%s3 + $0x90] sm:$0xff] %vm48, %v281
  %333 = vst.msk [vmem:[%s3 + $0x98] sm:$0xff] %vm48, %v286
  %334 = vst.msk [vmem:[%s3 + $0xa0] sm:$0xff] %vm48, %v291
  %335 = vst.msk [vmem:[%s3 + $0xa8] sm:$0xff] %vm48, %v296
  %336 = vst.msk [vmem:[%s3 + $0xb0] sm:$0xff] %vm48, %v301
  %337 = vst.msk [vmem:[%s3 + $0xb8] sm:$0xff] %vm48, %v306
  %338 = vst.msk [vmem:[%s3 + $0xc0] sm:$0xff] %vm48, %v311
  // Predicated region
  $region14: #{_lambda_.34} parent=0 // pred_check
    _
  $region15: #{_lambda_.34} parent=0 // pred_check_branch
    %340 = sbr.rel (0) target = $region17
  $region16: #{_lambda_.34} parent=0 // pred_region
    _
  $region17: #{_lambda_.34} parent=0 // pred_fallthru
    _
  // Predicated region
  $region18: #{_lambda_.34} parent=0 // pred_check
    _
  $region19: #{_lambda_.34} parent=0 // pred_check_branch
    %342 = sbr.rel (0) target = $region21
  $region20: #{_lambda_.34} parent=0 // pred_region
    _
  $region21: #{_lambda_.34} parent=0 // pred_fallthru
    _

// kernel: _lambda_.35
$region0: #{_lambda_.35}
  #allocation0 [shape = 'u32[]', space=smem, size = 0x4, offset = 0x4, fixed_abs, tag = 'smem constant byte address 0x4 - core index']
  #allocation1 [shape = 'u32[144,128]{1,0:T(1,128)}', space=vmem, size = 0x12000, scoped, tag = 'internal scratch']
  %s0 = inlined_call_operand.vmem [shape: f32[200,16], index: 0, kind: input, shape index: {}]
  %s1 = inlined_call_operand.vmem [shape: f32[16,128], index: 1, kind: input, shape index: {}]
  %s2 = inlined_call_operand.vmem [shape: f32[1,128], index: 2, kind: input, shape index: {}]
  %s3 = inlined_call_operand.vmem [shape: f32[200,128], index: 3, kind: output, shape index: {}]
  %s4 = sld [smem:[#allocation0]]
  $region22: #{_lambda_.35} parent=0
    _
  %s6 = ssub.s32 1, %s4
  %s7 = scalar_select 0, %s6, %s4
  // Predicated region
  $region2: #{_lambda_.35} parent=0 // pred_check
    _
  $region3: #{_lambda_.35} parent=0 // pred_check_branch
    %9 = sbr.rel (0) target = $region5
  $region4: #{_lambda_.35} parent=0 // pred_region
    _
  $region5: #{_lambda_.35} parent=0 // pred_fallthru
    _
  // Predicated region
  $region6: #{_lambda_.35} parent=0 // pred_check
    _
  $region7: #{_lambda_.35} parent=0 // pred_check_branch
    %11 = sbr.rel (0) target = $region9
  $region8: #{_lambda_.35} parent=0 // pred_region
    _
  $region9: #{_lambda_.35} parent=0 // pred_fallthru
    _
  // Predicated region
  $region10: #{_lambda_.35} parent=0 // pred_check
    _
  $region11: #{_lambda_.35} parent=0 // pred_check_branch
    %13 = sbr.rel (0) target = $region13
  $region12: #{_lambda_.35} parent=0 // pred_region
    _
  $region13: #{_lambda_.35} parent=0 // pred_fallthru
    _
  %v14 = vld [vmem:[%s0] sm:$0xff]
  %v15 = vld [vmem:[%s0 + $0x8] sm:$0xff]
  %v16 = vld [vmem:[%s0 + $0x10] sm:$0xff]
  %v17 = vld [vmem:[%s0 + $0x18] sm:$0xff]
  %v18 = vld [vmem:[%s0 + $0x20] sm:$0xff]
  %v19 = vld [vmem:[%s0 + $0x28] sm:$0xff]
  %v20 = vld [vmem:[%s0 + $0x30] sm:$0xff]
  %v21 = vld [vmem:[%s0 + $0x38] sm:$0xff]
  %v22 = vld [vmem:[%s0 + $0x40] sm:$0xff]
  %v23 = vld [vmem:[%s0 + $0x48] sm:$0xff]
  %v24 = vld [vmem:[%s0 + $0x50] sm:$0xff]
  %v25 = vld [vmem:[%s0 + $0x58] sm:$0xff]
  %v26 = vld [vmem:[%s0 + $0x60] sm:$0xff]
  %v27 = vld [vmem:[%s0 + $0x68] sm:$0xff]
  %v28 = vld [vmem:[%s0 + $0x70] sm:$0xff]
  %v29 = vld [vmem:[%s0 + $0x78] sm:$0xff]
  %v30 = vld [vmem:[%s0 + $0x80] sm:$0xff]
  %v31 = vld [vmem:[%s0 + $0x88] sm:$0xff]
  %v32 = vld [vmem:[%s0 + $0x90] sm:$0xff]
  %v33 = vld [vmem:[%s0 + $0x98] sm:$0xff]
  %v34 = vld [vmem:[%s0 + $0xa0] sm:$0xff]
  %v35 = vld [vmem:[%s0 + $0xa8] sm:$0xff]
  %v36 = vld [vmem:[%s0 + $0xb0] sm:$0xff]
  %v37 = vld [vmem:[%s0 + $0xb8] sm:$0xff]
  %v38 = vld [vmem:[%s0 + $0xc0] sm:$0xff]
  %v39 = vld [vmem:[%s1] sm:$0xff]
  %v40 = vld [vmem:[%s1 + $0x8] sm:$0xff]
  %v41 = vld [vmem:[%s2] sm:$0x1]
  %v43 = vlaneseq
  %v44 = vshrl.u32 %v43, 7
  %v45 = vsub.s32 0, %v44
  %v46 = vrot.slane %v41, %v45
  %vm48 = vcmask 130048
  %v50 = vsel %vm48, %v14, 0
  %v53 = vsel %vm48, %v15, 0
  %v56 = vsel %vm48, %v16, 0
  %v59 = vsel %vm48, %v17, 0
  %v62 = vsel %vm48, %v18, 0
  %v65 = vsel %vm48, %v19, 0
  %v68 = vsel %vm48, %v20, 0
  %v71 = vsel %vm48, %v21, 0
  %v74 = vsel %vm48, %v22, 0
  %v77 = vsel %vm48, %v23, 0
  %v80 = vsel %vm48, %v24, 0
  %v83 = vsel %vm48, %v25, 0
  %v86 = vsel %vm48, %v26, 0
  %v89 = vsel %vm48, %v27, 0
  %v92 = vsel %vm48, %v28, 0
  %v95 = vsel %vm48, %v29, 0
  %v98 = vsel %vm48, %v30, 0
  %v101 = vsel %vm48, %v31, 0
  %v104 = vsel %vm48, %v32, 0
  %v107 = vsel %vm48, %v33, 0
  %v110 = vsel %vm48, %v34, 0
  %v113 = vsel %vm48, %v35, 0
  %v116 = vsel %vm48, %v36, 0
  %v119 = vsel %vm48, %v37, 0
  %v122 = vsel %vm48, %v38, 0
  %124 = vmatprep.subr.mxu0 0.0
  %125 = vmatpush1.msra.mxu0 %v39
  %126 = vmatprep.subr.mxu0 0.0
  %127 = vmatpush1.msra.mxu0 %v40
  %128 = vmatprep.subr.mxu0 0.0
  %129 = vmatpush1.msra.mxu0 0.0
  %130 = vmatprep.subr.mxu0 0.0
  %131 = vmatpush1.msra.mxu0 0.0
  %132 = vmatprep.subr.mxu0 0.0
  %133 = vmatpush1.msra.mxu0 0.0
  %134 = vmatprep.subr.mxu0 0.0
  %135 = vmatpush1.msra.mxu0 0.0
  %136 = vmatprep.subr.mxu0 0.0
  %137 = vmatpush1.msra.mxu0 0.0
  %138 = vmatprep.subr.mxu0 0.0
  %139 = vmatpush1.msra.mxu0 0.0
  %140 = vmatprep.subr.mxu0 0.0
  %141 = vmatpush1.msra.mxu0 0.0
  %142 = vmatprep.subr.mxu0 0.0
  %143 = vmatpush1.msra.mxu0 0.0
  %144 = vmatprep.subr.mxu0 0.0
  %145 = vmatpush1.msra.mxu0 0.0
  %146 = vmatprep.subr.mxu0 0.0
  %147 = vmatpush1.msra.mxu0 0.0
  %148 = vmatprep.subr.mxu0 0.0
  %149 = vmatpush1.msra.mxu0 0.0
  %150 = vmatprep.subr.mxu0 0.0
  %151 = vmatpush1.msra.mxu0 0.0
  %152 = vmatprep.subr.mxu0 0.0
  %153 = vmatpush1.msra.mxu0 0.0
  %154 = vmatprep.subr.mxu0 0.0
  %155 = vmatpush1.msra.mxu0 0.0
  %156 = vmatprep.subr.mxu0 0.0
  %157 = vmatpush1.msra.mxu0 0.0
  %158 = vmatprep.subr.mxu0 0.0
  %159 = vmatpush1.msra.mxu0 0.0
  %160 = vmatprep.subr.mxu0 0.0
  %161 = vmatpush1.msra.mxu0 0.0
  %162 = vmatprep.subr.mxu0 0.0
  %163 = vmatpush1.msra.mxu0 0.0
  %164 = vmatprep.subr.mxu0 0.0
  %165 = vmatpush1.msra.mxu0 0.0
  %166 = vmatprep.subr.mxu0 0.0
  %167 = vmatpush1.msra.mxu0 0.0
  %168 = vmatprep.subr.mxu0 0.0
  %169 = vmatpush1.msra.mxu0 0.0
  %170 = vmatprep.subr.mxu0 0.0
  %171 = vmatpush1.msra.mxu0 0.0
  %172 = vmatprep.subr.mxu0 0.0
  %173 = vmatpush1.msra.mxu0 0.0
  %174 = vmatprep.subr.mxu0 0.0
  %175 = vmatpush1.msra.mxu0 0.0
  %176 = vmatprep.subr.mxu0 0.0
  %177 = vmatpush1.msra.mxu0 0.0
  %178 = vmatprep.subr.mxu0 0.0
  %179 = vmatpush1.msra.mxu0 0.0
  %180 = vmatprep.subr.mxu0 0.0
  %181 = vmatpush1.msra.mxu0 0.0
  %182 = vmatprep.subr.mxu0 0.0
  %183 = vmatpush1.msra.mxu0 0.0
  %184 = vmatprep.subr.mxu0 0.0
  %185 = vmatpush1.msra.mxu0 0.0
  %186 = vmatprep.subr.mxu0 0.0
  %187 = vmatpush1.msra.mxu0 0.0
  %188 = vmatprep.mubr.f32.mxu0 0.0
  %189 = vmatmul.mubr.f32.gmra.mrb[0].mxu0 %v50
  %v190 = vpop.f32.mrb[0].mxu0
  %v191 = vadd.f32 %v46, %v190
  %v192 = vpop.f32.mrb[0].mxu0
  %193 = vmatprep.mubr.f32.mxu0 0.0
  %194 = vmatmul.mubr.f32.gmra.mrb[0].mxu0 %v53
  %v195 = vpop.f32.mrb[0].mxu0
  %v196 = vadd.f32 %v46, %v195
  %v197 = vpop.f32.mrb[0].mxu0
  %198 = vmatprep.mubr.f32.mxu0 0.0
  %199 = vmatmul.mubr.f32.gmra.mrb[0].mxu0 %v56
  %v200 = vpop.f32.mrb[0].mxu0
  %v201 = vadd.f32 %v46, %v200
  %v202 = vpop.f32.mrb[0].mxu0
  %203 = vmatprep.mubr.f32.mxu0 0.0
  %204 = vmatmul.mubr.f32.gmra.mrb[0].mxu0 %v59
  %v205 = vpop.f32.mrb[0].mxu0
  %v206 = vadd.f32 %v46, %v205
  %v207 = vpop.f32.mrb[0].mxu0
  %208 = vmatprep.mubr.f32.mxu0 0.0
  %209 = vmatmul.mubr.f32.gmra.mrb[0].mxu0 %v62
  %v210 = vpop.f32.mrb[0].mxu0
  %v211 = vadd.f32 %v46, %v210
  %v212 = vpop.f32.mrb[0].mxu0
  %213 = vmatprep.mubr.f32.mxu0 0.0
  %214 = vmatmul.mubr.f32.gmra.mrb[0].mxu0 %v65
  %v215 = vpop.f32.mrb[0].mxu0
  %v216 = vadd.f32 %v46, %v215
  %v217 = vpop.f32.mrb[0].mxu0
  %218 = vmatprep.mubr.f32.mxu0 0.0
  %219 = vmatmul.mubr.f32.gmra.mrb[0].mxu0 %v68
  %v220 = vpop.f32.mrb[0].mxu0
  %v221 = vadd.f32 %v46, %v220
  %v222 = vpop.f32.mrb[0].mxu0
  %223 = vmatprep.mubr.f32.mxu0 0.0
  %224 = vmatmul.mubr.f32.gmra.mrb[0].mxu0 %v71
  %v225 = vpop.f32.mrb[0].mxu0
  %v226 = vadd.f32 %v46, %v225
  %v227 = vpop.f32.mrb[0].mxu0
  %228 = vmatprep.mubr.f32.mxu0 0.0
  %229 = vmatmul.mubr.f32.gmra.mrb[0].mxu0 %v74
  %v230 = vpop.f32.mrb[0].mxu0
  %v231 = vadd.f32 %v46, %v230
  %v232 = vpop.f32.mrb[0].mxu0
  %233 = vmatprep.mubr.f32.mxu0 0.0
  %234 = vmatmul.mubr.f32.gmra.mrb[0].mxu0 %v77
  %v235 = vpop.f32.mrb[0].mxu0
  %v236 = vadd.f32 %v46, %v235
  %v237 = vpop.f32.mrb[0].mxu0
  %238 = vmatprep.mubr.f32.mxu0 0.0
  %239 = vmatmul.mubr.f32.gmra.mrb[0].mxu0 %v80
  %v240 = vpop.f32.mrb[0].mxu0
  %v241 = vadd.f32 %v46, %v240
  %v242 = vpop.f32.mrb[0].mxu0
  %243 = vmatprep.mubr.f32.mxu0 0.0
  %244 = vmatmul.mubr.f32.gmra.mrb[0].mxu0 %v83
  %v245 = vpop.f32.mrb[0].mxu0
  %v246 = vadd.f32 %v46, %v245
  %v247 = vpop.f32.mrb[0].mxu0
  %248 = vmatprep.mubr.f32.mxu0 0.0
  %249 = vmatmul.mubr.f32.gmra.mrb[0].mxu0 %v86
  %v250 = vpop.f32.mrb[0].mxu0
  %v251 = vadd.f32 %v46, %v250
  %v252 = vpop.f32.mrb[0].mxu0
  %253 = vmatprep.mubr.f32.mxu0 0.0
  %254 = vmatmul.mubr.f32.gmra.mrb[0].mxu0 %v89
  %v255 = vpop.f32.mrb[0].mxu0
  %v256 = vadd.f32 %v46, %v255
  %v257 = vpop.f32.mrb[0].mxu0
  %258 = vmatprep.mubr.f32.mxu0 0.0
  %259 = vmatmul.mubr.f32.gmra.mrb[0].mxu0 %v92
  %v260 = vpop.f32.mrb[0].mxu0
  %v261 = vadd.f32 %v46, %v260
  %v262 = vpop.f32.mrb[0].mxu0
  %263 = vmatprep.mubr.f32.mxu0 0.0
  %264 = vmatmul.mubr.f32.gmra.mrb[0].mxu0 %v95
  %v265 = vpop.f32.mrb[0].mxu0
  %v266 = vadd.f32 %v46, %v265
  %v267 = vpop.f32.mrb[0].mxu0
  %268 = vmatprep.mubr.f32.mxu0 0.0
  %269 = vmatmul.mubr.f32.gmra.mrb[0].mxu0 %v98
  %v270 = vpop.f32.mrb[0].mxu0
  %v271 = vadd.f32 %v46, %v270
  %v272 = vpop.f32.mrb[0].mxu0
  %273 = vmatprep.mubr.f32.mxu0 0.0
  %274 = vmatmul.mubr.f32.gmra.mrb[0].mxu0 %v101
  %v275 = vpop.f32.mrb[0].mxu0
  %v276 = vadd.f32 %v46, %v275
  %v277 = vpop.f32.mrb[0].mxu0
  %278 = vmatprep.mubr.f32.mxu0 0.0
  %279 = vmatmul.mubr.f32.gmra.mrb[0].mxu0 %v104
  %v280 = vpop.f32.mrb[0].mxu0
  %v281 = vadd.f32 %v46, %v280
  %v282 = vpop.f32.mrb[0].mxu0
  %283 = vmatprep.mubr.f32.mxu0 0.0
  %284 = vmatmul.mubr.f32.gmra.mrb[0].mxu0 %v107
  %v285 = vpop.f32.mrb[0].mxu0
  %v286 = vadd.f32 %v46, %v285
  %v287 = vpop.f32.mrb[0].mxu0
  %288 = vmatprep.mubr.f32.mxu0 0.0
  %289 = vmatmul.mubr.f32.gmra.mrb[0].mxu0 %v110
  %v290 = vpop.f32.mrb[0].mxu0
  %v291 = vadd.f32 %v46, %v290
  %v292 = vpop.f32.mrb[0].mxu0
  %293 = vmatprep.mubr.f32.mxu0 0.0
  %294 = vmatmul.mubr.f32.gmra.mrb[0].mxu0 %v113
  %v295 = vpop.f32.mrb[0].mxu0
  %v296 = vadd.f32 %v46, %v295
  %v297 = vpop.f32.mrb[0].mxu0
  %298 = vmatprep.mubr.f32.mxu0 0.0
  %299 = vmatmul.mubr.f32.gmra.mrb[0].mxu0 %v116
  %v300 = vpop.f32.mrb[0].mxu0
  %v301 = vadd.f32 %v46, %v300
  %v302 = vpop.f32.mrb[0].mxu0
  %303 = vmatprep.mubr.f32.mxu0 0.0
  %304 = vmatmul.mubr.f32.gmra.mrb[0].mxu0 %v119
  %v305 = vpop.f32.mrb[0].mxu0
  %v306 = vadd.f32 %v46, %v305
  %v307 = vpop.f32.mrb[0].mxu0
  %308 = vmatprep.mubr.f32.mxu0 0.0
  %309 = vmatmul.mubr.f32.gmra.mrb[0].mxu0 %v122
  %v310 = vpop.f32.mrb[0].mxu0
  %v311 = vadd.f32 %v46, %v310
  %v312 = vpop.f32.mrb[0].mxu0
  %313 = vdwg.mxu0
  %314 = vst [vmem:[%s3] sm:$0xff] %v191
  %315 = vst [vmem:[%s3 + $0x8] sm:$0xff] %v196
  %316 = vst [vmem:[%s3 + $0x10] sm:$0xff] %v201
  %317 = vst [vmem:[%s3 + $0x18] sm:$0xff] %v206
  %318 = vst [vmem:[%s3 + $0x20] sm:$0xff] %v211
  %319 = vst [vmem:[%s3 + $0x28] sm:$0xff] %v216
  %320 = vst [vmem:[%s3 + $0x30] sm:$0xff] %v221
  %321 = vst [vmem:[%s3 + $0x38] sm:$0xff] %v226
  %322 = vst [vmem:[%s3 + $0x40] sm:$0xff] %v231
  %323 = vst [vmem:[%s3 + $0x48] sm:$0xff] %v236
  %324 = vst [vmem:[%s3 + $0x50] sm:$0xff] %v241
  %325 = vst [vmem:[%s3 + $0x58] sm:$0xff] %v246
  %326 = vst [vmem:[%s3 + $0x60] sm:$0xff] %v251
  %327 = vst [vmem:[%s3 + $0x68] sm:$0xff] %v256
  %328 = vst [vmem:[%s3 + $0x70] sm:$0xff] %v261
  %329 = vst [vmem:[%s3 + $0x78] sm:$0xff] %v266
  %330 = vst [vmem:[%s3 + $0x80] sm:$0xff] %v271
  %331 = vst [vmem:[%s3 + $0x88] sm:$0xff] %v276
  %332 = vst [vmem:[%s3 + $0x90] sm:$0xff] %v281
  %333 = vst [vmem:[%s3 + $0x98] sm:$0xff] %v286
  %334 = vst [vmem:[%s3 + $0xa0] sm:$0xff] %v291
  %335 = vst [vmem:[%s3 + $0xa8] sm:$0xff] %v296
  %336 = vst [vmem:[%s3 + $0xb0] sm:$0xff] %v301
  %337 = vst [vmem:[%s3 + $0xb8] sm:$0xff] %v306
  %338 = vst [vmem:[%s3 + $0xc0] sm:$0xff] %v311
  // Predicated region
  $region14: #{_lambda_.35} parent=0 // pred_check
    _
  $region15: #{_lambda_.35} parent=0 // pred_check_branch
    %340 = sbr.rel (0) target = $region17
  $region16: #{_lambda_.35} parent=0 // pred_region
    _
  $region17: #{_lambda_.35} parent=0 // pred_fallthru
    _
  // Predicated region
  $region18: #{_lambda_.35} parent=0 // pred_check
    _
  $region19: #{_lambda_.35} parent=0 // pred_check_branch
    %342 = sbr.rel (0) target = $region21
  $region20: #{_lambda_.35} parent=0 // pred_region
    _
  $region21: #{_lambda_.35} parent=0 // pred_fallthru
    _

// kernel: _lambda_.36
$region0: #{_lambda_.36}
  #allocation0 [shape = 'u32[]', space=smem, size = 0x4, offset = 0x4, fixed_abs, tag = 'smem constant byte address 0x4 - core index']
  #allocation1 [shape = 'u32[144,128]{1,0:T(1,128)}', space=vmem, size = 0x12000, scoped, tag = 'internal scratch']
  %s0 = inlined_call_operand.vmem [shape: f32[5,40,128], index: 0, kind: input, shape index: {}]
  %s1 = inlined_call_operand.vmem [shape: f32[32,128], index: 1, kind: input, shape index: {}]
  %s2 = inlined_call_operand.vmem [shape: f32[5,40,32], index: 2, kind: output, shape index: {}]
  %s3 = sld [smem:[#allocation0]]
  $region18: #{_lambda_.36} parent=0
    _
  %s5 = ssub.s32 1, %s3
  %s6 = scalar_select 0, %s5, %s3
  // Predicated region
  $region2: #{_lambda_.36} parent=0 // pred_check
    _
  $region3: #{_lambda_.36} parent=0 // pred_check_branch
    %8 = sbr.rel (0) target = $region5
  $region4: #{_lambda_.36} parent=0 // pred_region
    _
  $region5: #{_lambda_.36} parent=0 // pred_fallthru
    _
  // Predicated region
  $region6: #{_lambda_.36} parent=0 // pred_check
    _
  $region7: #{_lambda_.36} parent=0 // pred_check_branch
    %10 = sbr.rel (0) target = $region9
  $region8: #{_lambda_.36} parent=0 // pred_region
    _
  $region9: #{_lambda_.36} parent=0 // pred_fallthru
    _
  %v11 = vld [vmem:[%s1] sm:$0xff]
  %v12 = vld [vmem:[%s1 + $0x8] sm:$0xff]
  %v13 = vld [vmem:[%s1 + $0x10] sm:$0xff]
  %v14 = vld [vmem:[%s1 + $0x18] sm:$0xff]
  %v15 = vld [vmem:[%s0] sm:$0xff]
  %v16 = vld [vmem:[%s0 + $0x8] sm:$0xff]
  %v17 = vld [vmem:[%s0 + $0x10] sm:$0xff]
  %v18 = vld [vmem:[%s0 + $0x18] sm:$0xff]
  %v19 = vld [vmem:[%s0 + $0x20] sm:$0xff]
  %vm20 = vcmask 261120
  %v22 = vsel %vm20, 0.0, 0
  %24 = vmatprep.subr.mxu0 0.0
  %25 = vmatpush1.msra.mxu0 %v11
  %26 = vmatprep.subr.mxu0 0.0
  %27 = vmatpush1.msra.mxu0 %v12
  %28 = vmatprep.subr.mxu0 0.0
  %29 = vmatpush1.msra.mxu0 %v13
  %30 = vmatprep.subr.mxu0 0.0
  %31 = vmatpush1.msra.mxu0 %v14
  %32 = vmatprep.subr.mxu0 0.0
  %33 = vmatpush1.msra.mxu0 0.0
  %34 = vmatprep.subr.mxu0 0.0
  %35 = vmatpush1.msra.mxu0 0.0
  %36 = vmatprep.subr.mxu0 0.0
  %37 = vmatpush1.msra.mxu0 0.0
  %38 = vmatprep.subr.mxu0 0.0
  %39 = vmatpush1.msra.mxu0 0.0
  %40 = vmatprep.subr.mxu0 0.0
  %41 = vmatpush1.msra.mxu0 0.0
  %42 = vmatprep.subr.mxu0 0.0
  %43 = vmatpush1.msra.mxu0 0.0
  %44 = vmatprep.subr.mxu0 0.0
  %45 = vmatpush1.msra.mxu0 0.0
  %46 = vmatprep.subr.mxu0 0.0
  %47 = vmatpush1.msra.mxu0 0.0
  %48 = vmatprep.subr.mxu0 0.0
  %49 = vmatpush1.msra.mxu0 0.0
  %50 = vmatprep.subr.mxu0 0.0
  %51 = vmatpush1.msra.mxu0 0.0
  %52 = vmatprep.subr.mxu0 0.0
  %53 = vmatpush1.msra.mxu0 0.0
  %54 = vmatprep.subr.mxu0 0.0
  %55 = vmatpush1.msra.mxu0 0.0
  %56 = vmatprep.subr.mxu0 0.0
  %57 = vmatpush1.msra.mxu0 0.0
  %58 = vmatprep.subr.mxu0 0.0
  %59 = vmatpush1.msra.mxu0 0.0
  %60 = vmatprep.subr.mxu0 0.0
  %61 = vmatpush1.msra.mxu0 0.0
  %62 = vmatprep.subr.mxu0 0.0
  %63 = vmatpush1.msra.mxu0 0.0
  %64 = vmatprep.subr.mxu0 0.0
  %65 = vmatpush1.msra.mxu0 0.0
  %66 = vmatprep.subr.mxu0 0.0
  %67 = vmatpush1.msra.mxu0 0.0
  %68 = vmatprep.subr.mxu0 0.0
  %69 = vmatpush1.msra.mxu0 0.0
  %70 = vmatprep.subr.mxu0 0.0
  %71 = vmatpush1.msra.mxu0 0.0
  %72 = vmatprep.subr.mxu0 0.0
  %73 = vmatpush1.msra.mxu0 0.0
  %74 = vmatprep.subr.mxu0 0.0
  %75 = vmatpush1.msra.mxu0 0.0
  %76 = vmatprep.subr.mxu0 0.0
  %77 = vmatpush1.msra.mxu0 0.0
  %78 = vmatprep.subr.mxu0 0.0
  %79 = vmatpush1.msra.mxu0 0.0
  %80 = vmatprep.subr.mxu0 0.0
  %81 = vmatpush1.msra.mxu0 0.0
  %82 = vmatprep.subr.mxu0 0.0
  %83 = vmatpush1.msra.mxu0 0.0
  %84 = vmatprep.subr.mxu0 0.0
  %85 = vmatpush1.msra.mxu0 0.0
  %86 = vmatprep.subr.mxu0 0.0
  %87 = vmatpush1.msra.mxu0 0.0
  %88 = vmatprep.mubr.f32.mxu0 0.0
  %89 = vmatmul.mubr.f32.gmra.mrb[0].mxu0 %v22
  %v90 = vpop.f32.mrb[0].mxu0
  %v91 = vadd.f32 0.0, %v90
  %v92 = vpop.f32.mrb[0].mxu0
  %93 = vmatprep.mubr.f32.mxu0 0.0
  %94 = vmatmul.mubr.f32.gmra.mrb[0].mxu0 %v22
  %v95 = vpop.f32.mrb[0].mxu0
  %v96 = vadd.f32 0.0, %v95
  %v97 = vpop.f32.mrb[0].mxu0
  %98 = vmatprep.mubr.f32.mxu0 0.0
  %99 = vmatmul.mubr.f32.gmra.mrb[0].mxu0 %v22
  %v100 = vpop.f32.mrb[0].mxu0
  %v101 = vadd.f32 0.0, %v100
  %v102 = vpop.f32.mrb[0].mxu0
  %103 = vmatprep.mubr.f32.mxu0 0.0
  %104 = vmatmul.mubr.f32.gmra.mrb[0].mxu0 %v22
  %v105 = vpop.f32.mrb[0].mxu0
  %v106 = vadd.f32 0.0, %v105
  %v107 = vpop.f32.mrb[0].mxu0
  %108 = vmatprep.mubr.f32.mxu0 0.0
  %109 = vmatmul.mubr.f32.gmra.mrb[0].mxu0 %v22
  %v110 = vpop.f32.mrb[0].mxu0
  %v111 = vadd.f32 0.0, %v110
  %v112 = vpop.f32.mrb[0].mxu0
  %113 = vdwg.mxu0
  %v114 = vadd.f32 %v15, %v91
  %v115 = vadd.f32 %v16, %v96
  %v116 = vadd.f32 %v17, %v101
  %v117 = vadd.f32 %v18, %v106
  %v118 = vadd.f32 %v19, %v111
  %v119 = vxor.u32 %v114, 2147483648
  %v120 = vxor.u32 %v115, 2147483648
  %v121 = vxor.u32 %v116, 2147483648
  %v122 = vxor.u32 %v117, 2147483648
  %v123 = vxor.u32 %v118, 2147483648
  %v124 = vmul.f32 %v119, 1.442695
  %v125 = vpow.pop %v124
  %v126 = vmul.f32 %v120, 1.442695
  %v127 = vpow.pop %v126
  %v128 = vmul.f32 %v121, 1.442695
  %v129 = vpow.pop %v128
  %v130 = vmul.f32 %v122, 1.442695
  %v131 = vpow.pop %v130
  %v132 = vmul.f32 %v123, 1.442695
  %v133 = vpow.pop %v132
  %v134 = vadd.f32 %v125, 1.0
  %v135 = vadd.f32 %v127, 1.0
  %v136 = vadd.f32 %v129, 1.0
  %v137 = vadd.f32 %v131, 1.0
  %v138 = vadd.f32 %v133, 1.0
  %v139 = vrcp.pop %v134
  %v140 = vmul.f32 1.0, %v139
  %v141 = vrcp.pop %v135
  %v142 = vmul.f32 1.0, %v141
  %v143 = vrcp.pop %v136
  %v144 = vmul.f32 1.0, %v143
  %v145 = vrcp.pop %v137
  %v146 = vmul.f32 1.0, %v145
  %v147 = vrcp.pop %v138
  %v148 = vmul.f32 1.0, %v147
  %v149 = vtanh.pop %v114
  %v150 = vtanh.pop %v115
  %v151 = vtanh.pop %v116
  %v152 = vtanh.pop %v117
  %v153 = vtanh.pop %v118
  %v154 = vmul.f32 %v140, 0.0
  %v155 = vmul.f32 %v142, 0.0
  %v156 = vmul.f32 %v144, 0.0
  %v157 = vmul.f32 %v146, 0.0
  %v158 = vmul.f32 %v148, 0.0
  %164 = vrot.lane.b32.xlu0 %v149, 64
  %v165 = vpop.permute.xlu0 %164
  %166 = vrot.lane.b32.xlu0 %v150, 64
  %v167 = vpop.permute.xlu0 %166
  %168 = vrot.lane.b32.xlu0 %v151, 64
  %v169 = vpop.permute.xlu0 %168
  %170 = vrot.lane.b32.xlu0 %v152, 64
  %v171 = vpop.permute.xlu0 %170
  %172 = vrot.lane.b32.xlu0 %v153, 64
  %v173 = vpop.permute.xlu0 %172
  %v179 = vmul.f32 %v140, %v165
  %v180 = vmul.f32 %v142, %v167
  %v181 = vmul.f32 %v144, %v169
  %v182 = vmul.f32 %v146, %v171
  %v183 = vmul.f32 %v148, %v173
  %189 = vrot.lane.b32.xlu0 %v179, 32
  %v190 = vpop.permute.xlu0 %189
  %191 = vrot.lane.b32.xlu0 %v180, 32
  %v192 = vpop.permute.xlu0 %191
  %193 = vrot.lane.b32.xlu0 %v181, 32
  %v194 = vpop.permute.xlu0 %193
  %195 = vrot.lane.b32.xlu0 %v182, 32
  %v196 = vpop.permute.xlu0 %195
  %197 = vrot.lane.b32.xlu0 %v183, 32
  %v198 = vpop.permute.xlu0 %197
  %v204 = vadd.f32 %v154, %v190
  %v205 = vadd.f32 %v155, %v192
  %v206 = vadd.f32 %v156, %v194
  %v207 = vadd.f32 %v157, %v196
  %v208 = vadd.f32 %v158, %v198
  %v209 = vtanh.pop %v204
  %v210 = vtanh.pop %v205
  %v211 = vtanh.pop %v206
  %v212 = vtanh.pop %v207
  %v213 = vtanh.pop %v208
  %219 = vrot.lane.b32.xlu0 %v209, 64
  %v220 = vpop.permute.xlu0 %219
  %221 = vrot.lane.b32.xlu0 %v210, 64
  %v222 = vpop.permute.xlu0 %221
  %223 = vrot.lane.b32.xlu0 %v211, 64
  %v224 = vpop.permute.xlu0 %223
  %225 = vrot.lane.b32.xlu0 %v212, 64
  %v226 = vpop.permute.xlu0 %225
  %227 = vrot.lane.b32.xlu0 %v213, 64
  %v228 = vpop.permute.xlu0 %227
  %v234 = vmul.f32 %v140, %v220
  %v235 = vmul.f32 %v142, %v222
  %v236 = vmul.f32 %v144, %v224
  %v237 = vmul.f32 %v146, %v226
  %v238 = vmul.f32 %v148, %v228
  %244 = vrot.lane.b32.xlu0 %v234, 32
  %v245 = vpop.permute.xlu0 %244
  %246 = vrot.lane.b32.xlu0 %v235, 32
  %v247 = vpop.permute.xlu0 %246
  %248 = vrot.lane.b32.xlu0 %v236, 32
  %v249 = vpop.permute.xlu0 %248
  %250 = vrot.lane.b32.xlu0 %v237, 32
  %v251 = vpop.permute.xlu0 %250
  %252 = vrot.lane.b32.xlu0 %v238, 32
  %v253 = vpop.permute.xlu0 %252
  %259 = vst.msk [vmem:[%s2] sm:$0xff] %vm20, %v245
  %260 = vst.msk [vmem:[%s2 + $0x8] sm:$0xff] %vm20, %v247
  %261 = vst.msk [vmem:[%s2 + $0x10] sm:$0xff] %vm20, %v249
  %262 = vst.msk [vmem:[%s2 + $0x18] sm:$0xff] %vm20, %v251
  %263 = vst.msk [vmem:[%s2 + $0x20] sm:$0xff] %vm20, %v253
  %s264 = scalar_lea.vmem %s0, 40
  %v265 = vld [vmem:[%s264] sm:$0xff]
  %v266 = vld [vmem:[%s264 + $0x8] sm:$0xff]
  %v267 = vld [vmem:[%s264 + $0x10] sm:$0xff]
  %v268 = vld [vmem:[%s264 + $0x18] sm:$0xff]
  %v269 = vld [vmem:[%s264 + $0x20] sm:$0xff]
  %v270 = vsel %vm20, %v245, 0
  %v272 = vsel %vm20, %v247, 0
  %v274 = vsel %vm20, %v249, 0
  %v276 = vsel %vm20, %v251, 0
  %v278 = vsel %vm20, %v253, 0
  %280 = vmatprep.subr.mxu0 0.0
  %281 = vmatpush1.msra.mxu0 %v11
  %282 = vmatprep.subr.mxu0 0.0
  %283 = vmatpush1.msra.mxu0 %v12
  %284 = vmatprep.subr.mxu0 0.0
  %285 = vmatpush1.msra.mxu0 %v13
  %286 = vmatprep.subr.mxu0 0.0
  %287 = vmatpush1.msra.mxu0 %v14
  %288 = vmatprep.subr.mxu0 0.0
  %289 = vmatpush1.msra.mxu0 0.0
  %290 = vmatprep.subr.mxu0 0.0
  %291 = vmatpush1.msra.mxu0 0.0
  %292 = vmatprep.subr.mxu0 0.0
  %293 = vmatpush1.msra.mxu0 0.0
  %294 = vmatprep.subr.mxu0 0.0
  %295 = vmatpush1.msra.mxu0 0.0
  %296 = vmatprep.subr.mxu0 0.0
  %297 = vmatpush1.msra.mxu0 0.0
  %298 = vmatprep.subr.mxu0 0.0
  %299 = vmatpush1.msra.mxu0 0.0
  %300 = vmatprep.subr.mxu0 0.0
  %301 = vmatpush1.msra.mxu0 0.0
  %302 = vmatprep.subr.mxu0 0.0
  %303 = vmatpush1.msra.mxu0 0.0
  %304 = vmatprep.subr.mxu0 0.0
  %305 = vmatpush1.msra.mxu0 0.0
  %306 = vmatprep.subr.mxu0 0.0
  %307 = vmatpush1.msra.mxu0 0.0
  %308 = vmatprep.subr.mxu0 0.0
  %309 = vmatpush1.msra.mxu0 0.0
  %310 = vmatprep.subr.mxu0 0.0
  %311 = vmatpush1.msra.mxu0 0.0
  %312 = vmatprep.subr.mxu0 0.0
  %313 = vmatpush1.msra.mxu0 0.0
  %314 = vmatprep.subr.mxu0 0.0
  %315 = vmatpush1.msra.mxu0 0.0
  %316 = vmatprep.subr.mxu0 0.0
  %317 = vmatpush1.msra.mxu0 0.0
  %318 = vmatprep.subr.mxu0 0.0
  %319 = vmatpush1.msra.mxu0 0.0
  %320 = vmatprep.subr.mxu0 0.0
  %321 = vmatpush1.msra.mxu0 0.0
  %322 = vmatprep.subr.mxu0 0.0
  %323 = vmatpush1.msra.mxu0 0.0
  %324 = vmatprep.subr.mxu0 0.0
  %325 = vmatpush1.msra.mxu0 0.0
  %326 = vmatprep.subr.mxu0 0.0
  %327 = vmatpush1.msra.mxu0 0.0
  %328 = vmatprep.subr.mxu0 0.0
  %329 = vmatpush1.msra.mxu0 0.0
  %330 = vmatprep.subr.mxu0 0.0
  %331 = vmatpush1.msra.mxu0 0.0
  %332 = vmatprep.subr.mxu0 0.0
  %333 = vmatpush1.msra.mxu0 0.0
  %334 = vmatprep.subr.mxu0 0.0
  %335 = vmatpush1.msra.mxu0 0.0
  %336 = vmatprep.subr.mxu0 0.0
  %337 = vmatpush1.msra.mxu0 0.0
  %338 = vmatprep.subr.mxu0 0.0
  %339 = vmatpush1.msra.mxu0 0.0
  %340 = vmatprep.subr.mxu0 0.0
  %341 = vmatpush1.msra.mxu0 0.0
  %342 = vmatprep.subr.mxu0 0.0
  %343 = vmatpush1.msra.mxu0 0.0
  %344 = vmatprep.mubr.f32.mxu0 0.0
  %345 = vmatmul.mubr.f32.gmra.mrb[0].mxu0 %v270
  %v346 = vpop.f32.mrb[0].mxu0
  %v347 = vadd.f32 0.0, %v346
  %v348 = vpop.f32.mrb[0].mxu0
  %349 = vmatprep.mubr.f32.mxu0 0.0
  %350 = vmatmul.mubr.f32.gmra.mrb[0].mxu0 %v272
  %v351 = vpop.f32.mrb[0].mxu0
  %v352 = vadd.f32 0.0, %v351
  %v353 = vpop.f32.mrb[0].mxu0
  %354 = vmatprep.mubr.f32.mxu0 0.0
  %355 = vmatmul.mubr.f32.gmra.mrb[0].mxu0 %v274
  %v356 = vpop.f32.mrb[0].mxu0
  %v357 = vadd.f32 0.0, %v356
  %v358 = vpop.f32.mrb[0].mxu0
  %359 = vmatprep.mubr.f32.mxu0 0.0
  %360 = vmatmul.mubr.f32.gmra.mrb[0].mxu0 %v276
  %v361 = vpop.f32.mrb[0].mxu0
  %v362 = vadd.f32 0.0, %v361
  %v363 = vpop.f32.mrb[0].mxu0
  %364 = vmatprep.mubr.f32.mxu0 0.0
  %365 = vmatmul.mubr.f32.gmra.mrb[0].mxu0 %v278
  %v366 = vpop.f32.mrb[0].mxu0
  %v367 = vadd.f32 0.0, %v366
  %v368 = vpop.f32.mrb[0].mxu0
  %369 = vdwg.mxu0
  %v370 = vadd.f32 %v265, %v347
  %v371 = vadd.f32 %v266, %v352
  %v372 = vadd.f32 %v267, %v357
  %v373 = vadd.f32 %v268, %v362
  %v374 = vadd.f32 %v269, %v367
  %v375 = vxor.u32 %v370, 2147483648
  %v376 = vxor.u32 %v371, 2147483648
  %v377 = vxor.u32 %v372, 2147483648
  %v378 = vxor.u32 %v373, 2147483648
  %v379 = vxor.u32 %v374, 2147483648
  %v380 = vmul.f32 %v375, 1.442695
  %v381 = vpow.pop %v380
  %v382 = vmul.f32 %v376, 1.442695
  %v383 = vpow.pop %v382
  %v384 = vmul.f32 %v377, 1.442695
  %v385 = vpow.pop %v384
  %v386 = vmul.f32 %v378, 1.442695
  %v387 = vpow.pop %v386
  %v388 = vmul.f32 %v379, 1.442695
  %v389 = vpow.pop %v388
  %v390 = vadd.f32 %v381, 1.0
  %v391 = vadd.f32 %v383, 1.0
  %v392 = vadd.f32 %v385, 1.0
  %v393 = vadd.f32 %v387, 1.0
  %v394 = vadd.f32 %v389, 1.0
  %v395 = vrcp.pop %v390
  %v396 = vmul.f32 1.0, %v395
  %v397 = vrcp.pop %v391
  %v398 = vmul.f32 1.0, %v397
  %v399 = vrcp.pop %v392
  %v400 = vmul.f32 1.0, %v399
  %v401 = vrcp.pop %v393
  %v402 = vmul.f32 1.0, %v401
  %v403 = vrcp.pop %v394
  %v404 = vmul.f32 1.0, %v403
  %v405 = vtanh.pop %v370
  %v406 = vtanh.pop %v371
  %v407 = vtanh.pop %v372
  %v408 = vtanh.pop %v373
  %v409 = vtanh.pop %v374
  %v410 = vmul.f32 %v396, %v204
  %v411 = vmul.f32 %v398, %v205
  %v412 = vmul.f32 %v400, %v206
  %v413 = vmul.f32 %v402, %v207
  %v414 = vmul.f32 %v404, %v208
  %420 = vrot.lane.b32.xlu0 %v405, 64
  %v421 = vpop.permute.xlu0 %420
  %422 = vrot.lane.b32.xlu0 %v406, 64
  %v423 = vpop.permute.xlu0 %422
  %424 = vrot.lane.b32.xlu0 %v407, 64
  %v425 = vpop.permute.xlu0 %424
  %426 = vrot.lane.b32.xlu0 %v408, 64
  %v427 = vpop.permute.xlu0 %426
  %428 = vrot.lane.b32.xlu0 %v409, 64
  %v429 = vpop.permute.xlu0 %428
  %v435 = vmul.f32 %v396, %v421
  %v436 = vmul.f32 %v398, %v423
  %v437 = vmul.f32 %v400, %v425
  %v438 = vmul.f32 %v402, %v427
  %v439 = vmul.f32 %v404, %v429
  %445 = vrot.lane.b32.xlu0 %v435, 32
  %v446 = vpop.permute.xlu0 %445
  %447 = vrot.lane.b32.xlu0 %v436, 32
  %v448 = vpop.permute.xlu0 %447
  %449 = vrot.lane.b32.xlu0 %v437, 32
  %v450 = vpop.permute.xlu0 %449
  %451 = vrot.lane.b32.xlu0 %v438, 32
  %v452 = vpop.permute.xlu0 %451
  %453 = vrot.lane.b32.xlu0 %v439, 32
  %v454 = vpop.permute.xlu0 %453
  %v460 = vadd.f32 %v410, %v446
  %v461 = vadd.f32 %v411, %v448
  %v462 = vadd.f32 %v412, %v450
  %v463 = vadd.f32 %v413, %v452
  %v464 = vadd.f32 %v414, %v454
  %v465 = vtanh.pop %v460
  %v466 = vtanh.pop %v461
  %v467 = vtanh.pop %v462
  %v468 = vtanh.pop %v463
  %v469 = vtanh.pop %v464
  %475 = vrot.lane.b32.xlu0 %v465, 64
  %v476 = vpop.permute.xlu0 %475
  %477 = vrot.lane.b32.xlu0 %v466, 64
  %v478 = vpop.permute.xlu0 %477
  %479 = vrot.lane.b32.xlu0 %v467, 64
  %v480 = vpop.permute.xlu0 %479
  %481 = vrot.lane.b32.xlu0 %v468, 64
  %v482 = vpop.permute.xlu0 %481
  %483 = vrot.lane.b32.xlu0 %v469, 64
  %v484 = vpop.permute.xlu0 %483
  %v490 = vmul.f32 %v396, %v476
  %v491 = vmul.f32 %v398, %v478
  %v492 = vmul.f32 %v400, %v480
  %v493 = vmul.f32 %v402, %v482
  %v494 = vmul.f32 %v404, %v484
  %500 = vrot.lane.b32.xlu0 %v490, 32
  %v501 = vpop.permute.xlu0 %500
  %502 = vrot.lane.b32.xlu0 %v491, 32
  %v503 = vpop.permute.xlu0 %502
  %504 = vrot.lane.b32.xlu0 %v492, 32
  %v505 = vpop.permute.xlu0 %504
  %506 = vrot.lane.b32.xlu0 %v493, 32
  %v507 = vpop.permute.xlu0 %506
  %508 = vrot.lane.b32.xlu0 %v494, 32
  %v509 = vpop.permute.xlu0 %508
  %s515 = scalar_lea.vmem %s2, 40
  %516 = vst.msk [vmem:[%s515] sm:$0xff] %vm20, %v501
  %517 = vst.msk [vmem:[%s515 + $0x8] sm:$0xff] %vm20, %v503
  %518 = vst.msk [vmem:[%s515 + $0x10] sm:$0xff] %vm20, %v505
  %519 = vst.msk [vmem:[%s515 + $0x18] sm:$0xff] %vm20, %v507
  %520 = vst.msk [vmem:[%s515 + $0x20] sm:$0xff] %vm20, %v509
  %s521 = scalar_lea.vmem %s0, 80
  %v522 = vld [vmem:[%s521] sm:$0xff]
  %v523 = vld [vmem:[%s521 + $0x8] sm:$0xff]
  %v524 = vld [vmem:[%s521 + $0x10] sm:$0xff]
  %v525 = vld [vmem:[%s521 + $0x18] sm:$0xff]
  %v526 = vld [vmem:[%s521 + $0x20] sm:$0xff]
  %v527 = vsel %vm20, %v501, 0
  %v529 = vsel %vm20, %v503, 0
  %v531 = vsel %vm20, %v505, 0
  %v533 = vsel %vm20, %v507, 0
  %v535 = vsel %vm20, %v509, 0
  %537 = vmatprep.subr.mxu0 0.0
  %538 = vmatpush1.msra.mxu0 %v11
  %539 = vmatprep.subr.mxu0 0.0
  %540 = vmatpush1.msra.mxu0 %v12
  %541 = vmatprep.subr.mxu0 0.0
  %542 = vmatpush1.msra.mxu0 %v13
  %543 = vmatprep.subr.mxu0 0.0
  %544 = vmatpush1.msra.mxu0 %v14
  %545 = vmatprep.subr.mxu0 0.0
  %546 = vmatpush1.msra.mxu0 0.0
  %547 = vmatprep.subr.mxu0 0.0
  %548 = vmatpush1.msra.mxu0 0.0
  %549 = vmatprep.subr.mxu0 0.0
  %550 = vmatpush1.msra.mxu0 0.0
  %551 = vmatprep.subr.mxu0 0.0
  %552 = vmatpush1.msra.mxu0 0.0
  %553 = vmatprep.subr.mxu0 0.0
  %554 = vmatpush1.msra.mxu0 0.0
  %555 = vmatprep.subr.mxu0 0.0
  %556 = vmatpush1.msra.mxu0 0.0
  %557 = vmatprep.subr.mxu0 0.0
  %558 = vmatpush1.msra.mxu0 0.0
  %559 = vmatprep.subr.mxu0 0.0
  %560 = vmatpush1.msra.mxu0 0.0
  %561 = vmatprep.subr.mxu0 0.0
  %562 = vmatpush1.msra.mxu0 0.0
  %563 = vmatprep.subr.mxu0 0.0
  %564 = vmatpush1.msra.mxu0 0.0
  %565 = vmatprep.subr.mxu0 0.0
  %566 = vmatpush1.msra.mxu0 0.0
  %567 = vmatprep.subr.mxu0 0.0
  %568 = vmatpush1.msra.mxu0 0.0
  %569 = vmatprep.subr.mxu0 0.0
  %570 = vmatpush1.msra.mxu0 0.0
  %571 = vmatprep.subr.mxu0 0.0
  %572 = vmatpush1.msra.mxu0 0.0
  %573 = vmatprep.subr.mxu0 0.0
  %574 = vmatpush1.msra.mxu0 0.0
  %575 = vmatprep.subr.mxu0 0.0
  %576 = vmatpush1.msra.mxu0 0.0
  %577 = vmatprep.subr.mxu0 0.0
  %578 = vmatpush1.msra.mxu0 0.0
  %579 = vmatprep.subr.mxu0 0.0
  %580 = vmatpush1.msra.mxu0 0.0
  %581 = vmatprep.subr.mxu0 0.0
  %582 = vmatpush1.msra.mxu0 0.0
  %583 = vmatprep.subr.mxu0 0.0
  %584 = vmatpush1.msra.mxu0 0.0
  %585 = vmatprep.subr.mxu0 0.0
  %586 = vmatpush1.msra.mxu0 0.0
  %587 = vmatprep.subr.mxu0 0.0
  %588 = vmatpush1.msra.mxu0 0.0
  %589 = vmatprep.subr.mxu0 0.0
  %590 = vmatpush1.msra.mxu0 0.0
  %591 = vmatprep.subr.mxu0 0.0
  %592 = vmatpush1.msra.mxu0 0.0
  %593 = vmatprep.subr.mxu0 0.0
  %594 = vmatpush1.msra.mxu0 0.0
  %595 = vmatprep.subr.mxu0 0.0
  %596 = vmatpush1.msra.mxu0 0.0
  %597 = vmatprep.subr.mxu0 0.0
  %598 = vmatpush1.msra.mxu0 0.0
  %599 = vmatprep.subr.mxu0 0.0
  %600 = vmatpush1.msra.mxu0 0.0
  %601 = vmatprep.mubr.f32.mxu0 0.0
  %602 = vmatmul.mubr.f32.gmra.mrb[0].mxu0 %v527
  %v603 = vpop.f32.mrb[0].mxu0
  %v604 = vadd.f32 0.0, %v603
  %v605 = vpop.f32.mrb[0].mxu0
  %606 = vmatprep.mubr.f32.mxu0 0.0
  %607 = vmatmul.mubr.f32.gmra.mrb[0].mxu0 %v529
  %v608 = vpop.f32.mrb[0].mxu0
  %v609 = vadd.f32 0.0, %v608
  %v610 = vpop.f32.mrb[0].mxu0
  %611 = vmatprep.mubr.f32.mxu0 0.0
  %612 = vmatmul.mubr.f32.gmra.mrb[0].mxu0 %v531
  %v613 = vpop.f32.mrb[0].mxu0
  %v614 = vadd.f32 0.0, %v613
  %v615 = vpop.f32.mrb[0].mxu0
  %616 = vmatprep.mubr.f32.mxu0 0.0
  %617 = vmatmul.mubr.f32.gmra.mrb[0].mxu0 %v533
  %v618 = vpop.f32.mrb[0].mxu0
  %v619 = vadd.f32 0.0, %v618
  %v620 = vpop.f32.mrb[0].mxu0
  %621 = vmatprep.mubr.f32.mxu0 0.0
  %622 = vmatmul.mubr.f32.gmra.mrb[0].mxu0 %v535
  %v623 = vpop.f32.mrb[0].mxu0
  %v624 = vadd.f32 0.0, %v623
  %v625 = vpop.f32.mrb[0].mxu0
  %626 = vdwg.mxu0
  %v627 = vadd.f32 %v522, %v604
  %v628 = vadd.f32 %v523, %v609
  %v629 = vadd.f32 %v524, %v614
  %v630 = vadd.f32 %v525, %v619
  %v631 = vadd.f32 %v526, %v624
  %v632 = vxor.u32 %v627, 2147483648
  %v633 = vxor.u32 %v628, 2147483648
  %v634 = vxor.u32 %v629, 2147483648
  %v635 = vxor.u32 %v630, 2147483648
  %v636 = vxor.u32 %v631, 2147483648
  %v637 = vmul.f32 %v632, 1.442695
  %v638 = vpow.pop %v637
  %v639 = vmul.f32 %v633, 1.442695
  %v640 = vpow.pop %v639
  %v641 = vmul.f32 %v634, 1.442695
  %v642 = vpow.pop %v641
  %v643 = vmul.f32 %v635, 1.442695
  %v644 = vpow.pop %v643
  %v645 = vmul.f32 %v636, 1.442695
  %v646 = vpow.pop %v645
  %v647 = vadd.f32 %v638, 1.0
  %v648 = vadd.f32 %v640, 1.0
  %v649 = vadd.f32 %v642, 1.0
  %v650 = vadd.f32 %v644, 1.0
  %v651 = vadd.f32 %v646, 1.0
  %v652 = vrcp.pop %v647
  %v653 = vmul.f32 1.0, %v652
  %v654 = vrcp.pop %v648
  %v655 = vmul.f32 1.0, %v654
  %v656 = vrcp.pop %v649
  %v657 = vmul.f32 1.0, %v656
  %v658 = vrcp.pop %v650
  %v659 = vmul.f32 1.0, %v658
  %v660 = vrcp.pop %v651
  %v661 = vmul.f32 1.0, %v660
  %v662 = vtanh.pop %v627
  %v663 = vtanh.pop %v628
  %v664 = vtanh.pop %v629
  %v665 = vtanh.pop %v630
  %v666 = vtanh.pop %v631
  %v667 = vmul.f32 %v653, %v460
  %v668 = vmul.f32 %v655, %v461
  %v669 = vmul.f32 %v657, %v462
  %v670 = vmul.f32 %v659, %v463
  %v671 = vmul.f32 %v661, %v464
  %677 = vrot.lane.b32.xlu0 %v662, 64
  %v678 = vpop.permute.xlu0 %677
  %679 = vrot.lane.b32.xlu0 %v663, 64
  %v680 = vpop.permute.xlu0 %679
  %681 = vrot.lane.b32.xlu0 %v664, 64
  %v682 = vpop.permute.xlu0 %681
  %683 = vrot.lane.b32.xlu0 %v665, 64
  %v684 = vpop.permute.xlu0 %683
  %685 = vrot.lane.b32.xlu0 %v666, 64
  %v686 = vpop.permute.xlu0 %685
  %v692 = vmul.f32 %v653, %v678
  %v693 = vmul.f32 %v655, %v680
  %v694 = vmul.f32 %v657, %v682
  %v695 = vmul.f32 %v659, %v684
  %v696 = vmul.f32 %v661, %v686
  %702 = vrot.lane.b32.xlu0 %v692, 32
  %v703 = vpop.permute.xlu0 %702
  %704 = vrot.lane.b32.xlu0 %v693, 32
  %v705 = vpop.permute.xlu0 %704
  %706 = vrot.lane.b32.xlu0 %v694, 32
  %v707 = vpop.permute.xlu0 %706
  %708 = vrot.lane.b32.xlu0 %v695, 32
  %v709 = vpop.permute.xlu0 %708
  %710 = vrot.lane.b32.xlu0 %v696, 32
  %v711 = vpop.permute.xlu0 %710
  %v717 = vadd.f32 %v667, %v703
  %v718 = vadd.f32 %v668, %v705
  %v719 = vadd.f32 %v669, %v707
  %v720 = vadd.f32 %v670, %v709
  %v721 = vadd.f32 %v671, %v711
  %v722 = vtanh.pop %v717
  %v723 = vtanh.pop %v718
  %v724 = vtanh.pop %v719
  %v725 = vtanh.pop %v720
  %v726 = vtanh.pop %v721
  %732 = vrot.lane.b32.xlu0 %v722, 64
  %v733 = vpop.permute.xlu0 %732
  %734 = vrot.lane.b32.xlu0 %v723, 64
  %v735 = vpop.permute.xlu0 %734
  %736 = vrot.lane.b32.xlu0 %v724, 64
  %v737 = vpop.permute.xlu0 %736
  %738 = vrot.lane.b32.xlu0 %v725, 64
  %v739 = vpop.permute.xlu0 %738
  %740 = vrot.lane.b32.xlu0 %v726, 64
  %v741 = vpop.permute.xlu0 %740
  %v747 = vmul.f32 %v653, %v733
  %v748 = vmul.f32 %v655, %v735
  %v749 = vmul.f32 %v657, %v737
  %v750 = vmul.f32 %v659, %v739
  %v751 = vmul.f32 %v661, %v741
  %757 = vrot.lane.b32.xlu0 %v747, 32
  %v758 = vpop.permute.xlu0 %757
  %759 = vrot.lane.b32.xlu0 %v748, 32
  %v760 = vpop.permute.xlu0 %759
  %761 = vrot.lane.b32.xlu0 %v749, 32
  %v762 = vpop.permute.xlu0 %761
  %763 = vrot.lane.b32.xlu0 %v750, 32
  %v764 = vpop.permute.xlu0 %763
  %765 = vrot.lane.b32.xlu0 %v751, 32
  %v766 = vpop.permute.xlu0 %765
  %s772 = scalar_lea.vmem %s2, 80
  %773 = vst.msk [vmem:[%s772] sm:$0xff] %vm20, %v758
  %774 = vst.msk [vmem:[%s772 + $0x8] sm:$0xff] %vm20, %v760
  %775 = vst.msk [vmem:[%s772 + $0x10] sm:$0xff] %vm20, %v762
  %776 = vst.msk [vmem:[%s772 + $0x18] sm:$0xff] %vm20, %v764
  %777 = vst.msk [vmem:[%s772 + $0x20] sm:$0xff] %vm20, %v766
  %s778 = scalar_lea.vmem %s0, 120
  %v779 = vld [vmem:[%s778] sm:$0xff]
  %v780 = vld [vmem:[%s778 + $0x8] sm:$0xff]
  %v781 = vld [vmem:[%s778 + $0x10] sm:$0xff]
  %v782 = vld [vmem:[%s778 + $0x18] sm:$0xff]
  %v783 = vld [vmem:[%s778 + $0x20] sm:$0xff]
  %v784 = vsel %vm20, %v758, 0
  %v786 = vsel %vm20, %v760, 0
  %v788 = vsel %vm20, %v762, 0
  %v790 = vsel %vm20, %v764, 0
  %v792 = vsel %vm20, %v766, 0
  %794 = vmatprep.subr.mxu0 0.0
  %795 = vmatpush1.msra.mxu0 %v11
  %796 = vmatprep.subr.mxu0 0.0
  %797 = vmatpush1.msra.mxu0 %v12
  %798 = vmatprep.subr.mxu0 0.0
  %799 = vmatpush1.msra.mxu0 %v13
  %800 = vmatprep.subr.mxu0 0.0
  %801 = vmatpush1.msra.mxu0 %v14
  %802 = vmatprep.subr.mxu0 0.0
  %803 = vmatpush1.msra.mxu0 0.0
  %804 = vmatprep.subr.mxu0 0.0
  %805 = vmatpush1.msra.mxu0 0.0
  %806 = vmatprep.subr.mxu0 0.0
  %807 = vmatpush1.msra.mxu0 0.0
  %808 = vmatprep.subr.mxu0 0.0
  %809 = vmatpush1.msra.mxu0 0.0
  %810 = vmatprep.subr.mxu0 0.0
  %811 = vmatpush1.msra.mxu0 0.0
  %812 = vmatprep.subr.mxu0 0.0
  %813 = vmatpush1.msra.mxu0 0.0
  %814 = vmatprep.subr.mxu0 0.0
  %815 = vmatpush1.msra.mxu0 0.0
  %816 = vmatprep.subr.mxu0 0.0
  %817 = vmatpush1.msra.mxu0 0.0
  %818 = vmatprep.subr.mxu0 0.0
  %819 = vmatpush1.msra.mxu0 0.0
  %820 = vmatprep.subr.mxu0 0.0
  %821 = vmatpush1.msra.mxu0 0.0
  %822 = vmatprep.subr.mxu0 0.0
  %823 = vmatpush1.msra.mxu0 0.0
  %824 = vmatprep.subr.mxu0 0.0
  %825 = vmatpush1.msra.mxu0 0.0
  %826 = vmatprep.subr.mxu0 0.0
  %827 = vmatpush1.msra.mxu0 0.0
  %828 = vmatprep.subr.mxu0 0.0
  %829 = vmatpush1.msra.mxu0 0.0
  %830 = vmatprep.subr.mxu0 0.0
  %831 = vmatpush1.msra.mxu0 0.0
  %832 = vmatprep.subr.mxu0 0.0
  %833 = vmatpush1.msra.mxu0 0.0
  %834 = vmatprep.subr.mxu0 0.0
  %835 = vmatpush1.msra.mxu0 0.0
  %836 = vmatprep.subr.mxu0 0.0
  %837 = vmatpush1.msra.mxu0 0.0
  %838 = vmatprep.subr.mxu0 0.0
  %839 = vmatpush1.msra.mxu0 0.0
  %840 = vmatprep.subr.mxu0 0.0
  %841 = vmatpush1.msra.mxu0 0.0
  %842 = vmatprep.subr.mxu0 0.0
  %843 = vmatpush1.msra.mxu0 0.0
  %844 = vmatprep.subr.mxu0 0.0
  %845 = vmatpush1.msra.mxu0 0.0
  %846 = vmatprep.subr.mxu0 0.0
  %847 = vmatpush1.msra.mxu0 0.0
  %848 = vmatprep.subr.mxu0 0.0
  %849 = vmatpush1.msra.mxu0 0.0
  %850 = vmatprep.subr.mxu0 0.0
  %851 = vmatpush1.msra.mxu0 0.0
  %852 = vmatprep.subr.mxu0 0.0
  %853 = vmatpush1.msra.mxu0 0.0
  %854 = vmatprep.subr.mxu0 0.0
  %855 = vmatpush1.msra.mxu0 0.0
  %856 = vmatprep.subr.mxu0 0.0
  %857 = vmatpush1.msra.mxu0 0.0
  %858 = vmatprep.mubr.f32.mxu0 0.0
  %859 = vmatmul.mubr.f32.gmra.mrb[0].mxu0 %v784
  %v860 = vpop.f32.mrb[0].mxu0
  %v861 = vadd.f32 0.0, %v860
  %v862 = vpop.f32.mrb[0].mxu0
  %863 = vmatprep.mubr.f32.mxu0 0.0
  %864 = vmatmul.mubr.f32.gmra.mrb[0].mxu0 %v786
  %v865 = vpop.f32.mrb[0].mxu0
  %v866 = vadd.f32 0.0, %v865
  %v867 = vpop.f32.mrb[0].mxu0
  %868 = vmatprep.mubr.f32.mxu0 0.0
  %869 = vmatmul.mubr.f32.gmra.mrb[0].mxu0 %v788
  %v870 = vpop.f32.mrb[0].mxu0
  %v871 = vadd.f32 0.0, %v870
  %v872 = vpop.f32.mrb[0].mxu0
  %873 = vmatprep.mubr.f32.mxu0 0.0
  %874 = vmatmul.mubr.f32.gmra.mrb[0].mxu0 %v790
  %v875 = vpop.f32.mrb[0].mxu0
  %v876 = vadd.f32 0.0, %v875
  %v877 = vpop.f32.mrb[0].mxu0
  %878 = vmatprep.mubr.f32.mxu0 0.0
  %879 = vmatmul.mubr.f32.gmra.mrb[0].mxu0 %v792
  %v880 = vpop.f32.mrb[0].mxu0
  %v881 = vadd.f32 0.0, %v880
  %v882 = vpop.f32.mrb[0].mxu0
  %883 = vdwg.mxu0
  %v884 = vadd.f32 %v779, %v861
  %v885 = vadd.f32 %v780, %v866
  %v886 = vadd.f32 %v781, %v871
  %v887 = vadd.f32 %v782, %v876
  %v888 = vadd.f32 %v783, %v881
  %v889 = vxor.u32 %v884, 2147483648
  %v890 = vxor.u32 %v885, 2147483648
  %v891 = vxor.u32 %v886, 2147483648
  %v892 = vxor.u32 %v887, 2147483648
  %v893 = vxor.u32 %v888, 2147483648
  %v894 = vmul.f32 %v889, 1.442695
  %v895 = vpow.pop %v894
  %v896 = vmul.f32 %v890, 1.442695
  %v897 = vpow.pop %v896
  %v898 = vmul.f32 %v891, 1.442695
  %v899 = vpow.pop %v898
  %v900 = vmul.f32 %v892, 1.442695
  %v901 = vpow.pop %v900
  %v902 = vmul.f32 %v893, 1.442695
  %v903 = vpow.pop %v902
  %v904 = vadd.f32 %v895, 1.0
  %v905 = vadd.f32 %v897, 1.0
  %v906 = vadd.f32 %v899, 1.0
  %v907 = vadd.f32 %v901, 1.0
  %v908 = vadd.f32 %v903, 1.0
  %v909 = vrcp.pop %v904
  %v910 = vmul.f32 1.0, %v909
  %v911 = vrcp.pop %v905
  %v912 = vmul.f32 1.0, %v911
  %v913 = vrcp.pop %v906
  %v914 = vmul.f32 1.0, %v913
  %v915 = vrcp.pop %v907
  %v916 = vmul.f32 1.0, %v915
  %v917 = vrcp.pop %v908
  %v918 = vmul.f32 1.0, %v917
  %v919 = vtanh.pop %v884
  %v920 = vtanh.pop %v885
  %v921 = vtanh.pop %v886
  %v922 = vtanh.pop %v887
  %v923 = vtanh.pop %v888
  %v924 = vmul.f32 %v910, %v717
  %v925 = vmul.f32 %v912, %v718
  %v926 = vmul.f32 %v914, %v719
  %v927 = vmul.f32 %v916, %v720
  %v928 = vmul.f32 %v918, %v721
  %934 = vrot.lane.b32.xlu0 %v919, 64
  %v935 = vpop.permute.xlu0 %934
  %936 = vrot.lane.b32.xlu0 %v920, 64
  %v937 = vpop.permute.xlu0 %936
  %938 = vrot.lane.b32.xlu0 %v921, 64
  %v939 = vpop.permute.xlu0 %938
  %940 = vrot.lane.b32.xlu0 %v922, 64
  %v941 = vpop.permute.xlu0 %940
  %942 = vrot.lane.b32.xlu0 %v923, 64
  %v943 = vpop.permute.xlu0 %942
  %v949 = vmul.f32 %v910, %v935
  %v950 = vmul.f32 %v912, %v937
  %v951 = vmul.f32 %v914, %v939
  %v952 = vmul.f32 %v916, %v941
  %v953 = vmul.f32 %v918, %v943
  %959 = vrot.lane.b32.xlu0 %v949, 32
  %v960 = vpop.permute.xlu0 %959
  %961 = vrot.lane.b32.xlu0 %v950, 32
  %v962 = vpop.permute.xlu0 %961
  %963 = vrot.lane.b32.xlu0 %v951, 32
  %v964 = vpop.permute.xlu0 %963
  %965 = vrot.lane.b32.xlu0 %v952, 32
  %v966 = vpop.permute.xlu0 %965
  %967 = vrot.lane.b32.xlu0 %v953, 32
  %v968 = vpop.permute.xlu0 %967
  %v974 = vadd.f32 %v924, %v960
  %v975 = vadd.f32 %v925, %v962
  %v976 = vadd.f32 %v926, %v964
  %v977 = vadd.f32 %v927, %v966
  %v978 = vadd.f32 %v928, %v968
  %v979 = vtanh.pop %v974
  %v980 = vtanh.pop %v975
  %v981 = vtanh.pop %v976
  %v982 = vtanh.pop %v977
  %v983 = vtanh.pop %v978
  %989 = vrot.lane.b32.xlu0 %v979, 64
  %v990 = vpop.permute.xlu0 %989
  %991 = vrot.lane.b32.xlu0 %v980, 64
  %v992 = vpop.permute.xlu0 %991
  %993 = vrot.lane.b32.xlu0 %v981, 64
  %v994 = vpop.permute.xlu0 %993
  %995 = vrot.lane.b32.xlu0 %v982, 64
  %v996 = vpop.permute.xlu0 %995
  %997 = vrot.lane.b32.xlu0 %v983, 64
  %v998 = vpop.permute.xlu0 %997
  %v1004 = vmul.f32 %v910, %v990
  %v1005 = vmul.f32 %v912, %v992
  %v1006 = vmul.f32 %v914, %v994
  %v1007 = vmul.f32 %v916, %v996
  %v1008 = vmul.f32 %v918, %v998
  %1014 = vrot.lane.b32.xlu0 %v1004, 32
  %v1015 = vpop.permute.xlu0 %1014
  %1016 = vrot.lane.b32.xlu0 %v1005, 32
  %v1017 = vpop.permute.xlu0 %1016
  %1018 = vrot.lane.b32.xlu0 %v1006, 32
  %v1019 = vpop.permute.xlu0 %1018
  %1020 = vrot.lane.b32.xlu0 %v1007, 32
  %v1021 = vpop.permute.xlu0 %1020
  %1022 = vrot.lane.b32.xlu0 %v1008, 32
  %v1023 = vpop.permute.xlu0 %1022
  %s1029 = scalar_lea.vmem %s2, 120
  %1030 = vst.msk [vmem:[%s1029] sm:$0xff] %vm20, %v1015
  %1031 = vst.msk [vmem:[%s1029 + $0x8] sm:$0xff] %vm20, %v1017
  %1032 = vst.msk [vmem:[%s1029 + $0x10] sm:$0xff] %vm20, %v1019
  %1033 = vst.msk [vmem:[%s1029 + $0x18] sm:$0xff] %vm20, %v1021
  %1034 = vst.msk [vmem:[%s1029 + $0x20] sm:$0xff] %vm20, %v1023
  %s1035 = scalar_lea.vmem %s0, 160
  %v1036 = vld [vmem:[%s1035] sm:$0xff]
  %v1037 = vld [vmem:[%s1035 + $0x8] sm:$0xff]
  %v1038 = vld [vmem:[%s1035 + $0x10] sm:$0xff]
  %v1039 = vld [vmem:[%s1035 + $0x18] sm:$0xff]
  %v1040 = vld [vmem:[%s1035 + $0x20] sm:$0xff]
  %v1041 = vsel %vm20, %v1015, 0
  %v1043 = vsel %vm20, %v1017, 0
  %v1045 = vsel %vm20, %v1019, 0
  %v1047 = vsel %vm20, %v1021, 0
  %v1049 = vsel %vm20, %v1023, 0
  %1051 = vmatprep.subr.mxu0 0.0
  %1052 = vmatpush1.msra.mxu0 %v11
  %1053 = vmatprep.subr.mxu0 0.0
  %1054 = vmatpush1.msra.mxu0 %v12
  %1055 = vmatprep.subr.mxu0 0.0
  %1056 = vmatpush1.msra.mxu0 %v13
  %1057 = vmatprep.subr.mxu0 0.0
  %1058 = vmatpush1.msra.mxu0 %v14
  %1059 = vmatprep.subr.mxu0 0.0
  %1060 = vmatpush1.msra.mxu0 0.0
  %1061 = vmatprep.subr.mxu0 0.0
  %1062 = vmatpush1.msra.mxu0 0.0
  %1063 = vmatprep.subr.mxu0 0.0
  %1064 = vmatpush1.msra.mxu0 0.0
  %1065 = vmatprep.subr.mxu0 0.0
  %1066 = vmatpush1.msra.mxu0 0.0
  %1067 = vmatprep.subr.mxu0 0.0
  %1068 = vmatpush1.msra.mxu0 0.0
  %1069 = vmatprep.subr.mxu0 0.0
  %1070 = vmatpush1.msra.mxu0 0.0
  %1071 = vmatprep.subr.mxu0 0.0
  %1072 = vmatpush1.msra.mxu0 0.0
  %1073 = vmatprep.subr.mxu0 0.0
  %1074 = vmatpush1.msra.mxu0 0.0
  %1075 = vmatprep.subr.mxu0 0.0
  %1076 = vmatpush1.msra.mxu0 0.0
  %1077 = vmatprep.subr.mxu0 0.0
  %1078 = vmatpush1.msra.mxu0 0.0
  %1079 = vmatprep.subr.mxu0 0.0
  %1080 = vmatpush1.msra.mxu0 0.0
  %1081 = vmatprep.subr.mxu0 0.0
  %1082 = vmatpush1.msra.mxu0 0.0
  %1083 = vmatprep.subr.mxu0 0.0
  %1084 = vmatpush1.msra.mxu0 0.0
  %1085 = vmatprep.subr.mxu0 0.0
  %1086 = vmatpush1.msra.mxu0 0.0
  %1087 = vmatprep.subr.mxu0 0.0
  %1088 = vmatpush1.msra.mxu0 0.0
  %1089 = vmatprep.subr.mxu0 0.0
  %1090 = vmatpush1.msra.mxu0 0.0
  %1091 = vmatprep.subr.mxu0 0.0
  %1092 = vmatpush1.msra.mxu0 0.0
  %1093 = vmatprep.subr.mxu0 0.0
  %1094 = vmatpush1.msra.mxu0 0.0
  %1095 = vmatprep.subr.mxu0 0.0
  %1096 = vmatpush1.msra.mxu0 0.0
  %1097 = vmatprep.subr.mxu0 0.0
  %1098 = vmatpush1.msra.mxu0 0.0
  %1099 = vmatprep.subr.mxu0 0.0
  %1100 = vmatpush1.msra.mxu0 0.0
  %1101 = vmatprep.subr.mxu0 0.0
  %1102 = vmatpush1.msra.mxu0 0.0
  %1103 = vmatprep.subr.mxu0 0.0
  %1104 = vmatpush1.msra.mxu0 0.0
  %1105 = vmatprep.subr.mxu0 0.0
  %1106 = vmatpush1.msra.mxu0 0.0
  %1107 = vmatprep.subr.mxu0 0.0
  %1108 = vmatpush1.msra.mxu0 0.0
  %1109 = vmatprep.subr.mxu0 0.0
  %1110 = vmatpush1.msra.mxu0 0.0
  %1111 = vmatprep.subr.mxu0 0.0
  %1112 = vmatpush1.msra.mxu0 0.0
  %1113 = vmatprep.subr.mxu0 0.0
  %1114 = vmatpush1.msra.mxu0 0.0
  %1115 = vmatprep.mubr.f32.mxu0 0.0
  %1116 = vmatmul.mubr.f32.gmra.mrb[0].mxu0 %v1041
  %v1117 = vpop.f32.mrb[0].mxu0
  %v1118 = vadd.f32 0.0, %v1117
  %v1119 = vpop.f32.mrb[0].mxu0
  %1120 = vmatprep.mubr.f32.mxu0 0.0
  %1121 = vmatmul.mubr.f32.gmra.mrb[0].mxu0 %v1043
  %v1122 = vpop.f32.mrb[0].mxu0
  %v1123 = vadd.f32 0.0, %v1122
  %v1124 = vpop.f32.mrb[0].mxu0
  %1125 = vmatprep.mubr.f32.mxu0 0.0
  %1126 = vmatmul.mubr.f32.gmra.mrb[0].mxu0 %v1045
  %v1127 = vpop.f32.mrb[0].mxu0
  %v1128 = vadd.f32 0.0, %v1127
  %v1129 = vpop.f32.mrb[0].mxu0
  %1130 = vmatprep.mubr.f32.mxu0 0.0
  %1131 = vmatmul.mubr.f32.gmra.mrb[0].mxu0 %v1047
  %v1132 = vpop.f32.mrb[0].mxu0
  %v1133 = vadd.f32 0.0, %v1132
  %v1134 = vpop.f32.mrb[0].mxu0
  %1135 = vmatprep.mubr.f32.mxu0 0.0
  %1136 = vmatmul.mubr.f32.gmra.mrb[0].mxu0 %v1049
  %v1137 = vpop.f32.mrb[0].mxu0
  %v1138 = vadd.f32 0.0, %v1137
  %v1139 = vpop.f32.mrb[0].mxu0
  %1140 = vdwg.mxu0
  %v1141 = vadd.f32 %v1036, %v1118
  %v1142 = vadd.f32 %v1037, %v1123
  %v1143 = vadd.f32 %v1038, %v1128
  %v1144 = vadd.f32 %v1039, %v1133
  %v1145 = vadd.f32 %v1040, %v1138
  %v1146 = vxor.u32 %v1141, 2147483648
  %v1147 = vxor.u32 %v1142, 2147483648
  %v1148 = vxor.u32 %v1143, 2147483648
  %v1149 = vxor.u32 %v1144, 2147483648
  %v1150 = vxor.u32 %v1145, 2147483648
  %v1151 = vmul.f32 %v1146, 1.442695
  %v1152 = vpow.pop %v1151
  %v1153 = vmul.f32 %v1147, 1.442695
  %v1154 = vpow.pop %v1153
  %v1155 = vmul.f32 %v1148, 1.442695
  %v1156 = vpow.pop %v1155
  %v1157 = vmul.f32 %v1149, 1.442695
  %v1158 = vpow.pop %v1157
  %v1159 = vmul.f32 %v1150, 1.442695
  %v1160 = vpow.pop %v1159
  %v1161 = vadd.f32 %v1152, 1.0
  %v1162 = vadd.f32 %v1154, 1.0
  %v1163 = vadd.f32 %v1156, 1.0
  %v1164 = vadd.f32 %v1158, 1.0
  %v1165 = vadd.f32 %v1160, 1.0
  %v1166 = vrcp.pop %v1161
  %v1167 = vmul.f32 1.0, %v1166
  %v1168 = vrcp.pop %v1162
  %v1169 = vmul.f32 1.0, %v1168
  %v1170 = vrcp.pop %v1163
  %v1171 = vmul.f32 1.0, %v1170
  %v1172 = vrcp.pop %v1164
  %v1173 = vmul.f32 1.0, %v1172
  %v1174 = vrcp.pop %v1165
  %v1175 = vmul.f32 1.0, %v1174
  %v1176 = vtanh.pop %v1141
  %v1177 = vtanh.pop %v1142
  %v1178 = vtanh.pop %v1143
  %v1179 = vtanh.pop %v1144
  %v1180 = vtanh.pop %v1145
  %v1181 = vmul.f32 %v1167, %v974
  %v1182 = vmul.f32 %v1169, %v975
  %v1183 = vmul.f32 %v1171, %v976
  %v1184 = vmul.f32 %v1173, %v977
  %v1185 = vmul.f32 %v1175, %v978
  %1191 = vrot.lane.b32.xlu0 %v1176, 64
  %v1192 = vpop.permute.xlu0 %1191
  %1193 = vrot.lane.b32.xlu0 %v1177, 64
  %v1194 = vpop.permute.xlu0 %1193
  %1195 = vrot.lane.b32.xlu0 %v1178, 64
  %v1196 = vpop.permute.xlu0 %1195
  %1197 = vrot.lane.b32.xlu0 %v1179, 64
  %v1198 = vpop.permute.xlu0 %1197
  %1199 = vrot.lane.b32.xlu0 %v1180, 64
  %v1200 = vpop.permute.xlu0 %1199
  %v1206 = vmul.f32 %v1167, %v1192
  %v1207 = vmul.f32 %v1169, %v1194
  %v1208 = vmul.f32 %v1171, %v1196
  %v1209 = vmul.f32 %v1173, %v1198
  %v1210 = vmul.f32 %v1175, %v1200
  %1216 = vrot.lane.b32.xlu0 %v1206, 32
  %v1217 = vpop.permute.xlu0 %1216
  %1218 = vrot.lane.b32.xlu0 %v1207, 32
  %v1219 = vpop.permute.xlu0 %1218
  %1220 = vrot.lane.b32.xlu0 %v1208, 32
  %v1221 = vpop.permute.xlu0 %1220
  %1222 = vrot.lane.b32.xlu0 %v1209, 32
  %v1223 = vpop.permute.xlu0 %1222
  %1224 = vrot.lane.b32.xlu0 %v1210, 32
  %v1225 = vpop.permute.xlu0 %1224
  %v1231 = vadd.f32 %v1181, %v1217
  %v1232 = vadd.f32 %v1182, %v1219
  %v1233 = vadd.f32 %v1183, %v1221
  %v1234 = vadd.f32 %v1184, %v1223
  %v1235 = vadd.f32 %v1185, %v1225
  %v1236 = vtanh.pop %v1231
  %v1237 = vtanh.pop %v1232
  %v1238 = vtanh.pop %v1233
  %v1239 = vtanh.pop %v1234
  %v1240 = vtanh.pop %v1235
  %1246 = vrot.lane.b32.xlu0 %v1236, 64
  %v1247 = vpop.permute.xlu0 %1246
  %1248 = vrot.lane.b32.xlu0 %v1237, 64
  %v1249 = vpop.permute.xlu0 %1248
  %1250 = vrot.lane.b32.xlu0 %v1238, 64
  %v1251 = vpop.permute.xlu0 %1250
  %1252 = vrot.lane.b32.xlu0 %v1239, 64
  %v1253 = vpop.permute.xlu0 %1252
  %1254 = vrot.lane.b32.xlu0 %v1240, 64
  %v1255 = vpop.permute.xlu0 %1254
  %v1261 = vmul.f32 %v1167, %v1247
  %v1262 = vmul.f32 %v1169, %v1249
  %v1263 = vmul.f32 %v1171, %v1251
  %v1264 = vmul.f32 %v1173, %v1253
  %v1265 = vmul.f32 %v1175, %v1255
  %1271 = vrot.lane.b32.xlu0 %v1261, 32
  %v1272 = vpop.permute.xlu0 %1271
  %1273 = vrot.lane.b32.xlu0 %v1262, 32
  %v1274 = vpop.permute.xlu0 %1273
  %1275 = vrot.lane.b32.xlu0 %v1263, 32
  %v1276 = vpop.permute.xlu0 %1275
  %1277 = vrot.lane.b32.xlu0 %v1264, 32
  %v1278 = vpop.permute.xlu0 %1277
  %1279 = vrot.lane.b32.xlu0 %v1265, 32
  %v1280 = vpop.permute.xlu0 %1279
  %s1286 = scalar_lea.vmem %s2, 160
  %1287 = vst.msk [vmem:[%s1286] sm:$0xff] %vm20, %v1272
  %1288 = vst.msk [vmem:[%s1286 + $0x8] sm:$0xff] %vm20, %v1274
  %1289 = vst.msk [vmem:[%s1286 + $0x10] sm:$0xff] %vm20, %v1276
  %1290 = vst.msk [vmem:[%s1286 + $0x18] sm:$0xff] %vm20, %v1278
  %1291 = vst.msk [vmem:[%s1286 + $0x20] sm:$0xff] %vm20, %v1280
  // Predicated region
  $region10: #{_lambda_.36} parent=0 // pred_check
    _
  $region11: #{_lambda_.36} parent=0 // pred_check_branch
    %1293 = sbr.rel (0) target = $region13
  $region12: #{_lambda_.36} parent=0 // pred_region
    _
  $region13: #{_lambda_.36} parent=0 // pred_fallthru
    _
  // Predicated region
  $region14: #{_lambda_.36} parent=0 // pred_check
    _
  $region15: #{_lambda_.36} parent=0 // pred_check_branch
    %1295 = sbr.rel (0) target = $region17
  $region16: #{_lambda_.36} parent=0 // pred_region
    _
  $region17: #{_lambda_.36} parent=0 // pred_fallthru
    _

// kernel: _lambda_.37
$region0: #{_lambda_.37}
  #allocation0 [shape = 'u32[]', space=smem, size = 0x4, offset = 0x4, fixed_abs, tag = 'smem constant byte address 0x4 - core index']
  #allocation1 [shape = 'u32[144,128]{1,0:T(1,128)}', space=vmem, size = 0x12000, scoped, tag = 'internal scratch']
  %s0 = inlined_call_operand.vmem [shape: f32[200,32], index: 0, kind: input, shape index: {}]
  %s1 = inlined_call_operand.vmem [shape: f32[32,16], index: 1, kind: input, shape index: {}]
  %s2 = inlined_call_operand.vmem [shape: f32[1,16], index: 2, kind: input, shape index: {}]
  %s3 = inlined_call_operand.vmem [shape: f32[200,16], index: 3, kind: output, shape index: {}]
  %s4 = sld [smem:[#allocation0]]
  $region22: #{_lambda_.37} parent=0
    _
  %s6 = ssub.s32 1, %s4
  %s7 = scalar_select 0, %s6, %s4
  // Predicated region
  $region2: #{_lambda_.37} parent=0 // pred_check
    _
  $region3: #{_lambda_.37} parent=0 // pred_check_branch
    %9 = sbr.rel (0) target = $region5
  $region4: #{_lambda_.37} parent=0 // pred_region
    _
  $region5: #{_lambda_.37} parent=0 // pred_fallthru
    _
  // Predicated region
  $region6: #{_lambda_.37} parent=0 // pred_check
    _
  $region7: #{_lambda_.37} parent=0 // pred_check_branch
    %11 = sbr.rel (0) target = $region9
  $region8: #{_lambda_.37} parent=0 // pred_region
    _
  $region9: #{_lambda_.37} parent=0 // pred_fallthru
    _
  // Predicated region
  $region10: #{_lambda_.37} parent=0 // pred_check
    _
  $region11: #{_lambda_.37} parent=0 // pred_check_branch
    %13 = sbr.rel (0) target = $region13
  $region12: #{_lambda_.37} parent=0 // pred_region
    _
  $region13: #{_lambda_.37} parent=0 // pred_fallthru
    _
  %v14 = vld [vmem:[%s0] sm:$0xff]
  %v15 = vld [vmem:[%s0 + $0x8] sm:$0xff]
  %v16 = vld [vmem:[%s0 + $0x10] sm:$0xff]
  %v17 = vld [vmem:[%s0 + $0x18] sm:$0xff]
  %v18 = vld [vmem:[%s0 + $0x20] sm:$0xff]
  %v19 = vld [vmem:[%s0 + $0x28] sm:$0xff]
  %v20 = vld [vmem:[%s0 + $0x30] sm:$0xff]
  %v21 = vld [vmem:[%s0 + $0x38] sm:$0xff]
  %v22 = vld [vmem:[%s0 + $0x40] sm:$0xff]
  %v23 = vld [vmem:[%s0 + $0x48] sm:$0xff]
  %v24 = vld [vmem:[%s0 + $0x50] sm:$0xff]
  %v25 = vld [vmem:[%s0 + $0x58] sm:$0xff]
  %v26 = vld [vmem:[%s0 + $0x60] sm:$0xff]
  %v27 = vld [vmem:[%s0 + $0x68] sm:$0xff]
  %v28 = vld [vmem:[%s0 + $0x70] sm:$0xff]
  %v29 = vld [vmem:[%s0 + $0x78] sm:$0xff]
  %v30 = vld [vmem:[%s0 + $0x80] sm:$0xff]
  %v31 = vld [vmem:[%s0 + $0x88] sm:$0xff]
  %v32 = vld [vmem:[%s0 + $0x90] sm:$0xff]
  %v33 = vld [vmem:[%s0 + $0x98] sm:$0xff]
  %v34 = vld [vmem:[%s0 + $0xa0] sm:$0xff]
  %v35 = vld [vmem:[%s0 + $0xa8] sm:$0xff]
  %v36 = vld [vmem:[%s0 + $0xb0] sm:$0xff]
  %v37 = vld [vmem:[%s0 + $0xb8] sm:$0xff]
  %v38 = vld [vmem:[%s0 + $0xc0] sm:$0xff]
  %v39 = vld [vmem:[%s1] sm:$0xff]
  %v40 = vld [vmem:[%s1 + $0x8] sm:$0xff]
  %v41 = vld [vmem:[%s1 + $0x10] sm:$0xff]
  %v42 = vld [vmem:[%s1 + $0x18] sm:$0xff]
  %v43 = vld [vmem:[%s2] sm:$0x1]
  %v45 = vlaneseq
  %v46 = vshrl.u32 %v45, 7
  %v47 = vsub.s32 0, %v46
  %v48 = vrot.slane %v43, %v47
  %vm50 = vcmask 261120
  %v52 = vsel %vm50, %v14, 0
  %v55 = vsel %vm50, %v15, 0
  %v58 = vsel %vm50, %v16, 0
  %v61 = vsel %vm50, %v17, 0
  %v64 = vsel %vm50, %v18, 0
  %v67 = vsel %vm50, %v19, 0
  %v70 = vsel %vm50, %v20, 0
  %v73 = vsel %vm50, %v21, 0
  %v76 = vsel %vm50, %v22, 0
  %v79 = vsel %vm50, %v23, 0
  %v82 = vsel %vm50, %v24, 0
  %v85 = vsel %vm50, %v25, 0
  %v88 = vsel %vm50, %v26, 0
  %v91 = vsel %vm50, %v27, 0
  %v94 = vsel %vm50, %v28, 0
  %v97 = vsel %vm50, %v29, 0
  %v100 = vsel %vm50, %v30, 0
  %v103 = vsel %vm50, %v31, 0
  %v106 = vsel %vm50, %v32, 0
  %v109 = vsel %vm50, %v33, 0
  %v112 = vsel %vm50, %v34, 0
  %v115 = vsel %vm50, %v35, 0
  %v118 = vsel %vm50, %v36, 0
  %v121 = vsel %vm50, %v37, 0
  %v124 = vsel %vm50, %v38, 0
  %126 = vmatprep.subr.mxu0 0.0
  %127 = vmatpush1.msra.mxu0 %v39
  %128 = vmatprep.subr.mxu0 0.0
  %129 = vmatpush1.msra.mxu0 %v40
  %130 = vmatprep.subr.mxu0 0.0
  %131 = vmatpush1.msra.mxu0 %v41
  %132 = vmatprep.subr.mxu0 0.0
  %133 = vmatpush1.msra.mxu0 %v42
  %134 = vmatprep.subr.mxu0 0.0
  %135 = vmatpush1.msra.mxu0 0.0
  %136 = vmatprep.subr.mxu0 0.0
  %137 = vmatpush1.msra.mxu0 0.0
  %138 = vmatprep.subr.mxu0 0.0
  %139 = vmatpush1.msra.mxu0 0.0
  %140 = vmatprep.subr.mxu0 0.0
  %141 = vmatpush1.msra.mxu0 0.0
  %142 = vmatprep.subr.mxu0 0.0
  %143 = vmatpush1.msra.mxu0 0.0
  %144 = vmatprep.subr.mxu0 0.0
  %145 = vmatpush1.msra.mxu0 0.0
  %146 = vmatprep.subr.mxu0 0.0
  %147 = vmatpush1.msra.mxu0 0.0
  %148 = vmatprep.subr.mxu0 0.0
  %149 = vmatpush1.msra.mxu0 0.0
  %150 = vmatprep.subr.mxu0 0.0
  %151 = vmatpush1.msra.mxu0 0.0
  %152 = vmatprep.subr.mxu0 0.0
  %153 = vmatpush1.msra.mxu0 0.0
  %154 = vmatprep.subr.mxu0 0.0
  %155 = vmatpush1.msra.mxu0 0.0
  %156 = vmatprep.subr.mxu0 0.0
  %157 = vmatpush1.msra.mxu0 0.0
  %158 = vmatprep.subr.mxu0 0.0
  %159 = vmatpush1.msra.mxu0 0.0
  %160 = vmatprep.subr.mxu0 0.0
  %161 = vmatpush1.msra.mxu0 0.0
  %162 = vmatprep.subr.mxu0 0.0
  %163 = vmatpush1.msra.mxu0 0.0
  %164 = vmatprep.subr.mxu0 0.0
  %165 = vmatpush1.msra.mxu0 0.0
  %166 = vmatprep.subr.mxu0 0.0
  %167 = vmatpush1.msra.mxu0 0.0
  %168 = vmatprep.subr.mxu0 0.0
  %169 = vmatpush1.msra.mxu0 0.0
  %170 = vmatprep.subr.mxu0 0.0
  %171 = vmatpush1.msra.mxu0 0.0
  %172 = vmatprep.subr.mxu0 0.0
  %173 = vmatpush1.msra.mxu0 0.0
  %174 = vmatprep.subr.mxu0 0.0
  %175 = vmatpush1.msra.mxu0 0.0
  %176 = vmatprep.subr.mxu0 0.0
  %177 = vmatpush1.msra.mxu0 0.0
  %178 = vmatprep.subr.mxu0 0.0
  %179 = vmatpush1.msra.mxu0 0.0
  %180 = vmatprep.subr.mxu0 0.0
  %181 = vmatpush1.msra.mxu0 0.0
  %182 = vmatprep.subr.mxu0 0.0
  %183 = vmatpush1.msra.mxu0 0.0
  %184 = vmatprep.subr.mxu0 0.0
  %185 = vmatpush1.msra.mxu0 0.0
  %186 = vmatprep.subr.mxu0 0.0
  %187 = vmatpush1.msra.mxu0 0.0
  %188 = vmatprep.subr.mxu0 0.0
  %189 = vmatpush1.msra.mxu0 0.0
  %190 = vmatprep.mubr.f32.mxu0 0.0
  %191 = vmatmul.mubr.f32.gmra.mrb[0].mxu0 %v52
  %v192 = vpop.f32.mrb[0].mxu0
  %v193 = vadd.f32 %v48, %v192
  %v194 = vpop.f32.mrb[0].mxu0
  %195 = vmatprep.mubr.f32.mxu0 0.0
  %196 = vmatmul.mubr.f32.gmra.mrb[0].mxu0 %v55
  %v197 = vpop.f32.mrb[0].mxu0
  %v198 = vadd.f32 %v48, %v197
  %v199 = vpop.f32.mrb[0].mxu0
  %200 = vmatprep.mubr.f32.mxu0 0.0
  %201 = vmatmul.mubr.f32.gmra.mrb[0].mxu0 %v58
  %v202 = vpop.f32.mrb[0].mxu0
  %v203 = vadd.f32 %v48, %v202
  %v204 = vpop.f32.mrb[0].mxu0
  %205 = vmatprep.mubr.f32.mxu0 0.0
  %206 = vmatmul.mubr.f32.gmra.mrb[0].mxu0 %v61
  %v207 = vpop.f32.mrb[0].mxu0
  %v208 = vadd.f32 %v48, %v207
  %v209 = vpop.f32.mrb[0].mxu0
  %210 = vmatprep.mubr.f32.mxu0 0.0
  %211 = vmatmul.mubr.f32.gmra.mrb[0].mxu0 %v64
  %v212 = vpop.f32.mrb[0].mxu0
  %v213 = vadd.f32 %v48, %v212
  %v214 = vpop.f32.mrb[0].mxu0
  %215 = vmatprep.mubr.f32.mxu0 0.0
  %216 = vmatmul.mubr.f32.gmra.mrb[0].mxu0 %v67
  %v217 = vpop.f32.mrb[0].mxu0
  %v218 = vadd.f32 %v48, %v217
  %v219 = vpop.f32.mrb[0].mxu0
  %220 = vmatprep.mubr.f32.mxu0 0.0
  %221 = vmatmul.mubr.f32.gmra.mrb[0].mxu0 %v70
  %v222 = vpop.f32.mrb[0].mxu0
  %v223 = vadd.f32 %v48, %v222
  %v224 = vpop.f32.mrb[0].mxu0
  %225 = vmatprep.mubr.f32.mxu0 0.0
  %226 = vmatmul.mubr.f32.gmra.mrb[0].mxu0 %v73
  %v227 = vpop.f32.mrb[0].mxu0
  %v228 = vadd.f32 %v48, %v227
  %v229 = vpop.f32.mrb[0].mxu0
  %230 = vmatprep.mubr.f32.mxu0 0.0
  %231 = vmatmul.mubr.f32.gmra.mrb[0].mxu0 %v76
  %v232 = vpop.f32.mrb[0].mxu0
  %v233 = vadd.f32 %v48, %v232
  %v234 = vpop.f32.mrb[0].mxu0
  %235 = vmatprep.mubr.f32.mxu0 0.0
  %236 = vmatmul.mubr.f32.gmra.mrb[0].mxu0 %v79
  %v237 = vpop.f32.mrb[0].mxu0
  %v238 = vadd.f32 %v48, %v237
  %v239 = vpop.f32.mrb[0].mxu0
  %240 = vmatprep.mubr.f32.mxu0 0.0
  %241 = vmatmul.mubr.f32.gmra.mrb[0].mxu0 %v82
  %v242 = vpop.f32.mrb[0].mxu0
  %v243 = vadd.f32 %v48, %v242
  %v244 = vpop.f32.mrb[0].mxu0
  %245 = vmatprep.mubr.f32.mxu0 0.0
  %246 = vmatmul.mubr.f32.gmra.mrb[0].mxu0 %v85
  %v247 = vpop.f32.mrb[0].mxu0
  %v248 = vadd.f32 %v48, %v247
  %v249 = vpop.f32.mrb[0].mxu0
  %250 = vmatprep.mubr.f32.mxu0 0.0
  %251 = vmatmul.mubr.f32.gmra.mrb[0].mxu0 %v88
  %v252 = vpop.f32.mrb[0].mxu0
  %v253 = vadd.f32 %v48, %v252
  %v254 = vpop.f32.mrb[0].mxu0
  %255 = vmatprep.mubr.f32.mxu0 0.0
  %256 = vmatmul.mubr.f32.gmra.mrb[0].mxu0 %v91
  %v257 = vpop.f32.mrb[0].mxu0
  %v258 = vadd.f32 %v48, %v257
  %v259 = vpop.f32.mrb[0].mxu0
  %260 = vmatprep.mubr.f32.mxu0 0.0
  %261 = vmatmul.mubr.f32.gmra.mrb[0].mxu0 %v94
  %v262 = vpop.f32.mrb[0].mxu0
  %v263 = vadd.f32 %v48, %v262
  %v264 = vpop.f32.mrb[0].mxu0
  %265 = vmatprep.mubr.f32.mxu0 0.0
  %266 = vmatmul.mubr.f32.gmra.mrb[0].mxu0 %v97
  %v267 = vpop.f32.mrb[0].mxu0
  %v268 = vadd.f32 %v48, %v267
  %v269 = vpop.f32.mrb[0].mxu0
  %270 = vmatprep.mubr.f32.mxu0 0.0
  %271 = vmatmul.mubr.f32.gmra.mrb[0].mxu0 %v100
  %v272 = vpop.f32.mrb[0].mxu0
  %v273 = vadd.f32 %v48, %v272
  %v274 = vpop.f32.mrb[0].mxu0
  %275 = vmatprep.mubr.f32.mxu0 0.0
  %276 = vmatmul.mubr.f32.gmra.mrb[0].mxu0 %v103
  %v277 = vpop.f32.mrb[0].mxu0
  %v278 = vadd.f32 %v48, %v277
  %v279 = vpop.f32.mrb[0].mxu0
  %280 = vmatprep.mubr.f32.mxu0 0.0
  %281 = vmatmul.mubr.f32.gmra.mrb[0].mxu0 %v106
  %v282 = vpop.f32.mrb[0].mxu0
  %v283 = vadd.f32 %v48, %v282
  %v284 = vpop.f32.mrb[0].mxu0
  %285 = vmatprep.mubr.f32.mxu0 0.0
  %286 = vmatmul.mubr.f32.gmra.mrb[0].mxu0 %v109
  %v287 = vpop.f32.mrb[0].mxu0
  %v288 = vadd.f32 %v48, %v287
  %v289 = vpop.f32.mrb[0].mxu0
  %290 = vmatprep.mubr.f32.mxu0 0.0
  %291 = vmatmul.mubr.f32.gmra.mrb[0].mxu0 %v112
  %v292 = vpop.f32.mrb[0].mxu0
  %v293 = vadd.f32 %v48, %v292
  %v294 = vpop.f32.mrb[0].mxu0
  %295 = vmatprep.mubr.f32.mxu0 0.0
  %296 = vmatmul.mubr.f32.gmra.mrb[0].mxu0 %v115
  %v297 = vpop.f32.mrb[0].mxu0
  %v298 = vadd.f32 %v48, %v297
  %v299 = vpop.f32.mrb[0].mxu0
  %300 = vmatprep.mubr.f32.mxu0 0.0
  %301 = vmatmul.mubr.f32.gmra.mrb[0].mxu0 %v118
  %v302 = vpop.f32.mrb[0].mxu0
  %v303 = vadd.f32 %v48, %v302
  %v304 = vpop.f32.mrb[0].mxu0
  %305 = vmatprep.mubr.f32.mxu0 0.0
  %306 = vmatmul.mubr.f32.gmra.mrb[0].mxu0 %v121
  %v307 = vpop.f32.mrb[0].mxu0
  %v308 = vadd.f32 %v48, %v307
  %v309 = vpop.f32.mrb[0].mxu0
  %310 = vmatprep.mubr.f32.mxu0 0.0
  %311 = vmatmul.mubr.f32.gmra.mrb[0].mxu0 %v124
  %v312 = vpop.f32.mrb[0].mxu0
  %v313 = vadd.f32 %v48, %v312
  %v314 = vpop.f32.mrb[0].mxu0
  %315 = vdwg.mxu0
  %vm316 = vcmask 130048
  %317 = vst.msk [vmem:[%s3] sm:$0xff] %vm316, %v193
  %318 = vst.msk [vmem:[%s3 + $0x8] sm:$0xff] %vm316, %v198
  %319 = vst.msk [vmem:[%s3 + $0x10] sm:$0xff] %vm316, %v203
  %320 = vst.msk [vmem:[%s3 + $0x18] sm:$0xff] %vm316, %v208
  %321 = vst.msk [vmem:[%s3 + $0x20] sm:$0xff] %vm316, %v213
  %322 = vst.msk [vmem:[%s3 + $0x28] sm:$0xff] %vm316, %v218
  %323 = vst.msk [vmem:[%s3 + $0x30] sm:$0xff] %vm316, %v223
  %324 = vst.msk [vmem:[%s3 + $0x38] sm:$0xff] %vm316, %v228
  %325 = vst.msk [vmem:[%s3 + $0x40] sm:$0xff] %vm316, %v233
  %326 = vst.msk [vmem:[%s3 + $0x48] sm:$0xff] %vm316, %v238
  %327 = vst.msk [vmem:[%s3 + $0x50] sm:$0xff] %vm316, %v243
  %328 = vst.msk [vmem:[%s3 + $0x58] sm:$0xff] %vm316, %v248
  %329 = vst.msk [vmem:[%s3 + $0x60] sm:$0xff] %vm316, %v253
  %330 = vst.msk [vmem:[%s3 + $0x68] sm:$0xff] %vm316, %v258
  %331 = vst.msk [vmem:[%s3 + $0x70] sm:$0xff] %vm316, %v263
  %332 = vst.msk [vmem:[%s3 + $0x78] sm:$0xff] %vm316, %v268
  %333 = vst.msk [vmem:[%s3 + $0x80] sm:$0xff] %vm316, %v273
  %334 = vst.msk [vmem:[%s3 + $0x88] sm:$0xff] %vm316, %v278
  %335 = vst.msk [vmem:[%s3 + $0x90] sm:$0xff] %vm316, %v283
  %336 = vst.msk [vmem:[%s3 + $0x98] sm:$0xff] %vm316, %v288
  %337 = vst.msk [vmem:[%s3 + $0xa0] sm:$0xff] %vm316, %v293
  %338 = vst.msk [vmem:[%s3 + $0xa8] sm:$0xff] %vm316, %v298
  %339 = vst.msk [vmem:[%s3 + $0xb0] sm:$0xff] %vm316, %v303
  %340 = vst.msk [vmem:[%s3 + $0xb8] sm:$0xff] %vm316, %v308
  %341 = vst.msk [vmem:[%s3 + $0xc0] sm:$0xff] %vm316, %v313
  // Predicated region
  $region14: #{_lambda_.37} parent=0 // pred_check
    _
  $region15: #{_lambda_.37} parent=0 // pred_check_branch
    %343 = sbr.rel (0) target = $region17
  $region16: #{_lambda_.37} parent=0 // pred_region
    _
  $region17: #{_lambda_.37} parent=0 // pred_fallthru
    _
  // Predicated region
  $region18: #{_lambda_.37} parent=0 // pred_check
    _
  $region19: #{_lambda_.37} parent=0 // pred_check_branch
    %345 = sbr.rel (0) target = $region21
  $region20: #{_lambda_.37} parent=0 // pred_region
    _
  $region21: #{_lambda_.37} parent=0 // pred_fallthru
    _

// kernel: _lambda_.38
$region0: #{_lambda_.38}
  #allocation0 [shape = 'u32[]', space=smem, size = 0x4, offset = 0x4, fixed_abs, tag = 'smem constant byte address 0x4 - core index']
  #allocation1 [shape = 'u32[144,128]{1,0:T(1,128)}', space=vmem, size = 0x12000, scoped, tag = 'internal scratch']
  %s0 = inlined_call_operand.vmem [shape: f32[40,80], index: 0, kind: input, shape index: {}]
  %s1 = inlined_call_operand.vmem [shape: f32[1,80], index: 1, kind: input, shape index: {}]
  %s2 = inlined_call_operand.vmem [shape: f32[1,80], index: 2, kind: input, shape index: {}]
  %s3 = inlined_call_operand.vmem [shape: f32[40,80], index: 3, kind: input, shape index: {}]
  %s4 = inlined_call_operand.vmem [shape: f32[40,80], index: 4, kind: output, shape index: {}]
  %s5 = sld [smem:[#allocation0]]
  $region26: #{_lambda_.38} parent=0
    _
  %s7 = ssub.s32 1, %s5
  %s8 = scalar_select 0, %s7, %s5
  // Predicated region
  $region2: #{_lambda_.38} parent=0 // pred_check
    _
  $region3: #{_lambda_.38} parent=0 // pred_check_branch
    %10 = sbr.rel (0) target = $region5
  $region4: #{_lambda_.38} parent=0 // pred_region
    _
  $region5: #{_lambda_.38} parent=0 // pred_fallthru
    _
  // Predicated region
  $region6: #{_lambda_.38} parent=0 // pred_check
    _
  $region7: #{_lambda_.38} parent=0 // pred_check_branch
    %12 = sbr.rel (0) target = $region9
  $region8: #{_lambda_.38} parent=0 // pred_region
    _
  $region9: #{_lambda_.38} parent=0 // pred_fallthru
    _
  // Predicated region
  $region10: #{_lambda_.38} parent=0 // pred_check
    _
  $region11: #{_lambda_.38} parent=0 // pred_check_branch
    %14 = sbr.rel (0) target = $region13
  $region12: #{_lambda_.38} parent=0 // pred_region
    _
  $region13: #{_lambda_.38} parent=0 // pred_fallthru
    _
  // Predicated region
  $region14: #{_lambda_.38} parent=0 // pred_check
    _
  $region15: #{_lambda_.38} parent=0 // pred_check_branch
    %16 = sbr.rel (0) target = $region17
  $region16: #{_lambda_.38} parent=0 // pred_region
    _
  $region17: #{_lambda_.38} parent=0 // pred_fallthru
    _
  %v17 = vld [vmem:[%s0] sm:$0xff]
  %v18 = vld [vmem:[%s0 + $0x8] sm:$0xff]
  %v19 = vld [vmem:[%s0 + $0x10] sm:$0xff]
  %v20 = vld [vmem:[%s0 + $0x18] sm:$0xff]
  %v21 = vld [vmem:[%s0 + $0x20] sm:$0xff]
  %vm22 = vcmask 654336
  %v23 = vsel %vm22, %v17, 0.0
  %24 = vadd.xlane.f32.xlu0 %v23
  %v25 = vpop.xlane.xlu0 %24
  %v26 = vsel %vm22, %v18, 0.0
  %27 = vadd.xlane.f32.xlu0 %v26
  %v28 = vpop.xlane.xlu0 %27
  %v29 = vsel %vm22, %v19, 0.0
  %30 = vadd.xlane.f32.xlu0 %v29
  %v31 = vpop.xlane.xlu0 %30
  %v32 = vsel %vm22, %v20, 0.0
  %33 = vadd.xlane.f32.xlu0 %v32
  %v34 = vpop.xlane.xlu0 %33
  %v35 = vsel %vm22, %v21, 0.0
  %36 = vadd.xlane.f32.xlu0 %v35
  %v37 = vpop.xlane.xlu0 %36
  %v38 = vrcp.pop 80.0
  %v39 = vmul.f32 %v25, %v38
  %v40 = vmul.f32 %v28, %v38
  %v41 = vmul.f32 %v31, %v38
  %v42 = vmul.f32 %v34, %v38
  %v43 = vmul.f32 %v37, %v38
  %v44 = vsub.f32 %v17, %v39
  %v45 = vsub.f32 %v18, %v40
  %v46 = vsub.f32 %v19, %v41
  %v47 = vsub.f32 %v20, %v42
  %v48 = vsub.f32 %v21, %v43
  %v49 = vmul.f32 %v44, %v44
  %v50 = vmul.f32 %v45, %v45
  %v51 = vmul.f32 %v46, %v46
  %v52 = vmul.f32 %v47, %v47
  %v53 = vmul.f32 %v48, %v48
  %v54 = vsel %vm22, %v49, 0.0
  %55 = vadd.xlane.f32.xlu0 %v54
  %v56 = vpop.xlane.xlu0 %55
  %v57 = vsel %vm22, %v50, 0.0
  %58 = vadd.xlane.f32.xlu0 %v57
  %v59 = vpop.xlane.xlu0 %58
  %v60 = vsel %vm22, %v51, 0.0
  %61 = vadd.xlane.f32.xlu0 %v60
  %v62 = vpop.xlane.xlu0 %61
  %v63 = vsel %vm22, %v52, 0.0
  %64 = vadd.xlane.f32.xlu0 %v63
  %v65 = vpop.xlane.xlu0 %64
  %v66 = vsel %vm22, %v53, 0.0
  %67 = vadd.xlane.f32.xlu0 %v66
  %v68 = vpop.xlane.xlu0 %67
  %v69 = vmul.f32 %v56, %v38
  %v70 = vmul.f32 %v59, %v38
  %v71 = vmul.f32 %v62, %v38
  %v72 = vmul.f32 %v65, %v38
  %v73 = vmul.f32 %v68, %v38
  %v74 = vadd.f32 %v69, 1e-08
  %v75 = vadd.f32 %v70, 1e-08
  %v76 = vadd.f32 %v71, 1e-08
  %v77 = vadd.f32 %v72, 1e-08
  %v78 = vadd.f32 %v73, 1e-08
  %v79 = vrsqrt.pop %v74
  %v80 = vrsqrt.pop %v75
  %v81 = vrsqrt.pop %v76
  %v82 = vrsqrt.pop %v77
  %v83 = vrsqrt.pop %v78
  %v84 = vmul.f32 %v44, %v79
  %v85 = vmul.f32 %v45, %v80
  %v86 = vmul.f32 %v46, %v81
  %v87 = vmul.f32 %v47, %v82
  %v88 = vmul.f32 %v48, %v83
  %v89 = vld [vmem:[%s1] sm:$0x1]
  %v91 = vlaneseq
  %v92 = vshrl.u32 %v91, 7
  %v93 = vsub.s32 0, %v92
  %v94 = vrot.slane %v89, %v93
  %v96 = vmul.f32 %v84, %v94
  %v97 = vmul.f32 %v85, %v94
  %v98 = vmul.f32 %v86, %v94
  %v99 = vmul.f32 %v87, %v94
  %v100 = vmul.f32 %v88, %v94
  %v101 = vld [vmem:[%s2] sm:$0x1]
  %v103 = vlaneseq
  %v104 = vshrl.u32 %v103, 7
  %v105 = vsub.s32 0, %v104
  %v106 = vrot.slane %v101, %v105
  %v108 = vadd.f32 %v96, %v106
  %v109 = vadd.f32 %v97, %v106
  %v110 = vadd.f32 %v98, %v106
  %v111 = vadd.f32 %v99, %v106
  %v112 = vadd.f32 %v100, %v106
  %v113 = vld [vmem:[%s3] sm:$0xff]
  %v114 = vld [vmem:[%s3 + $0x8] sm:$0xff]
  %v115 = vld [vmem:[%s3 + $0x10] sm:$0xff]
  %v116 = vld [vmem:[%s3 + $0x18] sm:$0xff]
  %v117 = vld [vmem:[%s3 + $0x20] sm:$0xff]
  %v118 = vadd.f32 %v108, %v113
  %v119 = vadd.f32 %v109, %v114
  %v120 = vadd.f32 %v110, %v115
  %v121 = vadd.f32 %v111, %v116
  %v122 = vadd.f32 %v112, %v117
  %123 = vst.msk [vmem:[%s4] sm:$0xff] %vm22, %v118
  %124 = vst.msk [vmem:[%s4 + $0x8] sm:$0xff] %vm22, %v119
  %125 = vst.msk [vmem:[%s4 + $0x10] sm:$0xff] %vm22, %v120
  %126 = vst.msk [vmem:[%s4 + $0x18] sm:$0xff] %vm22, %v121
  %127 = vst.msk [vmem:[%s4 + $0x20] sm:$0xff] %vm22, %v122
  // Predicated region
  $region18: #{_lambda_.38} parent=0 // pred_check
    _
  $region19: #{_lambda_.38} parent=0 // pred_check_branch
    %129 = sbr.rel (0) target = $region21
  $region20: #{_lambda_.38} parent=0 // pred_region
    _
  $region21: #{_lambda_.38} parent=0 // pred_fallthru
    _
  // Predicated region
  $region22: #{_lambda_.38} parent=0 // pred_check
    _
  $region23: #{_lambda_.38} parent=0 // pred_check_branch
    %131 = sbr.rel (0) target = $region25
  $region24: #{_lambda_.38} parent=0 // pred_region
    _
  $region25: #{_lambda_.38} parent=0 // pred_fallthru
    _

// kernel: _lambda_.32
$region0: #{_lambda_.32}
  #allocation0 [shape = 'u32[]', space=smem, size = 0x4, offset = 0x4, fixed_abs, tag = 'smem constant byte address 0x4 - core index']
  #allocation1 [shape = 'u32[144,128]{1,0:T(1,128)}', space=vmem, size = 0x12000, scoped, tag = 'internal scratch']
  %s0 = inlined_call_operand.vmem [shape: f32[20,10,16], index: 0, kind: input, shape index: {}]
  %s1 = inlined_call_operand.vmem [shape: f32[20,5,16], index: 1, kind: input, shape index: {}]
  %s2 = inlined_call_operand.vmem [shape: f32[20,10,5], index: 2, kind: output, shape index: {}]
  %s3 = sld [smem:[#allocation0]]
  $region18: #{_lambda_.32} parent=0
    _
  %s5 = ssub.s32 1, %s3
  %s6 = scalar_select 0, %s5, %s3
  // Predicated region
  $region2: #{_lambda_.32} parent=0 // pred_check
    _
  $region3: #{_lambda_.32} parent=0 // pred_check_branch
    %8 = sbr.rel (0) target = $region5
  $region4: #{_lambda_.32} parent=0 // pred_region
    _
  $region5: #{_lambda_.32} parent=0 // pred_fallthru
    _
  // Predicated region
  $region6: #{_lambda_.32} parent=0 // pred_check
    _
  $region7: #{_lambda_.32} parent=0 // pred_check_branch
    %10 = sbr.rel (0) target = $region9
  $region8: #{_lambda_.32} parent=0 // pred_region
    _
  $region9: #{_lambda_.32} parent=0 // pred_fallthru
    _
  %v11 = vld [vmem:[%s0] sm:$0xff]
  %v12 = vld [vmem:[%s0 + $0x8] sm:$0x3]
  %v13 = vld [vmem:[%s0 + $0x10] sm:$0xff]
  %v14 = vld [vmem:[%s0 + $0x18] sm:$0x3]
  %v15 = vld [vmem:[%s0 + $0x20] sm:$0xff]
  %v16 = vld [vmem:[%s0 + $0x28] sm:$0x3]
  %v17 = vld [vmem:[%s0 + $0x30] sm:$0xff]
  %v18 = vld [vmem:[%s0 + $0x38] sm:$0x3]
  %v19 = vld [vmem:[%s0 + $0x40] sm:$0xff]
  %v20 = vld [vmem:[%s0 + $0x48] sm:$0x3]
  %v21 = vld [vmem:[%s0 + $0x50] sm:$0xff]
  %v22 = vld [vmem:[%s0 + $0x58] sm:$0x3]
  %v23 = vld [vmem:[%s0 + $0x60] sm:$0xff]
  %v24 = vld [vmem:[%s0 + $0x68] sm:$0x3]
  %v25 = vld [vmem:[%s0 + $0x70] sm:$0xff]
  %v26 = vld [vmem:[%s0 + $0x78] sm:$0x3]
  %v27 = vld [vmem:[%s0 + $0x80] sm:$0xff]
  %v28 = vld [vmem:[%s0 + $0x88] sm:$0x3]
  %v29 = vld [vmem:[%s0 + $0x90] sm:$0xff]
  %v30 = vld [vmem:[%s0 + $0x98] sm:$0x3]
  %v31 = vld [vmem:[%s0 + $0xa0] sm:$0xff]
  %v32 = vld [vmem:[%s0 + $0xa8] sm:$0x3]
  %v33 = vld [vmem:[%s0 + $0xb0] sm:$0xff]
  %v34 = vld [vmem:[%s0 + $0xb8] sm:$0x3]
  %v35 = vld [vmem:[%s0 + $0xc0] sm:$0xff]
  %v36 = vld [vmem:[%s0 + $0xc8] sm:$0x3]
  %v37 = vld [vmem:[%s0 + $0xd0] sm:$0xff]
  %v38 = vld [vmem:[%s0 + $0xd8] sm:$0x3]
  %v39 = vld [vmem:[%s0 + $0xe0] sm:$0xff]
  %v40 = vld [vmem:[%s0 + $0xe8] sm:$0x3]
  %v41 = vld [vmem:[%s0 + $0xf0] sm:$0xff]
  %v42 = vld [vmem:[%s0 + $0xf8] sm:$0x3]
  %v43 = vld [vmem:[%s0 + $0x100] sm:$0xff]
  %v44 = vld [vmem:[%s0 + $0x108] sm:$0x3]
  %v45 = vld [vmem:[%s0 + $0x110] sm:$0xff]
  %v46 = vld [vmem:[%s0 + $0x118] sm:$0x3]
  %v47 = vld [vmem:[%s0 + $0x120] sm:$0xff]
  %v48 = vld [vmem:[%s0 + $0x128] sm:$0x3]
  %v49 = vld [vmem:[%s0 + $0x130] sm:$0xff]
  %v50 = vld [vmem:[%s0 + $0x138] sm:$0x3]
  %v51 = vld [vmem:[%s1] sm:$0x1f]
  %v52 = vld [vmem:[%s1 + $0x8] sm:$0x1f]
  %v53 = vld [vmem:[%s1 + $0x10] sm:$0x1f]
  %v54 = vld [vmem:[%s1 + $0x18] sm:$0x1f]
  %v55 = vld [vmem:[%s1 + $0x20] sm:$0x1f]
  %v56 = vld [vmem:[%s1 + $0x28] sm:$0x1f]
  %v57 = vld [vmem:[%s1 + $0x30] sm:$0x1f]
  %v58 = vld [vmem:[%s1 + $0x38] sm:$0x1f]
  %v59 = vld [vmem:[%s1 + $0x40] sm:$0x1f]
  %v60 = vld [vmem:[%s1 + $0x48] sm:$0x1f]
  %v61 = vld [vmem:[%s1 + $0x50] sm:$0x1f]
  %v62 = vld [vmem:[%s1 + $0x58] sm:$0x1f]
  %v63 = vld [vmem:[%s1 + $0x60] sm:$0x1f]
  %v64 = vld [vmem:[%s1 + $0x68] sm:$0x1f]
  %v65 = vld [vmem:[%s1 + $0x70] sm:$0x1f]
  %v66 = vld [vmem:[%s1 + $0x78] sm:$0x1f]
  %v67 = vld [vmem:[%s1 + $0x80] sm:$0x1f]
  %v68 = vld [vmem:[%s1 + $0x88] sm:$0x1f]
  %v69 = vld [vmem:[%s1 + $0x90] sm:$0x1f]
  %v70 = vld [vmem:[%s1 + $0x98] sm:$0x1f]
  %v71 = vmul.f32 %v11, %v11
  %v72 = vmul.f32 %v12, %v12
  %v73 = vmul.f32 %v13, %v13
  %v74 = vmul.f32 %v14, %v14
  %v75 = vmul.f32 %v15, %v15
  %v76 = vmul.f32 %v16, %v16
  %v77 = vmul.f32 %v17, %v17
  %v78 = vmul.f32 %v18, %v18
  %v79 = vmul.f32 %v19, %v19
  %v80 = vmul.f32 %v20, %v20
  %v81 = vmul.f32 %v21, %v21
  %v82 = vmul.f32 %v22, %v22
  %v83 = vmul.f32 %v23, %v23
  %v84 = vmul.f32 %v24, %v24
  %v85 = vmul.f32 %v25, %v25
  %v86 = vmul.f32 %v26, %v26
  %v87 = vmul.f32 %v27, %v27
  %v88 = vmul.f32 %v28, %v28
  %v89 = vmul.f32 %v29, %v29
  %v90 = vmul.f32 %v30, %v30
  %v91 = vmul.f32 %v31, %v31
  %v92 = vmul.f32 %v32, %v32
  %v93 = vmul.f32 %v33, %v33
  %v94 = vmul.f32 %v34, %v34
  %v95 = vmul.f32 %v35, %v35
  %v96 = vmul.f32 %v36, %v36
  %v97 = vmul.f32 %v37, %v37
  %v98 = vmul.f32 %v38, %v38
  %v99 = vmul.f32 %v39, %v39
  %v100 = vmul.f32 %v40, %v40
  %v101 = vmul.f32 %v41, %v41
  %v102 = vmul.f32 %v42, %v42
  %v103 = vmul.f32 %v43, %v43
  %v104 = vmul.f32 %v44, %v44
  %v105 = vmul.f32 %v45, %v45
  %v106 = vmul.f32 %v46, %v46
  %v107 = vmul.f32 %v47, %v47
  %v108 = vmul.f32 %v48, %v48
  %v109 = vmul.f32 %v49, %v49
  %v110 = vmul.f32 %v50, %v50
  %vm111 = vcmask 130048
  %v112 = vsel %vm111, %v71, 0.0
  %113 = vadd.xlane.f32.xlu0 %v112
  %v114 = vpop.xlane.xlu0 %113
  %vm115 = vcmask 123904
  %v116 = vsel %vm115, %v72, 0.0
  %117 = vadd.xlane.f32.xlu0 %v116
  %v118 = vpop.xlane.xlu0 %117
  %v119 = vsel %vm111, %v73, 0.0
  %120 = vadd.xlane.f32.xlu0 %v119
  %v121 = vpop.xlane.xlu0 %120
  %v122 = vsel %vm115, %v74, 0.0
  %123 = vadd.xlane.f32.xlu0 %v122
  %v124 = vpop.xlane.xlu0 %123
  %v125 = vsel %vm111, %v75, 0.0
  %126 = vadd.xlane.f32.xlu0 %v125
  %v127 = vpop.xlane.xlu0 %126
  %v128 = vsel %vm115, %v76, 0.0
  %129 = vadd.xlane.f32.xlu0 %v128
  %v130 = vpop.xlane.xlu0 %129
  %v131 = vsel %vm111, %v77, 0.0
  %132 = vadd.xlane.f32.xlu0 %v131
  %v133 = vpop.xlane.xlu0 %132
  %v134 = vsel %vm115, %v78, 0.0
  %135 = vadd.xlane.f32.xlu0 %v134
  %v136 = vpop.xlane.xlu0 %135
  %v137 = vsel %vm111, %v79, 0.0
  %138 = vadd.xlane.f32.xlu0 %v137
  %v139 = vpop.xlane.xlu0 %138
  %v140 = vsel %vm115, %v80, 0.0
  %141 = vadd.xlane.f32.xlu0 %v140
  %v142 = vpop.xlane.xlu0 %141
  %v143 = vsel %vm111, %v81, 0.0
  %144 = vadd.xlane.f32.xlu0 %v143
  %v145 = vpop.xlane.xlu0 %144
  %v146 = vsel %vm115, %v82, 0.0
  %147 = vadd.xlane.f32.xlu0 %v146
  %v148 = vpop.xlane.xlu0 %147
  %v149 = vsel %vm111, %v83, 0.0
  %150 = vadd.xlane.f32.xlu0 %v149
  %v151 = vpop.xlane.xlu0 %150
  %v152 = vsel %vm115, %v84, 0.0
  %153 = vadd.xlane.f32.xlu0 %v152
  %v154 = vpop.xlane.xlu0 %153
  %v155 = vsel %vm111, %v85, 0.0
  %156 = vadd.xlane.f32.xlu0 %v155
  %v157 = vpop.xlane.xlu0 %156
  %v158 = vsel %vm115, %v86, 0.0
  %159 = vadd.xlane.f32.xlu0 %v158
  %v160 = vpop.xlane.xlu0 %159
  %v161 = vsel %vm111, %v87, 0.0
  %162 = vadd.xlane.f32.xlu0 %v161
  %v163 = vpop.xlane.xlu0 %162
  %v164 = vsel %vm115, %v88, 0.0
  %165 = vadd.xlane.f32.xlu0 %v164
  %v166 = vpop.xlane.xlu0 %165
  %v167 = vsel %vm111, %v89, 0.0
  %168 = vadd.xlane.f32.xlu0 %v167
  %v169 = vpop.xlane.xlu0 %168
  %v170 = vsel %vm115, %v90, 0.0
  %171 = vadd.xlane.f32.xlu0 %v170
  %v172 = vpop.xlane.xlu0 %171
  %v173 = vsel %vm111, %v91, 0.0
  %174 = vadd.xlane.f32.xlu0 %v173
  %v175 = vpop.xlane.xlu0 %174
  %v176 = vsel %vm115, %v92, 0.0
  %177 = vadd.xlane.f32.xlu0 %v176
  %v178 = vpop.xlane.xlu0 %177
  %v179 = vsel %vm111, %v93, 0.0
  %180 = vadd.xlane.f32.xlu0 %v179
  %v181 = vpop.xlane.xlu0 %180
  %v182 = vsel %vm115, %v94, 0.0
  %183 = vadd.xlane.f32.xlu0 %v182
  %v184 = vpop.xlane.xlu0 %183
  %v185 = vsel %vm111, %v95, 0.0
  %186 = vadd.xlane.f32.xlu0 %v185
  %v187 = vpop.xlane.xlu0 %186
  %v188 = vsel %vm115, %v96, 0.0
  %189 = vadd.xlane.f32.xlu0 %v188
  %v190 = vpop.xlane.xlu0 %189
  %v191 = vsel %vm111, %v97, 0.0
  %192 = vadd.xlane.f32.xlu0 %v191
  %v193 = vpop.xlane.xlu0 %192
  %v194 = vsel %vm115, %v98, 0.0
  %195 = vadd.xlane.f32.xlu0 %v194
  %v196 = vpop.xlane.xlu0 %195
  %v197 = vsel %vm111, %v99, 0.0
  %198 = vadd.xlane.f32.xlu0 %v197
  %v199 = vpop.xlane.xlu0 %198
  %v200 = vsel %vm115, %v100, 0.0
  %201 = vadd.xlane.f32.xlu0 %v200
  %v202 = vpop.xlane.xlu0 %201
  %v203 = vsel %vm111, %v101, 0.0
  %204 = vadd.xlane.f32.xlu0 %v203
  %v205 = vpop.xlane.xlu0 %204
  %v206 = vsel %vm115, %v102, 0.0
  %207 = vadd.xlane.f32.xlu0 %v206
  %v208 = vpop.xlane.xlu0 %207
  %v209 = vsel %vm111, %v103, 0.0
  %210 = vadd.xlane.f32.xlu0 %v209
  %v211 = vpop.xlane.xlu0 %210
  %v212 = vsel %vm115, %v104, 0.0
  %213 = vadd.xlane.f32.xlu0 %v212
  %v214 = vpop.xlane.xlu0 %213
  %v215 = vsel %vm111, %v105, 0.0
  %216 = vadd.xlane.f32.xlu0 %v215
  %v217 = vpop.xlane.xlu0 %216
  %v218 = vsel %vm115, %v106, 0.0
  %219 = vadd.xlane.f32.xlu0 %v218
  %v220 = vpop.xlane.xlu0 %219
  %v221 = vsel %vm111, %v107, 0.0
  %222 = vadd.xlane.f32.xlu0 %v221
  %v223 = vpop.xlane.xlu0 %222
  %v224 = vsel %vm115, %v108, 0.0
  %225 = vadd.xlane.f32.xlu0 %v224
  %v226 = vpop.xlane.xlu0 %225
  %v227 = vsel %vm111, %v109, 0.0
  %228 = vadd.xlane.f32.xlu0 %v227
  %v229 = vpop.xlane.xlu0 %228
  %v230 = vsel %vm115, %v110, 0.0
  %231 = vadd.xlane.f32.xlu0 %v230
  %v232 = vpop.xlane.xlu0 %231
  %v233 = vadd.f32 %v114, 1e-08
  %v234 = vadd.f32 %v118, 1e-08
  %v235 = vadd.f32 %v121, 1e-08
  %v236 = vadd.f32 %v124, 1e-08
  %v237 = vadd.f32 %v127, 1e-08
  %v238 = vadd.f32 %v130, 1e-08
  %v239 = vadd.f32 %v133, 1e-08
  %v240 = vadd.f32 %v136, 1e-08
  %v241 = vadd.f32 %v139, 1e-08
  %v242 = vadd.f32 %v142, 1e-08
  %v243 = vadd.f32 %v145, 1e-08
  %v244 = vadd.f32 %v148, 1e-08
  %v245 = vadd.f32 %v151, 1e-08
  %v246 = vadd.f32 %v154, 1e-08
  %v247 = vadd.f32 %v157, 1e-08
  %v248 = vadd.f32 %v160, 1e-08
  %v249 = vadd.f32 %v163, 1e-08
  %v250 = vadd.f32 %v166, 1e-08
  %v251 = vadd.f32 %v169, 1e-08
  %v252 = vadd.f32 %v172, 1e-08
  %v253 = vadd.f32 %v175, 1e-08
  %v254 = vadd.f32 %v178, 1e-08
  %v255 = vadd.f32 %v181, 1e-08
  %v256 = vadd.f32 %v184, 1e-08
  %v257 = vadd.f32 %v187, 1e-08
  %v258 = vadd.f32 %v190, 1e-08
  %v259 = vadd.f32 %v193, 1e-08
  %v260 = vadd.f32 %v196, 1e-08
  %v261 = vadd.f32 %v199, 1e-08
  %v262 = vadd.f32 %v202, 1e-08
  %v263 = vadd.f32 %v205, 1e-08
  %v264 = vadd.f32 %v208, 1e-08
  %v265 = vadd.f32 %v211, 1e-08
  %v266 = vadd.f32 %v214, 1e-08
  %v267 = vadd.f32 %v217, 1e-08
  %v268 = vadd.f32 %v220, 1e-08
  %v269 = vadd.f32 %v223, 1e-08
  %v270 = vadd.f32 %v226, 1e-08
  %v271 = vadd.f32 %v229, 1e-08
  %v272 = vadd.f32 %v232, 1e-08
  %v273 = vrsqrt.pop %v233
  %v274 = vrsqrt.pop %v234
  %v275 = vrsqrt.pop %v235
  %v276 = vrsqrt.pop %v236
  %v277 = vrsqrt.pop %v237
  %v278 = vrsqrt.pop %v238
  %v279 = vrsqrt.pop %v239
  %v280 = vrsqrt.pop %v240
  %v281 = vrsqrt.pop %v241
  %v282 = vrsqrt.pop %v242
  %v283 = vrsqrt.pop %v243
  %v284 = vrsqrt.pop %v244
  %v285 = vrsqrt.pop %v245
  %v286 = vrsqrt.pop %v246
  %v287 = vrsqrt.pop %v247
  %v288 = vrsqrt.pop %v248
  %v289 = vrsqrt.pop %v249
  %v290 = vrsqrt.pop %v250
  %v291 = vrsqrt.pop %v251
  %v292 = vrsqrt.pop %v252
  %v293 = vrsqrt.pop %v253
  %v294 = vrsqrt.pop %v254
  %v295 = vrsqrt.pop %v255
  %v296 = vrsqrt.pop %v256
  %v297 = vrsqrt.pop %v257
  %v298 = vrsqrt.pop %v258
  %v299 = vrsqrt.pop %v259
  %v300 = vrsqrt.pop %v260
  %v301 = vrsqrt.pop %v261
  %v302 = vrsqrt.pop %v262
  %v303 = vrsqrt.pop %v263
  %v304 = vrsqrt.pop %v264
  %v305 = vrsqrt.pop %v265
  %v306 = vrsqrt.pop %v266
  %v307 = vrsqrt.pop %v267
  %v308 = vrsqrt.pop %v268
  %v309 = vrsqrt.pop %v269
  %v310 = vrsqrt.pop %v270
  %v311 = vrsqrt.pop %v271
  %v312 = vrsqrt.pop %v272
  %v313 = vmul.f32 %v11, %v273
  %v314 = vmul.f32 %v12, %v274
  %v315 = vmul.f32 %v13, %v275
  %v316 = vmul.f32 %v14, %v276
  %v317 = vmul.f32 %v15, %v277
  %v318 = vmul.f32 %v16, %v278
  %v319 = vmul.f32 %v17, %v279
  %v320 = vmul.f32 %v18, %v280
  %v321 = vmul.f32 %v19, %v281
  %v322 = vmul.f32 %v20, %v282
  %v323 = vmul.f32 %v21, %v283
  %v324 = vmul.f32 %v22, %v284
  %v325 = vmul.f32 %v23, %v285
  %v326 = vmul.f32 %v24, %v286
  %v327 = vmul.f32 %v25, %v287
  %v328 = vmul.f32 %v26, %v288
  %v329 = vmul.f32 %v27, %v289
  %v330 = vmul.f32 %v28, %v290
  %v331 = vmul.f32 %v29, %v291
  %v332 = vmul.f32 %v30, %v292
  %v333 = vmul.f32 %v31, %v293
  %v334 = vmul.f32 %v32, %v294
  %v335 = vmul.f32 %v33, %v295
  %v336 = vmul.f32 %v34, %v296
  %v337 = vmul.f32 %v35, %v297
  %v338 = vmul.f32 %v36, %v298
  %v339 = vmul.f32 %v37, %v299
  %v340 = vmul.f32 %v38, %v300
  %v341 = vmul.f32 %v39, %v301
  %v342 = vmul.f32 %v40, %v302
  %v343 = vmul.f32 %v41, %v303
  %v344 = vmul.f32 %v42, %v304
  %v345 = vmul.f32 %v43, %v305
  %v346 = vmul.f32 %v44, %v306
  %v347 = vmul.f32 %v45, %v307
  %v348 = vmul.f32 %v46, %v308
  %v349 = vmul.f32 %v47, %v309
  %v350 = vmul.f32 %v48, %v310
  %v351 = vmul.f32 %v49, %v311
  %v352 = vmul.f32 %v50, %v312
  %v353 = vmul.f32 %v51, %v51
  %v354 = vmul.f32 %v52, %v52
  %v355 = vmul.f32 %v53, %v53
  %v356 = vmul.f32 %v54, %v54
  %v357 = vmul.f32 %v55, %v55
  %v358 = vmul.f32 %v56, %v56
  %v359 = vmul.f32 %v57, %v57
  %v360 = vmul.f32 %v58, %v58
  %v361 = vmul.f32 %v59, %v59
  %v362 = vmul.f32 %v60, %v60
  %v363 = vmul.f32 %v61, %v61
  %v364 = vmul.f32 %v62, %v62
  %v365 = vmul.f32 %v63, %v63
  %v366 = vmul.f32 %v64, %v64
  %v367 = vmul.f32 %v65, %v65
  %v368 = vmul.f32 %v66, %v66
  %v369 = vmul.f32 %v67, %v67
  %v370 = vmul.f32 %v68, %v68
  %v371 = vmul.f32 %v69, %v69
  %v372 = vmul.f32 %v70, %v70
  %vm373 = vcmask 126976
  %v374 = vsel %vm373, %v353, 0.0
  %375 = vadd.xlane.f32.xlu0 %v374
  %v376 = vpop.xlane.xlu0 %375
  %v377 = vsel %vm373, %v354, 0.0
  %378 = vadd.xlane.f32.xlu0 %v377
  %v379 = vpop.xlane.xlu0 %378
  %v380 = vsel %vm373, %v355, 0.0
  %381 = vadd.xlane.f32.xlu0 %v380
  %v382 = vpop.xlane.xlu0 %381
  %v383 = vsel %vm373, %v356, 0.0
  %384 = vadd.xlane.f32.xlu0 %v383
  %v385 = vpop.xlane.xlu0 %384
  %v386 = vsel %vm373, %v357, 0.0
  %387 = vadd.xlane.f32.xlu0 %v386
  %v388 = vpop.xlane.xlu0 %387
  %v389 = vsel %vm373, %v358, 0.0
  %390 = vadd.xlane.f32.xlu0 %v389
  %v391 = vpop.xlane.xlu0 %390
  %v392 = vsel %vm373, %v359, 0.0
  %393 = vadd.xlane.f32.xlu0 %v392
  %v394 = vpop.xlane.xlu0 %393
  %v395 = vsel %vm373, %v360, 0.0
  %396 = vadd.xlane.f32.xlu0 %v395
  %v397 = vpop.xlane.xlu0 %396
  %v398 = vsel %vm373, %v361, 0.0
  %399 = vadd.xlane.f32.xlu0 %v398
  %v400 = vpop.xlane.xlu0 %399
  %v401 = vsel %vm373, %v362, 0.0
  %402 = vadd.xlane.f32.xlu0 %v401
  %v403 = vpop.xlane.xlu0 %402
  %v404 = vsel %vm373, %v363, 0.0
  %405 = vadd.xlane.f32.xlu0 %v404
  %v406 = vpop.xlane.xlu0 %405
  %v407 = vsel %vm373, %v364, 0.0
  %408 = vadd.xlane.f32.xlu0 %v407
  %v409 = vpop.xlane.xlu0 %408
  %v410 = vsel %vm373, %v365, 0.0
  %411 = vadd.xlane.f32.xlu0 %v410
  %v412 = vpop.xlane.xlu0 %411
  %v413 = vsel %vm373, %v366, 0.0
  %414 = vadd.xlane.f32.xlu0 %v413
  %v415 = vpop.xlane.xlu0 %414
  %v416 = vsel %vm373, %v367, 0.0
  %417 = vadd.xlane.f32.xlu0 %v416
  %v418 = vpop.xlane.xlu0 %417
  %v419 = vsel %vm373, %v368, 0.0
  %420 = vadd.xlane.f32.xlu0 %v419
  %v421 = vpop.xlane.xlu0 %420
  %v422 = vsel %vm373, %v369, 0.0
  %423 = vadd.xlane.f32.xlu0 %v422
  %v424 = vpop.xlane.xlu0 %423
  %v425 = vsel %vm373, %v370, 0.0
  %426 = vadd.xlane.f32.xlu0 %v425
  %v427 = vpop.xlane.xlu0 %426
  %v428 = vsel %vm373, %v371, 0.0
  %429 = vadd.xlane.f32.xlu0 %v428
  %v430 = vpop.xlane.xlu0 %429
  %v431 = vsel %vm373, %v372, 0.0
  %432 = vadd.xlane.f32.xlu0 %v431
  %v433 = vpop.xlane.xlu0 %432
  %v434 = vadd.f32 %v376, 1e-08
  %v435 = vadd.f32 %v379, 1e-08
  %v436 = vadd.f32 %v382, 1e-08
  %v437 = vadd.f32 %v385, 1e-08
  %v438 = vadd.f32 %v388, 1e-08
  %v439 = vadd.f32 %v391, 1e-08
  %v440 = vadd.f32 %v394, 1e-08
  %v441 = vadd.f32 %v397, 1e-08
  %v442 = vadd.f32 %v400, 1e-08
  %v443 = vadd.f32 %v403, 1e-08
  %v444 = vadd.f32 %v406, 1e-08
  %v445 = vadd.f32 %v409, 1e-08
  %v446 = vadd.f32 %v412, 1e-08
  %v447 = vadd.f32 %v415, 1e-08
  %v448 = vadd.f32 %v418, 1e-08
  %v449 = vadd.f32 %v421, 1e-08
  %v450 = vadd.f32 %v424, 1e-08
  %v451 = vadd.f32 %v427, 1e-08
  %v452 = vadd.f32 %v430, 1e-08
  %v453 = vadd.f32 %v433, 1e-08
  %v454 = vrsqrt.pop %v434
  %v455 = vrsqrt.pop %v435
  %v456 = vrsqrt.pop %v436
  %v457 = vrsqrt.pop %v437
  %v458 = vrsqrt.pop %v438
  %v459 = vrsqrt.pop %v439
  %v460 = vrsqrt.pop %v440
  %v461 = vrsqrt.pop %v441
  %v462 = vrsqrt.pop %v442
  %v463 = vrsqrt.pop %v443
  %v464 = vrsqrt.pop %v444
  %v465 = vrsqrt.pop %v445
  %v466 = vrsqrt.pop %v446
  %v467 = vrsqrt.pop %v447
  %v468 = vrsqrt.pop %v448
  %v469 = vrsqrt.pop %v449
  %v470 = vrsqrt.pop %v450
  %v471 = vrsqrt.pop %v451
  %v472 = vrsqrt.pop %v452
  %v473 = vrsqrt.pop %v453
  %v474 = vmul.f32 %v51, %v454
  %v475 = vmul.f32 %v52, %v455
  %v476 = vmul.f32 %v53, %v456
  %v477 = vmul.f32 %v54, %v457
  %v478 = vmul.f32 %v55, %v458
  %v479 = vmul.f32 %v56, %v459
  %v480 = vmul.f32 %v57, %v460
  %v481 = vmul.f32 %v58, %v461
  %v482 = vmul.f32 %v59, %v462
  %v483 = vmul.f32 %v60, %v463
  %v484 = vmul.f32 %v61, %v464
  %v485 = vmul.f32 %v62, %v465
  %v486 = vmul.f32 %v63, %v466
  %v487 = vmul.f32 %v64, %v467
  %v488 = vmul.f32 %v65, %v468
  %v489 = vmul.f32 %v66, %v469
  %v490 = vmul.f32 %v67, %v470
  %v491 = vmul.f32 %v68, %v471
  %v492 = vmul.f32 %v69, %v472
  %v493 = vmul.f32 %v70, %v473
  %v495 = vsel %vm111, %v313, 0
  %v498 = vsel %vm111, %v314, 0
  %v501 = vsel %vm111, %v474, 0
  %503 = vmatprep.subr.mxu0 0.0
  %504 = vmatpush1.xpose.msra.mxu0 %v501
  %505 = vmatprep.subr.mxu0 0.0
  %506 = vmatpush1.xpose.msra.mxu0 0.0
  %507 = vmatprep.subr.mxu0 0.0
  %508 = vmatpush1.xpose.msra.mxu0 0.0
  %509 = vmatprep.subr.mxu0 0.0
  %510 = vmatpush1.xpose.msra.mxu0 0.0
  %511 = vmatprep.subr.mxu0 0.0
  %512 = vmatpush1.xpose.msra.mxu0 0.0
  %513 = vmatprep.subr.mxu0 0.0
  %514 = vmatpush1.xpose.msra.mxu0 0.0
  %515 = vmatprep.subr.mxu0 0.0
  %516 = vmatpush1.xpose.msra.mxu0 0.0
  %517 = vmatprep.subr.mxu0 0.0
  %518 = vmatpush1.xpose.msra.mxu0 0.0
  %519 = vmatprep.subr.mxu0 0.0
  %520 = vmatpush1.xpose.msra.mxu0 0.0
  %521 = vmatprep.subr.mxu0 0.0
  %522 = vmatpush1.xpose.msra.mxu0 0.0
  %523 = vmatprep.subr.mxu0 0.0
  %524 = vmatpush1.xpose.msra.mxu0 0.0
  %525 = vmatprep.subr.mxu0 0.0
  %526 = vmatpush1.xpose.msra.mxu0 0.0
  %527 = vmatprep.subr.mxu0 0.0
  %528 = vmatpush1.xpose.msra.mxu0 0.0
  %529 = vmatprep.subr.mxu0 0.0
  %530 = vmatpush1.xpose.msra.mxu0 0.0
  %531 = vmatprep.subr.mxu0 0.0
  %532 = vmatpush1.xpose.msra.mxu0 0.0
  %533 = vmatprep.subr.mxu0 0.0
  %534 = vmatpush1.xpose.msra.mxu0 0.0
  %535 = vmatprep.subr.mxu0 0.0
  %536 = vmatpush1.xpose.msra.mxu0 0.0
  %537 = vmatprep.subr.mxu0 0.0
  %538 = vmatpush1.xpose.msra.mxu0 0.0
  %539 = vmatprep.subr.mxu0 0.0
  %540 = vmatpush1.xpose.msra.mxu0 0.0
  %541 = vmatprep.subr.mxu0 0.0
  %542 = vmatpush1.xpose.msra.mxu0 0.0
  %543 = vmatprep.subr.mxu0 0.0
  %544 = vmatpush1.xpose.msra.mxu0 0.0
  %545 = vmatprep.subr.mxu0 0.0
  %546 = vmatpush1.xpose.msra.mxu0 0.0
  %547 = vmatprep.subr.mxu0 0.0
  %548 = vmatpush1.xpose.msra.mxu0 0.0
  %549 = vmatprep.subr.mxu0 0.0
  %550 = vmatpush1.xpose.msra.mxu0 0.0
  %551 = vmatprep.subr.mxu0 0.0
  %552 = vmatpush1.xpose.msra.mxu0 0.0
  %553 = vmatprep.subr.mxu0 0.0
  %554 = vmatpush1.xpose.msra.mxu0 0.0
  %555 = vmatprep.subr.mxu0 0.0
  %556 = vmatpush1.xpose.msra.mxu0 0.0
  %557 = vmatprep.subr.mxu0 0.0
  %558 = vmatpush1.xpose.msra.mxu0 0.0
  %559 = vmatprep.subr.mxu0 0.0
  %560 = vmatpush1.xpose.msra.mxu0 0.0
  %561 = vmatprep.subr.mxu0 0.0
  %562 = vmatpush1.xpose.msra.mxu0 0.0
  %563 = vmatprep.subr.mxu0 0.0
  %564 = vmatpush1.xpose.msra.mxu0 0.0
  %565 = vmatprep.subr.mxu0 0.0
  %566 = vmatpush1.xpose.msra.mxu0 0.0
  %567 = vmatprep.mubr.f32.mxu0 0.0
  %568 = vmatmul.mubr.f32.gmra.mrb[0].mxu0 %v495
  %v569 = vpop.f32.mrb[0].mxu0
  %v570 = vadd.f32 0.0, %v569
  %v571 = vpop.f32.mrb[0].mxu0
  %572 = vmatprep.mubr.f32.mxu0 0.0
  %573 = vmatmul.mubr.f32.gmra.mrb[0].mxu0 %v498
  %v574 = vpop.f32.mrb[0].mxu0
  %v575 = vadd.f32 0.0, %v574
  %v576 = vpop.f32.mrb[0].mxu0
  %577 = vdwg.mxu0
  %v579 = vsel %vm111, %v315, 0
  %v582 = vsel %vm111, %v316, 0
  %v585 = vsel %vm111, %v475, 0
  %587 = vmatprep.subr.mxu0 0.0
  %588 = vmatpush1.xpose.msra.mxu0 %v585
  %589 = vmatprep.subr.mxu0 0.0
  %590 = vmatpush1.xpose.msra.mxu0 0.0
  %591 = vmatprep.subr.mxu0 0.0
  %592 = vmatpush1.xpose.msra.mxu0 0.0
  %593 = vmatprep.subr.mxu0 0.0
  %594 = vmatpush1.xpose.msra.mxu0 0.0
  %595 = vmatprep.subr.mxu0 0.0
  %596 = vmatpush1.xpose.msra.mxu0 0.0
  %597 = vmatprep.subr.mxu0 0.0
  %598 = vmatpush1.xpose.msra.mxu0 0.0
  %599 = vmatprep.subr.mxu0 0.0
  %600 = vmatpush1.xpose.msra.mxu0 0.0
  %601 = vmatprep.subr.mxu0 0.0
  %602 = vmatpush1.xpose.msra.mxu0 0.0
  %603 = vmatprep.subr.mxu0 0.0
  %604 = vmatpush1.xpose.msra.mxu0 0.0
  %605 = vmatprep.subr.mxu0 0.0
  %606 = vmatpush1.xpose.msra.mxu0 0.0
  %607 = vmatprep.subr.mxu0 0.0
  %608 = vmatpush1.xpose.msra.mxu0 0.0
  %609 = vmatprep.subr.mxu0 0.0
  %610 = vmatpush1.xpose.msra.mxu0 0.0
  %611 = vmatprep.subr.mxu0 0.0
  %612 = vmatpush1.xpose.msra.mxu0 0.0
  %613 = vmatprep.subr.mxu0 0.0
  %614 = vmatpush1.xpose.msra.mxu0 0.0
  %615 = vmatprep.subr.mxu0 0.0
  %616 = vmatpush1.xpose.msra.mxu0 0.0
  %617 = vmatprep.subr.mxu0 0.0
  %618 = vmatpush1.xpose.msra.mxu0 0.0
  %619 = vmatprep.subr.mxu0 0.0
  %620 = vmatpush1.xpose.msra.mxu0 0.0
  %621 = vmatprep.subr.mxu0 0.0
  %622 = vmatpush1.xpose.msra.mxu0 0.0
  %623 = vmatprep.subr.mxu0 0.0
  %624 = vmatpush1.xpose.msra.mxu0 0.0
  %625 = vmatprep.subr.mxu0 0.0
  %626 = vmatpush1.xpose.msra.mxu0 0.0
  %627 = vmatprep.subr.mxu0 0.0
  %628 = vmatpush1.xpose.msra.mxu0 0.0
  %629 = vmatprep.subr.mxu0 0.0
  %630 = vmatpush1.xpose.msra.mxu0 0.0
  %631 = vmatprep.subr.mxu0 0.0
  %632 = vmatpush1.xpose.msra.mxu0 0.0
  %633 = vmatprep.subr.mxu0 0.0
  %634 = vmatpush1.xpose.msra.mxu0 0.0
  %635 = vmatprep.subr.mxu0 0.0
  %636 = vmatpush1.xpose.msra.mxu0 0.0
  %637 = vmatprep.subr.mxu0 0.0
  %638 = vmatpush1.xpose.msra.mxu0 0.0
  %639 = vmatprep.subr.mxu0 0.0
  %640 = vmatpush1.xpose.msra.mxu0 0.0
  %641 = vmatprep.subr.mxu0 0.0
  %642 = vmatpush1.xpose.msra.mxu0 0.0
  %643 = vmatprep.subr.mxu0 0.0
  %644 = vmatpush1.xpose.msra.mxu0 0.0
  %645 = vmatprep.subr.mxu0 0.0
  %646 = vmatpush1.xpose.msra.mxu0 0.0
  %647 = vmatprep.subr.mxu0 0.0
  %648 = vmatpush1.xpose.msra.mxu0 0.0
  %649 = vmatprep.subr.mxu0 0.0
  %650 = vmatpush1.xpose.msra.mxu0 0.0
  %651 = vmatprep.mubr.f32.mxu0 0.0
  %652 = vmatmul.mubr.f32.gmra.mrb[0].mxu0 %v579
  %v653 = vpop.f32.mrb[0].mxu0
  %v654 = vadd.f32 0.0, %v653
  %v655 = vpop.f32.mrb[0].mxu0
  %656 = vmatprep.mubr.f32.mxu0 0.0
  %657 = vmatmul.mubr.f32.gmra.mrb[0].mxu0 %v582
  %v658 = vpop.f32.mrb[0].mxu0
  %v659 = vadd.f32 0.0, %v658
  %v660 = vpop.f32.mrb[0].mxu0
  %661 = vdwg.mxu0
  %v663 = vsel %vm111, %v317, 0
  %v666 = vsel %vm111, %v318, 0
  %v669 = vsel %vm111, %v476, 0
  %671 = vmatprep.subr.mxu0 0.0
  %672 = vmatpush1.xpose.msra.mxu0 %v669
  %673 = vmatprep.subr.mxu0 0.0
  %674 = vmatpush1.xpose.msra.mxu0 0.0
  %675 = vmatprep.subr.mxu0 0.0
  %676 = vmatpush1.xpose.msra.mxu0 0.0
  %677 = vmatprep.subr.mxu0 0.0
  %678 = vmatpush1.xpose.msra.mxu0 0.0
  %679 = vmatprep.subr.mxu0 0.0
  %680 = vmatpush1.xpose.msra.mxu0 0.0
  %681 = vmatprep.subr.mxu0 0.0
  %682 = vmatpush1.xpose.msra.mxu0 0.0
  %683 = vmatprep.subr.mxu0 0.0
  %684 = vmatpush1.xpose.msra.mxu0 0.0
  %685 = vmatprep.subr.mxu0 0.0
  %686 = vmatpush1.xpose.msra.mxu0 0.0
  %687 = vmatprep.subr.mxu0 0.0
  %688 = vmatpush1.xpose.msra.mxu0 0.0
  %689 = vmatprep.subr.mxu0 0.0
  %690 = vmatpush1.xpose.msra.mxu0 0.0
  %691 = vmatprep.subr.mxu0 0.0
  %692 = vmatpush1.xpose.msra.mxu0 0.0
  %693 = vmatprep.subr.mxu0 0.0
  %694 = vmatpush1.xpose.msra.mxu0 0.0
  %695 = vmatprep.subr.mxu0 0.0
  %696 = vmatpush1.xpose.msra.mxu0 0.0
  %697 = vmatprep.subr.mxu0 0.0
  %698 = vmatpush1.xpose.msra.mxu0 0.0
  %699 = vmatprep.subr.mxu0 0.0
  %700 = vmatpush1.xpose.msra.mxu0 0.0
  %701 = vmatprep.subr.mxu0 0.0
  %702 = vmatpush1.xpose.msra.mxu0 0.0
  %703 = vmatprep.subr.mxu0 0.0
  %704 = vmatpush1.xpose.msra.mxu0 0.0
  %705 = vmatprep.subr.mxu0 0.0
  %706 = vmatpush1.xpose.msra.mxu0 0.0
  %707 = vmatprep.subr.mxu0 0.0
  %708 = vmatpush1.xpose.msra.mxu0 0.0
  %709 = vmatprep.subr.mxu0 0.0
  %710 = vmatpush1.xpose.msra.mxu0 0.0
  %711 = vmatprep.subr.mxu0 0.0
  %712 = vmatpush1.xpose.msra.mxu0 0.0
  %713 = vmatprep.subr.mxu0 0.0
  %714 = vmatpush1.xpose.msra.mxu0 0.0
  %715 = vmatprep.subr.mxu0 0.0
  %716 = vmatpush1.xpose.msra.mxu0 0.0
  %717 = vmatprep.subr.mxu0 0.0
  %718 = vmatpush1.xpose.msra.mxu0 0.0
  %719 = vmatprep.subr.mxu0 0.0
  %720 = vmatpush1.xpose.msra.mxu0 0.0
  %721 = vmatprep.subr.mxu0 0.0
  %722 = vmatpush1.xpose.msra.mxu0 0.0
  %723 = vmatprep.subr.mxu0 0.0
  %724 = vmatpush1.xpose.msra.mxu0 0.0
  %725 = vmatprep.subr.mxu0 0.0
  %726 = vmatpush1.xpose.msra.mxu0 0.0
  %727 = vmatprep.subr.mxu0 0.0
  %728 = vmatpush1.xpose.msra.mxu0 0.0
  %729 = vmatprep.subr.mxu0 0.0
  %730 = vmatpush1.xpose.msra.mxu0 0.0
  %731 = vmatprep.subr.mxu0 0.0
  %732 = vmatpush1.xpose.msra.mxu0 0.0
  %733 = vmatprep.subr.mxu0 0.0
  %734 = vmatpush1.xpose.msra.mxu0 0.0
  %735 = vmatprep.mubr.f32.mxu0 0.0
  %736 = vmatmul.mubr.f32.gmra.mrb[0].mxu0 %v663
  %v737 = vpop.f32.mrb[0].mxu0
  %v738 = vadd.f32 0.0, %v737
  %v739 = vpop.f32.mrb[0].mxu0
  %740 = vmatprep.mubr.f32.mxu0 0.0
  %741 = vmatmul.mubr.f32.gmra.mrb[0].mxu0 %v666
  %v742 = vpop.f32.mrb[0].mxu0
  %v743 = vadd.f32 0.0, %v742
  %v744 = vpop.f32.mrb[0].mxu0
  %745 = vdwg.mxu0
  %v747 = vsel %vm111, %v319, 0
  %v750 = vsel %vm111, %v320, 0
  %v753 = vsel %vm111, %v477, 0
  %755 = vmatprep.subr.mxu0 0.0
  %756 = vmatpush1.xpose.msra.mxu0 %v753
  %757 = vmatprep.subr.mxu0 0.0
  %758 = vmatpush1.xpose.msra.mxu0 0.0
  %759 = vmatprep.subr.mxu0 0.0
  %760 = vmatpush1.xpose.msra.mxu0 0.0
  %761 = vmatprep.subr.mxu0 0.0
  %762 = vmatpush1.xpose.msra.mxu0 0.0
  %763 = vmatprep.subr.mxu0 0.0
  %764 = vmatpush1.xpose.msra.mxu0 0.0
  %765 = vmatprep.subr.mxu0 0.0
  %766 = vmatpush1.xpose.msra.mxu0 0.0
  %767 = vmatprep.subr.mxu0 0.0
  %768 = vmatpush1.xpose.msra.mxu0 0.0
  %769 = vmatprep.subr.mxu0 0.0
  %770 = vmatpush1.xpose.msra.mxu0 0.0
  %771 = vmatprep.subr.mxu0 0.0
  %772 = vmatpush1.xpose.msra.mxu0 0.0
  %773 = vmatprep.subr.mxu0 0.0
  %774 = vmatpush1.xpose.msra.mxu0 0.0
  %775 = vmatprep.subr.mxu0 0.0
  %776 = vmatpush1.xpose.msra.mxu0 0.0
  %777 = vmatprep.subr.mxu0 0.0
  %778 = vmatpush1.xpose.msra.mxu0 0.0
  %779 = vmatprep.subr.mxu0 0.0
  %780 = vmatpush1.xpose.msra.mxu0 0.0
  %781 = vmatprep.subr.mxu0 0.0
  %782 = vmatpush1.xpose.msra.mxu0 0.0
  %783 = vmatprep.subr.mxu0 0.0
  %784 = vmatpush1.xpose.msra.mxu0 0.0
  %785 = vmatprep.subr.mxu0 0.0
  %786 = vmatpush1.xpose.msra.mxu0 0.0
  %787 = vmatprep.subr.mxu0 0.0
  %788 = vmatpush1.xpose.msra.mxu0 0.0
  %789 = vmatprep.subr.mxu0 0.0
  %790 = vmatpush1.xpose.msra.mxu0 0.0
  %791 = vmatprep.subr.mxu0 0.0
  %792 = vmatpush1.xpose.msra.mxu0 0.0
  %793 = vmatprep.subr.mxu0 0.0
  %794 = vmatpush1.xpose.msra.mxu0 0.0
  %795 = vmatprep.subr.mxu0 0.0
  %796 = vmatpush1.xpose.msra.mxu0 0.0
  %797 = vmatprep.subr.mxu0 0.0
  %798 = vmatpush1.xpose.msra.mxu0 0.0
  %799 = vmatprep.subr.mxu0 0.0
  %800 = vmatpush1.xpose.msra.mxu0 0.0
  %801 = vmatprep.subr.mxu0 0.0
  %802 = vmatpush1.xpose.msra.mxu0 0.0
  %803 = vmatprep.subr.mxu0 0.0
  %804 = vmatpush1.xpose.msra.mxu0 0.0
  %805 = vmatprep.subr.mxu0 0.0
  %806 = vmatpush1.xpose.msra.mxu0 0.0
  %807 = vmatprep.subr.mxu0 0.0
  %808 = vmatpush1.xpose.msra.mxu0 0.0
  %809 = vmatprep.subr.mxu0 0.0
  %810 = vmatpush1.xpose.msra.mxu0 0.0
  %811 = vmatprep.subr.mxu0 0.0
  %812 = vmatpush1.xpose.msra.mxu0 0.0
  %813 = vmatprep.subr.mxu0 0.0
  %814 = vmatpush1.xpose.msra.mxu0 0.0
  %815 = vmatprep.subr.mxu0 0.0
  %816 = vmatpush1.xpose.msra.mxu0 0.0
  %817 = vmatprep.subr.mxu0 0.0
  %818 = vmatpush1.xpose.msra.mxu0 0.0
  %819 = vmatprep.mubr.f32.mxu0 0.0
  %820 = vmatmul.mubr.f32.gmra.mrb[0].mxu0 %v747
  %v821 = vpop.f32.mrb[0].mxu0
  %v822 = vadd.f32 0.0, %v821
  %v823 = vpop.f32.mrb[0].mxu0
  %824 = vmatprep.mubr.f32.mxu0 0.0
  %825 = vmatmul.mubr.f32.gmra.mrb[0].mxu0 %v750
  %v826 = vpop.f32.mrb[0].mxu0
  %v827 = vadd.f32 0.0, %v826
  %v828 = vpop.f32.mrb[0].mxu0
  %829 = vdwg.mxu0
  %v831 = vsel %vm111, %v321, 0
  %v834 = vsel %vm111, %v322, 0
  %v837 = vsel %vm111, %v478, 0
  %839 = vmatprep.subr.mxu0 0.0
  %840 = vmatpush1.xpose.msra.mxu0 %v837
  %841 = vmatprep.subr.mxu0 0.0
  %842 = vmatpush1.xpose.msra.mxu0 0.0
  %843 = vmatprep.subr.mxu0 0.0
  %844 = vmatpush1.xpose.msra.mxu0 0.0
  %845 = vmatprep.subr.mxu0 0.0
  %846 = vmatpush1.xpose.msra.mxu0 0.0
  %847 = vmatprep.subr.mxu0 0.0
  %848 = vmatpush1.xpose.msra.mxu0 0.0
  %849 = vmatprep.subr.mxu0 0.0
  %850 = vmatpush1.xpose.msra.mxu0 0.0
  %851 = vmatprep.subr.mxu0 0.0
  %852 = vmatpush1.xpose.msra.mxu0 0.0
  %853 = vmatprep.subr.mxu0 0.0
  %854 = vmatpush1.xpose.msra.mxu0 0.0
  %855 = vmatprep.subr.mxu0 0.0
  %856 = vmatpush1.xpose.msra.mxu0 0.0
  %857 = vmatprep.subr.mxu0 0.0
  %858 = vmatpush1.xpose.msra.mxu0 0.0
  %859 = vmatprep.subr.mxu0 0.0
  %860 = vmatpush1.xpose.msra.mxu0 0.0
  %861 = vmatprep.subr.mxu0 0.0
  %862 = vmatpush1.xpose.msra.mxu0 0.0
  %863 = vmatprep.subr.mxu0 0.0
  %864 = vmatpush1.xpose.msra.mxu0 0.0
  %865 = vmatprep.subr.mxu0 0.0
  %866 = vmatpush1.xpose.msra.mxu0 0.0
  %867 = vmatprep.subr.mxu0 0.0
  %868 = vmatpush1.xpose.msra.mxu0 0.0
  %869 = vmatprep.subr.mxu0 0.0
  %870 = vmatpush1.xpose.msra.mxu0 0.0
  %871 = vmatprep.subr.mxu0 0.0
  %872 = vmatpush1.xpose.msra.mxu0 0.0
  %873 = vmatprep.subr.mxu0 0.0
  %874 = vmatpush1.xpose.msra.mxu0 0.0
  %875 = vmatprep.subr.mxu0 0.0
  %876 = vmatpush1.xpose.msra.mxu0 0.0
  %877 = vmatprep.subr.mxu0 0.0
  %878 = vmatpush1.xpose.msra.mxu0 0.0
  %879 = vmatprep.subr.mxu0 0.0
  %880 = vmatpush1.xpose.msra.mxu0 0.0
  %881 = vmatprep.subr.mxu0 0.0
  %882 = vmatpush1.xpose.msra.mxu0 0.0
  %883 = vmatprep.subr.mxu0 0.0
  %884 = vmatpush1.xpose.msra.mxu0 0.0
  %885 = vmatprep.subr.mxu0 0.0
  %886 = vmatpush1.xpose.msra.mxu0 0.0
  %887 = vmatprep.subr.mxu0 0.0
  %888 = vmatpush1.xpose.msra.mxu0 0.0
  %889 = vmatprep.subr.mxu0 0.0
  %890 = vmatpush1.xpose.msra.mxu0 0.0
  %891 = vmatprep.subr.mxu0 0.0
  %892 = vmatpush1.xpose.msra.mxu0 0.0
  %893 = vmatprep.subr.mxu0 0.0
  %894 = vmatpush1.xpose.msra.mxu0 0.0
  %895 = vmatprep.subr.mxu0 0.0
  %896 = vmatpush1.xpose.msra.mxu0 0.0
  %897 = vmatprep.subr.mxu0 0.0
  %898 = vmatpush1.xpose.msra.mxu0 0.0
  %899 = vmatprep.subr.mxu0 0.0
  %900 = vmatpush1.xpose.msra.mxu0 0.0
  %901 = vmatprep.subr.mxu0 0.0
  %902 = vmatpush1.xpose.msra.mxu0 0.0
  %903 = vmatprep.mubr.f32.mxu0 0.0
  %904 = vmatmul.mubr.f32.gmra.mrb[0].mxu0 %v831
  %v905 = vpop.f32.mrb[0].mxu0
  %v906 = vadd.f32 0.0, %v905
  %v907 = vpop.f32.mrb[0].mxu0
  %908 = vmatprep.mubr.f32.mxu0 0.0
  %909 = vmatmul.mubr.f32.gmra.mrb[0].mxu0 %v834
  %v910 = vpop.f32.mrb[0].mxu0
  %v911 = vadd.f32 0.0, %v910
  %v912 = vpop.f32.mrb[0].mxu0
  %913 = vdwg.mxu0
  %v915 = vsel %vm111, %v323, 0
  %v918 = vsel %vm111, %v324, 0
  %v921 = vsel %vm111, %v479, 0
  %923 = vmatprep.subr.mxu0 0.0
  %924 = vmatpush1.xpose.msra.mxu0 %v921
  %925 = vmatprep.subr.mxu0 0.0
  %926 = vmatpush1.xpose.msra.mxu0 0.0
  %927 = vmatprep.subr.mxu0 0.0
  %928 = vmatpush1.xpose.msra.mxu0 0.0
  %929 = vmatprep.subr.mxu0 0.0
  %930 = vmatpush1.xpose.msra.mxu0 0.0
  %931 = vmatprep.subr.mxu0 0.0
  %932 = vmatpush1.xpose.msra.mxu0 0.0
  %933 = vmatprep.subr.mxu0 0.0
  %934 = vmatpush1.xpose.msra.mxu0 0.0
  %935 = vmatprep.subr.mxu0 0.0
  %936 = vmatpush1.xpose.msra.mxu0 0.0
  %937 = vmatprep.subr.mxu0 0.0
  %938 = vmatpush1.xpose.msra.mxu0 0.0
  %939 = vmatprep.subr.mxu0 0.0
  %940 = vmatpush1.xpose.msra.mxu0 0.0
  %941 = vmatprep.subr.mxu0 0.0
  %942 = vmatpush1.xpose.msra.mxu0 0.0
  %943 = vmatprep.subr.mxu0 0.0
  %944 = vmatpush1.xpose.msra.mxu0 0.0
  %945 = vmatprep.subr.mxu0 0.0
  %946 = vmatpush1.xpose.msra.mxu0 0.0
  %947 = vmatprep.subr.mxu0 0.0
  %948 = vmatpush1.xpose.msra.mxu0 0.0
  %949 = vmatprep.subr.mxu0 0.0
  %950 = vmatpush1.xpose.msra.mxu0 0.0
  %951 = vmatprep.subr.mxu0 0.0
  %952 = vmatpush1.xpose.msra.mxu0 0.0
  %953 = vmatprep.subr.mxu0 0.0
  %954 = vmatpush1.xpose.msra.mxu0 0.0
  %955 = vmatprep.subr.mxu0 0.0
  %956 = vmatpush1.xpose.msra.mxu0 0.0
  %957 = vmatprep.subr.mxu0 0.0
  %958 = vmatpush1.xpose.msra.mxu0 0.0
  %959 = vmatprep.subr.mxu0 0.0
  %960 = vmatpush1.xpose.msra.mxu0 0.0
  %961 = vmatprep.subr.mxu0 0.0
  %962 = vmatpush1.xpose.msra.mxu0 0.0
  %963 = vmatprep.subr.mxu0 0.0
  %964 = vmatpush1.xpose.msra.mxu0 0.0
  %965 = vmatprep.subr.mxu0 0.0
  %966 = vmatpush1.xpose.msra.mxu0 0.0
  %967 = vmatprep.subr.mxu0 0.0
  %968 = vmatpush1.xpose.msra.mxu0 0.0
  %969 = vmatprep.subr.mxu0 0.0
  %970 = vmatpush1.xpose.msra.mxu0 0.0
  %971 = vmatprep.subr.mxu0 0.0
  %972 = vmatpush1.xpose.msra.mxu0 0.0
  %973 = vmatprep.subr.mxu0 0.0
  %974 = vmatpush1.xpose.msra.mxu0 0.0
  %975 = vmatprep.subr.mxu0 0.0
  %976 = vmatpush1.xpose.msra.mxu0 0.0
  %977 = vmatprep.subr.mxu0 0.0
  %978 = vmatpush1.xpose.msra.mxu0 0.0
  %979 = vmatprep.subr.mxu0 0.0
  %980 = vmatpush1.xpose.msra.mxu0 0.0
  %981 = vmatprep.subr.mxu0 0.0
  %982 = vmatpush1.xpose.msra.mxu0 0.0
  %983 = vmatprep.subr.mxu0 0.0
  %984 = vmatpush1.xpose.msra.mxu0 0.0
  %985 = vmatprep.subr.mxu0 0.0
  %986 = vmatpush1.xpose.msra.mxu0 0.0
  %987 = vmatprep.mubr.f32.mxu0 0.0
  %988 = vmatmul.mubr.f32.gmra.mrb[0].mxu0 %v915
  %v989 = vpop.f32.mrb[0].mxu0
  %v990 = vadd.f32 0.0, %v989
  %v991 = vpop.f32.mrb[0].mxu0
  %992 = vmatprep.mubr.f32.mxu0 0.0
  %993 = vmatmul.mubr.f32.gmra.mrb[0].mxu0 %v918
  %v994 = vpop.f32.mrb[0].mxu0
  %v995 = vadd.f32 0.0, %v994
  %v996 = vpop.f32.mrb[0].mxu0
  %997 = vdwg.mxu0
  %v999 = vsel %vm111, %v325, 0
  %v1002 = vsel %vm111, %v326, 0
  %v1005 = vsel %vm111, %v480, 0
  %1007 = vmatprep.subr.mxu0 0.0
  %1008 = vmatpush1.xpose.msra.mxu0 %v1005
  %1009 = vmatprep.subr.mxu0 0.0
  %1010 = vmatpush1.xpose.msra.mxu0 0.0
  %1011 = vmatprep.subr.mxu0 0.0
  %1012 = vmatpush1.xpose.msra.mxu0 0.0
  %1013 = vmatprep.subr.mxu0 0.0
  %1014 = vmatpush1.xpose.msra.mxu0 0.0
  %1015 = vmatprep.subr.mxu0 0.0
  %1016 = vmatpush1.xpose.msra.mxu0 0.0
  %1017 = vmatprep.subr.mxu0 0.0
  %1018 = vmatpush1.xpose.msra.mxu0 0.0
  %1019 = vmatprep.subr.mxu0 0.0
  %1020 = vmatpush1.xpose.msra.mxu0 0.0
  %1021 = vmatprep.subr.mxu0 0.0
  %1022 = vmatpush1.xpose.msra.mxu0 0.0
  %1023 = vmatprep.subr.mxu0 0.0
  %1024 = vmatpush1.xpose.msra.mxu0 0.0
  %1025 = vmatprep.subr.mxu0 0.0
  %1026 = vmatpush1.xpose.msra.mxu0 0.0
  %1027 = vmatprep.subr.mxu0 0.0
  %1028 = vmatpush1.xpose.msra.mxu0 0.0
  %1029 = vmatprep.subr.mxu0 0.0
  %1030 = vmatpush1.xpose.msra.mxu0 0.0
  %1031 = vmatprep.subr.mxu0 0.0
  %1032 = vmatpush1.xpose.msra.mxu0 0.0
  %1033 = vmatprep.subr.mxu0 0.0
  %1034 = vmatpush1.xpose.msra.mxu0 0.0
  %1035 = vmatprep.subr.mxu0 0.0
  %1036 = vmatpush1.xpose.msra.mxu0 0.0
  %1037 = vmatprep.subr.mxu0 0.0
  %1038 = vmatpush1.xpose.msra.mxu0 0.0
  %1039 = vmatprep.subr.mxu0 0.0
  %1040 = vmatpush1.xpose.msra.mxu0 0.0
  %1041 = vmatprep.subr.mxu0 0.0
  %1042 = vmatpush1.xpose.msra.mxu0 0.0
  %1043 = vmatprep.subr.mxu0 0.0
  %1044 = vmatpush1.xpose.msra.mxu0 0.0
  %1045 = vmatprep.subr.mxu0 0.0
  %1046 = vmatpush1.xpose.msra.mxu0 0.0
  %1047 = vmatprep.subr.mxu0 0.0
  %1048 = vmatpush1.xpose.msra.mxu0 0.0
  %1049 = vmatprep.subr.mxu0 0.0
  %1050 = vmatpush1.xpose.msra.mxu0 0.0
  %1051 = vmatprep.subr.mxu0 0.0
  %1052 = vmatpush1.xpose.msra.mxu0 0.0
  %1053 = vmatprep.subr.mxu0 0.0
  %1054 = vmatpush1.xpose.msra.mxu0 0.0
  %1055 = vmatprep.subr.mxu0 0.0
  %1056 = vmatpush1.xpose.msra.mxu0 0.0
  %1057 = vmatprep.subr.mxu0 0.0
  %1058 = vmatpush1.xpose.msra.mxu0 0.0
  %1059 = vmatprep.subr.mxu0 0.0
  %1060 = vmatpush1.xpose.msra.mxu0 0.0
  %1061 = vmatprep.subr.mxu0 0.0
  %1062 = vmatpush1.xpose.msra.mxu0 0.0
  %1063 = vmatprep.subr.mxu0 0.0
  %1064 = vmatpush1.xpose.msra.mxu0 0.0
  %1065 = vmatprep.subr.mxu0 0.0
  %1066 = vmatpush1.xpose.msra.mxu0 0.0
  %1067 = vmatprep.subr.mxu0 0.0
  %1068 = vmatpush1.xpose.msra.mxu0 0.0
  %1069 = vmatprep.subr.mxu0 0.0
  %1070 = vmatpush1.xpose.msra.mxu0 0.0
  %1071 = vmatprep.mubr.f32.mxu0 0.0
  %1072 = vmatmul.mubr.f32.gmra.mrb[0].mxu0 %v999
  %v1073 = vpop.f32.mrb[0].mxu0
  %v1074 = vadd.f32 0.0, %v1073
  %v1075 = vpop.f32.mrb[0].mxu0
  %1076 = vmatprep.mubr.f32.mxu0 0.0
  %1077 = vmatmul.mubr.f32.gmra.mrb[0].mxu0 %v1002
  %v1078 = vpop.f32.mrb[0].mxu0
  %v1079 = vadd.f32 0.0, %v1078
  %v1080 = vpop.f32.mrb[0].mxu0
  %1081 = vdwg.mxu0
  %v1083 = vsel %vm111, %v327, 0
  %v1086 = vsel %vm111, %v328, 0
  %v1089 = vsel %vm111, %v481, 0
  %1091 = vmatprep.subr.mxu0 0.0
  %1092 = vmatpush1.xpose.msra.mxu0 %v1089
  %1093 = vmatprep.subr.mxu0 0.0
  %1094 = vmatpush1.xpose.msra.mxu0 0.0
  %1095 = vmatprep.subr.mxu0 0.0
  %1096 = vmatpush1.xpose.msra.mxu0 0.0
  %1097 = vmatprep.subr.mxu0 0.0
  %1098 = vmatpush1.xpose.msra.mxu0 0.0
  %1099 = vmatprep.subr.mxu0 0.0
  %1100 = vmatpush1.xpose.msra.mxu0 0.0
  %1101 = vmatprep.subr.mxu0 0.0
  %1102 = vmatpush1.xpose.msra.mxu0 0.0
  %1103 = vmatprep.subr.mxu0 0.0
  %1104 = vmatpush1.xpose.msra.mxu0 0.0
  %1105 = vmatprep.subr.mxu0 0.0
  %1106 = vmatpush1.xpose.msra.mxu0 0.0
  %1107 = vmatprep.subr.mxu0 0.0
  %1108 = vmatpush1.xpose.msra.mxu0 0.0
  %1109 = vmatprep.subr.mxu0 0.0
  %1110 = vmatpush1.xpose.msra.mxu0 0.0
  %1111 = vmatprep.subr.mxu0 0.0
  %1112 = vmatpush1.xpose.msra.mxu0 0.0
  %1113 = vmatprep.subr.mxu0 0.0
  %1114 = vmatpush1.xpose.msra.mxu0 0.0
  %1115 = vmatprep.subr.mxu0 0.0
  %1116 = vmatpush1.xpose.msra.mxu0 0.0
  %1117 = vmatprep.subr.mxu0 0.0
  %1118 = vmatpush1.xpose.msra.mxu0 0.0
  %1119 = vmatprep.subr.mxu0 0.0
  %1120 = vmatpush1.xpose.msra.mxu0 0.0
  %1121 = vmatprep.subr.mxu0 0.0
  %1122 = vmatpush1.xpose.msra.mxu0 0.0
  %1123 = vmatprep.subr.mxu0 0.0
  %1124 = vmatpush1.xpose.msra.mxu0 0.0
  %1125 = vmatprep.subr.mxu0 0.0
  %1126 = vmatpush1.xpose.msra.mxu0 0.0
  %1127 = vmatprep.subr.mxu0 0.0
  %1128 = vmatpush1.xpose.msra.mxu0 0.0
  %1129 = vmatprep.subr.mxu0 0.0
  %1130 = vmatpush1.xpose.msra.mxu0 0.0
  %1131 = vmatprep.subr.mxu0 0.0
  %1132 = vmatpush1.xpose.msra.mxu0 0.0
  %1133 = vmatprep.subr.mxu0 0.0
  %1134 = vmatpush1.xpose.msra.mxu0 0.0
  %1135 = vmatprep.subr.mxu0 0.0
  %1136 = vmatpush1.xpose.msra.mxu0 0.0
  %1137 = vmatprep.subr.mxu0 0.0
  %1138 = vmatpush1.xpose.msra.mxu0 0.0
  %1139 = vmatprep.subr.mxu0 0.0
  %1140 = vmatpush1.xpose.msra.mxu0 0.0
  %1141 = vmatprep.subr.mxu0 0.0
  %1142 = vmatpush1.xpose.msra.mxu0 0.0
  %1143 = vmatprep.subr.mxu0 0.0
  %1144 = vmatpush1.xpose.msra.mxu0 0.0
  %1145 = vmatprep.subr.mxu0 0.0
  %1146 = vmatpush1.xpose.msra.mxu0 0.0
  %1147 = vmatprep.subr.mxu0 0.0
  %1148 = vmatpush1.xpose.msra.mxu0 0.0
  %1149 = vmatprep.subr.mxu0 0.0
  %1150 = vmatpush1.xpose.msra.mxu0 0.0
  %1151 = vmatprep.subr.mxu0 0.0
  %1152 = vmatpush1.xpose.msra.mxu0 0.0
  %1153 = vmatprep.subr.mxu0 0.0
  %1154 = vmatpush1.xpose.msra.mxu0 0.0
  %1155 = vmatprep.mubr.f32.mxu0 0.0
  %1156 = vmatmul.mubr.f32.gmra.mrb[0].mxu0 %v1083
  %v1157 = vpop.f32.mrb[0].mxu0
  %v1158 = vadd.f32 0.0, %v1157
  %v1159 = vpop.f32.mrb[0].mxu0
  %1160 = vmatprep.mubr.f32.mxu0 0.0
  %1161 = vmatmul.mubr.f32.gmra.mrb[0].mxu0 %v1086
  %v1162 = vpop.f32.mrb[0].mxu0
  %v1163 = vadd.f32 0.0, %v1162
  %v1164 = vpop.f32.mrb[0].mxu0
  %1165 = vdwg.mxu0
  %v1167 = vsel %vm111, %v329, 0
  %v1170 = vsel %vm111, %v330, 0
  %v1173 = vsel %vm111, %v482, 0
  %1175 = vmatprep.subr.mxu0 0.0
  %1176 = vmatpush1.xpose.msra.mxu0 %v1173
  %1177 = vmatprep.subr.mxu0 0.0
  %1178 = vmatpush1.xpose.msra.mxu0 0.0
  %1179 = vmatprep.subr.mxu0 0.0
  %1180 = vmatpush1.xpose.msra.mxu0 0.0
  %1181 = vmatprep.subr.mxu0 0.0
  %1182 = vmatpush1.xpose.msra.mxu0 0.0
  %1183 = vmatprep.subr.mxu0 0.0
  %1184 = vmatpush1.xpose.msra.mxu0 0.0
  %1185 = vmatprep.subr.mxu0 0.0
  %1186 = vmatpush1.xpose.msra.mxu0 0.0
  %1187 = vmatprep.subr.mxu0 0.0
  %1188 = vmatpush1.xpose.msra.mxu0 0.0
  %1189 = vmatprep.subr.mxu0 0.0
  %1190 = vmatpush1.xpose.msra.mxu0 0.0
  %1191 = vmatprep.subr.mxu0 0.0
  %1192 = vmatpush1.xpose.msra.mxu0 0.0
  %1193 = vmatprep.subr.mxu0 0.0
  %1194 = vmatpush1.xpose.msra.mxu0 0.0
  %1195 = vmatprep.subr.mxu0 0.0
  %1196 = vmatpush1.xpose.msra.mxu0 0.0
  %1197 = vmatprep.subr.mxu0 0.0
  %1198 = vmatpush1.xpose.msra.mxu0 0.0
  %1199 = vmatprep.subr.mxu0 0.0
  %1200 = vmatpush1.xpose.msra.mxu0 0.0
  %1201 = vmatprep.subr.mxu0 0.0
  %1202 = vmatpush1.xpose.msra.mxu0 0.0
  %1203 = vmatprep.subr.mxu0 0.0
  %1204 = vmatpush1.xpose.msra.mxu0 0.0
  %1205 = vmatprep.subr.mxu0 0.0
  %1206 = vmatpush1.xpose.msra.mxu0 0.0
  %1207 = vmatprep.subr.mxu0 0.0
  %1208 = vmatpush1.xpose.msra.mxu0 0.0
  %1209 = vmatprep.subr.mxu0 0.0
  %1210 = vmatpush1.xpose.msra.mxu0 0.0
  %1211 = vmatprep.subr.mxu0 0.0
  %1212 = vmatpush1.xpose.msra.mxu0 0.0
  %1213 = vmatprep.subr.mxu0 0.0
  %1214 = vmatpush1.xpose.msra.mxu0 0.0
  %1215 = vmatprep.subr.mxu0 0.0
  %1216 = vmatpush1.xpose.msra.mxu0 0.0
  %1217 = vmatprep.subr.mxu0 0.0
  %1218 = vmatpush1.xpose.msra.mxu0 0.0
  %1219 = vmatprep.subr.mxu0 0.0
  %1220 = vmatpush1.xpose.msra.mxu0 0.0
  %1221 = vmatprep.subr.mxu0 0.0
  %1222 = vmatpush1.xpose.msra.mxu0 0.0
  %1223 = vmatprep.subr.mxu0 0.0
  %1224 = vmatpush1.xpose.msra.mxu0 0.0
  %1225 = vmatprep.subr.mxu0 0.0
  %1226 = vmatpush1.xpose.msra.mxu0 0.0
  %1227 = vmatprep.subr.mxu0 0.0
  %1228 = vmatpush1.xpose.msra.mxu0 0.0
  %1229 = vmatprep.subr.mxu0 0.0
  %1230 = vmatpush1.xpose.msra.mxu0 0.0
  %1231 = vmatprep.subr.mxu0 0.0
  %1232 = vmatpush1.xpose.msra.mxu0 0.0
  %1233 = vmatprep.subr.mxu0 0.0
  %1234 = vmatpush1.xpose.msra.mxu0 0.0
  %1235 = vmatprep.subr.mxu0 0.0
  %1236 = vmatpush1.xpose.msra.mxu0 0.0
  %1237 = vmatprep.subr.mxu0 0.0
  %1238 = vmatpush1.xpose.msra.mxu0 0.0
  %1239 = vmatprep.mubr.f32.mxu0 0.0
  %1240 = vmatmul.mubr.f32.gmra.mrb[0].mxu0 %v1167
  %v1241 = vpop.f32.mrb[0].mxu0
  %v1242 = vadd.f32 0.0, %v1241
  %v1243 = vpop.f32.mrb[0].mxu0
  %1244 = vmatprep.mubr.f32.mxu0 0.0
  %1245 = vmatmul.mubr.f32.gmra.mrb[0].mxu0 %v1170
  %v1246 = vpop.f32.mrb[0].mxu0
  %v1247 = vadd.f32 0.0, %v1246
  %v1248 = vpop.f32.mrb[0].mxu0
  %1249 = vdwg.mxu0
  %v1251 = vsel %vm111, %v331, 0
  %v1254 = vsel %vm111, %v332, 0
  %v1257 = vsel %vm111, %v483, 0
  %1259 = vmatprep.subr.mxu0 0.0
  %1260 = vmatpush1.xpose.msra.mxu0 %v1257
  %1261 = vmatprep.subr.mxu0 0.0
  %1262 = vmatpush1.xpose.msra.mxu0 0.0
  %1263 = vmatprep.subr.mxu0 0.0
  %1264 = vmatpush1.xpose.msra.mxu0 0.0
  %1265 = vmatprep.subr.mxu0 0.0
  %1266 = vmatpush1.xpose.msra.mxu0 0.0
  %1267 = vmatprep.subr.mxu0 0.0
  %1268 = vmatpush1.xpose.msra.mxu0 0.0
  %1269 = vmatprep.subr.mxu0 0.0
  %1270 = vmatpush1.xpose.msra.mxu0 0.0
  %1271 = vmatprep.subr.mxu0 0.0
  %1272 = vmatpush1.xpose.msra.mxu0 0.0
  %1273 = vmatprep.subr.mxu0 0.0
  %1274 = vmatpush1.xpose.msra.mxu0 0.0
  %1275 = vmatprep.subr.mxu0 0.0
  %1276 = vmatpush1.xpose.msra.mxu0 0.0
  %1277 = vmatprep.subr.mxu0 0.0
  %1278 = vmatpush1.xpose.msra.mxu0 0.0
  %1279 = vmatprep.subr.mxu0 0.0
  %1280 = vmatpush1.xpose.msra.mxu0 0.0
  %1281 = vmatprep.subr.mxu0 0.0
  %1282 = vmatpush1.xpose.msra.mxu0 0.0
  %1283 = vmatprep.subr.mxu0 0.0
  %1284 = vmatpush1.xpose.msra.mxu0 0.0
  %1285 = vmatprep.subr.mxu0 0.0
  %1286 = vmatpush1.xpose.msra.mxu0 0.0
  %1287 = vmatprep.subr.mxu0 0.0
  %1288 = vmatpush1.xpose.msra.mxu0 0.0
  %1289 = vmatprep.subr.mxu0 0.0
  %1290 = vmatpush1.xpose.msra.mxu0 0.0
  %1291 = vmatprep.subr.mxu0 0.0
  %1292 = vmatpush1.xpose.msra.mxu0 0.0
  %1293 = vmatprep.subr.mxu0 0.0
  %1294 = vmatpush1.xpose.msra.mxu0 0.0
  %1295 = vmatprep.subr.mxu0 0.0
  %1296 = vmatpush1.xpose.msra.mxu0 0.0
  %1297 = vmatprep.subr.mxu0 0.0
  %1298 = vmatpush1.xpose.msra.mxu0 0.0
  %1299 = vmatprep.subr.mxu0 0.0
  %1300 = vmatpush1.xpose.msra.mxu0 0.0
  %1301 = vmatprep.subr.mxu0 0.0
  %1302 = vmatpush1.xpose.msra.mxu0 0.0
  %1303 = vmatprep.subr.mxu0 0.0
  %1304 = vmatpush1.xpose.msra.mxu0 0.0
  %1305 = vmatprep.subr.mxu0 0.0
  %1306 = vmatpush1.xpose.msra.mxu0 0.0
  %1307 = vmatprep.subr.mxu0 0.0
  %1308 = vmatpush1.xpose.msra.mxu0 0.0
  %1309 = vmatprep.subr.mxu0 0.0
  %1310 = vmatpush1.xpose.msra.mxu0 0.0
  %1311 = vmatprep.subr.mxu0 0.0
  %1312 = vmatpush1.xpose.msra.mxu0 0.0
  %1313 = vmatprep.subr.mxu0 0.0
  %1314 = vmatpush1.xpose.msra.mxu0 0.0
  %1315 = vmatprep.subr.mxu0 0.0
  %1316 = vmatpush1.xpose.msra.mxu0 0.0
  %1317 = vmatprep.subr.mxu0 0.0
  %1318 = vmatpush1.xpose.msra.mxu0 0.0
  %1319 = vmatprep.subr.mxu0 0.0
  %1320 = vmatpush1.xpose.msra.mxu0 0.0
  %1321 = vmatprep.subr.mxu0 0.0
  %1322 = vmatpush1.xpose.msra.mxu0 0.0
  %1323 = vmatprep.mubr.f32.mxu0 0.0
  %1324 = vmatmul.mubr.f32.gmra.mrb[0].mxu0 %v1251
  %v1325 = vpop.f32.mrb[0].mxu0
  %v1326 = vadd.f32 0.0, %v1325
  %v1327 = vpop.f32.mrb[0].mxu0
  %1328 = vmatprep.mubr.f32.mxu0 0.0
  %1329 = vmatmul.mubr.f32.gmra.mrb[0].mxu0 %v1254
  %v1330 = vpop.f32.mrb[0].mxu0
  %v1331 = vadd.f32 0.0, %v1330
  %v1332 = vpop.f32.mrb[0].mxu0
  %1333 = vdwg.mxu0
  %v1335 = vsel %vm111, %v333, 0
  %v1338 = vsel %vm111, %v334, 0
  %v1341 = vsel %vm111, %v484, 0
  %1343 = vmatprep.subr.mxu0 0.0
  %1344 = vmatpush1.xpose.msra.mxu0 %v1341
  %1345 = vmatprep.subr.mxu0 0.0
  %1346 = vmatpush1.xpose.msra.mxu0 0.0
  %1347 = vmatprep.subr.mxu0 0.0
  %1348 = vmatpush1.xpose.msra.mxu0 0.0
  %1349 = vmatprep.subr.mxu0 0.0
  %1350 = vmatpush1.xpose.msra.mxu0 0.0
  %1351 = vmatprep.subr.mxu0 0.0
  %1352 = vmatpush1.xpose.msra.mxu0 0.0
  %1353 = vmatprep.subr.mxu0 0.0
  %1354 = vmatpush1.xpose.msra.mxu0 0.0
  %1355 = vmatprep.subr.mxu0 0.0
  %1356 = vmatpush1.xpose.msra.mxu0 0.0
  %1357 = vmatprep.subr.mxu0 0.0
  %1358 = vmatpush1.xpose.msra.mxu0 0.0
  %1359 = vmatprep.subr.mxu0 0.0
  %1360 = vmatpush1.xpose.msra.mxu0 0.0
  %1361 = vmatprep.subr.mxu0 0.0
  %1362 = vmatpush1.xpose.msra.mxu0 0.0
  %1363 = vmatprep.subr.mxu0 0.0
  %1364 = vmatpush1.xpose.msra.mxu0 0.0
  %1365 = vmatprep.subr.mxu0 0.0
  %1366 = vmatpush1.xpose.msra.mxu0 0.0
  %1367 = vmatprep.subr.mxu0 0.0
  %1368 = vmatpush1.xpose.msra.mxu0 0.0
  %1369 = vmatprep.subr.mxu0 0.0
  %1370 = vmatpush1.xpose.msra.mxu0 0.0
  %1371 = vmatprep.subr.mxu0 0.0
  %1372 = vmatpush1.xpose.msra.mxu0 0.0
  %1373 = vmatprep.subr.mxu0 0.0
  %1374 = vmatpush1.xpose.msra.mxu0 0.0
  %1375 = vmatprep.subr.mxu0 0.0
  %1376 = vmatpush1.xpose.msra.mxu0 0.0
  %1377 = vmatprep.subr.mxu0 0.0
  %1378 = vmatpush1.xpose.msra.mxu0 0.0
  %1379 = vmatprep.subr.mxu0 0.0
  %1380 = vmatpush1.xpose.msra.mxu0 0.0
  %1381 = vmatprep.subr.mxu0 0.0
  %1382 = vmatpush1.xpose.msra.mxu0 0.0
  %1383 = vmatprep.subr.mxu0 0.0
  %1384 = vmatpush1.xpose.msra.mxu0 0.0
  %1385 = vmatprep.subr.mxu0 0.0
  %1386 = vmatpush1.xpose.msra.mxu0 0.0
  %1387 = vmatprep.subr.mxu0 0.0
  %1388 = vmatpush1.xpose.msra.mxu0 0.0
  %1389 = vmatprep.subr.mxu0 0.0
  %1390 = vmatpush1.xpose.msra.mxu0 0.0
  %1391 = vmatprep.subr.mxu0 0.0
  %1392 = vmatpush1.xpose.msra.mxu0 0.0
  %1393 = vmatprep.subr.mxu0 0.0
  %1394 = vmatpush1.xpose.msra.mxu0 0.0
  %1395 = vmatprep.subr.mxu0 0.0
  %1396 = vmatpush1.xpose.msra.mxu0 0.0
  %1397 = vmatprep.subr.mxu0 0.0
  %1398 = vmatpush1.xpose.msra.mxu0 0.0
  %1399 = vmatprep.subr.mxu0 0.0
  %1400 = vmatpush1.xpose.msra.mxu0 0.0
  %1401 = vmatprep.subr.mxu0 0.0
  %1402 = vmatpush1.xpose.msra.mxu0 0.0
  %1403 = vmatprep.subr.mxu0 0.0
  %1404 = vmatpush1.xpose.msra.mxu0 0.0
  %1405 = vmatprep.subr.mxu0 0.0
  %1406 = vmatpush1.xpose.msra.mxu0 0.0
  %1407 = vmatprep.mubr.f32.mxu0 0.0
  %1408 = vmatmul.mubr.f32.gmra.mrb[0].mxu0 %v1335
  %v1409 = vpop.f32.mrb[0].mxu0
  %v1410 = vadd.f32 0.0, %v1409
  %v1411 = vpop.f32.mrb[0].mxu0
  %1412 = vmatprep.mubr.f32.mxu0 0.0
  %1413 = vmatmul.mubr.f32.gmra.mrb[0].mxu0 %v1338
  %v1414 = vpop.f32.mrb[0].mxu0
  %v1415 = vadd.f32 0.0, %v1414
  %v1416 = vpop.f32.mrb[0].mxu0
  %1417 = vdwg.mxu0
  %v1419 = vsel %vm111, %v335, 0
  %v1422 = vsel %vm111, %v336, 0
  %v1425 = vsel %vm111, %v485, 0
  %1427 = vmatprep.subr.mxu0 0.0
  %1428 = vmatpush1.xpose.msra.mxu0 %v1425
  %1429 = vmatprep.subr.mxu0 0.0
  %1430 = vmatpush1.xpose.msra.mxu0 0.0
  %1431 = vmatprep.subr.mxu0 0.0
  %1432 = vmatpush1.xpose.msra.mxu0 0.0
  %1433 = vmatprep.subr.mxu0 0.0
  %1434 = vmatpush1.xpose.msra.mxu0 0.0
  %1435 = vmatprep.subr.mxu0 0.0
  %1436 = vmatpush1.xpose.msra.mxu0 0.0
  %1437 = vmatprep.subr.mxu0 0.0
  %1438 = vmatpush1.xpose.msra.mxu0 0.0
  %1439 = vmatprep.subr.mxu0 0.0
  %1440 = vmatpush1.xpose.msra.mxu0 0.0
  %1441 = vmatprep.subr.mxu0 0.0
  %1442 = vmatpush1.xpose.msra.mxu0 0.0
  %1443 = vmatprep.subr.mxu0 0.0
  %1444 = vmatpush1.xpose.msra.mxu0 0.0
  %1445 = vmatprep.subr.mxu0 0.0
  %1446 = vmatpush1.xpose.msra.mxu0 0.0
  %1447 = vmatprep.subr.mxu0 0.0
  %1448 = vmatpush1.xpose.msra.mxu0 0.0
  %1449 = vmatprep.subr.mxu0 0.0
  %1450 = vmatpush1.xpose.msra.mxu0 0.0
  %1451 = vmatprep.subr.mxu0 0.0
  %1452 = vmatpush1.xpose.msra.mxu0 0.0
  %1453 = vmatprep.subr.mxu0 0.0
  %1454 = vmatpush1.xpose.msra.mxu0 0.0
  %1455 = vmatprep.subr.mxu0 0.0
  %1456 = vmatpush1.xpose.msra.mxu0 0.0
  %1457 = vmatprep.subr.mxu0 0.0
  %1458 = vmatpush1.xpose.msra.mxu0 0.0
  %1459 = vmatprep.subr.mxu0 0.0
  %1460 = vmatpush1.xpose.msra.mxu0 0.0
  %1461 = vmatprep.subr.mxu0 0.0
  %1462 = vmatpush1.xpose.msra.mxu0 0.0
  %1463 = vmatprep.subr.mxu0 0.0
  %1464 = vmatpush1.xpose.msra.mxu0 0.0
  %1465 = vmatprep.subr.mxu0 0.0
  %1466 = vmatpush1.xpose.msra.mxu0 0.0
  %1467 = vmatprep.subr.mxu0 0.0
  %1468 = vmatpush1.xpose.msra.mxu0 0.0
  %1469 = vmatprep.subr.mxu0 0.0
  %1470 = vmatpush1.xpose.msra.mxu0 0.0
  %1471 = vmatprep.subr.mxu0 0.0
  %1472 = vmatpush1.xpose.msra.mxu0 0.0
  %1473 = vmatprep.subr.mxu0 0.0
  %1474 = vmatpush1.xpose.msra.mxu0 0.0
  %1475 = vmatprep.subr.mxu0 0.0
  %1476 = vmatpush1.xpose.msra.mxu0 0.0
  %1477 = vmatprep.subr.mxu0 0.0
  %1478 = vmatpush1.xpose.msra.mxu0 0.0
  %1479 = vmatprep.subr.mxu0 0.0
  %1480 = vmatpush1.xpose.msra.mxu0 0.0
  %1481 = vmatprep.subr.mxu0 0.0
  %1482 = vmatpush1.xpose.msra.mxu0 0.0
  %1483 = vmatprep.subr.mxu0 0.0
  %1484 = vmatpush1.xpose.msra.mxu0 0.0
  %1485 = vmatprep.subr.mxu0 0.0
  %1486 = vmatpush1.xpose.msra.mxu0 0.0
  %1487 = vmatprep.subr.mxu0 0.0
  %1488 = vmatpush1.xpose.msra.mxu0 0.0
  %1489 = vmatprep.subr.mxu0 0.0
  %1490 = vmatpush1.xpose.msra.mxu0 0.0
  %1491 = vmatprep.mubr.f32.mxu0 0.0
  %1492 = vmatmul.mubr.f32.gmra.mrb[0].mxu0 %v1419
  %v1493 = vpop.f32.mrb[0].mxu0
  %v1494 = vadd.f32 0.0, %v1493
  %v1495 = vpop.f32.mrb[0].mxu0
  %1496 = vmatprep.mubr.f32.mxu0 0.0
  %1497 = vmatmul.mubr.f32.gmra.mrb[0].mxu0 %v1422
  %v1498 = vpop.f32.mrb[0].mxu0
  %v1499 = vadd.f32 0.0, %v1498
  %v1500 = vpop.f32.mrb[0].mxu0
  %1501 = vdwg.mxu0
  %v1503 = vsel %vm111, %v337, 0
  %v1506 = vsel %vm111, %v338, 0
  %v1509 = vsel %vm111, %v486, 0
  %1511 = vmatprep.subr.mxu0 0.0
  %1512 = vmatpush1.xpose.msra.mxu0 %v1509
  %1513 = vmatprep.subr.mxu0 0.0
  %1514 = vmatpush1.xpose.msra.mxu0 0.0
  %1515 = vmatprep.subr.mxu0 0.0
  %1516 = vmatpush1.xpose.msra.mxu0 0.0
  %1517 = vmatprep.subr.mxu0 0.0
  %1518 = vmatpush1.xpose.msra.mxu0 0.0
  %1519 = vmatprep.subr.mxu0 0.0
  %1520 = vmatpush1.xpose.msra.mxu0 0.0
  %1521 = vmatprep.subr.mxu0 0.0
  %1522 = vmatpush1.xpose.msra.mxu0 0.0
  %1523 = vmatprep.subr.mxu0 0.0
  %1524 = vmatpush1.xpose.msra.mxu0 0.0
  %1525 = vmatprep.subr.mxu0 0.0
  %1526 = vmatpush1.xpose.msra.mxu0 0.0
  %1527 = vmatprep.subr.mxu0 0.0
  %1528 = vmatpush1.xpose.msra.mxu0 0.0
  %1529 = vmatprep.subr.mxu0 0.0
  %1530 = vmatpush1.xpose.msra.mxu0 0.0
  %1531 = vmatprep.subr.mxu0 0.0
  %1532 = vmatpush1.xpose.msra.mxu0 0.0
  %1533 = vmatprep.subr.mxu0 0.0
  %1534 = vmatpush1.xpose.msra.mxu0 0.0
  %1535 = vmatprep.subr.mxu0 0.0
  %1536 = vmatpush1.xpose.msra.mxu0 0.0
  %1537 = vmatprep.subr.mxu0 0.0
  %1538 = vmatpush1.xpose.msra.mxu0 0.0
  %1539 = vmatprep.subr.mxu0 0.0
  %1540 = vmatpush1.xpose.msra.mxu0 0.0
  %1541 = vmatprep.subr.mxu0 0.0
  %1542 = vmatpush1.xpose.msra.mxu0 0.0
  %1543 = vmatprep.subr.mxu0 0.0
  %1544 = vmatpush1.xpose.msra.mxu0 0.0
  %1545 = vmatprep.subr.mxu0 0.0
  %1546 = vmatpush1.xpose.msra.mxu0 0.0
  %1547 = vmatprep.subr.mxu0 0.0
  %1548 = vmatpush1.xpose.msra.mxu0 0.0
  %1549 = vmatprep.subr.mxu0 0.0
  %1550 = vmatpush1.xpose.msra.mxu0 0.0
  %1551 = vmatprep.subr.mxu0 0.0
  %1552 = vmatpush1.xpose.msra.mxu0 0.0
  %1553 = vmatprep.subr.mxu0 0.0
  %1554 = vmatpush1.xpose.msra.mxu0 0.0
  %1555 = vmatprep.subr.mxu0 0.0
  %1556 = vmatpush1.xpose.msra.mxu0 0.0
  %1557 = vmatprep.subr.mxu0 0.0
  %1558 = vmatpush1.xpose.msra.mxu0 0.0
  %1559 = vmatprep.subr.mxu0 0.0
  %1560 = vmatpush1.xpose.msra.mxu0 0.0
  %1561 = vmatprep.subr.mxu0 0.0
  %1562 = vmatpush1.xpose.msra.mxu0 0.0
  %1563 = vmatprep.subr.mxu0 0.0
  %1564 = vmatpush1.xpose.msra.mxu0 0.0
  %1565 = vmatprep.subr.mxu0 0.0
  %1566 = vmatpush1.xpose.msra.mxu0 0.0
  %1567 = vmatprep.subr.mxu0 0.0
  %1568 = vmatpush1.xpose.msra.mxu0 0.0
  %1569 = vmatprep.subr.mxu0 0.0
  %1570 = vmatpush1.xpose.msra.mxu0 0.0
  %1571 = vmatprep.subr.mxu0 0.0
  %1572 = vmatpush1.xpose.msra.mxu0 0.0
  %1573 = vmatprep.subr.mxu0 0.0
  %1574 = vmatpush1.xpose.msra.mxu0 0.0
  %1575 = vmatprep.mubr.f32.mxu0 0.0
  %1576 = vmatmul.mubr.f32.gmra.mrb[0].mxu0 %v1503
  %v1577 = vpop.f32.mrb[0].mxu0
  %v1578 = vadd.f32 0.0, %v1577
  %v1579 = vpop.f32.mrb[0].mxu0
  %1580 = vmatprep.mubr.f32.mxu0 0.0
  %1581 = vmatmul.mubr.f32.gmra.mrb[0].mxu0 %v1506
  %v1582 = vpop.f32.mrb[0].mxu0
  %v1583 = vadd.f32 0.0, %v1582
  %v1584 = vpop.f32.mrb[0].mxu0
  %1585 = vdwg.mxu0
  %v1587 = vsel %vm111, %v339, 0
  %v1590 = vsel %vm111, %v340, 0
  %v1593 = vsel %vm111, %v487, 0
  %1595 = vmatprep.subr.mxu0 0.0
  %1596 = vmatpush1.xpose.msra.mxu0 %v1593
  %1597 = vmatprep.subr.mxu0 0.0
  %1598 = vmatpush1.xpose.msra.mxu0 0.0
  %1599 = vmatprep.subr.mxu0 0.0
  %1600 = vmatpush1.xpose.msra.mxu0 0.0
  %1601 = vmatprep.subr.mxu0 0.0
  %1602 = vmatpush1.xpose.msra.mxu0 0.0
  %1603 = vmatprep.subr.mxu0 0.0
  %1604 = vmatpush1.xpose.msra.mxu0 0.0
  %1605 = vmatprep.subr.mxu0 0.0
  %1606 = vmatpush1.xpose.msra.mxu0 0.0
  %1607 = vmatprep.subr.mxu0 0.0
  %1608 = vmatpush1.xpose.msra.mxu0 0.0
  %1609 = vmatprep.subr.mxu0 0.0
  %1610 = vmatpush1.xpose.msra.mxu0 0.0
  %1611 = vmatprep.subr.mxu0 0.0
  %1612 = vmatpush1.xpose.msra.mxu0 0.0
  %1613 = vmatprep.subr.mxu0 0.0
  %1614 = vmatpush1.xpose.msra.mxu0 0.0
  %1615 = vmatprep.subr.mxu0 0.0
  %1616 = vmatpush1.xpose.msra.mxu0 0.0
  %1617 = vmatprep.subr.mxu0 0.0
  %1618 = vmatpush1.xpose.msra.mxu0 0.0
  %1619 = vmatprep.subr.mxu0 0.0
  %1620 = vmatpush1.xpose.msra.mxu0 0.0
  %1621 = vmatprep.subr.mxu0 0.0
  %1622 = vmatpush1.xpose.msra.mxu0 0.0
  %1623 = vmatprep.subr.mxu0 0.0
  %1624 = vmatpush1.xpose.msra.mxu0 0.0
  %1625 = vmatprep.subr.mxu0 0.0
  %1626 = vmatpush1.xpose.msra.mxu0 0.0
  %1627 = vmatprep.subr.mxu0 0.0
  %1628 = vmatpush1.xpose.msra.mxu0 0.0
  %1629 = vmatprep.subr.mxu0 0.0
  %1630 = vmatpush1.xpose.msra.mxu0 0.0
  %1631 = vmatprep.subr.mxu0 0.0
  %1632 = vmatpush1.xpose.msra.mxu0 0.0
  %1633 = vmatprep.subr.mxu0 0.0
  %1634 = vmatpush1.xpose.msra.mxu0 0.0
  %1635 = vmatprep.subr.mxu0 0.0
  %1636 = vmatpush1.xpose.msra.mxu0 0.0
  %1637 = vmatprep.subr.mxu0 0.0
  %1638 = vmatpush1.xpose.msra.mxu0 0.0
  %1639 = vmatprep.subr.mxu0 0.0
  %1640 = vmatpush1.xpose.msra.mxu0 0.0
  %1641 = vmatprep.subr.mxu0 0.0
  %1642 = vmatpush1.xpose.msra.mxu0 0.0
  %1643 = vmatprep.subr.mxu0 0.0
  %1644 = vmatpush1.xpose.msra.mxu0 0.0
  %1645 = vmatprep.subr.mxu0 0.0
  %1646 = vmatpush1.xpose.msra.mxu0 0.0
  %1647 = vmatprep.subr.mxu0 0.0
  %1648 = vmatpush1.xpose.msra.mxu0 0.0
  %1649 = vmatprep.subr.mxu0 0.0
  %1650 = vmatpush1.xpose.msra.mxu0 0.0
  %1651 = vmatprep.subr.mxu0 0.0
  %1652 = vmatpush1.xpose.msra.mxu0 0.0
  %1653 = vmatprep.subr.mxu0 0.0
  %1654 = vmatpush1.xpose.msra.mxu0 0.0
  %1655 = vmatprep.subr.mxu0 0.0
  %1656 = vmatpush1.xpose.msra.mxu0 0.0
  %1657 = vmatprep.subr.mxu0 0.0
  %1658 = vmatpush1.xpose.msra.mxu0 0.0
  %1659 = vmatprep.mubr.f32.mxu0 0.0
  %1660 = vmatmul.mubr.f32.gmra.mrb[0].mxu0 %v1587
  %v1661 = vpop.f32.mrb[0].mxu0
  %v1662 = vadd.f32 0.0, %v1661
  %v1663 = vpop.f32.mrb[0].mxu0
  %1664 = vmatprep.mubr.f32.mxu0 0.0
  %1665 = vmatmul.mubr.f32.gmra.mrb[0].mxu0 %v1590
  %v1666 = vpop.f32.mrb[0].mxu0
  %v1667 = vadd.f32 0.0, %v1666
  %v1668 = vpop.f32.mrb[0].mxu0
  %1669 = vdwg.mxu0
  %v1671 = vsel %vm111, %v341, 0
  %v1674 = vsel %vm111, %v342, 0
  %v1677 = vsel %vm111, %v488, 0
  %1679 = vmatprep.subr.mxu0 0.0
  %1680 = vmatpush1.xpose.msra.mxu0 %v1677
  %1681 = vmatprep.subr.mxu0 0.0
  %1682 = vmatpush1.xpose.msra.mxu0 0.0
  %1683 = vmatprep.subr.mxu0 0.0
  %1684 = vmatpush1.xpose.msra.mxu0 0.0
  %1685 = vmatprep.subr.mxu0 0.0
  %1686 = vmatpush1.xpose.msra.mxu0 0.0
  %1687 = vmatprep.subr.mxu0 0.0
  %1688 = vmatpush1.xpose.msra.mxu0 0.0
  %1689 = vmatprep.subr.mxu0 0.0
  %1690 = vmatpush1.xpose.msra.mxu0 0.0
  %1691 = vmatprep.subr.mxu0 0.0
  %1692 = vmatpush1.xpose.msra.mxu0 0.0
  %1693 = vmatprep.subr.mxu0 0.0
  %1694 = vmatpush1.xpose.msra.mxu0 0.0
  %1695 = vmatprep.subr.mxu0 0.0
  %1696 = vmatpush1.xpose.msra.mxu0 0.0
  %1697 = vmatprep.subr.mxu0 0.0
  %1698 = vmatpush1.xpose.msra.mxu0 0.0
  %1699 = vmatprep.subr.mxu0 0.0
  %1700 = vmatpush1.xpose.msra.mxu0 0.0
  %1701 = vmatprep.subr.mxu0 0.0
  %1702 = vmatpush1.xpose.msra.mxu0 0.0
  %1703 = vmatprep.subr.mxu0 0.0
  %1704 = vmatpush1.xpose.msra.mxu0 0.0
  %1705 = vmatprep.subr.mxu0 0.0
  %1706 = vmatpush1.xpose.msra.mxu0 0.0
  %1707 = vmatprep.subr.mxu0 0.0
  %1708 = vmatpush1.xpose.msra.mxu0 0.0
  %1709 = vmatprep.subr.mxu0 0.0
  %1710 = vmatpush1.xpose.msra.mxu0 0.0
  %1711 = vmatprep.subr.mxu0 0.0
  %1712 = vmatpush1.xpose.msra.mxu0 0.0
  %1713 = vmatprep.subr.mxu0 0.0
  %1714 = vmatpush1.xpose.msra.mxu0 0.0
  %1715 = vmatprep.subr.mxu0 0.0
  %1716 = vmatpush1.xpose.msra.mxu0 0.0
  %1717 = vmatprep.subr.mxu0 0.0
  %1718 = vmatpush1.xpose.msra.mxu0 0.0
  %1719 = vmatprep.subr.mxu0 0.0
  %1720 = vmatpush1.xpose.msra.mxu0 0.0
  %1721 = vmatprep.subr.mxu0 0.0
  %1722 = vmatpush1.xpose.msra.mxu0 0.0
  %1723 = vmatprep.subr.mxu0 0.0
  %1724 = vmatpush1.xpose.msra.mxu0 0.0
  %1725 = vmatprep.subr.mxu0 0.0
  %1726 = vmatpush1.xpose.msra.mxu0 0.0
  %1727 = vmatprep.subr.mxu0 0.0
  %1728 = vmatpush1.xpose.msra.mxu0 0.0
  %1729 = vmatprep.subr.mxu0 0.0
  %1730 = vmatpush1.xpose.msra.mxu0 0.0
  %1731 = vmatprep.subr.mxu0 0.0
  %1732 = vmatpush1.xpose.msra.mxu0 0.0
  %1733 = vmatprep.subr.mxu0 0.0
  %1734 = vmatpush1.xpose.msra.mxu0 0.0
  %1735 = vmatprep.subr.mxu0 0.0
  %1736 = vmatpush1.xpose.msra.mxu0 0.0
  %1737 = vmatprep.subr.mxu0 0.0
  %1738 = vmatpush1.xpose.msra.mxu0 0.0
  %1739 = vmatprep.subr.mxu0 0.0
  %1740 = vmatpush1.xpose.msra.mxu0 0.0
  %1741 = vmatprep.subr.mxu0 0.0
  %1742 = vmatpush1.xpose.msra.mxu0 0.0
  %1743 = vmatprep.mubr.f32.mxu0 0.0
  %1744 = vmatmul.mubr.f32.gmra.mrb[0].mxu0 %v1671
  %v1745 = vpop.f32.mrb[0].mxu0
  %v1746 = vadd.f32 0.0, %v1745
  %v1747 = vpop.f32.mrb[0].mxu0
  %1748 = vmatprep.mubr.f32.mxu0 0.0
  %1749 = vmatmul.mubr.f32.gmra.mrb[0].mxu0 %v1674
  %v1750 = vpop.f32.mrb[0].mxu0
  %v1751 = vadd.f32 0.0, %v1750
  %v1752 = vpop.f32.mrb[0].mxu0
  %1753 = vdwg.mxu0
  %v1755 = vsel %vm111, %v343, 0
  %v1758 = vsel %vm111, %v344, 0
  %v1761 = vsel %vm111, %v489, 0
  %1763 = vmatprep.subr.mxu0 0.0
  %1764 = vmatpush1.xpose.msra.mxu0 %v1761
  %1765 = vmatprep.subr.mxu0 0.0
  %1766 = vmatpush1.xpose.msra.mxu0 0.0
  %1767 = vmatprep.subr.mxu0 0.0
  %1768 = vmatpush1.xpose.msra.mxu0 0.0
  %1769 = vmatprep.subr.mxu0 0.0
  %1770 = vmatpush1.xpose.msra.mxu0 0.0
  %1771 = vmatprep.subr.mxu0 0.0
  %1772 = vmatpush1.xpose.msra.mxu0 0.0
  %1773 = vmatprep.subr.mxu0 0.0
  %1774 = vmatpush1.xpose.msra.mxu0 0.0
  %1775 = vmatprep.subr.mxu0 0.0
  %1776 = vmatpush1.xpose.msra.mxu0 0.0
  %1777 = vmatprep.subr.mxu0 0.0
  %1778 = vmatpush1.xpose.msra.mxu0 0.0
  %1779 = vmatprep.subr.mxu0 0.0
  %1780 = vmatpush1.xpose.msra.mxu0 0.0
  %1781 = vmatprep.subr.mxu0 0.0
  %1782 = vmatpush1.xpose.msra.mxu0 0.0
  %1783 = vmatprep.subr.mxu0 0.0
  %1784 = vmatpush1.xpose.msra.mxu0 0.0
  %1785 = vmatprep.subr.mxu0 0.0
  %1786 = vmatpush1.xpose.msra.mxu0 0.0
  %1787 = vmatprep.subr.mxu0 0.0
  %1788 = vmatpush1.xpose.msra.mxu0 0.0
  %1789 = vmatprep.subr.mxu0 0.0
  %1790 = vmatpush1.xpose.msra.mxu0 0.0
  %1791 = vmatprep.subr.mxu0 0.0
  %1792 = vmatpush1.xpose.msra.mxu0 0.0
  %1793 = vmatprep.subr.mxu0 0.0
  %1794 = vmatpush1.xpose.msra.mxu0 0.0
  %1795 = vmatprep.subr.mxu0 0.0
  %1796 = vmatpush1.xpose.msra.mxu0 0.0
  %1797 = vmatprep.subr.mxu0 0.0
  %1798 = vmatpush1.xpose.msra.mxu0 0.0
  %1799 = vmatprep.subr.mxu0 0.0
  %1800 = vmatpush1.xpose.msra.mxu0 0.0
  %1801 = vmatprep.subr.mxu0 0.0
  %1802 = vmatpush1.xpose.msra.mxu0 0.0
  %1803 = vmatprep.subr.mxu0 0.0
  %1804 = vmatpush1.xpose.msra.mxu0 0.0
  %1805 = vmatprep.subr.mxu0 0.0
  %1806 = vmatpush1.xpose.msra.mxu0 0.0
  %1807 = vmatprep.subr.mxu0 0.0
  %1808 = vmatpush1.xpose.msra.mxu0 0.0
  %1809 = vmatprep.subr.mxu0 0.0
  %1810 = vmatpush1.xpose.msra.mxu0 0.0
  %1811 = vmatprep.subr.mxu0 0.0
  %1812 = vmatpush1.xpose.msra.mxu0 0.0
  %1813 = vmatprep.subr.mxu0 0.0
  %1814 = vmatpush1.xpose.msra.mxu0 0.0
  %1815 = vmatprep.subr.mxu0 0.0
  %1816 = vmatpush1.xpose.msra.mxu0 0.0
  %1817 = vmatprep.subr.mxu0 0.0
  %1818 = vmatpush1.xpose.msra.mxu0 0.0
  %1819 = vmatprep.subr.mxu0 0.0
  %1820 = vmatpush1.xpose.msra.mxu0 0.0
  %1821 = vmatprep.subr.mxu0 0.0
  %1822 = vmatpush1.xpose.msra.mxu0 0.0
  %1823 = vmatprep.subr.mxu0 0.0
  %1824 = vmatpush1.xpose.msra.mxu0 0.0
  %1825 = vmatprep.subr.mxu0 0.0
  %1826 = vmatpush1.xpose.msra.mxu0 0.0
  %1827 = vmatprep.mubr.f32.mxu0 0.0
  %1828 = vmatmul.mubr.f32.gmra.mrb[0].mxu0 %v1755
  %v1829 = vpop.f32.mrb[0].mxu0
  %v1830 = vadd.f32 0.0, %v1829
  %v1831 = vpop.f32.mrb[0].mxu0
  %1832 = vmatprep.mubr.f32.mxu0 0.0
  %1833 = vmatmul.mubr.f32.gmra.mrb[0].mxu0 %v1758
  %v1834 = vpop.f32.mrb[0].mxu0
  %v1835 = vadd.f32 0.0, %v1834
  %v1836 = vpop.f32.mrb[0].mxu0
  %1837 = vdwg.mxu0
  %v1839 = vsel %vm111, %v345, 0
  %v1842 = vsel %vm111, %v346, 0
  %v1845 = vsel %vm111, %v490, 0
  %1847 = vmatprep.subr.mxu0 0.0
  %1848 = vmatpush1.xpose.msra.mxu0 %v1845
  %1849 = vmatprep.subr.mxu0 0.0
  %1850 = vmatpush1.xpose.msra.mxu0 0.0
  %1851 = vmatprep.subr.mxu0 0.0
  %1852 = vmatpush1.xpose.msra.mxu0 0.0
  %1853 = vmatprep.subr.mxu0 0.0
  %1854 = vmatpush1.xpose.msra.mxu0 0.0
  %1855 = vmatprep.subr.mxu0 0.0
  %1856 = vmatpush1.xpose.msra.mxu0 0.0
  %1857 = vmatprep.subr.mxu0 0.0
  %1858 = vmatpush1.xpose.msra.mxu0 0.0
  %1859 = vmatprep.subr.mxu0 0.0
  %1860 = vmatpush1.xpose.msra.mxu0 0.0
  %1861 = vmatprep.subr.mxu0 0.0
  %1862 = vmatpush1.xpose.msra.mxu0 0.0
  %1863 = vmatprep.subr.mxu0 0.0
  %1864 = vmatpush1.xpose.msra.mxu0 0.0
  %1865 = vmatprep.subr.mxu0 0.0
  %1866 = vmatpush1.xpose.msra.mxu0 0.0
  %1867 = vmatprep.subr.mxu0 0.0
  %1868 = vmatpush1.xpose.msra.mxu0 0.0
  %1869 = vmatprep.subr.mxu0 0.0
  %1870 = vmatpush1.xpose.msra.mxu0 0.0
  %1871 = vmatprep.subr.mxu0 0.0
  %1872 = vmatpush1.xpose.msra.mxu0 0.0
  %1873 = vmatprep.subr.mxu0 0.0
  %1874 = vmatpush1.xpose.msra.mxu0 0.0
  %1875 = vmatprep.subr.mxu0 0.0
  %1876 = vmatpush1.xpose.msra.mxu0 0.0
  %1877 = vmatprep.subr.mxu0 0.0
  %1878 = vmatpush1.xpose.msra.mxu0 0.0
  %1879 = vmatprep.subr.mxu0 0.0
  %1880 = vmatpush1.xpose.msra.mxu0 0.0
  %1881 = vmatprep.subr.mxu0 0.0
  %1882 = vmatpush1.xpose.msra.mxu0 0.0
  %1883 = vmatprep.subr.mxu0 0.0
  %1884 = vmatpush1.xpose.msra.mxu0 0.0
  %1885 = vmatprep.subr.mxu0 0.0
  %1886 = vmatpush1.xpose.msra.mxu0 0.0
  %1887 = vmatprep.subr.mxu0 0.0
  %1888 = vmatpush1.xpose.msra.mxu0 0.0
  %1889 = vmatprep.subr.mxu0 0.0
  %1890 = vmatpush1.xpose.msra.mxu0 0.0
  %1891 = vmatprep.subr.mxu0 0.0
  %1892 = vmatpush1.xpose.msra.mxu0 0.0
  %1893 = vmatprep.subr.mxu0 0.0
  %1894 = vmatpush1.xpose.msra.mxu0 0.0
  %1895 = vmatprep.subr.mxu0 0.0
  %1896 = vmatpush1.xpose.msra.mxu0 0.0
  %1897 = vmatprep.subr.mxu0 0.0
  %1898 = vmatpush1.xpose.msra.mxu0 0.0
  %1899 = vmatprep.subr.mxu0 0.0
  %1900 = vmatpush1.xpose.msra.mxu0 0.0
  %1901 = vmatprep.subr.mxu0 0.0
  %1902 = vmatpush1.xpose.msra.mxu0 0.0
  %1903 = vmatprep.subr.mxu0 0.0
  %1904 = vmatpush1.xpose.msra.mxu0 0.0
  %1905 = vmatprep.subr.mxu0 0.0
  %1906 = vmatpush1.xpose.msra.mxu0 0.0
  %1907 = vmatprep.subr.mxu0 0.0
  %1908 = vmatpush1.xpose.msra.mxu0 0.0
  %1909 = vmatprep.subr.mxu0 0.0
  %1910 = vmatpush1.xpose.msra.mxu0 0.0
  %1911 = vmatprep.mubr.f32.mxu0 0.0
  %1912 = vmatmul.mubr.f32.gmra.mrb[0].mxu0 %v1839
  %v1913 = vpop.f32.mrb[0].mxu0
  %v1914 = vadd.f32 0.0, %v1913
  %v1915 = vpop.f32.mrb[0].mxu0
  %1916 = vmatprep.mubr.f32.mxu0 0.0
  %1917 = vmatmul.mubr.f32.gmra.mrb[0].mxu0 %v1842
  %v1918 = vpop.f32.mrb[0].mxu0
  %v1919 = vadd.f32 0.0, %v1918
  %v1920 = vpop.f32.mrb[0].mxu0
  %1921 = vdwg.mxu0
  %v1923 = vsel %vm111, %v347, 0
  %v1926 = vsel %vm111, %v348, 0
  %v1929 = vsel %vm111, %v491, 0
  %1931 = vmatprep.subr.mxu0 0.0
  %1932 = vmatpush1.xpose.msra.mxu0 %v1929
  %1933 = vmatprep.subr.mxu0 0.0
  %1934 = vmatpush1.xpose.msra.mxu0 0.0
  %1935 = vmatprep.subr.mxu0 0.0
  %1936 = vmatpush1.xpose.msra.mxu0 0.0
  %1937 = vmatprep.subr.mxu0 0.0
  %1938 = vmatpush1.xpose.msra.mxu0 0.0
  %1939 = vmatprep.subr.mxu0 0.0
  %1940 = vmatpush1.xpose.msra.mxu0 0.0
  %1941 = vmatprep.subr.mxu0 0.0
  %1942 = vmatpush1.xpose.msra.mxu0 0.0
  %1943 = vmatprep.subr.mxu0 0.0
  %1944 = vmatpush1.xpose.msra.mxu0 0.0
  %1945 = vmatprep.subr.mxu0 0.0
  %1946 = vmatpush1.xpose.msra.mxu0 0.0
  %1947 = vmatprep.subr.mxu0 0.0
  %1948 = vmatpush1.xpose.msra.mxu0 0.0
  %1949 = vmatprep.subr.mxu0 0.0
  %1950 = vmatpush1.xpose.msra.mxu0 0.0
  %1951 = vmatprep.subr.mxu0 0.0
  %1952 = vmatpush1.xpose.msra.mxu0 0.0
  %1953 = vmatprep.subr.mxu0 0.0
  %1954 = vmatpush1.xpose.msra.mxu0 0.0
  %1955 = vmatprep.subr.mxu0 0.0
  %1956 = vmatpush1.xpose.msra.mxu0 0.0
  %1957 = vmatprep.subr.mxu0 0.0
  %1958 = vmatpush1.xpose.msra.mxu0 0.0
  %1959 = vmatprep.subr.mxu0 0.0
  %1960 = vmatpush1.xpose.msra.mxu0 0.0
  %1961 = vmatprep.subr.mxu0 0.0
  %1962 = vmatpush1.xpose.msra.mxu0 0.0
  %1963 = vmatprep.subr.mxu0 0.0
  %1964 = vmatpush1.xpose.msra.mxu0 0.0
  %1965 = vmatprep.subr.mxu0 0.0
  %1966 = vmatpush1.xpose.msra.mxu0 0.0
  %1967 = vmatprep.subr.mxu0 0.0
  %1968 = vmatpush1.xpose.msra.mxu0 0.0
  %1969 = vmatprep.subr.mxu0 0.0
  %1970 = vmatpush1.xpose.msra.mxu0 0.0
  %1971 = vmatprep.subr.mxu0 0.0
  %1972 = vmatpush1.xpose.msra.mxu0 0.0
  %1973 = vmatprep.subr.mxu0 0.0
  %1974 = vmatpush1.xpose.msra.mxu0 0.0
  %1975 = vmatprep.subr.mxu0 0.0
  %1976 = vmatpush1.xpose.msra.mxu0 0.0
  %1977 = vmatprep.subr.mxu0 0.0
  %1978 = vmatpush1.xpose.msra.mxu0 0.0
  %1979 = vmatprep.subr.mxu0 0.0
  %1980 = vmatpush1.xpose.msra.mxu0 0.0
  %1981 = vmatprep.subr.mxu0 0.0
  %1982 = vmatpush1.xpose.msra.mxu0 0.0
  %1983 = vmatprep.subr.mxu0 0.0
  %1984 = vmatpush1.xpose.msra.mxu0 0.0
  %1985 = vmatprep.subr.mxu0 0.0
  %1986 = vmatpush1.xpose.msra.mxu0 0.0
  %1987 = vmatprep.subr.mxu0 0.0
  %1988 = vmatpush1.xpose.msra.mxu0 0.0
  %1989 = vmatprep.subr.mxu0 0.0
  %1990 = vmatpush1.xpose.msra.mxu0 0.0
  %1991 = vmatprep.subr.mxu0 0.0
  %1992 = vmatpush1.xpose.msra.mxu0 0.0
  %1993 = vmatprep.subr.mxu0 0.0
  %1994 = vmatpush1.xpose.msra.mxu0 0.0
  %1995 = vmatprep.mubr.f32.mxu0 0.0
  %1996 = vmatmul.mubr.f32.gmra.mrb[0].mxu0 %v1923
  %v1997 = vpop.f32.mrb[0].mxu0
  %v1998 = vadd.f32 0.0, %v1997
  %v1999 = vpop.f32.mrb[0].mxu0
  %2000 = vmatprep.mubr.f32.mxu0 0.0
  %2001 = vmatmul.mubr.f32.gmra.mrb[0].mxu0 %v1926
  %v2002 = vpop.f32.mrb[0].mxu0
  %v2003 = vadd.f32 0.0, %v2002
  %v2004 = vpop.f32.mrb[0].mxu0
  %2005 = vdwg.mxu0
  %v2007 = vsel %vm111, %v349, 0
  %v2010 = vsel %vm111, %v350, 0
  %v2013 = vsel %vm111, %v492, 0
  %2015 = vmatprep.subr.mxu0 0.0
  %2016 = vmatpush1.xpose.msra.mxu0 %v2013
  %2017 = vmatprep.subr.mxu0 0.0
  %2018 = vmatpush1.xpose.msra.mxu0 0.0
  %2019 = vmatprep.subr.mxu0 0.0
  %2020 = vmatpush1.xpose.msra.mxu0 0.0
  %2021 = vmatprep.subr.mxu0 0.0
  %2022 = vmatpush1.xpose.msra.mxu0 0.0
  %2023 = vmatprep.subr.mxu0 0.0
  %2024 = vmatpush1.xpose.msra.mxu0 0.0
  %2025 = vmatprep.subr.mxu0 0.0
  %2026 = vmatpush1.xpose.msra.mxu0 0.0
  %2027 = vmatprep.subr.mxu0 0.0
  %2028 = vmatpush1.xpose.msra.mxu0 0.0
  %2029 = vmatprep.subr.mxu0 0.0
  %2030 = vmatpush1.xpose.msra.mxu0 0.0
  %2031 = vmatprep.subr.mxu0 0.0
  %2032 = vmatpush1.xpose.msra.mxu0 0.0
  %2033 = vmatprep.subr.mxu0 0.0
  %2034 = vmatpush1.xpose.msra.mxu0 0.0
  %2035 = vmatprep.subr.mxu0 0.0
  %2036 = vmatpush1.xpose.msra.mxu0 0.0
  %2037 = vmatprep.subr.mxu0 0.0
  %2038 = vmatpush1.xpose.msra.mxu0 0.0
  %2039 = vmatprep.subr.mxu0 0.0
  %2040 = vmatpush1.xpose.msra.mxu0 0.0
  %2041 = vmatprep.subr.mxu0 0.0
  %2042 = vmatpush1.xpose.msra.mxu0 0.0
  %2043 = vmatprep.subr.mxu0 0.0
  %2044 = vmatpush1.xpose.msra.mxu0 0.0
  %2045 = vmatprep.subr.mxu0 0.0
  %2046 = vmatpush1.xpose.msra.mxu0 0.0
  %2047 = vmatprep.subr.mxu0 0.0
  %2048 = vmatpush1.xpose.msra.mxu0 0.0
  %2049 = vmatprep.subr.mxu0 0.0
  %2050 = vmatpush1.xpose.msra.mxu0 0.0
  %2051 = vmatprep.subr.mxu0 0.0
  %2052 = vmatpush1.xpose.msra.mxu0 0.0
  %2053 = vmatprep.subr.mxu0 0.0
  %2054 = vmatpush1.xpose.msra.mxu0 0.0
  %2055 = vmatprep.subr.mxu0 0.0
  %2056 = vmatpush1.xpose.msra.mxu0 0.0
  %2057 = vmatprep.subr.mxu0 0.0
  %2058 = vmatpush1.xpose.msra.mxu0 0.0
  %2059 = vmatprep.subr.mxu0 0.0
  %2060 = vmatpush1.xpose.msra.mxu0 0.0
  %2061 = vmatprep.subr.mxu0 0.0
  %2062 = vmatpush1.xpose.msra.mxu0 0.0
  %2063 = vmatprep.subr.mxu0 0.0
  %2064 = vmatpush1.xpose.msra.mxu0 0.0
  %2065 = vmatprep.subr.mxu0 0.0
  %2066 = vmatpush1.xpose.msra.mxu0 0.0
  %2067 = vmatprep.subr.mxu0 0.0
  %2068 = vmatpush1.xpose.msra.mxu0 0.0
  %2069 = vmatprep.subr.mxu0 0.0
  %2070 = vmatpush1.xpose.msra.mxu0 0.0
  %2071 = vmatprep.subr.mxu0 0.0
  %2072 = vmatpush1.xpose.msra.mxu0 0.0
  %2073 = vmatprep.subr.mxu0 0.0
  %2074 = vmatpush1.xpose.msra.mxu0 0.0
  %2075 = vmatprep.subr.mxu0 0.0
  %2076 = vmatpush1.xpose.msra.mxu0 0.0
  %2077 = vmatprep.subr.mxu0 0.0
  %2078 = vmatpush1.xpose.msra.mxu0 0.0
  %2079 = vmatprep.mubr.f32.mxu0 0.0
  %2080 = vmatmul.mubr.f32.gmra.mrb[0].mxu0 %v2007
  %v2081 = vpop.f32.mrb[0].mxu0
  %v2082 = vadd.f32 0.0, %v2081
  %v2083 = vpop.f32.mrb[0].mxu0
  %2084 = vmatprep.mubr.f32.mxu0 0.0
  %2085 = vmatmul.mubr.f32.gmra.mrb[0].mxu0 %v2010
  %v2086 = vpop.f32.mrb[0].mxu0
  %v2087 = vadd.f32 0.0, %v2086
  %v2088 = vpop.f32.mrb[0].mxu0
  %2089 = vdwg.mxu0
  %v2091 = vsel %vm111, %v351, 0
  %v2094 = vsel %vm111, %v352, 0
  %v2097 = vsel %vm111, %v493, 0
  %2099 = vmatprep.subr.mxu0 0.0
  %2100 = vmatpush1.xpose.msra.mxu0 %v2097
  %2101 = vmatprep.subr.mxu0 0.0
  %2102 = vmatpush1.xpose.msra.mxu0 0.0
  %2103 = vmatprep.subr.mxu0 0.0
  %2104 = vmatpush1.xpose.msra.mxu0 0.0
  %2105 = vmatprep.subr.mxu0 0.0
  %2106 = vmatpush1.xpose.msra.mxu0 0.0
  %2107 = vmatprep.subr.mxu0 0.0
  %2108 = vmatpush1.xpose.msra.mxu0 0.0
  %2109 = vmatprep.subr.mxu0 0.0
  %2110 = vmatpush1.xpose.msra.mxu0 0.0
  %2111 = vmatprep.subr.mxu0 0.0
  %2112 = vmatpush1.xpose.msra.mxu0 0.0
  %2113 = vmatprep.subr.mxu0 0.0
  %2114 = vmatpush1.xpose.msra.mxu0 0.0
  %2115 = vmatprep.subr.mxu0 0.0
  %2116 = vmatpush1.xpose.msra.mxu0 0.0
  %2117 = vmatprep.subr.mxu0 0.0
  %2118 = vmatpush1.xpose.msra.mxu0 0.0
  %2119 = vmatprep.subr.mxu0 0.0
  %2120 = vmatpush1.xpose.msra.mxu0 0.0
  %2121 = vmatprep.subr.mxu0 0.0
  %2122 = vmatpush1.xpose.msra.mxu0 0.0
  %2123 = vmatprep.subr.mxu0 0.0
  %2124 = vmatpush1.xpose.msra.mxu0 0.0
  %2125 = vmatprep.subr.mxu0 0.0
  %2126 = vmatpush1.xpose.msra.mxu0 0.0
  %2127 = vmatprep.subr.mxu0 0.0
  %2128 = vmatpush1.xpose.msra.mxu0 0.0
  %2129 = vmatprep.subr.mxu0 0.0
  %2130 = vmatpush1.xpose.msra.mxu0 0.0
  %2131 = vmatprep.subr.mxu0 0.0
  %2132 = vmatpush1.xpose.msra.mxu0 0.0
  %2133 = vmatprep.subr.mxu0 0.0
  %2134 = vmatpush1.xpose.msra.mxu0 0.0
  %2135 = vmatprep.subr.mxu0 0.0
  %2136 = vmatpush1.xpose.msra.mxu0 0.0
  %2137 = vmatprep.subr.mxu0 0.0
  %2138 = vmatpush1.xpose.msra.mxu0 0.0
  %2139 = vmatprep.subr.mxu0 0.0
  %2140 = vmatpush1.xpose.msra.mxu0 0.0
  %2141 = vmatprep.subr.mxu0 0.0
  %2142 = vmatpush1.xpose.msra.mxu0 0.0
  %2143 = vmatprep.subr.mxu0 0.0
  %2144 = vmatpush1.xpose.msra.mxu0 0.0
  %2145 = vmatprep.subr.mxu0 0.0
  %2146 = vmatpush1.xpose.msra.mxu0 0.0
  %2147 = vmatprep.subr.mxu0 0.0
  %2148 = vmatpush1.xpose.msra.mxu0 0.0
  %2149 = vmatprep.subr.mxu0 0.0
  %2150 = vmatpush1.xpose.msra.mxu0 0.0
  %2151 = vmatprep.subr.mxu0 0.0
  %2152 = vmatpush1.xpose.msra.mxu0 0.0
  %2153 = vmatprep.subr.mxu0 0.0
  %2154 = vmatpush1.xpose.msra.mxu0 0.0
  %2155 = vmatprep.subr.mxu0 0.0
  %2156 = vmatpush1.xpose.msra.mxu0 0.0
  %2157 = vmatprep.subr.mxu0 0.0
  %2158 = vmatpush1.xpose.msra.mxu0 0.0
  %2159 = vmatprep.subr.mxu0 0.0
  %2160 = vmatpush1.xpose.msra.mxu0 0.0
  %2161 = vmatprep.subr.mxu0 0.0
  %2162 = vmatpush1.xpose.msra.mxu0 0.0
  %2163 = vmatprep.mubr.f32.mxu0 0.0
  %2164 = vmatmul.mubr.f32.gmra.mrb[0].mxu0 %v2091
  %v2165 = vpop.f32.mrb[0].mxu0
  %v2166 = vadd.f32 0.0, %v2165
  %v2167 = vpop.f32.mrb[0].mxu0
  %2168 = vmatprep.mubr.f32.mxu0 0.0
  %2169 = vmatmul.mubr.f32.gmra.mrb[0].mxu0 %v2094
  %v2170 = vpop.f32.mrb[0].mxu0
  %v2171 = vadd.f32 0.0, %v2170
  %v2172 = vpop.f32.mrb[0].mxu0
  %2173 = vdwg.mxu0
  %vm2174 = vcmask 39936
  %2175 = vst.msk [vmem:[%s2] sm:$0xff] %vm2174, %v570
  %vm2176 = vcmask 33792
  %2177 = vst.msk [vmem:[%s2 + $0x8] sm:$0x3] %vm2176, %v575
  %2178 = vst.msk [vmem:[%s2 + $0x10] sm:$0xff] %vm2174, %v654
  %2179 = vst.msk [vmem:[%s2 + $0x18] sm:$0x3] %vm2176, %v659
  %2180 = vst.msk [vmem:[%s2 + $0x20] sm:$0xff] %vm2174, %v738
  %2181 = vst.msk [vmem:[%s2 + $0x28] sm:$0x3] %vm2176, %v743
  %2182 = vst.msk [vmem:[%s2 + $0x30] sm:$0xff] %vm2174, %v822
  %2183 = vst.msk [vmem:[%s2 + $0x38] sm:$0x3] %vm2176, %v827
  %2184 = vst.msk [vmem:[%s2 + $0x40] sm:$0xff] %vm2174, %v906
  %2185 = vst.msk [vmem:[%s2 + $0x48] sm:$0x3] %vm2176, %v911
  %2186 = vst.msk [vmem:[%s2 + $0x50] sm:$0xff] %vm2174, %v990
  %2187 = vst.msk [vmem:[%s2 + $0x58] sm:$0x3] %vm2176, %v995
  %2188 = vst.msk [vmem:[%s2 + $0x60] sm:$0xff] %vm2174, %v1074
  %2189 = vst.msk [vmem:[%s2 + $0x68] sm:$0x3] %vm2176, %v1079
  %2190 = vst.msk [vmem:[%s2 + $0x70] sm:$0xff] %vm2174, %v1158
  %2191 = vst.msk [vmem:[%s2 + $0x78] sm:$0x3] %vm2176, %v1163
  %2192 = vst.msk [vmem:[%s2 + $0x80] sm:$0xff] %vm2174, %v1242
  %2193 = vst.msk [vmem:[%s2 + $0x88] sm:$0x3] %vm2176, %v1247
  %2194 = vst.msk [vmem:[%s2 + $0x90] sm:$0xff] %vm2174, %v1326
  %2195 = vst.msk [vmem:[%s2 + $0x98] sm:$0x3] %vm2176, %v1331
  %2196 = vst.msk [vmem:[%s2 + $0xa0] sm:$0xff] %vm2174, %v1410
  %2197 = vst.msk [vmem:[%s2 + $0xa8] sm:$0x3] %vm2176, %v1415
  %2198 = vst.msk [vmem:[%s2 + $0xb0] sm:$0xff] %vm2174, %v1494
  %2199 = vst.msk [vmem:[%s2 + $0xb8] sm:$0x3] %vm2176, %v1499
  %2200 = vst.msk [vmem:[%s2 + $0xc0] sm:$0xff] %vm2174, %v1578
  %2201 = vst.msk [vmem:[%s2 + $0xc8] sm:$0x3] %vm2176, %v1583
  %2202 = vst.msk [vmem:[%s2 + $0xd0] sm:$0xff] %vm2174, %v1662
  %2203 = vst.msk [vmem:[%s2 + $0xd8] sm:$0x3] %vm2176, %v1667
  %2204 = vst.msk [vmem:[%s2 + $0xe0] sm:$0xff] %vm2174, %v1746
  %2205 = vst.msk [vmem:[%s2 + $0xe8] sm:$0x3] %vm2176, %v1751
  %2206 = vst.msk [vmem:[%s2 + $0xf0] sm:$0xff] %vm2174, %v1830
  %2207 = vst.msk [vmem:[%s2 + $0xf8] sm:$0x3] %vm2176, %v1835
  %2208 = vst.msk [vmem:[%s2 + $0x100] sm:$0xff] %vm2174, %v1914
  %2209 = vst.msk [vmem:[%s2 + $0x108] sm:$0x3] %vm2176, %v1919
  %2210 = vst.msk [vmem:[%s2 + $0x110] sm:$0xff] %vm2174, %v1998
  %2211 = vst.msk [vmem:[%s2 + $0x118] sm:$0x3] %vm2176, %v2003
  %2212 = vst.msk [vmem:[%s2 + $0x120] sm:$0xff] %vm2174, %v2082
  %2213 = vst.msk [vmem:[%s2 + $0x128] sm:$0x3] %vm2176, %v2087
  %2214 = vst.msk [vmem:[%s2 + $0x130] sm:$0xff] %vm2174, %v2166
  %2215 = vst.msk [vmem:[%s2 + $0x138] sm:$0x3] %vm2176, %v2171
  // Predicated region
  $region10: #{_lambda_.32} parent=0 // pred_check
    _
  $region11: #{_lambda_.32} parent=0 // pred_check_branch
    %2217 = sbr.rel (0) target = $region13
  $region12: #{_lambda_.32} parent=0 // pred_region
    _
  $region13: #{_lambda_.32} parent=0 // pred_fallthru
    _
  // Predicated region
  $region14: #{_lambda_.32} parent=0 // pred_check
    _
  $region15: #{_lambda_.32} parent=0 // pred_check_branch
    %2219 = sbr.rel (0) target = $region17
  $region16: #{_lambda_.32} parent=0 // pred_region
    _
  $region17: #{_lambda_.32} parent=0 // pred_fallthru
    _

// kernel: _lambda_.40
$region0: #{_lambda_.40}
  #allocation0 [shape = 'u32[]', space=smem, size = 0x4, offset = 0x4, fixed_abs, tag = 'smem constant byte address 0x4 - core index']
  #allocation1 [shape = 'u32[144,128]{1,0:T(1,128)}', space=vmem, size = 0x12000, scoped, tag = 'internal scratch']
  %s0 = inlined_call_operand.vmem [shape: f32[40,41], index: 0, kind: input, shape index: {}]
  %s1 = inlined_call_operand.vmem [shape: f32[41,16], index: 1, kind: input, shape index: {}]
  %s2 = inlined_call_operand.vmem [shape: f32[1,16], index: 2, kind: input, shape index: {}]
  %s3 = inlined_call_operand.vmem [shape: f32[40,16], index: 3, kind: output, shape index: {}]
  %s4 = sld [smem:[#allocation0]]
  $region22: #{_lambda_.40} parent=0
    _
  %s6 = ssub.s32 1, %s4
  %s7 = scalar_select 0, %s6, %s4
  // Predicated region
  $region2: #{_lambda_.40} parent=0 // pred_check
    _
  $region3: #{_lambda_.40} parent=0 // pred_check_branch
    %9 = sbr.rel (0) target = $region5
  $region4: #{_lambda_.40} parent=0 // pred_region
    _
  $region5: #{_lambda_.40} parent=0 // pred_fallthru
    _
  // Predicated region
  $region6: #{_lambda_.40} parent=0 // pred_check
    _
  $region7: #{_lambda_.40} parent=0 // pred_check_branch
    %11 = sbr.rel (0) target = $region9
  $region8: #{_lambda_.40} parent=0 // pred_region
    _
  $region9: #{_lambda_.40} parent=0 // pred_fallthru
    _
  // Predicated region
  $region10: #{_lambda_.40} parent=0 // pred_check
    _
  $region11: #{_lambda_.40} parent=0 // pred_check_branch
    %13 = sbr.rel (0) target = $region13
  $region12: #{_lambda_.40} parent=0 // pred_region
    _
  $region13: #{_lambda_.40} parent=0 // pred_fallthru
    _
  %v14 = vld [vmem:[%s0] sm:$0xff]
  %v15 = vld [vmem:[%s0 + $0x8] sm:$0xff]
  %v16 = vld [vmem:[%s0 + $0x10] sm:$0xff]
  %v17 = vld [vmem:[%s0 + $0x18] sm:$0xff]
  %v18 = vld [vmem:[%s0 + $0x20] sm:$0xff]
  %v19 = vld [vmem:[%s1] sm:$0xff]
  %v20 = vld [vmem:[%s1 + $0x8] sm:$0xff]
  %v21 = vld [vmem:[%s1 + $0x10] sm:$0xff]
  %v22 = vld [vmem:[%s1 + $0x18] sm:$0xff]
  %v23 = vld [vmem:[%s1 + $0x20] sm:$0xff]
  %v24 = vld [vmem:[%s1 + $0x28] sm:$0x1]
  %v25 = vld [vmem:[%s2] sm:$0x1]
  %v27 = vlaneseq
  %v28 = vshrl.u32 %v27, 7
  %v29 = vsub.s32 0, %v28
  %v30 = vrot.slane %v25, %v29
  %vm32 = vcmask 334848
  %v34 = vsel %vm32, %v14, 0
  %v37 = vsel %vm32, %v15, 0
  %v40 = vsel %vm32, %v16, 0
  %v43 = vsel %vm32, %v17, 0
  %v46 = vsel %vm32, %v18, 0
  %vm48 = vcmask 1040384
  %v50 = vsel %vm48, %v24, 0
  %52 = vmatprep.subr.mxu0 0.0
  %53 = vmatpush1.msra.mxu0 %v19
  %54 = vmatprep.subr.mxu0 0.0
  %55 = vmatpush1.msra.mxu0 %v20
  %56 = vmatprep.subr.mxu0 0.0
  %57 = vmatpush1.msra.mxu0 %v21
  %58 = vmatprep.subr.mxu0 0.0
  %59 = vmatpush1.msra.mxu0 %v22
  %60 = vmatprep.subr.mxu0 0.0
  %61 = vmatpush1.msra.mxu0 %v23
  %62 = vmatprep.subr.mxu0 0.0
  %63 = vmatpush1.msra.mxu0 %v50
  %64 = vmatprep.subr.mxu0 0.0
  %65 = vmatpush1.msra.mxu0 0.0
  %66 = vmatprep.subr.mxu0 0.0
  %67 = vmatpush1.msra.mxu0 0.0
  %68 = vmatprep.subr.mxu0 0.0
  %69 = vmatpush1.msra.mxu0 0.0
  %70 = vmatprep.subr.mxu0 0.0
  %71 = vmatpush1.msra.mxu0 0.0
  %72 = vmatprep.subr.mxu0 0.0
  %73 = vmatpush1.msra.mxu0 0.0
  %74 = vmatprep.subr.mxu0 0.0
  %75 = vmatpush1.msra.mxu0 0.0
  %76 = vmatprep.subr.mxu0 0.0
  %77 = vmatpush1.msra.mxu0 0.0
  %78 = vmatprep.subr.mxu0 0.0
  %79 = vmatpush1.msra.mxu0 0.0
  %80 = vmatprep.subr.mxu0 0.0
  %81 = vmatpush1.msra.mxu0 0.0
  %82 = vmatprep.subr.mxu0 0.0
  %83 = vmatpush1.msra.mxu0 0.0
  %84 = vmatprep.subr.mxu0 0.0
  %85 = vmatpush1.msra.mxu0 0.0
  %86 = vmatprep.subr.mxu0 0.0
  %87 = vmatpush1.msra.mxu0 0.0
  %88 = vmatprep.subr.mxu0 0.0
  %89 = vmatpush1.msra.mxu0 0.0
  %90 = vmatprep.subr.mxu0 0.0
  %91 = vmatpush1.msra.mxu0 0.0
  %92 = vmatprep.subr.mxu0 0.0
  %93 = vmatpush1.msra.mxu0 0.0
  %94 = vmatprep.subr.mxu0 0.0
  %95 = vmatpush1.msra.mxu0 0.0
  %96 = vmatprep.subr.mxu0 0.0
  %97 = vmatpush1.msra.mxu0 0.0
  %98 = vmatprep.subr.mxu0 0.0
  %99 = vmatpush1.msra.mxu0 0.0
  %100 = vmatprep.subr.mxu0 0.0
  %101 = vmatpush1.msra.mxu0 0.0
  %102 = vmatprep.subr.mxu0 0.0
  %103 = vmatpush1.msra.mxu0 0.0
  %104 = vmatprep.subr.mxu0 0.0
  %105 = vmatpush1.msra.mxu0 0.0
  %106 = vmatprep.subr.mxu0 0.0
  %107 = vmatpush1.msra.mxu0 0.0
  %108 = vmatprep.subr.mxu0 0.0
  %109 = vmatpush1.msra.mxu0 0.0
  %110 = vmatprep.subr.mxu0 0.0
  %111 = vmatpush1.msra.mxu0 0.0
  %112 = vmatprep.subr.mxu0 0.0
  %113 = vmatpush1.msra.mxu0 0.0
  %114 = vmatprep.subr.mxu0 0.0
  %115 = vmatpush1.msra.mxu0 0.0
  %116 = vmatprep.mubr.f32.mxu0 0.0
  %117 = vmatmul.mubr.f32.gmra.mrb[0].mxu0 %v34
  %v118 = vpop.f32.mrb[0].mxu0
  %v119 = vadd.f32 %v30, %v118
  %v120 = vpop.f32.mrb[0].mxu0
  %121 = vmatprep.mubr.f32.mxu0 0.0
  %122 = vmatmul.mubr.f32.gmra.mrb[0].mxu0 %v37
  %v123 = vpop.f32.mrb[0].mxu0
  %v124 = vadd.f32 %v30, %v123
  %v125 = vpop.f32.mrb[0].mxu0
  %126 = vmatprep.mubr.f32.mxu0 0.0
  %127 = vmatmul.mubr.f32.gmra.mrb[0].mxu0 %v40
  %v128 = vpop.f32.mrb[0].mxu0
  %v129 = vadd.f32 %v30, %v128
  %v130 = vpop.f32.mrb[0].mxu0
  %131 = vmatprep.mubr.f32.mxu0 0.0
  %132 = vmatmul.mubr.f32.gmra.mrb[0].mxu0 %v43
  %v133 = vpop.f32.mrb[0].mxu0
  %v134 = vadd.f32 %v30, %v133
  %v135 = vpop.f32.mrb[0].mxu0
  %136 = vmatprep.mubr.f32.mxu0 0.0
  %137 = vmatmul.mubr.f32.gmra.mrb[0].mxu0 %v46
  %v138 = vpop.f32.mrb[0].mxu0
  %v139 = vadd.f32 %v30, %v138
  %v140 = vpop.f32.mrb[0].mxu0
  %141 = vdwg.mxu0
  %vm142 = vcmask 130048
  %143 = vst.msk [vmem:[%s3] sm:$0xff] %vm142, %v119
  %144 = vst.msk [vmem:[%s3 + $0x8] sm:$0xff] %vm142, %v124
  %145 = vst.msk [vmem:[%s3 + $0x10] sm:$0xff] %vm142, %v129
  %146 = vst.msk [vmem:[%s3 + $0x18] sm:$0xff] %vm142, %v134
  %147 = vst.msk [vmem:[%s3 + $0x20] sm:$0xff] %vm142, %v139
  // Predicated region
  $region14: #{_lambda_.40} parent=0 // pred_check
    _
  $region15: #{_lambda_.40} parent=0 // pred_check_branch
    %149 = sbr.rel (0) target = $region17
  $region16: #{_lambda_.40} parent=0 // pred_region
    _
  $region17: #{_lambda_.40} parent=0 // pred_fallthru
    _
  // Predicated region
  $region18: #{_lambda_.40} parent=0 // pred_check
    _
  $region19: #{_lambda_.40} parent=0 // pred_check_branch
    %151 = sbr.rel (0) target = $region21
  $region20: #{_lambda_.40} parent=0 // pred_region
    _
  $region21: #{_lambda_.40} parent=0 // pred_fallthru
    _

// kernel: _lambda_.41
$region0: #{_lambda_.41}
  #allocation0 [shape = 'u32[]', space=smem, size = 0x4, offset = 0x4, fixed_abs, tag = 'smem constant byte address 0x4 - core index']
  #allocation1 [shape = 'u32[144,128]{1,0:T(1,128)}', space=vmem, size = 0x12000, scoped, tag = 'internal scratch']
  %s0 = inlined_call_operand.vmem [shape: f32[128,16], index: 0, kind: input, shape index: {}]
  %s1 = inlined_call_operand.vmem [shape: f32[16,128], index: 1, kind: input, shape index: {}]
  %s2 = inlined_call_operand.vmem [shape: f32[1,128], index: 2, kind: input, shape index: {}]
  %s3 = inlined_call_operand.vmem [shape: f32[128,128], index: 3, kind: output, shape index: {}]
  %s4 = sld [smem:[#allocation0]]
  $region22: #{_lambda_.41} parent=0
    _
  %s6 = ssub.s32 1, %s4
  %s7 = scalar_select 0, %s6, %s4
  // Predicated region
  $region2: #{_lambda_.41} parent=0 // pred_check
    _
  $region3: #{_lambda_.41} parent=0 // pred_check_branch
    %9 = sbr.rel (0) target = $region5
  $region4: #{_lambda_.41} parent=0 // pred_region
    _
  $region5: #{_lambda_.41} parent=0 // pred_fallthru
    _
  // Predicated region
  $region6: #{_lambda_.41} parent=0 // pred_check
    _
  $region7: #{_lambda_.41} parent=0 // pred_check_branch
    %11 = sbr.rel (0) target = $region9
  $region8: #{_lambda_.41} parent=0 // pred_region
    _
  $region9: #{_lambda_.41} parent=0 // pred_fallthru
    _
  // Predicated region
  $region10: #{_lambda_.41} parent=0 // pred_check
    _
  $region11: #{_lambda_.41} parent=0 // pred_check_branch
    %13 = sbr.rel (0) target = $region13
  $region12: #{_lambda_.41} parent=0 // pred_region
    _
  $region13: #{_lambda_.41} parent=0 // pred_fallthru
    _
  %v14 = vld [vmem:[%s0] sm:$0xff]
  %v15 = vld [vmem:[%s0 + $0x8] sm:$0xff]
  %v16 = vld [vmem:[%s0 + $0x10] sm:$0xff]
  %v17 = vld [vmem:[%s0 + $0x18] sm:$0xff]
  %v18 = vld [vmem:[%s0 + $0x20] sm:$0xff]
  %v19 = vld [vmem:[%s0 + $0x28] sm:$0xff]
  %v20 = vld [vmem:[%s0 + $0x30] sm:$0xff]
  %v21 = vld [vmem:[%s0 + $0x38] sm:$0xff]
  %v22 = vld [vmem:[%s0 + $0x40] sm:$0xff]
  %v23 = vld [vmem:[%s0 + $0x48] sm:$0xff]
  %v24 = vld [vmem:[%s0 + $0x50] sm:$0xff]
  %v25 = vld [vmem:[%s0 + $0x58] sm:$0xff]
  %v26 = vld [vmem:[%s0 + $0x60] sm:$0xff]
  %v27 = vld [vmem:[%s0 + $0x68] sm:$0xff]
  %v28 = vld [vmem:[%s0 + $0x70] sm:$0xff]
  %v29 = vld [vmem:[%s0 + $0x78] sm:$0xff]
  %v30 = vld [vmem:[%s1] sm:$0xff]
  %v31 = vld [vmem:[%s1 + $0x8] sm:$0xff]
  %v32 = vld [vmem:[%s2] sm:$0x1]
  %v34 = vlaneseq
  %v35 = vshrl.u32 %v34, 7
  %v36 = vsub.s32 0, %v35
  %v37 = vrot.slane %v32, %v36
  %vm39 = vcmask 130048
  %v41 = vsel %vm39, %v14, 0
  %v44 = vsel %vm39, %v15, 0
  %v47 = vsel %vm39, %v16, 0
  %v50 = vsel %vm39, %v17, 0
  %v53 = vsel %vm39, %v18, 0
  %v56 = vsel %vm39, %v19, 0
  %v59 = vsel %vm39, %v20, 0
  %v62 = vsel %vm39, %v21, 0
  %v65 = vsel %vm39, %v22, 0
  %v68 = vsel %vm39, %v23, 0
  %v71 = vsel %vm39, %v24, 0
  %v74 = vsel %vm39, %v25, 0
  %v77 = vsel %vm39, %v26, 0
  %v80 = vsel %vm39, %v27, 0
  %v83 = vsel %vm39, %v28, 0
  %v86 = vsel %vm39, %v29, 0
  %88 = vmatprep.subr.mxu0 0.0
  %89 = vmatpush1.msra.mxu0 %v30
  %90 = vmatprep.subr.mxu0 0.0
  %91 = vmatpush1.msra.mxu0 %v31
  %92 = vmatprep.subr.mxu0 0.0
  %93 = vmatpush1.msra.mxu0 0.0
  %94 = vmatprep.subr.mxu0 0.0
  %95 = vmatpush1.msra.mxu0 0.0
  %96 = vmatprep.subr.mxu0 0.0
  %97 = vmatpush1.msra.mxu0 0.0
  %98 = vmatprep.subr.mxu0 0.0
  %99 = vmatpush1.msra.mxu0 0.0
  %100 = vmatprep.subr.mxu0 0.0
  %101 = vmatpush1.msra.mxu0 0.0
  %102 = vmatprep.subr.mxu0 0.0
  %103 = vmatpush1.msra.mxu0 0.0
  %104 = vmatprep.subr.mxu0 0.0
  %105 = vmatpush1.msra.mxu0 0.0
  %106 = vmatprep.subr.mxu0 0.0
  %107 = vmatpush1.msra.mxu0 0.0
  %108 = vmatprep.subr.mxu0 0.0
  %109 = vmatpush1.msra.mxu0 0.0
  %110 = vmatprep.subr.mxu0 0.0
  %111 = vmatpush1.msra.mxu0 0.0
  %112 = vmatprep.subr.mxu0 0.0
  %113 = vmatpush1.msra.mxu0 0.0
  %114 = vmatprep.subr.mxu0 0.0
  %115 = vmatpush1.msra.mxu0 0.0
  %116 = vmatprep.subr.mxu0 0.0
  %117 = vmatpush1.msra.mxu0 0.0
  %118 = vmatprep.subr.mxu0 0.0
  %119 = vmatpush1.msra.mxu0 0.0
  %120 = vmatprep.subr.mxu0 0.0
  %121 = vmatpush1.msra.mxu0 0.0
  %122 = vmatprep.subr.mxu0 0.0
  %123 = vmatpush1.msra.mxu0 0.0
  %124 = vmatprep.subr.mxu0 0.0
  %125 = vmatpush1.msra.mxu0 0.0
  %126 = vmatprep.subr.mxu0 0.0
  %127 = vmatpush1.msra.mxu0 0.0
  %128 = vmatprep.subr.mxu0 0.0
  %129 = vmatpush1.msra.mxu0 0.0
  %130 = vmatprep.subr.mxu0 0.0
  %131 = vmatpush1.msra.mxu0 0.0
  %132 = vmatprep.subr.mxu0 0.0
  %133 = vmatpush1.msra.mxu0 0.0
  %134 = vmatprep.subr.mxu0 0.0
  %135 = vmatpush1.msra.mxu0 0.0
  %136 = vmatprep.subr.mxu0 0.0
  %137 = vmatpush1.msra.mxu0 0.0
  %138 = vmatprep.subr.mxu0 0.0
  %139 = vmatpush1.msra.mxu0 0.0
  %140 = vmatprep.subr.mxu0 0.0
  %141 = vmatpush1.msra.mxu0 0.0
  %142 = vmatprep.subr.mxu0 0.0
  %143 = vmatpush1.msra.mxu0 0.0
  %144 = vmatprep.subr.mxu0 0.0
  %145 = vmatpush1.msra.mxu0 0.0
  %146 = vmatprep.subr.mxu0 0.0
  %147 = vmatpush1.msra.mxu0 0.0
  %148 = vmatprep.subr.mxu0 0.0
  %149 = vmatpush1.msra.mxu0 0.0
  %150 = vmatprep.subr.mxu0 0.0
  %151 = vmatpush1.msra.mxu0 0.0
  %152 = vmatprep.mubr.f32.mxu0 0.0
  %153 = vmatmul.mubr.f32.gmra.mrb[0].mxu0 %v41
  %v154 = vpop.f32.mrb[0].mxu0
  %v155 = vadd.f32 %v37, %v154
  %v156 = vpop.f32.mrb[0].mxu0
  %157 = vmatprep.mubr.f32.mxu0 0.0
  %158 = vmatmul.mubr.f32.gmra.mrb[0].mxu0 %v44
  %v159 = vpop.f32.mrb[0].mxu0
  %v160 = vadd.f32 %v37, %v159
  %v161 = vpop.f32.mrb[0].mxu0
  %162 = vmatprep.mubr.f32.mxu0 0.0
  %163 = vmatmul.mubr.f32.gmra.mrb[0].mxu0 %v47
  %v164 = vpop.f32.mrb[0].mxu0
  %v165 = vadd.f32 %v37, %v164
  %v166 = vpop.f32.mrb[0].mxu0
  %167 = vmatprep.mubr.f32.mxu0 0.0
  %168 = vmatmul.mubr.f32.gmra.mrb[0].mxu0 %v50
  %v169 = vpop.f32.mrb[0].mxu0
  %v170 = vadd.f32 %v37, %v169
  %v171 = vpop.f32.mrb[0].mxu0
  %172 = vmatprep.mubr.f32.mxu0 0.0
  %173 = vmatmul.mubr.f32.gmra.mrb[0].mxu0 %v53
  %v174 = vpop.f32.mrb[0].mxu0
  %v175 = vadd.f32 %v37, %v174
  %v176 = vpop.f32.mrb[0].mxu0
  %177 = vmatprep.mubr.f32.mxu0 0.0
  %178 = vmatmul.mubr.f32.gmra.mrb[0].mxu0 %v56
  %v179 = vpop.f32.mrb[0].mxu0
  %v180 = vadd.f32 %v37, %v179
  %v181 = vpop.f32.mrb[0].mxu0
  %182 = vmatprep.mubr.f32.mxu0 0.0
  %183 = vmatmul.mubr.f32.gmra.mrb[0].mxu0 %v59
  %v184 = vpop.f32.mrb[0].mxu0
  %v185 = vadd.f32 %v37, %v184
  %v186 = vpop.f32.mrb[0].mxu0
  %187 = vmatprep.mubr.f32.mxu0 0.0
  %188 = vmatmul.mubr.f32.gmra.mrb[0].mxu0 %v62
  %v189 = vpop.f32.mrb[0].mxu0
  %v190 = vadd.f32 %v37, %v189
  %v191 = vpop.f32.mrb[0].mxu0
  %192 = vmatprep.mubr.f32.mxu0 0.0
  %193 = vmatmul.mubr.f32.gmra.mrb[0].mxu0 %v65
  %v194 = vpop.f32.mrb[0].mxu0
  %v195 = vadd.f32 %v37, %v194
  %v196 = vpop.f32.mrb[0].mxu0
  %197 = vmatprep.mubr.f32.mxu0 0.0
  %198 = vmatmul.mubr.f32.gmra.mrb[0].mxu0 %v68
  %v199 = vpop.f32.mrb[0].mxu0
  %v200 = vadd.f32 %v37, %v199
  %v201 = vpop.f32.mrb[0].mxu0
  %202 = vmatprep.mubr.f32.mxu0 0.0
  %203 = vmatmul.mubr.f32.gmra.mrb[0].mxu0 %v71
  %v204 = vpop.f32.mrb[0].mxu0
  %v205 = vadd.f32 %v37, %v204
  %v206 = vpop.f32.mrb[0].mxu0
  %207 = vmatprep.mubr.f32.mxu0 0.0
  %208 = vmatmul.mubr.f32.gmra.mrb[0].mxu0 %v74
  %v209 = vpop.f32.mrb[0].mxu0
  %v210 = vadd.f32 %v37, %v209
  %v211 = vpop.f32.mrb[0].mxu0
  %212 = vmatprep.mubr.f32.mxu0 0.0
  %213 = vmatmul.mubr.f32.gmra.mrb[0].mxu0 %v77
  %v214 = vpop.f32.mrb[0].mxu0
  %v215 = vadd.f32 %v37, %v214
  %v216 = vpop.f32.mrb[0].mxu0
  %217 = vmatprep.mubr.f32.mxu0 0.0
  %218 = vmatmul.mubr.f32.gmra.mrb[0].mxu0 %v80
  %v219 = vpop.f32.mrb[0].mxu0
  %v220 = vadd.f32 %v37, %v219
  %v221 = vpop.f32.mrb[0].mxu0
  %222 = vmatprep.mubr.f32.mxu0 0.0
  %223 = vmatmul.mubr.f32.gmra.mrb[0].mxu0 %v83
  %v224 = vpop.f32.mrb[0].mxu0
  %v225 = vadd.f32 %v37, %v224
  %v226 = vpop.f32.mrb[0].mxu0
  %227 = vmatprep.mubr.f32.mxu0 0.0
  %228 = vmatmul.mubr.f32.gmra.mrb[0].mxu0 %v86
  %v229 = vpop.f32.mrb[0].mxu0
  %v230 = vadd.f32 %v37, %v229
  %v231 = vpop.f32.mrb[0].mxu0
  %232 = vdwg.mxu0
  %233 = vst [vmem:[%s3] sm:$0xff] %v155
  %234 = vst [vmem:[%s3 + $0x8] sm:$0xff] %v160
  %235 = vst [vmem:[%s3 + $0x10] sm:$0xff] %v165
  %236 = vst [vmem:[%s3 + $0x18] sm:$0xff] %v170
  %237 = vst [vmem:[%s3 + $0x20] sm:$0xff] %v175
  %238 = vst [vmem:[%s3 + $0x28] sm:$0xff] %v180
  %239 = vst [vmem:[%s3 + $0x30] sm:$0xff] %v185
  %240 = vst [vmem:[%s3 + $0x38] sm:$0xff] %v190
  %241 = vst [vmem:[%s3 + $0x40] sm:$0xff] %v195
  %242 = vst [vmem:[%s3 + $0x48] sm:$0xff] %v200
  %243 = vst [vmem:[%s3 + $0x50] sm:$0xff] %v205
  %244 = vst [vmem:[%s3 + $0x58] sm:$0xff] %v210
  %245 = vst [vmem:[%s3 + $0x60] sm:$0xff] %v215
  %246 = vst [vmem:[%s3 + $0x68] sm:$0xff] %v220
  %247 = vst [vmem:[%s3 + $0x70] sm:$0xff] %v225
  %248 = vst [vmem:[%s3 + $0x78] sm:$0xff] %v230
  // Predicated region
  $region14: #{_lambda_.41} parent=0 // pred_check
    _
  $region15: #{_lambda_.41} parent=0 // pred_check_branch
    %250 = sbr.rel (0) target = $region17
  $region16: #{_lambda_.41} parent=0 // pred_region
    _
  $region17: #{_lambda_.41} parent=0 // pred_fallthru
    _
  // Predicated region
  $region18: #{_lambda_.41} parent=0 // pred_check
    _
  $region19: #{_lambda_.41} parent=0 // pred_check_branch
    %252 = sbr.rel (0) target = $region21
  $region20: #{_lambda_.41} parent=0 // pred_region
    _
  $region21: #{_lambda_.41} parent=0 // pred_fallthru
    _

// kernel: _lambda_.42
$region0: #{_lambda_.42}
  #allocation0 [shape = 'u32[]', space=smem, size = 0x4, offset = 0x4, fixed_abs, tag = 'smem constant byte address 0x4 - core index']
  #allocation1 [shape = 'u32[144,128]{1,0:T(1,128)}', space=vmem, size = 0x12000, scoped, tag = 'internal scratch']
  %s0 = inlined_call_operand.vmem [shape: f32[4,32,128], index: 0, kind: input, shape index: {}]
  %s1 = inlined_call_operand.vmem [shape: f32[32,128], index: 1, kind: input, shape index: {}]
  %s2 = inlined_call_operand.vmem [shape: f32[4,32,32], index: 2, kind: output, shape index: {}]
  %s3 = sld [smem:[#allocation0]]
  $region18: #{_lambda_.42} parent=0
    _
  %s5 = ssub.s32 1, %s3
  %s6 = scalar_select 0, %s5, %s3
  // Predicated region
  $region2: #{_lambda_.42} parent=0 // pred_check
    _
  $region3: #{_lambda_.42} parent=0 // pred_check_branch
    %8 = sbr.rel (0) target = $region5
  $region4: #{_lambda_.42} parent=0 // pred_region
    _
  $region5: #{_lambda_.42} parent=0 // pred_fallthru
    _
  // Predicated region
  $region6: #{_lambda_.42} parent=0 // pred_check
    _
  $region7: #{_lambda_.42} parent=0 // pred_check_branch
    %10 = sbr.rel (0) target = $region9
  $region8: #{_lambda_.42} parent=0 // pred_region
    _
  $region9: #{_lambda_.42} parent=0 // pred_fallthru
    _
  %v11 = vld [vmem:[%s1] sm:$0xff]
  %v12 = vld [vmem:[%s1 + $0x8] sm:$0xff]
  %v13 = vld [vmem:[%s1 + $0x10] sm:$0xff]
  %v14 = vld [vmem:[%s1 + $0x18] sm:$0xff]
  %v15 = vld [vmem:[%s0] sm:$0xff]
  %v16 = vld [vmem:[%s0 + $0x8] sm:$0xff]
  %v17 = vld [vmem:[%s0 + $0x10] sm:$0xff]
  %v18 = vld [vmem:[%s0 + $0x18] sm:$0xff]
  %vm19 = vcmask 261120
  %v21 = vsel %vm19, 0.0, 0
  %23 = vmatprep.subr.mxu0 0.0
  %24 = vmatpush1.msra.mxu0 %v11
  %25 = vmatprep.subr.mxu0 0.0
  %26 = vmatpush1.msra.mxu0 %v12
  %27 = vmatprep.subr.mxu0 0.0
  %28 = vmatpush1.msra.mxu0 %v13
  %29 = vmatprep.subr.mxu0 0.0
  %30 = vmatpush1.msra.mxu0 %v14
  %31 = vmatprep.subr.mxu0 0.0
  %32 = vmatpush1.msra.mxu0 0.0
  %33 = vmatprep.subr.mxu0 0.0
  %34 = vmatpush1.msra.mxu0 0.0
  %35 = vmatprep.subr.mxu0 0.0
  %36 = vmatpush1.msra.mxu0 0.0
  %37 = vmatprep.subr.mxu0 0.0
  %38 = vmatpush1.msra.mxu0 0.0
  %39 = vmatprep.subr.mxu0 0.0
  %40 = vmatpush1.msra.mxu0 0.0
  %41 = vmatprep.subr.mxu0 0.0
  %42 = vmatpush1.msra.mxu0 0.0
  %43 = vmatprep.subr.mxu0 0.0
  %44 = vmatpush1.msra.mxu0 0.0
  %45 = vmatprep.subr.mxu0 0.0
  %46 = vmatpush1.msra.mxu0 0.0
  %47 = vmatprep.subr.mxu0 0.0
  %48 = vmatpush1.msra.mxu0 0.0
  %49 = vmatprep.subr.mxu0 0.0
  %50 = vmatpush1.msra.mxu0 0.0
  %51 = vmatprep.subr.mxu0 0.0
  %52 = vmatpush1.msra.mxu0 0.0
  %53 = vmatprep.subr.mxu0 0.0
  %54 = vmatpush1.msra.mxu0 0.0
  %55 = vmatprep.subr.mxu0 0.0
  %56 = vmatpush1.msra.mxu0 0.0
  %57 = vmatprep.subr.mxu0 0.0
  %58 = vmatpush1.msra.mxu0 0.0
  %59 = vmatprep.subr.mxu0 0.0
  %60 = vmatpush1.msra.mxu0 0.0
  %61 = vmatprep.subr.mxu0 0.0
  %62 = vmatpush1.msra.mxu0 0.0
  %63 = vmatprep.subr.mxu0 0.0
  %64 = vmatpush1.msra.mxu0 0.0
  %65 = vmatprep.subr.mxu0 0.0
  %66 = vmatpush1.msra.mxu0 0.0
  %67 = vmatprep.subr.mxu0 0.0
  %68 = vmatpush1.msra.mxu0 0.0
  %69 = vmatprep.subr.mxu0 0.0
  %70 = vmatpush1.msra.mxu0 0.0
  %71 = vmatprep.subr.mxu0 0.0
  %72 = vmatpush1.msra.mxu0 0.0
  %73 = vmatprep.subr.mxu0 0.0
  %74 = vmatpush1.msra.mxu0 0.0
  %75 = vmatprep.subr.mxu0 0.0
  %76 = vmatpush1.msra.mxu0 0.0
  %77 = vmatprep.subr.mxu0 0.0
  %78 = vmatpush1.msra.mxu0 0.0
  %79 = vmatprep.subr.mxu0 0.0
  %80 = vmatpush1.msra.mxu0 0.0
  %81 = vmatprep.subr.mxu0 0.0
  %82 = vmatpush1.msra.mxu0 0.0
  %83 = vmatprep.subr.mxu0 0.0
  %84 = vmatpush1.msra.mxu0 0.0
  %85 = vmatprep.subr.mxu0 0.0
  %86 = vmatpush1.msra.mxu0 0.0
  %87 = vmatprep.mubr.f32.mxu0 0.0
  %88 = vmatmul.mubr.f32.gmra.mrb[0].mxu0 %v21
  %v89 = vpop.f32.mrb[0].mxu0
  %v90 = vadd.f32 0.0, %v89
  %v91 = vpop.f32.mrb[0].mxu0
  %92 = vmatprep.mubr.f32.mxu0 0.0
  %93 = vmatmul.mubr.f32.gmra.mrb[0].mxu0 %v21
  %v94 = vpop.f32.mrb[0].mxu0
  %v95 = vadd.f32 0.0, %v94
  %v96 = vpop.f32.mrb[0].mxu0
  %97 = vmatprep.mubr.f32.mxu0 0.0
  %98 = vmatmul.mubr.f32.gmra.mrb[0].mxu0 %v21
  %v99 = vpop.f32.mrb[0].mxu0
  %v100 = vadd.f32 0.0, %v99
  %v101 = vpop.f32.mrb[0].mxu0
  %102 = vmatprep.mubr.f32.mxu0 0.0
  %103 = vmatmul.mubr.f32.gmra.mrb[0].mxu0 %v21
  %v104 = vpop.f32.mrb[0].mxu0
  %v105 = vadd.f32 0.0, %v104
  %v106 = vpop.f32.mrb[0].mxu0
  %107 = vdwg.mxu0
  %v108 = vadd.f32 %v15, %v90
  %v109 = vadd.f32 %v16, %v95
  %v110 = vadd.f32 %v17, %v100
  %v111 = vadd.f32 %v18, %v105
  %v112 = vxor.u32 %v108, 2147483648
  %v113 = vxor.u32 %v109, 2147483648
  %v114 = vxor.u32 %v110, 2147483648
  %v115 = vxor.u32 %v111, 2147483648
  %v116 = vmul.f32 %v112, 1.442695
  %v117 = vpow.pop %v116
  %v118 = vmul.f32 %v113, 1.442695
  %v119 = vpow.pop %v118
  %v120 = vmul.f32 %v114, 1.442695
  %v121 = vpow.pop %v120
  %v122 = vmul.f32 %v115, 1.442695
  %v123 = vpow.pop %v122
  %v124 = vadd.f32 %v117, 1.0
  %v125 = vadd.f32 %v119, 1.0
  %v126 = vadd.f32 %v121, 1.0
  %v127 = vadd.f32 %v123, 1.0
  %v128 = vrcp.pop %v124
  %v129 = vmul.f32 1.0, %v128
  %v130 = vrcp.pop %v125
  %v131 = vmul.f32 1.0, %v130
  %v132 = vrcp.pop %v126
  %v133 = vmul.f32 1.0, %v132
  %v134 = vrcp.pop %v127
  %v135 = vmul.f32 1.0, %v134
  %v136 = vtanh.pop %v108
  %v137 = vtanh.pop %v109
  %v138 = vtanh.pop %v110
  %v139 = vtanh.pop %v111
  %v140 = vmul.f32 %v129, 0.0
  %v141 = vmul.f32 %v131, 0.0
  %v142 = vmul.f32 %v133, 0.0
  %v143 = vmul.f32 %v135, 0.0
  %148 = vrot.lane.b32.xlu0 %v136, 64
  %v149 = vpop.permute.xlu0 %148
  %150 = vrot.lane.b32.xlu0 %v137, 64
  %v151 = vpop.permute.xlu0 %150
  %152 = vrot.lane.b32.xlu0 %v138, 64
  %v153 = vpop.permute.xlu0 %152
  %154 = vrot.lane.b32.xlu0 %v139, 64
  %v155 = vpop.permute.xlu0 %154
  %v160 = vmul.f32 %v129, %v149
  %v161 = vmul.f32 %v131, %v151
  %v162 = vmul.f32 %v133, %v153
  %v163 = vmul.f32 %v135, %v155
  %168 = vrot.lane.b32.xlu0 %v160, 32
  %v169 = vpop.permute.xlu0 %168
  %170 = vrot.lane.b32.xlu0 %v161, 32
  %v171 = vpop.permute.xlu0 %170
  %172 = vrot.lane.b32.xlu0 %v162, 32
  %v173 = vpop.permute.xlu0 %172
  %174 = vrot.lane.b32.xlu0 %v163, 32
  %v175 = vpop.permute.xlu0 %174
  %v180 = vadd.f32 %v140, %v169
  %v181 = vadd.f32 %v141, %v171
  %v182 = vadd.f32 %v142, %v173
  %v183 = vadd.f32 %v143, %v175
  %v184 = vtanh.pop %v180
  %v185 = vtanh.pop %v181
  %v186 = vtanh.pop %v182
  %v187 = vtanh.pop %v183
  %192 = vrot.lane.b32.xlu0 %v184, 64
  %v193 = vpop.permute.xlu0 %192
  %194 = vrot.lane.b32.xlu0 %v185, 64
  %v195 = vpop.permute.xlu0 %194
  %196 = vrot.lane.b32.xlu0 %v186, 64
  %v197 = vpop.permute.xlu0 %196
  %198 = vrot.lane.b32.xlu0 %v187, 64
  %v199 = vpop.permute.xlu0 %198
  %v204 = vmul.f32 %v129, %v193
  %v205 = vmul.f32 %v131, %v195
  %v206 = vmul.f32 %v133, %v197
  %v207 = vmul.f32 %v135, %v199
  %212 = vrot.lane.b32.xlu0 %v204, 32
  %v213 = vpop.permute.xlu0 %212
  %214 = vrot.lane.b32.xlu0 %v205, 32
  %v215 = vpop.permute.xlu0 %214
  %216 = vrot.lane.b32.xlu0 %v206, 32
  %v217 = vpop.permute.xlu0 %216
  %218 = vrot.lane.b32.xlu0 %v207, 32
  %v219 = vpop.permute.xlu0 %218
  %224 = vst.msk [vmem:[%s2] sm:$0xff] %vm19, %v213
  %225 = vst.msk [vmem:[%s2 + $0x8] sm:$0xff] %vm19, %v215
  %226 = vst.msk [vmem:[%s2 + $0x10] sm:$0xff] %vm19, %v217
  %227 = vst.msk [vmem:[%s2 + $0x18] sm:$0xff] %vm19, %v219
  %s228 = scalar_lea.vmem %s0, 32
  %v229 = vld [vmem:[%s228] sm:$0xff]
  %v230 = vld [vmem:[%s228 + $0x8] sm:$0xff]
  %v231 = vld [vmem:[%s228 + $0x10] sm:$0xff]
  %v232 = vld [vmem:[%s228 + $0x18] sm:$0xff]
  %v233 = vsel %vm19, %v213, 0
  %v235 = vsel %vm19, %v215, 0
  %v237 = vsel %vm19, %v217, 0
  %v239 = vsel %vm19, %v219, 0
  %241 = vmatprep.subr.mxu0 0.0
  %242 = vmatpush1.msra.mxu0 %v11
  %243 = vmatprep.subr.mxu0 0.0
  %244 = vmatpush1.msra.mxu0 %v12
  %245 = vmatprep.subr.mxu0 0.0
  %246 = vmatpush1.msra.mxu0 %v13
  %247 = vmatprep.subr.mxu0 0.0
  %248 = vmatpush1.msra.mxu0 %v14
  %249 = vmatprep.subr.mxu0 0.0
  %250 = vmatpush1.msra.mxu0 0.0
  %251 = vmatprep.subr.mxu0 0.0
  %252 = vmatpush1.msra.mxu0 0.0
  %253 = vmatprep.subr.mxu0 0.0
  %254 = vmatpush1.msra.mxu0 0.0
  %255 = vmatprep.subr.mxu0 0.0
  %256 = vmatpush1.msra.mxu0 0.0
  %257 = vmatprep.subr.mxu0 0.0
  %258 = vmatpush1.msra.mxu0 0.0
  %259 = vmatprep.subr.mxu0 0.0
  %260 = vmatpush1.msra.mxu0 0.0
  %261 = vmatprep.subr.mxu0 0.0
  %262 = vmatpush1.msra.mxu0 0.0
  %263 = vmatprep.subr.mxu0 0.0
  %264 = vmatpush1.msra.mxu0 0.0
  %265 = vmatprep.subr.mxu0 0.0
  %266 = vmatpush1.msra.mxu0 0.0
  %267 = vmatprep.subr.mxu0 0.0
  %268 = vmatpush1.msra.mxu0 0.0
  %269 = vmatprep.subr.mxu0 0.0
  %270 = vmatpush1.msra.mxu0 0.0
  %271 = vmatprep.subr.mxu0 0.0
  %272 = vmatpush1.msra.mxu0 0.0
  %273 = vmatprep.subr.mxu0 0.0
  %274 = vmatpush1.msra.mxu0 0.0
  %275 = vmatprep.subr.mxu0 0.0
  %276 = vmatpush1.msra.mxu0 0.0
  %277 = vmatprep.subr.mxu0 0.0
  %278 = vmatpush1.msra.mxu0 0.0
  %279 = vmatprep.subr.mxu0 0.0
  %280 = vmatpush1.msra.mxu0 0.0
  %281 = vmatprep.subr.mxu0 0.0
  %282 = vmatpush1.msra.mxu0 0.0
  %283 = vmatprep.subr.mxu0 0.0
  %284 = vmatpush1.msra.mxu0 0.0
  %285 = vmatprep.subr.mxu0 0.0
  %286 = vmatpush1.msra.mxu0 0.0
  %287 = vmatprep.subr.mxu0 0.0
  %288 = vmatpush1.msra.mxu0 0.0
  %289 = vmatprep.subr.mxu0 0.0
  %290 = vmatpush1.msra.mxu0 0.0
  %291 = vmatprep.subr.mxu0 0.0
  %292 = vmatpush1.msra.mxu0 0.0
  %293 = vmatprep.subr.mxu0 0.0
  %294 = vmatpush1.msra.mxu0 0.0
  %295 = vmatprep.subr.mxu0 0.0
  %296 = vmatpush1.msra.mxu0 0.0
  %297 = vmatprep.subr.mxu0 0.0
  %298 = vmatpush1.msra.mxu0 0.0
  %299 = vmatprep.subr.mxu0 0.0
  %300 = vmatpush1.msra.mxu0 0.0
  %301 = vmatprep.subr.mxu0 0.0
  %302 = vmatpush1.msra.mxu0 0.0
  %303 = vmatprep.subr.mxu0 0.0
  %304 = vmatpush1.msra.mxu0 0.0
  %305 = vmatprep.mubr.f32.mxu0 0.0
  %306 = vmatmul.mubr.f32.gmra.mrb[0].mxu0 %v233
  %v307 = vpop.f32.mrb[0].mxu0
  %v308 = vadd.f32 0.0, %v307
  %v309 = vpop.f32.mrb[0].mxu0
  %310 = vmatprep.mubr.f32.mxu0 0.0
  %311 = vmatmul.mubr.f32.gmra.mrb[0].mxu0 %v235
  %v312 = vpop.f32.mrb[0].mxu0
  %v313 = vadd.f32 0.0, %v312
  %v314 = vpop.f32.mrb[0].mxu0
  %315 = vmatprep.mubr.f32.mxu0 0.0
  %316 = vmatmul.mubr.f32.gmra.mrb[0].mxu0 %v237
  %v317 = vpop.f32.mrb[0].mxu0
  %v318 = vadd.f32 0.0, %v317
  %v319 = vpop.f32.mrb[0].mxu0
  %320 = vmatprep.mubr.f32.mxu0 0.0
  %321 = vmatmul.mubr.f32.gmra.mrb[0].mxu0 %v239
  %v322 = vpop.f32.mrb[0].mxu0
  %v323 = vadd.f32 0.0, %v322
  %v324 = vpop.f32.mrb[0].mxu0
  %325 = vdwg.mxu0
  %v326 = vadd.f32 %v229, %v308
  %v327 = vadd.f32 %v230, %v313
  %v328 = vadd.f32 %v231, %v318
  %v329 = vadd.f32 %v232, %v323
  %v330 = vxor.u32 %v326, 2147483648
  %v331 = vxor.u32 %v327, 2147483648
  %v332 = vxor.u32 %v328, 2147483648
  %v333 = vxor.u32 %v329, 2147483648
  %v334 = vmul.f32 %v330, 1.442695
  %v335 = vpow.pop %v334
  %v336 = vmul.f32 %v331, 1.442695
  %v337 = vpow.pop %v336
  %v338 = vmul.f32 %v332, 1.442695
  %v339 = vpow.pop %v338
  %v340 = vmul.f32 %v333, 1.442695
  %v341 = vpow.pop %v340
  %v342 = vadd.f32 %v335, 1.0
  %v343 = vadd.f32 %v337, 1.0
  %v344 = vadd.f32 %v339, 1.0
  %v345 = vadd.f32 %v341, 1.0
  %v346 = vrcp.pop %v342
  %v347 = vmul.f32 1.0, %v346
  %v348 = vrcp.pop %v343
  %v349 = vmul.f32 1.0, %v348
  %v350 = vrcp.pop %v344
  %v351 = vmul.f32 1.0, %v350
  %v352 = vrcp.pop %v345
  %v353 = vmul.f32 1.0, %v352
  %v354 = vtanh.pop %v326
  %v355 = vtanh.pop %v327
  %v356 = vtanh.pop %v328
  %v357 = vtanh.pop %v329
  %v358 = vmul.f32 %v347, %v180
  %v359 = vmul.f32 %v349, %v181
  %v360 = vmul.f32 %v351, %v182
  %v361 = vmul.f32 %v353, %v183
  %366 = vrot.lane.b32.xlu0 %v354, 64
  %v367 = vpop.permute.xlu0 %366
  %368 = vrot.lane.b32.xlu0 %v355, 64
  %v369 = vpop.permute.xlu0 %368
  %370 = vrot.lane.b32.xlu0 %v356, 64
  %v371 = vpop.permute.xlu0 %370
  %372 = vrot.lane.b32.xlu0 %v357, 64
  %v373 = vpop.permute.xlu0 %372
  %v378 = vmul.f32 %v347, %v367
  %v379 = vmul.f32 %v349, %v369
  %v380 = vmul.f32 %v351, %v371
  %v381 = vmul.f32 %v353, %v373
  %386 = vrot.lane.b32.xlu0 %v378, 32
  %v387 = vpop.permute.xlu0 %386
  %388 = vrot.lane.b32.xlu0 %v379, 32
  %v389 = vpop.permute.xlu0 %388
  %390 = vrot.lane.b32.xlu0 %v380, 32
  %v391 = vpop.permute.xlu0 %390
  %392 = vrot.lane.b32.xlu0 %v381, 32
  %v393 = vpop.permute.xlu0 %392
  %v398 = vadd.f32 %v358, %v387
  %v399 = vadd.f32 %v359, %v389
  %v400 = vadd.f32 %v360, %v391
  %v401 = vadd.f32 %v361, %v393
  %v402 = vtanh.pop %v398
  %v403 = vtanh.pop %v399
  %v404 = vtanh.pop %v400
  %v405 = vtanh.pop %v401
  %410 = vrot.lane.b32.xlu0 %v402, 64
  %v411 = vpop.permute.xlu0 %410
  %412 = vrot.lane.b32.xlu0 %v403, 64
  %v413 = vpop.permute.xlu0 %412
  %414 = vrot.lane.b32.xlu0 %v404, 64
  %v415 = vpop.permute.xlu0 %414
  %416 = vrot.lane.b32.xlu0 %v405, 64
  %v417 = vpop.permute.xlu0 %416
  %v422 = vmul.f32 %v347, %v411
  %v423 = vmul.f32 %v349, %v413
  %v424 = vmul.f32 %v351, %v415
  %v425 = vmul.f32 %v353, %v417
  %430 = vrot.lane.b32.xlu0 %v422, 32
  %v431 = vpop.permute.xlu0 %430
  %432 = vrot.lane.b32.xlu0 %v423, 32
  %v433 = vpop.permute.xlu0 %432
  %434 = vrot.lane.b32.xlu0 %v424, 32
  %v435 = vpop.permute.xlu0 %434
  %436 = vrot.lane.b32.xlu0 %v425, 32
  %v437 = vpop.permute.xlu0 %436
  %s442 = scalar_lea.vmem %s2, 32
  %443 = vst.msk [vmem:[%s442] sm:$0xff] %vm19, %v431
  %444 = vst.msk [vmem:[%s442 + $0x8] sm:$0xff] %vm19, %v433
  %445 = vst.msk [vmem:[%s442 + $0x10] sm:$0xff] %vm19, %v435
  %446 = vst.msk [vmem:[%s442 + $0x18] sm:$0xff] %vm19, %v437
  %s447 = scalar_lea.vmem %s0, 64
  %v448 = vld [vmem:[%s447] sm:$0xff]
  %v449 = vld [vmem:[%s447 + $0x8] sm:$0xff]
  %v450 = vld [vmem:[%s447 + $0x10] sm:$0xff]
  %v451 = vld [vmem:[%s447 + $0x18] sm:$0xff]
  %v452 = vsel %vm19, %v431, 0
  %v454 = vsel %vm19, %v433, 0
  %v456 = vsel %vm19, %v435, 0
  %v458 = vsel %vm19, %v437, 0
  %460 = vmatprep.subr.mxu0 0.0
  %461 = vmatpush1.msra.mxu0 %v11
  %462 = vmatprep.subr.mxu0 0.0
  %463 = vmatpush1.msra.mxu0 %v12
  %464 = vmatprep.subr.mxu0 0.0
  %465 = vmatpush1.msra.mxu0 %v13
  %466 = vmatprep.subr.mxu0 0.0
  %467 = vmatpush1.msra.mxu0 %v14
  %468 = vmatprep.subr.mxu0 0.0
  %469 = vmatpush1.msra.mxu0 0.0
  %470 = vmatprep.subr.mxu0 0.0
  %471 = vmatpush1.msra.mxu0 0.0
  %472 = vmatprep.subr.mxu0 0.0
  %473 = vmatpush1.msra.mxu0 0.0
  %474 = vmatprep.subr.mxu0 0.0
  %475 = vmatpush1.msra.mxu0 0.0
  %476 = vmatprep.subr.mxu0 0.0
  %477 = vmatpush1.msra.mxu0 0.0
  %478 = vmatprep.subr.mxu0 0.0
  %479 = vmatpush1.msra.mxu0 0.0
  %480 = vmatprep.subr.mxu0 0.0
  %481 = vmatpush1.msra.mxu0 0.0
  %482 = vmatprep.subr.mxu0 0.0
  %483 = vmatpush1.msra.mxu0 0.0
  %484 = vmatprep.subr.mxu0 0.0
  %485 = vmatpush1.msra.mxu0 0.0
  %486 = vmatprep.subr.mxu0 0.0
  %487 = vmatpush1.msra.mxu0 0.0
  %488 = vmatprep.subr.mxu0 0.0
  %489 = vmatpush1.msra.mxu0 0.0
  %490 = vmatprep.subr.mxu0 0.0
  %491 = vmatpush1.msra.mxu0 0.0
  %492 = vmatprep.subr.mxu0 0.0
  %493 = vmatpush1.msra.mxu0 0.0
  %494 = vmatprep.subr.mxu0 0.0
  %495 = vmatpush1.msra.mxu0 0.0
  %496 = vmatprep.subr.mxu0 0.0
  %497 = vmatpush1.msra.mxu0 0.0
  %498 = vmatprep.subr.mxu0 0.0
  %499 = vmatpush1.msra.mxu0 0.0
  %500 = vmatprep.subr.mxu0 0.0
  %501 = vmatpush1.msra.mxu0 0.0
  %502 = vmatprep.subr.mxu0 0.0
  %503 = vmatpush1.msra.mxu0 0.0
  %504 = vmatprep.subr.mxu0 0.0
  %505 = vmatpush1.msra.mxu0 0.0
  %506 = vmatprep.subr.mxu0 0.0
  %507 = vmatpush1.msra.mxu0 0.0
  %508 = vmatprep.subr.mxu0 0.0
  %509 = vmatpush1.msra.mxu0 0.0
  %510 = vmatprep.subr.mxu0 0.0
  %511 = vmatpush1.msra.mxu0 0.0
  %512 = vmatprep.subr.mxu0 0.0
  %513 = vmatpush1.msra.mxu0 0.0
  %514 = vmatprep.subr.mxu0 0.0
  %515 = vmatpush1.msra.mxu0 0.0
  %516 = vmatprep.subr.mxu0 0.0
  %517 = vmatpush1.msra.mxu0 0.0
  %518 = vmatprep.subr.mxu0 0.0
  %519 = vmatpush1.msra.mxu0 0.0
  %520 = vmatprep.subr.mxu0 0.0
  %521 = vmatpush1.msra.mxu0 0.0
  %522 = vmatprep.subr.mxu0 0.0
  %523 = vmatpush1.msra.mxu0 0.0
  %524 = vmatprep.mubr.f32.mxu0 0.0
  %525 = vmatmul.mubr.f32.gmra.mrb[0].mxu0 %v452
  %v526 = vpop.f32.mrb[0].mxu0
  %v527 = vadd.f32 0.0, %v526
  %v528 = vpop.f32.mrb[0].mxu0
  %529 = vmatprep.mubr.f32.mxu0 0.0
  %530 = vmatmul.mubr.f32.gmra.mrb[0].mxu0 %v454
  %v531 = vpop.f32.mrb[0].mxu0
  %v532 = vadd.f32 0.0, %v531
  %v533 = vpop.f32.mrb[0].mxu0
  %534 = vmatprep.mubr.f32.mxu0 0.0
  %535 = vmatmul.mubr.f32.gmra.mrb[0].mxu0 %v456
  %v536 = vpop.f32.mrb[0].mxu0
  %v537 = vadd.f32 0.0, %v536
  %v538 = vpop.f32.mrb[0].mxu0
  %539 = vmatprep.mubr.f32.mxu0 0.0
  %540 = vmatmul.mubr.f32.gmra.mrb[0].mxu0 %v458
  %v541 = vpop.f32.mrb[0].mxu0
  %v542 = vadd.f32 0.0, %v541
  %v543 = vpop.f32.mrb[0].mxu0
  %544 = vdwg.mxu0
  %v545 = vadd.f32 %v448, %v527
  %v546 = vadd.f32 %v449, %v532
  %v547 = vadd.f32 %v450, %v537
  %v548 = vadd.f32 %v451, %v542
  %v549 = vxor.u32 %v545, 2147483648
  %v550 = vxor.u32 %v546, 2147483648
  %v551 = vxor.u32 %v547, 2147483648
  %v552 = vxor.u32 %v548, 2147483648
  %v553 = vmul.f32 %v549, 1.442695
  %v554 = vpow.pop %v553
  %v555 = vmul.f32 %v550, 1.442695
  %v556 = vpow.pop %v555
  %v557 = vmul.f32 %v551, 1.442695
  %v558 = vpow.pop %v557
  %v559 = vmul.f32 %v552, 1.442695
  %v560 = vpow.pop %v559
  %v561 = vadd.f32 %v554, 1.0
  %v562 = vadd.f32 %v556, 1.0
  %v563 = vadd.f32 %v558, 1.0
  %v564 = vadd.f32 %v560, 1.0
  %v565 = vrcp.pop %v561
  %v566 = vmul.f32 1.0, %v565
  %v567 = vrcp.pop %v562
  %v568 = vmul.f32 1.0, %v567
  %v569 = vrcp.pop %v563
  %v570 = vmul.f32 1.0, %v569
  %v571 = vrcp.pop %v564
  %v572 = vmul.f32 1.0, %v571
  %v573 = vtanh.pop %v545
  %v574 = vtanh.pop %v546
  %v575 = vtanh.pop %v547
  %v576 = vtanh.pop %v548
  %v577 = vmul.f32 %v566, %v398
  %v578 = vmul.f32 %v568, %v399
  %v579 = vmul.f32 %v570, %v400
  %v580 = vmul.f32 %v572, %v401
  %585 = vrot.lane.b32.xlu0 %v573, 64
  %v586 = vpop.permute.xlu0 %585
  %587 = vrot.lane.b32.xlu0 %v574, 64
  %v588 = vpop.permute.xlu0 %587
  %589 = vrot.lane.b32.xlu0 %v575, 64
  %v590 = vpop.permute.xlu0 %589
  %591 = vrot.lane.b32.xlu0 %v576, 64
  %v592 = vpop.permute.xlu0 %591
  %v597 = vmul.f32 %v566, %v586
  %v598 = vmul.f32 %v568, %v588
  %v599 = vmul.f32 %v570, %v590
  %v600 = vmul.f32 %v572, %v592
  %605 = vrot.lane.b32.xlu0 %v597, 32
  %v606 = vpop.permute.xlu0 %605
  %607 = vrot.lane.b32.xlu0 %v598, 32
  %v608 = vpop.permute.xlu0 %607
  %609 = vrot.lane.b32.xlu0 %v599, 32
  %v610 = vpop.permute.xlu0 %609
  %611 = vrot.lane.b32.xlu0 %v600, 32
  %v612 = vpop.permute.xlu0 %611
  %v617 = vadd.f32 %v577, %v606
  %v618 = vadd.f32 %v578, %v608
  %v619 = vadd.f32 %v579, %v610
  %v620 = vadd.f32 %v580, %v612
  %v621 = vtanh.pop %v617
  %v622 = vtanh.pop %v618
  %v623 = vtanh.pop %v619
  %v624 = vtanh.pop %v620
  %629 = vrot.lane.b32.xlu0 %v621, 64
  %v630 = vpop.permute.xlu0 %629
  %631 = vrot.lane.b32.xlu0 %v622, 64
  %v632 = vpop.permute.xlu0 %631
  %633 = vrot.lane.b32.xlu0 %v623, 64
  %v634 = vpop.permute.xlu0 %633
  %635 = vrot.lane.b32.xlu0 %v624, 64
  %v636 = vpop.permute.xlu0 %635
  %v641 = vmul.f32 %v566, %v630
  %v642 = vmul.f32 %v568, %v632
  %v643 = vmul.f32 %v570, %v634
  %v644 = vmul.f32 %v572, %v636
  %649 = vrot.lane.b32.xlu0 %v641, 32
  %v650 = vpop.permute.xlu0 %649
  %651 = vrot.lane.b32.xlu0 %v642, 32
  %v652 = vpop.permute.xlu0 %651
  %653 = vrot.lane.b32.xlu0 %v643, 32
  %v654 = vpop.permute.xlu0 %653
  %655 = vrot.lane.b32.xlu0 %v644, 32
  %v656 = vpop.permute.xlu0 %655
  %s661 = scalar_lea.vmem %s2, 64
  %662 = vst.msk [vmem:[%s661] sm:$0xff] %vm19, %v650
  %663 = vst.msk [vmem:[%s661 + $0x8] sm:$0xff] %vm19, %v652
  %664 = vst.msk [vmem:[%s661 + $0x10] sm:$0xff] %vm19, %v654
  %665 = vst.msk [vmem:[%s661 + $0x18] sm:$0xff] %vm19, %v656
  %s666 = scalar_lea.vmem %s0, 96
  %v667 = vld [vmem:[%s666] sm:$0xff]
  %v668 = vld [vmem:[%s666 + $0x8] sm:$0xff]
  %v669 = vld [vmem:[%s666 + $0x10] sm:$0xff]
  %v670 = vld [vmem:[%s666 + $0x18] sm:$0xff]
  %v671 = vsel %vm19, %v650, 0
  %v673 = vsel %vm19, %v652, 0
  %v675 = vsel %vm19, %v654, 0
  %v677 = vsel %vm19, %v656, 0
  %679 = vmatprep.subr.mxu0 0.0
  %680 = vmatpush1.msra.mxu0 %v11
  %681 = vmatprep.subr.mxu0 0.0
  %682 = vmatpush1.msra.mxu0 %v12
  %683 = vmatprep.subr.mxu0 0.0
  %684 = vmatpush1.msra.mxu0 %v13
  %685 = vmatprep.subr.mxu0 0.0
  %686 = vmatpush1.msra.mxu0 %v14
  %687 = vmatprep.subr.mxu0 0.0
  %688 = vmatpush1.msra.mxu0 0.0
  %689 = vmatprep.subr.mxu0 0.0
  %690 = vmatpush1.msra.mxu0 0.0
  %691 = vmatprep.subr.mxu0 0.0
  %692 = vmatpush1.msra.mxu0 0.0
  %693 = vmatprep.subr.mxu0 0.0
  %694 = vmatpush1.msra.mxu0 0.0
  %695 = vmatprep.subr.mxu0 0.0
  %696 = vmatpush1.msra.mxu0 0.0
  %697 = vmatprep.subr.mxu0 0.0
  %698 = vmatpush1.msra.mxu0 0.0
  %699 = vmatprep.subr.mxu0 0.0
  %700 = vmatpush1.msra.mxu0 0.0
  %701 = vmatprep.subr.mxu0 0.0
  %702 = vmatpush1.msra.mxu0 0.0
  %703 = vmatprep.subr.mxu0 0.0
  %704 = vmatpush1.msra.mxu0 0.0
  %705 = vmatprep.subr.mxu0 0.0
  %706 = vmatpush1.msra.mxu0 0.0
  %707 = vmatprep.subr.mxu0 0.0
  %708 = vmatpush1.msra.mxu0 0.0
  %709 = vmatprep.subr.mxu0 0.0
  %710 = vmatpush1.msra.mxu0 0.0
  %711 = vmatprep.subr.mxu0 0.0
  %712 = vmatpush1.msra.mxu0 0.0
  %713 = vmatprep.subr.mxu0 0.0
  %714 = vmatpush1.msra.mxu0 0.0
  %715 = vmatprep.subr.mxu0 0.0
  %716 = vmatpush1.msra.mxu0 0.0
  %717 = vmatprep.subr.mxu0 0.0
  %718 = vmatpush1.msra.mxu0 0.0
  %719 = vmatprep.subr.mxu0 0.0
  %720 = vmatpush1.msra.mxu0 0.0
  %721 = vmatprep.subr.mxu0 0.0
  %722 = vmatpush1.msra.mxu0 0.0
  %723 = vmatprep.subr.mxu0 0.0
  %724 = vmatpush1.msra.mxu0 0.0
  %725 = vmatprep.subr.mxu0 0.0
  %726 = vmatpush1.msra.mxu0 0.0
  %727 = vmatprep.subr.mxu0 0.0
  %728 = vmatpush1.msra.mxu0 0.0
  %729 = vmatprep.subr.mxu0 0.0
  %730 = vmatpush1.msra.mxu0 0.0
  %731 = vmatprep.subr.mxu0 0.0
  %732 = vmatpush1.msra.mxu0 0.0
  %733 = vmatprep.subr.mxu0 0.0
  %734 = vmatpush1.msra.mxu0 0.0
  %735 = vmatprep.subr.mxu0 0.0
  %736 = vmatpush1.msra.mxu0 0.0
  %737 = vmatprep.subr.mxu0 0.0
  %738 = vmatpush1.msra.mxu0 0.0
  %739 = vmatprep.subr.mxu0 0.0
  %740 = vmatpush1.msra.mxu0 0.0
  %741 = vmatprep.subr.mxu0 0.0
  %742 = vmatpush1.msra.mxu0 0.0
  %743 = vmatprep.mubr.f32.mxu0 0.0
  %744 = vmatmul.mubr.f32.gmra.mrb[0].mxu0 %v671
  %v745 = vpop.f32.mrb[0].mxu0
  %v746 = vadd.f32 0.0, %v745
  %v747 = vpop.f32.mrb[0].mxu0
  %748 = vmatprep.mubr.f32.mxu0 0.0
  %749 = vmatmul.mubr.f32.gmra.mrb[0].mxu0 %v673
  %v750 = vpop.f32.mrb[0].mxu0
  %v751 = vadd.f32 0.0, %v750
  %v752 = vpop.f32.mrb[0].mxu0
  %753 = vmatprep.mubr.f32.mxu0 0.0
  %754 = vmatmul.mubr.f32.gmra.mrb[0].mxu0 %v675
  %v755 = vpop.f32.mrb[0].mxu0
  %v756 = vadd.f32 0.0, %v755
  %v757 = vpop.f32.mrb[0].mxu0
  %758 = vmatprep.mubr.f32.mxu0 0.0
  %759 = vmatmul.mubr.f32.gmra.mrb[0].mxu0 %v677
  %v760 = vpop.f32.mrb[0].mxu0
  %v761 = vadd.f32 0.0, %v760
  %v762 = vpop.f32.mrb[0].mxu0
  %763 = vdwg.mxu0
  %v764 = vadd.f32 %v667, %v746
  %v765 = vadd.f32 %v668, %v751
  %v766 = vadd.f32 %v669, %v756
  %v767 = vadd.f32 %v670, %v761
  %v768 = vxor.u32 %v764, 2147483648
  %v769 = vxor.u32 %v765, 2147483648
  %v770 = vxor.u32 %v766, 2147483648
  %v771 = vxor.u32 %v767, 2147483648
  %v772 = vmul.f32 %v768, 1.442695
  %v773 = vpow.pop %v772
  %v774 = vmul.f32 %v769, 1.442695
  %v775 = vpow.pop %v774
  %v776 = vmul.f32 %v770, 1.442695
  %v777 = vpow.pop %v776
  %v778 = vmul.f32 %v771, 1.442695
  %v779 = vpow.pop %v778
  %v780 = vadd.f32 %v773, 1.0
  %v781 = vadd.f32 %v775, 1.0
  %v782 = vadd.f32 %v777, 1.0
  %v783 = vadd.f32 %v779, 1.0
  %v784 = vrcp.pop %v780
  %v785 = vmul.f32 1.0, %v784
  %v786 = vrcp.pop %v781
  %v787 = vmul.f32 1.0, %v786
  %v788 = vrcp.pop %v782
  %v789 = vmul.f32 1.0, %v788
  %v790 = vrcp.pop %v783
  %v791 = vmul.f32 1.0, %v790
  %v792 = vtanh.pop %v764
  %v793 = vtanh.pop %v765
  %v794 = vtanh.pop %v766
  %v795 = vtanh.pop %v767
  %v796 = vmul.f32 %v785, %v617
  %v797 = vmul.f32 %v787, %v618
  %v798 = vmul.f32 %v789, %v619
  %v799 = vmul.f32 %v791, %v620
  %804 = vrot.lane.b32.xlu0 %v792, 64
  %v805 = vpop.permute.xlu0 %804
  %806 = vrot.lane.b32.xlu0 %v793, 64
  %v807 = vpop.permute.xlu0 %806
  %808 = vrot.lane.b32.xlu0 %v794, 64
  %v809 = vpop.permute.xlu0 %808
  %810 = vrot.lane.b32.xlu0 %v795, 64
  %v811 = vpop.permute.xlu0 %810
  %v816 = vmul.f32 %v785, %v805
  %v817 = vmul.f32 %v787, %v807
  %v818 = vmul.f32 %v789, %v809
  %v819 = vmul.f32 %v791, %v811
  %824 = vrot.lane.b32.xlu0 %v816, 32
  %v825 = vpop.permute.xlu0 %824
  %826 = vrot.lane.b32.xlu0 %v817, 32
  %v827 = vpop.permute.xlu0 %826
  %828 = vrot.lane.b32.xlu0 %v818, 32
  %v829 = vpop.permute.xlu0 %828
  %830 = vrot.lane.b32.xlu0 %v819, 32
  %v831 = vpop.permute.xlu0 %830
  %v836 = vadd.f32 %v796, %v825
  %v837 = vadd.f32 %v797, %v827
  %v838 = vadd.f32 %v798, %v829
  %v839 = vadd.f32 %v799, %v831
  %v840 = vtanh.pop %v836
  %v841 = vtanh.pop %v837
  %v842 = vtanh.pop %v838
  %v843 = vtanh.pop %v839
  %848 = vrot.lane.b32.xlu0 %v840, 64
  %v849 = vpop.permute.xlu0 %848
  %850 = vrot.lane.b32.xlu0 %v841, 64
  %v851 = vpop.permute.xlu0 %850
  %852 = vrot.lane.b32.xlu0 %v842, 64
  %v853 = vpop.permute.xlu0 %852
  %854 = vrot.lane.b32.xlu0 %v843, 64
  %v855 = vpop.permute.xlu0 %854
  %v860 = vmul.f32 %v785, %v849
  %v861 = vmul.f32 %v787, %v851
  %v862 = vmul.f32 %v789, %v853
  %v863 = vmul.f32 %v791, %v855
  %868 = vrot.lane.b32.xlu0 %v860, 32
  %v869 = vpop.permute.xlu0 %868
  %870 = vrot.lane.b32.xlu0 %v861, 32
  %v871 = vpop.permute.xlu0 %870
  %872 = vrot.lane.b32.xlu0 %v862, 32
  %v873 = vpop.permute.xlu0 %872
  %874 = vrot.lane.b32.xlu0 %v863, 32
  %v875 = vpop.permute.xlu0 %874
  %s880 = scalar_lea.vmem %s2, 96
  %881 = vst.msk [vmem:[%s880] sm:$0xff] %vm19, %v869
  %882 = vst.msk [vmem:[%s880 + $0x8] sm:$0xff] %vm19, %v871
  %883 = vst.msk [vmem:[%s880 + $0x10] sm:$0xff] %vm19, %v873
  %884 = vst.msk [vmem:[%s880 + $0x18] sm:$0xff] %vm19, %v875
  // Predicated region
  $region10: #{_lambda_.42} parent=0 // pred_check
    _
  $region11: #{_lambda_.42} parent=0 // pred_check_branch
    %886 = sbr.rel (0) target = $region13
  $region12: #{_lambda_.42} parent=0 // pred_region
    _
  $region13: #{_lambda_.42} parent=0 // pred_fallthru
    _
  // Predicated region
  $region14: #{_lambda_.42} parent=0 // pred_check
    _
  $region15: #{_lambda_.42} parent=0 // pred_check_branch
    %888 = sbr.rel (0) target = $region17
  $region16: #{_lambda_.42} parent=0 // pred_region
    _
  $region17: #{_lambda_.42} parent=0 // pred_fallthru
    _

// kernel: _lambda_.43
$region0: #{_lambda_.43}
  #allocation0 [shape = 'u32[]', space=smem, size = 0x4, offset = 0x4, fixed_abs, tag = 'smem constant byte address 0x4 - core index']
  #allocation1 [shape = 'u32[144,128]{1,0:T(1,128)}', space=vmem, size = 0x12000, scoped, tag = 'internal scratch']
  %s0 = inlined_call_operand.vmem [shape: f32[128,32], index: 0, kind: input, shape index: {}]
  %s1 = inlined_call_operand.vmem [shape: f32[32,16], index: 1, kind: input, shape index: {}]
  %s2 = inlined_call_operand.vmem [shape: f32[1,16], index: 2, kind: input, shape index: {}]
  %s3 = inlined_call_operand.vmem [shape: f32[128,16], index: 3, kind: output, shape index: {}]
  %s4 = sld [smem:[#allocation0]]
  $region22: #{_lambda_.43} parent=0
    _
  %s6 = ssub.s32 1, %s4
  %s7 = scalar_select 0, %s6, %s4
  // Predicated region
  $region2: #{_lambda_.43} parent=0 // pred_check
    _
  $region3: #{_lambda_.43} parent=0 // pred_check_branch
    %9 = sbr.rel (0) target = $region5
  $region4: #{_lambda_.43} parent=0 // pred_region
    _
  $region5: #{_lambda_.43} parent=0 // pred_fallthru
    _
  // Predicated region
  $region6: #{_lambda_.43} parent=0 // pred_check
    _
  $region7: #{_lambda_.43} parent=0 // pred_check_branch
    %11 = sbr.rel (0) target = $region9
  $region8: #{_lambda_.43} parent=0 // pred_region
    _
  $region9: #{_lambda_.43} parent=0 // pred_fallthru
    _
  // Predicated region
  $region10: #{_lambda_.43} parent=0 // pred_check
    _
  $region11: #{_lambda_.43} parent=0 // pred_check_branch
    %13 = sbr.rel (0) target = $region13
  $region12: #{_lambda_.43} parent=0 // pred_region
    _
  $region13: #{_lambda_.43} parent=0 // pred_fallthru
    _
  %v14 = vld [vmem:[%s0] sm:$0xff]
  %v15 = vld [vmem:[%s0 + $0x8] sm:$0xff]
  %v16 = vld [vmem:[%s0 + $0x10] sm:$0xff]
  %v17 = vld [vmem:[%s0 + $0x18] sm:$0xff]
  %v18 = vld [vmem:[%s0 + $0x20] sm:$0xff]
  %v19 = vld [vmem:[%s0 + $0x28] sm:$0xff]
  %v20 = vld [vmem:[%s0 + $0x30] sm:$0xff]
  %v21 = vld [vmem:[%s0 + $0x38] sm:$0xff]
  %v22 = vld [vmem:[%s0 + $0x40] sm:$0xff]
  %v23 = vld [vmem:[%s0 + $0x48] sm:$0xff]
  %v24 = vld [vmem:[%s0 + $0x50] sm:$0xff]
  %v25 = vld [vmem:[%s0 + $0x58] sm:$0xff]
  %v26 = vld [vmem:[%s0 + $0x60] sm:$0xff]
  %v27 = vld [vmem:[%s0 + $0x68] sm:$0xff]
  %v28 = vld [vmem:[%s0 + $0x70] sm:$0xff]
  %v29 = vld [vmem:[%s0 + $0x78] sm:$0xff]
  %v30 = vld [vmem:[%s1] sm:$0xff]
  %v31 = vld [vmem:[%s1 + $0x8] sm:$0xff]
  %v32 = vld [vmem:[%s1 + $0x10] sm:$0xff]
  %v33 = vld [vmem:[%s1 + $0x18] sm:$0xff]
  %v34 = vld [vmem:[%s2] sm:$0x1]
  %v36 = vlaneseq
  %v37 = vshrl.u32 %v36, 7
  %v38 = vsub.s32 0, %v37
  %v39 = vrot.slane %v34, %v38
  %vm41 = vcmask 261120
  %v43 = vsel %vm41, %v14, 0
  %v46 = vsel %vm41, %v15, 0
  %v49 = vsel %vm41, %v16, 0
  %v52 = vsel %vm41, %v17, 0
  %v55 = vsel %vm41, %v18, 0
  %v58 = vsel %vm41, %v19, 0
  %v61 = vsel %vm41, %v20, 0
  %v64 = vsel %vm41, %v21, 0
  %v67 = vsel %vm41, %v22, 0
  %v70 = vsel %vm41, %v23, 0
  %v73 = vsel %vm41, %v24, 0
  %v76 = vsel %vm41, %v25, 0
  %v79 = vsel %vm41, %v26, 0
  %v82 = vsel %vm41, %v27, 0
  %v85 = vsel %vm41, %v28, 0
  %v88 = vsel %vm41, %v29, 0
  %90 = vmatprep.subr.mxu0 0.0
  %91 = vmatpush1.msra.mxu0 %v30
  %92 = vmatprep.subr.mxu0 0.0
  %93 = vmatpush1.msra.mxu0 %v31
  %94 = vmatprep.subr.mxu0 0.0
  %95 = vmatpush1.msra.mxu0 %v32
  %96 = vmatprep.subr.mxu0 0.0
  %97 = vmatpush1.msra.mxu0 %v33
  %98 = vmatprep.subr.mxu0 0.0
  %99 = vmatpush1.msra.mxu0 0.0
  %100 = vmatprep.subr.mxu0 0.0
  %101 = vmatpush1.msra.mxu0 0.0
  %102 = vmatprep.subr.mxu0 0.0
  %103 = vmatpush1.msra.mxu0 0.0
  %104 = vmatprep.subr.mxu0 0.0
  %105 = vmatpush1.msra.mxu0 0.0
  %106 = vmatprep.subr.mxu0 0.0
  %107 = vmatpush1.msra.mxu0 0.0
  %108 = vmatprep.subr.mxu0 0.0
  %109 = vmatpush1.msra.mxu0 0.0
  %110 = vmatprep.subr.mxu0 0.0
  %111 = vmatpush1.msra.mxu0 0.0
  %112 = vmatprep.subr.mxu0 0.0
  %113 = vmatpush1.msra.mxu0 0.0
  %114 = vmatprep.subr.mxu0 0.0
  %115 = vmatpush1.msra.mxu0 0.0
  %116 = vmatprep.subr.mxu0 0.0
  %117 = vmatpush1.msra.mxu0 0.0
  %118 = vmatprep.subr.mxu0 0.0
  %119 = vmatpush1.msra.mxu0 0.0
  %120 = vmatprep.subr.mxu0 0.0
  %121 = vmatpush1.msra.mxu0 0.0
  %122 = vmatprep.subr.mxu0 0.0
  %123 = vmatpush1.msra.mxu0 0.0
  %124 = vmatprep.subr.mxu0 0.0
  %125 = vmatpush1.msra.mxu0 0.0
  %126 = vmatprep.subr.mxu0 0.0
  %127 = vmatpush1.msra.mxu0 0.0
  %128 = vmatprep.subr.mxu0 0.0
  %129 = vmatpush1.msra.mxu0 0.0
  %130 = vmatprep.subr.mxu0 0.0
  %131 = vmatpush1.msra.mxu0 0.0
  %132 = vmatprep.subr.mxu0 0.0
  %133 = vmatpush1.msra.mxu0 0.0
  %134 = vmatprep.subr.mxu0 0.0
  %135 = vmatpush1.msra.mxu0 0.0
  %136 = vmatprep.subr.mxu0 0.0
  %137 = vmatpush1.msra.mxu0 0.0
  %138 = vmatprep.subr.mxu0 0.0
  %139 = vmatpush1.msra.mxu0 0.0
  %140 = vmatprep.subr.mxu0 0.0
  %141 = vmatpush1.msra.mxu0 0.0
  %142 = vmatprep.subr.mxu0 0.0
  %143 = vmatpush1.msra.mxu0 0.0
  %144 = vmatprep.subr.mxu0 0.0
  %145 = vmatpush1.msra.mxu0 0.0
  %146 = vmatprep.subr.mxu0 0.0
  %147 = vmatpush1.msra.mxu0 0.0
  %148 = vmatprep.subr.mxu0 0.0
  %149 = vmatpush1.msra.mxu0 0.0
  %150 = vmatprep.subr.mxu0 0.0
  %151 = vmatpush1.msra.mxu0 0.0
  %152 = vmatprep.subr.mxu0 0.0
  %153 = vmatpush1.msra.mxu0 0.0
  %154 = vmatprep.mubr.f32.mxu0 0.0
  %155 = vmatmul.mubr.f32.gmra.mrb[0].mxu0 %v43
  %v156 = vpop.f32.mrb[0].mxu0
  %v157 = vadd.f32 %v39, %v156
  %v158 = vpop.f32.mrb[0].mxu0
  %159 = vmatprep.mubr.f32.mxu0 0.0
  %160 = vmatmul.mubr.f32.gmra.mrb[0].mxu0 %v46
  %v161 = vpop.f32.mrb[0].mxu0
  %v162 = vadd.f32 %v39, %v161
  %v163 = vpop.f32.mrb[0].mxu0
  %164 = vmatprep.mubr.f32.mxu0 0.0
  %165 = vmatmul.mubr.f32.gmra.mrb[0].mxu0 %v49
  %v166 = vpop.f32.mrb[0].mxu0
  %v167 = vadd.f32 %v39, %v166
  %v168 = vpop.f32.mrb[0].mxu0
  %169 = vmatprep.mubr.f32.mxu0 0.0
  %170 = vmatmul.mubr.f32.gmra.mrb[0].mxu0 %v52
  %v171 = vpop.f32.mrb[0].mxu0
  %v172 = vadd.f32 %v39, %v171
  %v173 = vpop.f32.mrb[0].mxu0
  %174 = vmatprep.mubr.f32.mxu0 0.0
  %175 = vmatmul.mubr.f32.gmra.mrb[0].mxu0 %v55
  %v176 = vpop.f32.mrb[0].mxu0
  %v177 = vadd.f32 %v39, %v176
  %v178 = vpop.f32.mrb[0].mxu0
  %179 = vmatprep.mubr.f32.mxu0 0.0
  %180 = vmatmul.mubr.f32.gmra.mrb[0].mxu0 %v58
  %v181 = vpop.f32.mrb[0].mxu0
  %v182 = vadd.f32 %v39, %v181
  %v183 = vpop.f32.mrb[0].mxu0
  %184 = vmatprep.mubr.f32.mxu0 0.0
  %185 = vmatmul.mubr.f32.gmra.mrb[0].mxu0 %v61
  %v186 = vpop.f32.mrb[0].mxu0
  %v187 = vadd.f32 %v39, %v186
  %v188 = vpop.f32.mrb[0].mxu0
  %189 = vmatprep.mubr.f32.mxu0 0.0
  %190 = vmatmul.mubr.f32.gmra.mrb[0].mxu0 %v64
  %v191 = vpop.f32.mrb[0].mxu0
  %v192 = vadd.f32 %v39, %v191
  %v193 = vpop.f32.mrb[0].mxu0
  %194 = vmatprep.mubr.f32.mxu0 0.0
  %195 = vmatmul.mubr.f32.gmra.mrb[0].mxu0 %v67
  %v196 = vpop.f32.mrb[0].mxu0
  %v197 = vadd.f32 %v39, %v196
  %v198 = vpop.f32.mrb[0].mxu0
  %199 = vmatprep.mubr.f32.mxu0 0.0
  %200 = vmatmul.mubr.f32.gmra.mrb[0].mxu0 %v70
  %v201 = vpop.f32.mrb[0].mxu0
  %v202 = vadd.f32 %v39, %v201
  %v203 = vpop.f32.mrb[0].mxu0
  %204 = vmatprep.mubr.f32.mxu0 0.0
  %205 = vmatmul.mubr.f32.gmra.mrb[0].mxu0 %v73
  %v206 = vpop.f32.mrb[0].mxu0
  %v207 = vadd.f32 %v39, %v206
  %v208 = vpop.f32.mrb[0].mxu0
  %209 = vmatprep.mubr.f32.mxu0 0.0
  %210 = vmatmul.mubr.f32.gmra.mrb[0].mxu0 %v76
  %v211 = vpop.f32.mrb[0].mxu0
  %v212 = vadd.f32 %v39, %v211
  %v213 = vpop.f32.mrb[0].mxu0
  %214 = vmatprep.mubr.f32.mxu0 0.0
  %215 = vmatmul.mubr.f32.gmra.mrb[0].mxu0 %v79
  %v216 = vpop.f32.mrb[0].mxu0
  %v217 = vadd.f32 %v39, %v216
  %v218 = vpop.f32.mrb[0].mxu0
  %219 = vmatprep.mubr.f32.mxu0 0.0
  %220 = vmatmul.mubr.f32.gmra.mrb[0].mxu0 %v82
  %v221 = vpop.f32.mrb[0].mxu0
  %v222 = vadd.f32 %v39, %v221
  %v223 = vpop.f32.mrb[0].mxu0
  %224 = vmatprep.mubr.f32.mxu0 0.0
  %225 = vmatmul.mubr.f32.gmra.mrb[0].mxu0 %v85
  %v226 = vpop.f32.mrb[0].mxu0
  %v227 = vadd.f32 %v39, %v226
  %v228 = vpop.f32.mrb[0].mxu0
  %229 = vmatprep.mubr.f32.mxu0 0.0
  %230 = vmatmul.mubr.f32.gmra.mrb[0].mxu0 %v88
  %v231 = vpop.f32.mrb[0].mxu0
  %v232 = vadd.f32 %v39, %v231
  %v233 = vpop.f32.mrb[0].mxu0
  %234 = vdwg.mxu0
  %vm235 = vcmask 130048
  %236 = vst.msk [vmem:[%s3] sm:$0xff] %vm235, %v157
  %237 = vst.msk [vmem:[%s3 + $0x8] sm:$0xff] %vm235, %v162
  %238 = vst.msk [vmem:[%s3 + $0x10] sm:$0xff] %vm235, %v167
  %239 = vst.msk [vmem:[%s3 + $0x18] sm:$0xff] %vm235, %v172
  %240 = vst.msk [vmem:[%s3 + $0x20] sm:$0xff] %vm235, %v177
  %241 = vst.msk [vmem:[%s3 + $0x28] sm:$0xff] %vm235, %v182
  %242 = vst.msk [vmem:[%s3 + $0x30] sm:$0xff] %vm235, %v187
  %243 = vst.msk [vmem:[%s3 + $0x38] sm:$0xff] %vm235, %v192
  %244 = vst.msk [vmem:[%s3 + $0x40] sm:$0xff] %vm235, %v197
  %245 = vst.msk [vmem:[%s3 + $0x48] sm:$0xff] %vm235, %v202
  %246 = vst.msk [vmem:[%s3 + $0x50] sm:$0xff] %vm235, %v207
  %247 = vst.msk [vmem:[%s3 + $0x58] sm:$0xff] %vm235, %v212
  %248 = vst.msk [vmem:[%s3 + $0x60] sm:$0xff] %vm235, %v217
  %249 = vst.msk [vmem:[%s3 + $0x68] sm:$0xff] %vm235, %v222
  %250 = vst.msk [vmem:[%s3 + $0x70] sm:$0xff] %vm235, %v227
  %251 = vst.msk [vmem:[%s3 + $0x78] sm:$0xff] %vm235, %v232
  // Predicated region
  $region14: #{_lambda_.43} parent=0 // pred_check
    _
  $region15: #{_lambda_.43} parent=0 // pred_check_branch
    %253 = sbr.rel (0) target = $region17
  $region16: #{_lambda_.43} parent=0 // pred_region
    _
  $region17: #{_lambda_.43} parent=0 // pred_fallthru
    _
  // Predicated region
  $region18: #{_lambda_.43} parent=0 // pred_check
    _
  $region19: #{_lambda_.43} parent=0 // pred_check_branch
    %255 = sbr.rel (0) target = $region21
  $region20: #{_lambda_.43} parent=0 // pred_region
    _
  $region21: #{_lambda_.43} parent=0 // pred_fallthru
    _

// kernel: _lambda_.44
$region0: #{_lambda_.44}
  #allocation0 [shape = 'u32[]', space=smem, size = 0x4, offset = 0x4, fixed_abs, tag = 'smem constant byte address 0x4 - core index']
  #allocation1 [shape = 'u32[144,128]{1,0:T(1,128)}', space=vmem, size = 0x12000, scoped, tag = 'internal scratch']
  %s0 = inlined_call_operand.vmem [shape: f32[8,512], index: 0, kind: input, shape index: {}]
  %s1 = inlined_call_operand.vmem [shape: f32[1,512], index: 1, kind: input, shape index: {}]
  %s2 = inlined_call_operand.vmem [shape: f32[1,512], index: 2, kind: input, shape index: {}]
  %s3 = inlined_call_operand.vmem [shape: f32[8,512], index: 3, kind: input, shape index: {}]
  %s4 = inlined_call_operand.vmem [shape: f32[8,512], index: 4, kind: output, shape index: {}]
  %s5 = sld [smem:[#allocation0]]
  $region26: #{_lambda_.44} parent=0
    _
  %s7 = ssub.s32 1, %s5
  %s8 = scalar_select 0, %s7, %s5
  // Predicated region
  $region2: #{_lambda_.44} parent=0 // pred_check
    _
  $region3: #{_lambda_.44} parent=0 // pred_check_branch
    %10 = sbr.rel (0) target = $region5
  $region4: #{_lambda_.44} parent=0 // pred_region
    _
  $region5: #{_lambda_.44} parent=0 // pred_fallthru
    _
  // Predicated region
  $region6: #{_lambda_.44} parent=0 // pred_check
    _
  $region7: #{_lambda_.44} parent=0 // pred_check_branch
    %12 = sbr.rel (0) target = $region9
  $region8: #{_lambda_.44} parent=0 // pred_region
    _
  $region9: #{_lambda_.44} parent=0 // pred_fallthru
    _
  // Predicated region
  $region10: #{_lambda_.44} parent=0 // pred_check
    _
  $region11: #{_lambda_.44} parent=0 // pred_check_branch
    %14 = sbr.rel (0) target = $region13
  $region12: #{_lambda_.44} parent=0 // pred_region
    _
  $region13: #{_lambda_.44} parent=0 // pred_fallthru
    _
  // Predicated region
  $region14: #{_lambda_.44} parent=0 // pred_check
    _
  $region15: #{_lambda_.44} parent=0 // pred_check_branch
    %16 = sbr.rel (0) target = $region17
  $region16: #{_lambda_.44} parent=0 // pred_region
    _
  $region17: #{_lambda_.44} parent=0 // pred_fallthru
    _
  %v17 = vld [vmem:[%s0] sm:$0xff]
  %v18 = vld [vmem:[%s0 + $0x8] sm:$0xff]
  %v19 = vld [vmem:[%s0 + $0x10] sm:$0xff]
  %v20 = vld [vmem:[%s0 + $0x18] sm:$0xff]
  %v21 = vadd.f32 %v17, %v18
  %v22 = vadd.f32 %v21, %v19
  %v23 = vadd.f32 %v22, %v20
  %24 = vadd.xlane.f32.xlu0 %v23
  %v25 = vpop.xlane.xlu0 %24
  %v26 = vrcp.pop 512.0
  %v27 = vmul.f32 %v25, %v26
  %v28 = vsub.f32 %v17, %v27
  %v29 = vsub.f32 %v18, %v27
  %v30 = vsub.f32 %v19, %v27
  %v31 = vsub.f32 %v20, %v27
  %v32 = vmul.f32 %v28, %v28
  %v33 = vmul.f32 %v29, %v29
  %v34 = vmul.f32 %v30, %v30
  %v35 = vmul.f32 %v31, %v31
  %v36 = vadd.f32 %v32, %v33
  %v37 = vadd.f32 %v36, %v34
  %v38 = vadd.f32 %v37, %v35
  %39 = vadd.xlane.f32.xlu0 %v38
  %v40 = vpop.xlane.xlu0 %39
  %v41 = vmul.f32 %v40, %v26
  %v42 = vadd.f32 %v41, 1e-08
  %v43 = vrsqrt.pop %v42
  %v44 = vmul.f32 %v28, %v43
  %v45 = vmul.f32 %v29, %v43
  %v46 = vmul.f32 %v30, %v43
  %v47 = vmul.f32 %v31, %v43
  %v48 = vld [vmem:[%s1] sm:$0xf]
  %v50 = vlaneseq
  %v51 = vshrl.u32 %v50, 7
  %v52 = vsub.s32 0, %v51
  %v53 = vrot.slane %v48, %v52
  %v54 = vlaneseq
  %v55 = vshrl.u32 %v54, 7
  %v56 = vsub.s32 1, %v55
  %v57 = vrot.slane %v48, %v56
  %v58 = vlaneseq
  %v59 = vshrl.u32 %v58, 7
  %v60 = vsub.s32 2, %v59
  %v61 = vrot.slane %v48, %v60
  %v62 = vlaneseq
  %v63 = vshrl.u32 %v62, 7
  %v64 = vsub.s32 3, %v63
  %v65 = vrot.slane %v48, %v64
  %v70 = vmul.f32 %v44, %v53
  %v71 = vmul.f32 %v45, %v57
  %v72 = vmul.f32 %v46, %v61
  %v73 = vmul.f32 %v47, %v65
  %v74 = vld [vmem:[%s2] sm:$0xf]
  %v76 = vlaneseq
  %v77 = vshrl.u32 %v76, 7
  %v78 = vsub.s32 0, %v77
  %v79 = vrot.slane %v74, %v78
  %v80 = vlaneseq
  %v81 = vshrl.u32 %v80, 7
  %v82 = vsub.s32 1, %v81
  %v83 = vrot.slane %v74, %v82
  %v84 = vlaneseq
  %v85 = vshrl.u32 %v84, 7
  %v86 = vsub.s32 2, %v85
  %v87 = vrot.slane %v74, %v86
  %v88 = vlaneseq
  %v89 = vshrl.u32 %v88, 7
  %v90 = vsub.s32 3, %v89
  %v91 = vrot.slane %v74, %v90
  %v96 = vadd.f32 %v70, %v79
  %v97 = vadd.f32 %v71, %v83
  %v98 = vadd.f32 %v72, %v87
  %v99 = vadd.f32 %v73, %v91
  %v100 = vld [vmem:[%s3] sm:$0xff]
  %v101 = vld [vmem:[%s3 + $0x8] sm:$0xff]
  %v102 = vld [vmem:[%s3 + $0x10] sm:$0xff]
  %v103 = vld [vmem:[%s3 + $0x18] sm:$0xff]
  %v104 = vadd.f32 %v96, %v100
  %v105 = vadd.f32 %v97, %v101
  %v106 = vadd.f32 %v98, %v102
  %v107 = vadd.f32 %v99, %v103
  %108 = vst [vmem:[%s4] sm:$0xff] %v104
  %109 = vst [vmem:[%s4 + $0x8] sm:$0xff] %v105
  %110 = vst [vmem:[%s4 + $0x10] sm:$0xff] %v106
  %111 = vst [vmem:[%s4 + $0x18] sm:$0xff] %v107
  // Predicated region
  $region18: #{_lambda_.44} parent=0 // pred_check
    _
  $region19: #{_lambda_.44} parent=0 // pred_check_branch
    %113 = sbr.rel (0) target = $region21
  $region20: #{_lambda_.44} parent=0 // pred_region
    _
  $region21: #{_lambda_.44} parent=0 // pred_fallthru
    _
  // Predicated region
  $region22: #{_lambda_.44} parent=0 // pred_check
    _
  $region23: #{_lambda_.44} parent=0 // pred_check_branch
    %115 = sbr.rel (0) target = $region25
  $region24: #{_lambda_.44} parent=0 // pred_region
    _
  $region25: #{_lambda_.44} parent=0 // pred_fallthru
    _

// kernel: _lambda_.46
$region0: #{_lambda_.46}
  #allocation0 [shape = 'u32[]', space=smem, size = 0x4, offset = 0x4, fixed_abs, tag = 'smem constant byte address 0x4 - core index']
  #allocation1 [shape = 'u32[144,128]{1,0:T(1,128)}', space=vmem, size = 0x12000, scoped, tag = 'internal scratch']
  %s0 = inlined_call_operand.vmem [shape: f32[8,16,128], index: 0, kind: input, shape index: {}]
  %s1 = inlined_call_operand.vmem [shape: f32[32,128], index: 1, kind: input, shape index: {}]
  %s2 = inlined_call_operand.vmem [shape: f32[8,16,32], index: 2, kind: output, shape index: {}]
  %s3 = sld [smem:[#allocation0]]
  $region18: #{_lambda_.46} parent=0
    _
  %s5 = ssub.s32 1, %s3
  %s6 = scalar_select 0, %s5, %s3
  // Predicated region
  $region2: #{_lambda_.46} parent=0 // pred_check
    _
  $region3: #{_lambda_.46} parent=0 // pred_check_branch
    %8 = sbr.rel (0) target = $region5
  $region4: #{_lambda_.46} parent=0 // pred_region
    _
  $region5: #{_lambda_.46} parent=0 // pred_fallthru
    _
  // Predicated region
  $region6: #{_lambda_.46} parent=0 // pred_check
    _
  $region7: #{_lambda_.46} parent=0 // pred_check_branch
    %10 = sbr.rel (0) target = $region9
  $region8: #{_lambda_.46} parent=0 // pred_region
    _
  $region9: #{_lambda_.46} parent=0 // pred_fallthru
    _
  %v11 = vld [vmem:[%s1] sm:$0xff]
  %v12 = vld [vmem:[%s1 + $0x8] sm:$0xff]
  %v13 = vld [vmem:[%s1 + $0x10] sm:$0xff]
  %v14 = vld [vmem:[%s1 + $0x18] sm:$0xff]
  %v15 = vld [vmem:[%s0] sm:$0xff]
  %v16 = vld [vmem:[%s0 + $0x8] sm:$0xff]
  %vm17 = vcmask 261120
  %v19 = vsel %vm17, 0.0, 0
  %21 = vmatprep.subr.mxu0 0.0
  %22 = vmatpush1.msra.mxu0 %v11
  %23 = vmatprep.subr.mxu0 0.0
  %24 = vmatpush1.msra.mxu0 %v12
  %25 = vmatprep.subr.mxu0 0.0
  %26 = vmatpush1.msra.mxu0 %v13
  %27 = vmatprep.subr.mxu0 0.0
  %28 = vmatpush1.msra.mxu0 %v14
  %29 = vmatprep.subr.mxu0 0.0
  %30 = vmatpush1.msra.mxu0 0.0
  %31 = vmatprep.subr.mxu0 0.0
  %32 = vmatpush1.msra.mxu0 0.0
  %33 = vmatprep.subr.mxu0 0.0
  %34 = vmatpush1.msra.mxu0 0.0
  %35 = vmatprep.subr.mxu0 0.0
  %36 = vmatpush1.msra.mxu0 0.0
  %37 = vmatprep.subr.mxu0 0.0
  %38 = vmatpush1.msra.mxu0 0.0
  %39 = vmatprep.subr.mxu0 0.0
  %40 = vmatpush1.msra.mxu0 0.0
  %41 = vmatprep.subr.mxu0 0.0
  %42 = vmatpush1.msra.mxu0 0.0
  %43 = vmatprep.subr.mxu0 0.0
  %44 = vmatpush1.msra.mxu0 0.0
  %45 = vmatprep.subr.mxu0 0.0
  %46 = vmatpush1.msra.mxu0 0.0
  %47 = vmatprep.subr.mxu0 0.0
  %48 = vmatpush1.msra.mxu0 0.0
  %49 = vmatprep.subr.mxu0 0.0
  %50 = vmatpush1.msra.mxu0 0.0
  %51 = vmatprep.subr.mxu0 0.0
  %52 = vmatpush1.msra.mxu0 0.0
  %53 = vmatprep.subr.mxu0 0.0
  %54 = vmatpush1.msra.mxu0 0.0
  %55 = vmatprep.subr.mxu0 0.0
  %56 = vmatpush1.msra.mxu0 0.0
  %57 = vmatprep.subr.mxu0 0.0
  %58 = vmatpush1.msra.mxu0 0.0
  %59 = vmatprep.subr.mxu0 0.0
  %60 = vmatpush1.msra.mxu0 0.0
  %61 = vmatprep.subr.mxu0 0.0
  %62 = vmatpush1.msra.mxu0 0.0
  %63 = vmatprep.subr.mxu0 0.0
  %64 = vmatpush1.msra.mxu0 0.0
  %65 = vmatprep.subr.mxu0 0.0
  %66 = vmatpush1.msra.mxu0 0.0
  %67 = vmatprep.subr.mxu0 0.0
  %68 = vmatpush1.msra.mxu0 0.0
  %69 = vmatprep.subr.mxu0 0.0
  %70 = vmatpush1.msra.mxu0 0.0
  %71 = vmatprep.subr.mxu0 0.0
  %72 = vmatpush1.msra.mxu0 0.0
  %73 = vmatprep.subr.mxu0 0.0
  %74 = vmatpush1.msra.mxu0 0.0
  %75 = vmatprep.subr.mxu0 0.0
  %76 = vmatpush1.msra.mxu0 0.0
  %77 = vmatprep.subr.mxu0 0.0
  %78 = vmatpush1.msra.mxu0 0.0
  %79 = vmatprep.subr.mxu0 0.0
  %80 = vmatpush1.msra.mxu0 0.0
  %81 = vmatprep.subr.mxu0 0.0
  %82 = vmatpush1.msra.mxu0 0.0
  %83 = vmatprep.subr.mxu0 0.0
  %84 = vmatpush1.msra.mxu0 0.0
  %85 = vmatprep.mubr.f32.mxu0 0.0
  %86 = vmatmul.mubr.f32.gmra.mrb[0].mxu0 %v19
  %v87 = vpop.f32.mrb[0].mxu0
  %v88 = vadd.f32 0.0, %v87
  %v89 = vpop.f32.mrb[0].mxu0
  %90 = vmatprep.mubr.f32.mxu0 0.0
  %91 = vmatmul.mubr.f32.gmra.mrb[0].mxu0 %v19
  %v92 = vpop.f32.mrb[0].mxu0
  %v93 = vadd.f32 0.0, %v92
  %v94 = vpop.f32.mrb[0].mxu0
  %95 = vdwg.mxu0
  %v96 = vadd.f32 %v15, %v88
  %v97 = vadd.f32 %v16, %v93
  %v98 = vxor.u32 %v96, 2147483648
  %v99 = vxor.u32 %v97, 2147483648
  %v100 = vmul.f32 %v98, 1.442695
  %v101 = vpow.pop %v100
  %v102 = vmul.f32 %v99, 1.442695
  %v103 = vpow.pop %v102
  %v104 = vadd.f32 %v101, 1.0
  %v105 = vadd.f32 %v103, 1.0
  %v106 = vrcp.pop %v104
  %v107 = vmul.f32 1.0, %v106
  %v108 = vrcp.pop %v105
  %v109 = vmul.f32 1.0, %v108
  %v110 = vtanh.pop %v96
  %v111 = vtanh.pop %v97
  %v112 = vmul.f32 %v107, 0.0
  %v113 = vmul.f32 %v109, 0.0
  %116 = vrot.lane.b32.xlu0 %v110, 64
  %v117 = vpop.permute.xlu0 %116
  %118 = vrot.lane.b32.xlu0 %v111, 64
  %v119 = vpop.permute.xlu0 %118
  %v122 = vmul.f32 %v107, %v117
  %v123 = vmul.f32 %v109, %v119
  %126 = vrot.lane.b32.xlu0 %v122, 32
  %v127 = vpop.permute.xlu0 %126
  %128 = vrot.lane.b32.xlu0 %v123, 32
  %v129 = vpop.permute.xlu0 %128
  %v132 = vadd.f32 %v112, %v127
  %v133 = vadd.f32 %v113, %v129
  %v134 = vtanh.pop %v132
  %v135 = vtanh.pop %v133
  %138 = vrot.lane.b32.xlu0 %v134, 64
  %v139 = vpop.permute.xlu0 %138
  %140 = vrot.lane.b32.xlu0 %v135, 64
  %v141 = vpop.permute.xlu0 %140
  %v144 = vmul.f32 %v107, %v139
  %v145 = vmul.f32 %v109, %v141
  %148 = vrot.lane.b32.xlu0 %v144, 32
  %v149 = vpop.permute.xlu0 %148
  %150 = vrot.lane.b32.xlu0 %v145, 32
  %v151 = vpop.permute.xlu0 %150
  %154 = vst.msk [vmem:[%s2] sm:$0xff] %vm17, %v149
  %155 = vst.msk [vmem:[%s2 + $0x8] sm:$0xff] %vm17, %v151
  %s156 = scalar_lea.vmem %s0, 16
  %v157 = vld [vmem:[%s156] sm:$0xff]
  %v158 = vld [vmem:[%s156 + $0x8] sm:$0xff]
  %v159 = vsel %vm17, %v149, 0
  %v161 = vsel %vm17, %v151, 0
  %163 = vmatprep.subr.mxu0 0.0
  %164 = vmatpush1.msra.mxu0 %v11
  %165 = vmatprep.subr.mxu0 0.0
  %166 = vmatpush1.msra.mxu0 %v12
  %167 = vmatprep.subr.mxu0 0.0
  %168 = vmatpush1.msra.mxu0 %v13
  %169 = vmatprep.subr.mxu0 0.0
  %170 = vmatpush1.msra.mxu0 %v14
  %171 = vmatprep.subr.mxu0 0.0
  %172 = vmatpush1.msra.mxu0 0.0
  %173 = vmatprep.subr.mxu0 0.0
  %174 = vmatpush1.msra.mxu0 0.0
  %175 = vmatprep.subr.mxu0 0.0
  %176 = vmatpush1.msra.mxu0 0.0
  %177 = vmatprep.subr.mxu0 0.0
  %178 = vmatpush1.msra.mxu0 0.0
  %179 = vmatprep.subr.mxu0 0.0
  %180 = vmatpush1.msra.mxu0 0.0
  %181 = vmatprep.subr.mxu0 0.0
  %182 = vmatpush1.msra.mxu0 0.0
  %183 = vmatprep.subr.mxu0 0.0
  %184 = vmatpush1.msra.mxu0 0.0
  %185 = vmatprep.subr.mxu0 0.0
  %186 = vmatpush1.msra.mxu0 0.0
  %187 = vmatprep.subr.mxu0 0.0
  %188 = vmatpush1.msra.mxu0 0.0
  %189 = vmatprep.subr.mxu0 0.0
  %190 = vmatpush1.msra.mxu0 0.0
  %191 = vmatprep.subr.mxu0 0.0
  %192 = vmatpush1.msra.mxu0 0.0
  %193 = vmatprep.subr.mxu0 0.0
  %194 = vmatpush1.msra.mxu0 0.0
  %195 = vmatprep.subr.mxu0 0.0
  %196 = vmatpush1.msra.mxu0 0.0
  %197 = vmatprep.subr.mxu0 0.0
  %198 = vmatpush1.msra.mxu0 0.0
  %199 = vmatprep.subr.mxu0 0.0
  %200 = vmatpush1.msra.mxu0 0.0
  %201 = vmatprep.subr.mxu0 0.0
  %202 = vmatpush1.msra.mxu0 0.0
  %203 = vmatprep.subr.mxu0 0.0
  %204 = vmatpush1.msra.mxu0 0.0
  %205 = vmatprep.subr.mxu0 0.0
  %206 = vmatpush1.msra.mxu0 0.0
  %207 = vmatprep.subr.mxu0 0.0
  %208 = vmatpush1.msra.mxu0 0.0
  %209 = vmatprep.subr.mxu0 0.0
  %210 = vmatpush1.msra.mxu0 0.0
  %211 = vmatprep.subr.mxu0 0.0
  %212 = vmatpush1.msra.mxu0 0.0
  %213 = vmatprep.subr.mxu0 0.0
  %214 = vmatpush1.msra.mxu0 0.0
  %215 = vmatprep.subr.mxu0 0.0
  %216 = vmatpush1.msra.mxu0 0.0
  %217 = vmatprep.subr.mxu0 0.0
  %218 = vmatpush1.msra.mxu0 0.0
  %219 = vmatprep.subr.mxu0 0.0
  %220 = vmatpush1.msra.mxu0 0.0
  %221 = vmatprep.subr.mxu0 0.0
  %222 = vmatpush1.msra.mxu0 0.0
  %223 = vmatprep.subr.mxu0 0.0
  %224 = vmatpush1.msra.mxu0 0.0
  %225 = vmatprep.subr.mxu0 0.0
  %226 = vmatpush1.msra.mxu0 0.0
  %227 = vmatprep.mubr.f32.mxu0 0.0
  %228 = vmatmul.mubr.f32.gmra.mrb[0].mxu0 %v159
  %v229 = vpop.f32.mrb[0].mxu0
  %v230 = vadd.f32 0.0, %v229
  %v231 = vpop.f32.mrb[0].mxu0
  %232 = vmatprep.mubr.f32.mxu0 0.0
  %233 = vmatmul.mubr.f32.gmra.mrb[0].mxu0 %v161
  %v234 = vpop.f32.mrb[0].mxu0
  %v235 = vadd.f32 0.0, %v234
  %v236 = vpop.f32.mrb[0].mxu0
  %237 = vdwg.mxu0
  %v238 = vadd.f32 %v157, %v230
  %v239 = vadd.f32 %v158, %v235
  %v240 = vxor.u32 %v238, 2147483648
  %v241 = vxor.u32 %v239, 2147483648
  %v242 = vmul.f32 %v240, 1.442695
  %v243 = vpow.pop %v242
  %v244 = vmul.f32 %v241, 1.442695
  %v245 = vpow.pop %v244
  %v246 = vadd.f32 %v243, 1.0
  %v247 = vadd.f32 %v245, 1.0
  %v248 = vrcp.pop %v246
  %v249 = vmul.f32 1.0, %v248
  %v250 = vrcp.pop %v247
  %v251 = vmul.f32 1.0, %v250
  %v252 = vtanh.pop %v238
  %v253 = vtanh.pop %v239
  %v254 = vmul.f32 %v249, %v132
  %v255 = vmul.f32 %v251, %v133
  %258 = vrot.lane.b32.xlu0 %v252, 64
  %v259 = vpop.permute.xlu0 %258
  %260 = vrot.lane.b32.xlu0 %v253, 64
  %v261 = vpop.permute.xlu0 %260
  %v264 = vmul.f32 %v249, %v259
  %v265 = vmul.f32 %v251, %v261
  %268 = vrot.lane.b32.xlu0 %v264, 32
  %v269 = vpop.permute.xlu0 %268
  %270 = vrot.lane.b32.xlu0 %v265, 32
  %v271 = vpop.permute.xlu0 %270
  %v274 = vadd.f32 %v254, %v269
  %v275 = vadd.f32 %v255, %v271
  %v276 = vtanh.pop %v274
  %v277 = vtanh.pop %v275
  %280 = vrot.lane.b32.xlu0 %v276, 64
  %v281 = vpop.permute.xlu0 %280
  %282 = vrot.lane.b32.xlu0 %v277, 64
  %v283 = vpop.permute.xlu0 %282
  %v286 = vmul.f32 %v249, %v281
  %v287 = vmul.f32 %v251, %v283
  %290 = vrot.lane.b32.xlu0 %v286, 32
  %v291 = vpop.permute.xlu0 %290
  %292 = vrot.lane.b32.xlu0 %v287, 32
  %v293 = vpop.permute.xlu0 %292
  %s296 = scalar_lea.vmem %s2, 16
  %297 = vst.msk [vmem:[%s296] sm:$0xff] %vm17, %v291
  %298 = vst.msk [vmem:[%s296 + $0x8] sm:$0xff] %vm17, %v293
  %s299 = scalar_lea.vmem %s0, 32
  %v300 = vld [vmem:[%s299] sm:$0xff]
  %v301 = vld [vmem:[%s299 + $0x8] sm:$0xff]
  %v302 = vsel %vm17, %v291, 0
  %v304 = vsel %vm17, %v293, 0
  %306 = vmatprep.subr.mxu0 0.0
  %307 = vmatpush1.msra.mxu0 %v11
  %308 = vmatprep.subr.mxu0 0.0
  %309 = vmatpush1.msra.mxu0 %v12
  %310 = vmatprep.subr.mxu0 0.0
  %311 = vmatpush1.msra.mxu0 %v13
  %312 = vmatprep.subr.mxu0 0.0
  %313 = vmatpush1.msra.mxu0 %v14
  %314 = vmatprep.subr.mxu0 0.0
  %315 = vmatpush1.msra.mxu0 0.0
  %316 = vmatprep.subr.mxu0 0.0
  %317 = vmatpush1.msra.mxu0 0.0
  %318 = vmatprep.subr.mxu0 0.0
  %319 = vmatpush1.msra.mxu0 0.0
  %320 = vmatprep.subr.mxu0 0.0
  %321 = vmatpush1.msra.mxu0 0.0
  %322 = vmatprep.subr.mxu0 0.0
  %323 = vmatpush1.msra.mxu0 0.0
  %324 = vmatprep.subr.mxu0 0.0
  %325 = vmatpush1.msra.mxu0 0.0
  %326 = vmatprep.subr.mxu0 0.0
  %327 = vmatpush1.msra.mxu0 0.0
  %328 = vmatprep.subr.mxu0 0.0
  %329 = vmatpush1.msra.mxu0 0.0
  %330 = vmatprep.subr.mxu0 0.0
  %331 = vmatpush1.msra.mxu0 0.0
  %332 = vmatprep.subr.mxu0 0.0
  %333 = vmatpush1.msra.mxu0 0.0
  %334 = vmatprep.subr.mxu0 0.0
  %335 = vmatpush1.msra.mxu0 0.0
  %336 = vmatprep.subr.mxu0 0.0
  %337 = vmatpush1.msra.mxu0 0.0
  %338 = vmatprep.subr.mxu0 0.0
  %339 = vmatpush1.msra.mxu0 0.0
  %340 = vmatprep.subr.mxu0 0.0
  %341 = vmatpush1.msra.mxu0 0.0
  %342 = vmatprep.subr.mxu0 0.0
  %343 = vmatpush1.msra.mxu0 0.0
  %344 = vmatprep.subr.mxu0 0.0
  %345 = vmatpush1.msra.mxu0 0.0
  %346 = vmatprep.subr.mxu0 0.0
  %347 = vmatpush1.msra.mxu0 0.0
  %348 = vmatprep.subr.mxu0 0.0
  %349 = vmatpush1.msra.mxu0 0.0
  %350 = vmatprep.subr.mxu0 0.0
  %351 = vmatpush1.msra.mxu0 0.0
  %352 = vmatprep.subr.mxu0 0.0
  %353 = vmatpush1.msra.mxu0 0.0
  %354 = vmatprep.subr.mxu0 0.0
  %355 = vmatpush1.msra.mxu0 0.0
  %356 = vmatprep.subr.mxu0 0.0
  %357 = vmatpush1.msra.mxu0 0.0
  %358 = vmatprep.subr.mxu0 0.0
  %359 = vmatpush1.msra.mxu0 0.0
  %360 = vmatprep.subr.mxu0 0.0
  %361 = vmatpush1.msra.mxu0 0.0
  %362 = vmatprep.subr.mxu0 0.0
  %363 = vmatpush1.msra.mxu0 0.0
  %364 = vmatprep.subr.mxu0 0.0
  %365 = vmatpush1.msra.mxu0 0.0
  %366 = vmatprep.subr.mxu0 0.0
  %367 = vmatpush1.msra.mxu0 0.0
  %368 = vmatprep.subr.mxu0 0.0
  %369 = vmatpush1.msra.mxu0 0.0
  %370 = vmatprep.mubr.f32.mxu0 0.0
  %371 = vmatmul.mubr.f32.gmra.mrb[0].mxu0 %v302
  %v372 = vpop.f32.mrb[0].mxu0
  %v373 = vadd.f32 0.0, %v372
  %v374 = vpop.f32.mrb[0].mxu0
  %375 = vmatprep.mubr.f32.mxu0 0.0
  %376 = vmatmul.mubr.f32.gmra.mrb[0].mxu0 %v304
  %v377 = vpop.f32.mrb[0].mxu0
  %v378 = vadd.f32 0.0, %v377
  %v379 = vpop.f32.mrb[0].mxu0
  %380 = vdwg.mxu0
  %v381 = vadd.f32 %v300, %v373
  %v382 = vadd.f32 %v301, %v378
  %v383 = vxor.u32 %v381, 2147483648
  %v384 = vxor.u32 %v382, 2147483648
  %v385 = vmul.f32 %v383, 1.442695
  %v386 = vpow.pop %v385
  %v387 = vmul.f32 %v384, 1.442695
  %v388 = vpow.pop %v387
  %v389 = vadd.f32 %v386, 1.0
  %v390 = vadd.f32 %v388, 1.0
  %v391 = vrcp.pop %v389
  %v392 = vmul.f32 1.0, %v391
  %v393 = vrcp.pop %v390
  %v394 = vmul.f32 1.0, %v393
  %v395 = vtanh.pop %v381
  %v396 = vtanh.pop %v382
  %v397 = vmul.f32 %v392, %v274
  %v398 = vmul.f32 %v394, %v275
  %401 = vrot.lane.b32.xlu0 %v395, 64
  %v402 = vpop.permute.xlu0 %401
  %403 = vrot.lane.b32.xlu0 %v396, 64
  %v404 = vpop.permute.xlu0 %403
  %v407 = vmul.f32 %v392, %v402
  %v408 = vmul.f32 %v394, %v404
  %411 = vrot.lane.b32.xlu0 %v407, 32
  %v412 = vpop.permute.xlu0 %411
  %413 = vrot.lane.b32.xlu0 %v408, 32
  %v414 = vpop.permute.xlu0 %413
  %v417 = vadd.f32 %v397, %v412
  %v418 = vadd.f32 %v398, %v414
  %v419 = vtanh.pop %v417
  %v420 = vtanh.pop %v418
  %423 = vrot.lane.b32.xlu0 %v419, 64
  %v424 = vpop.permute.xlu0 %423
  %425 = vrot.lane.b32.xlu0 %v420, 64
  %v426 = vpop.permute.xlu0 %425
  %v429 = vmul.f32 %v392, %v424
  %v430 = vmul.f32 %v394, %v426
  %433 = vrot.lane.b32.xlu0 %v429, 32
  %v434 = vpop.permute.xlu0 %433
  %435 = vrot.lane.b32.xlu0 %v430, 32
  %v436 = vpop.permute.xlu0 %435
  %s439 = scalar_lea.vmem %s2, 32
  %440 = vst.msk [vmem:[%s439] sm:$0xff] %vm17, %v434
  %441 = vst.msk [vmem:[%s439 + $0x8] sm:$0xff] %vm17, %v436
  %s442 = scalar_lea.vmem %s0, 48
  %v443 = vld [vmem:[%s442] sm:$0xff]
  %v444 = vld [vmem:[%s442 + $0x8] sm:$0xff]
  %v445 = vsel %vm17, %v434, 0
  %v447 = vsel %vm17, %v436, 0
  %449 = vmatprep.subr.mxu0 0.0
  %450 = vmatpush1.msra.mxu0 %v11
  %451 = vmatprep.subr.mxu0 0.0
  %452 = vmatpush1.msra.mxu0 %v12
  %453 = vmatprep.subr.mxu0 0.0
  %454 = vmatpush1.msra.mxu0 %v13
  %455 = vmatprep.subr.mxu0 0.0
  %456 = vmatpush1.msra.mxu0 %v14
  %457 = vmatprep.subr.mxu0 0.0
  %458 = vmatpush1.msra.mxu0 0.0
  %459 = vmatprep.subr.mxu0 0.0
  %460 = vmatpush1.msra.mxu0 0.0
  %461 = vmatprep.subr.mxu0 0.0
  %462 = vmatpush1.msra.mxu0 0.0
  %463 = vmatprep.subr.mxu0 0.0
  %464 = vmatpush1.msra.mxu0 0.0
  %465 = vmatprep.subr.mxu0 0.0
  %466 = vmatpush1.msra.mxu0 0.0
  %467 = vmatprep.subr.mxu0 0.0
  %468 = vmatpush1.msra.mxu0 0.0
  %469 = vmatprep.subr.mxu0 0.0
  %470 = vmatpush1.msra.mxu0 0.0
  %471 = vmatprep.subr.mxu0 0.0
  %472 = vmatpush1.msra.mxu0 0.0
  %473 = vmatprep.subr.mxu0 0.0
  %474 = vmatpush1.msra.mxu0 0.0
  %475 = vmatprep.subr.mxu0 0.0
  %476 = vmatpush1.msra.mxu0 0.0
  %477 = vmatprep.subr.mxu0 0.0
  %478 = vmatpush1.msra.mxu0 0.0
  %479 = vmatprep.subr.mxu0 0.0
  %480 = vmatpush1.msra.mxu0 0.0
  %481 = vmatprep.subr.mxu0 0.0
  %482 = vmatpush1.msra.mxu0 0.0
  %483 = vmatprep.subr.mxu0 0.0
  %484 = vmatpush1.msra.mxu0 0.0
  %485 = vmatprep.subr.mxu0 0.0
  %486 = vmatpush1.msra.mxu0 0.0
  %487 = vmatprep.subr.mxu0 0.0
  %488 = vmatpush1.msra.mxu0 0.0
  %489 = vmatprep.subr.mxu0 0.0
  %490 = vmatpush1.msra.mxu0 0.0
  %491 = vmatprep.subr.mxu0 0.0
  %492 = vmatpush1.msra.mxu0 0.0
  %493 = vmatprep.subr.mxu0 0.0
  %494 = vmatpush1.msra.mxu0 0.0
  %495 = vmatprep.subr.mxu0 0.0
  %496 = vmatpush1.msra.mxu0 0.0
  %497 = vmatprep.subr.mxu0 0.0
  %498 = vmatpush1.msra.mxu0 0.0
  %499 = vmatprep.subr.mxu0 0.0
  %500 = vmatpush1.msra.mxu0 0.0
  %501 = vmatprep.subr.mxu0 0.0
  %502 = vmatpush1.msra.mxu0 0.0
  %503 = vmatprep.subr.mxu0 0.0
  %504 = vmatpush1.msra.mxu0 0.0
  %505 = vmatprep.subr.mxu0 0.0
  %506 = vmatpush1.msra.mxu0 0.0
  %507 = vmatprep.subr.mxu0 0.0
  %508 = vmatpush1.msra.mxu0 0.0
  %509 = vmatprep.subr.mxu0 0.0
  %510 = vmatpush1.msra.mxu0 0.0
  %511 = vmatprep.subr.mxu0 0.0
  %512 = vmatpush1.msra.mxu0 0.0
  %513 = vmatprep.mubr.f32.mxu0 0.0
  %514 = vmatmul.mubr.f32.gmra.mrb[0].mxu0 %v445
  %v515 = vpop.f32.mrb[0].mxu0
  %v516 = vadd.f32 0.0, %v515
  %v517 = vpop.f32.mrb[0].mxu0
  %518 = vmatprep.mubr.f32.mxu0 0.0
  %519 = vmatmul.mubr.f32.gmra.mrb[0].mxu0 %v447
  %v520 = vpop.f32.mrb[0].mxu0
  %v521 = vadd.f32 0.0, %v520
  %v522 = vpop.f32.mrb[0].mxu0
  %523 = vdwg.mxu0
  %v524 = vadd.f32 %v443, %v516
  %v525 = vadd.f32 %v444, %v521
  %v526 = vxor.u32 %v524, 2147483648
  %v527 = vxor.u32 %v525, 2147483648
  %v528 = vmul.f32 %v526, 1.442695
  %v529 = vpow.pop %v528
  %v530 = vmul.f32 %v527, 1.442695
  %v531 = vpow.pop %v530
  %v532 = vadd.f32 %v529, 1.0
  %v533 = vadd.f32 %v531, 1.0
  %v534 = vrcp.pop %v532
  %v535 = vmul.f32 1.0, %v534
  %v536 = vrcp.pop %v533
  %v537 = vmul.f32 1.0, %v536
  %v538 = vtanh.pop %v524
  %v539 = vtanh.pop %v525
  %v540 = vmul.f32 %v535, %v417
  %v541 = vmul.f32 %v537, %v418
  %544 = vrot.lane.b32.xlu0 %v538, 64
  %v545 = vpop.permute.xlu0 %544
  %546 = vrot.lane.b32.xlu0 %v539, 64
  %v547 = vpop.permute.xlu0 %546
  %v550 = vmul.f32 %v535, %v545
  %v551 = vmul.f32 %v537, %v547
  %554 = vrot.lane.b32.xlu0 %v550, 32
  %v555 = vpop.permute.xlu0 %554
  %556 = vrot.lane.b32.xlu0 %v551, 32
  %v557 = vpop.permute.xlu0 %556
  %v560 = vadd.f32 %v540, %v555
  %v561 = vadd.f32 %v541, %v557
  %v562 = vtanh.pop %v560
  %v563 = vtanh.pop %v561
  %566 = vrot.lane.b32.xlu0 %v562, 64
  %v567 = vpop.permute.xlu0 %566
  %568 = vrot.lane.b32.xlu0 %v563, 64
  %v569 = vpop.permute.xlu0 %568
  %v572 = vmul.f32 %v535, %v567
  %v573 = vmul.f32 %v537, %v569
  %576 = vrot.lane.b32.xlu0 %v572, 32
  %v577 = vpop.permute.xlu0 %576
  %578 = vrot.lane.b32.xlu0 %v573, 32
  %v579 = vpop.permute.xlu0 %578
  %s582 = scalar_lea.vmem %s2, 48
  %583 = vst.msk [vmem:[%s582] sm:$0xff] %vm17, %v577
  %584 = vst.msk [vmem:[%s582 + $0x8] sm:$0xff] %vm17, %v579
  %s585 = scalar_lea.vmem %s0, 64
  %v586 = vld [vmem:[%s585] sm:$0xff]
  %v587 = vld [vmem:[%s585 + $0x8] sm:$0xff]
  %v588 = vsel %vm17, %v577, 0
  %v590 = vsel %vm17, %v579, 0
  %592 = vmatprep.subr.mxu0 0.0
  %593 = vmatpush1.msra.mxu0 %v11
  %594 = vmatprep.subr.mxu0 0.0
  %595 = vmatpush1.msra.mxu0 %v12
  %596 = vmatprep.subr.mxu0 0.0
  %597 = vmatpush1.msra.mxu0 %v13
  %598 = vmatprep.subr.mxu0 0.0
  %599 = vmatpush1.msra.mxu0 %v14
  %600 = vmatprep.subr.mxu0 0.0
  %601 = vmatpush1.msra.mxu0 0.0
  %602 = vmatprep.subr.mxu0 0.0
  %603 = vmatpush1.msra.mxu0 0.0
  %604 = vmatprep.subr.mxu0 0.0
  %605 = vmatpush1.msra.mxu0 0.0
  %606 = vmatprep.subr.mxu0 0.0
  %607 = vmatpush1.msra.mxu0 0.0
  %608 = vmatprep.subr.mxu0 0.0
  %609 = vmatpush1.msra.mxu0 0.0
  %610 = vmatprep.subr.mxu0 0.0
  %611 = vmatpush1.msra.mxu0 0.0
  %612 = vmatprep.subr.mxu0 0.0
  %613 = vmatpush1.msra.mxu0 0.0
  %614 = vmatprep.subr.mxu0 0.0
  %615 = vmatpush1.msra.mxu0 0.0
  %616 = vmatprep.subr.mxu0 0.0
  %617 = vmatpush1.msra.mxu0 0.0
  %618 = vmatprep.subr.mxu0 0.0
  %619 = vmatpush1.msra.mxu0 0.0
  %620 = vmatprep.subr.mxu0 0.0
  %621 = vmatpush1.msra.mxu0 0.0
  %622 = vmatprep.subr.mxu0 0.0
  %623 = vmatpush1.msra.mxu0 0.0
  %624 = vmatprep.subr.mxu0 0.0
  %625 = vmatpush1.msra.mxu0 0.0
  %626 = vmatprep.subr.mxu0 0.0
  %627 = vmatpush1.msra.mxu0 0.0
  %628 = vmatprep.subr.mxu0 0.0
  %629 = vmatpush1.msra.mxu0 0.0
  %630 = vmatprep.subr.mxu0 0.0
  %631 = vmatpush1.msra.mxu0 0.0
  %632 = vmatprep.subr.mxu0 0.0
  %633 = vmatpush1.msra.mxu0 0.0
  %634 = vmatprep.subr.mxu0 0.0
  %635 = vmatpush1.msra.mxu0 0.0
  %636 = vmatprep.subr.mxu0 0.0
  %637 = vmatpush1.msra.mxu0 0.0
  %638 = vmatprep.subr.mxu0 0.0
  %639 = vmatpush1.msra.mxu0 0.0
  %640 = vmatprep.subr.mxu0 0.0
  %641 = vmatpush1.msra.mxu0 0.0
  %642 = vmatprep.subr.mxu0 0.0
  %643 = vmatpush1.msra.mxu0 0.0
  %644 = vmatprep.subr.mxu0 0.0
  %645 = vmatpush1.msra.mxu0 0.0
  %646 = vmatprep.subr.mxu0 0.0
  %647 = vmatpush1.msra.mxu0 0.0
  %648 = vmatprep.subr.mxu0 0.0
  %649 = vmatpush1.msra.mxu0 0.0
  %650 = vmatprep.subr.mxu0 0.0
  %651 = vmatpush1.msra.mxu0 0.0
  %652 = vmatprep.subr.mxu0 0.0
  %653 = vmatpush1.msra.mxu0 0.0
  %654 = vmatprep.subr.mxu0 0.0
  %655 = vmatpush1.msra.mxu0 0.0
  %656 = vmatprep.mubr.f32.mxu0 0.0
  %657 = vmatmul.mubr.f32.gmra.mrb[0].mxu0 %v588
  %v658 = vpop.f32.mrb[0].mxu0
  %v659 = vadd.f32 0.0, %v658
  %v660 = vpop.f32.mrb[0].mxu0
  %661 = vmatprep.mubr.f32.mxu0 0.0
  %662 = vmatmul.mubr.f32.gmra.mrb[0].mxu0 %v590
  %v663 = vpop.f32.mrb[0].mxu0
  %v664 = vadd.f32 0.0, %v663
  %v665 = vpop.f32.mrb[0].mxu0
  %666 = vdwg.mxu0
  %v667 = vadd.f32 %v586, %v659
  %v668 = vadd.f32 %v587, %v664
  %v669 = vxor.u32 %v667, 2147483648
  %v670 = vxor.u32 %v668, 2147483648
  %v671 = vmul.f32 %v669, 1.442695
  %v672 = vpow.pop %v671
  %v673 = vmul.f32 %v670, 1.442695
  %v674 = vpow.pop %v673
  %v675 = vadd.f32 %v672, 1.0
  %v676 = vadd.f32 %v674, 1.0
  %v677 = vrcp.pop %v675
  %v678 = vmul.f32 1.0, %v677
  %v679 = vrcp.pop %v676
  %v680 = vmul.f32 1.0, %v679
  %v681 = vtanh.pop %v667
  %v682 = vtanh.pop %v668
  %v683 = vmul.f32 %v678, %v560
  %v684 = vmul.f32 %v680, %v561
  %687 = vrot.lane.b32.xlu0 %v681, 64
  %v688 = vpop.permute.xlu0 %687
  %689 = vrot.lane.b32.xlu0 %v682, 64
  %v690 = vpop.permute.xlu0 %689
  %v693 = vmul.f32 %v678, %v688
  %v694 = vmul.f32 %v680, %v690
  %697 = vrot.lane.b32.xlu0 %v693, 32
  %v698 = vpop.permute.xlu0 %697
  %699 = vrot.lane.b32.xlu0 %v694, 32
  %v700 = vpop.permute.xlu0 %699
  %v703 = vadd.f32 %v683, %v698
  %v704 = vadd.f32 %v684, %v700
  %v705 = vtanh.pop %v703
  %v706 = vtanh.pop %v704
  %709 = vrot.lane.b32.xlu0 %v705, 64
  %v710 = vpop.permute.xlu0 %709
  %711 = vrot.lane.b32.xlu0 %v706, 64
  %v712 = vpop.permute.xlu0 %711
  %v715 = vmul.f32 %v678, %v710
  %v716 = vmul.f32 %v680, %v712
  %719 = vrot.lane.b32.xlu0 %v715, 32
  %v720 = vpop.permute.xlu0 %719
  %721 = vrot.lane.b32.xlu0 %v716, 32
  %v722 = vpop.permute.xlu0 %721
  %s725 = scalar_lea.vmem %s2, 64
  %726 = vst.msk [vmem:[%s725] sm:$0xff] %vm17, %v720
  %727 = vst.msk [vmem:[%s725 + $0x8] sm:$0xff] %vm17, %v722
  %s728 = scalar_lea.vmem %s0, 80
  %v729 = vld [vmem:[%s728] sm:$0xff]
  %v730 = vld [vmem:[%s728 + $0x8] sm:$0xff]
  %v731 = vsel %vm17, %v720, 0
  %v733 = vsel %vm17, %v722, 0
  %735 = vmatprep.subr.mxu0 0.0
  %736 = vmatpush1.msra.mxu0 %v11
  %737 = vmatprep.subr.mxu0 0.0
  %738 = vmatpush1.msra.mxu0 %v12
  %739 = vmatprep.subr.mxu0 0.0
  %740 = vmatpush1.msra.mxu0 %v13
  %741 = vmatprep.subr.mxu0 0.0
  %742 = vmatpush1.msra.mxu0 %v14
  %743 = vmatprep.subr.mxu0 0.0
  %744 = vmatpush1.msra.mxu0 0.0
  %745 = vmatprep.subr.mxu0 0.0
  %746 = vmatpush1.msra.mxu0 0.0
  %747 = vmatprep.subr.mxu0 0.0
  %748 = vmatpush1.msra.mxu0 0.0
  %749 = vmatprep.subr.mxu0 0.0
  %750 = vmatpush1.msra.mxu0 0.0
  %751 = vmatprep.subr.mxu0 0.0
  %752 = vmatpush1.msra.mxu0 0.0
  %753 = vmatprep.subr.mxu0 0.0
  %754 = vmatpush1.msra.mxu0 0.0
  %755 = vmatprep.subr.mxu0 0.0
  %756 = vmatpush1.msra.mxu0 0.0
  %757 = vmatprep.subr.mxu0 0.0
  %758 = vmatpush1.msra.mxu0 0.0
  %759 = vmatprep.subr.mxu0 0.0
  %760 = vmatpush1.msra.mxu0 0.0
  %761 = vmatprep.subr.mxu0 0.0
  %762 = vmatpush1.msra.mxu0 0.0
  %763 = vmatprep.subr.mxu0 0.0
  %764 = vmatpush1.msra.mxu0 0.0
  %765 = vmatprep.subr.mxu0 0.0
  %766 = vmatpush1.msra.mxu0 0.0
  %767 = vmatprep.subr.mxu0 0.0
  %768 = vmatpush1.msra.mxu0 0.0
  %769 = vmatprep.subr.mxu0 0.0
  %770 = vmatpush1.msra.mxu0 0.0
  %771 = vmatprep.subr.mxu0 0.0
  %772 = vmatpush1.msra.mxu0 0.0
  %773 = vmatprep.subr.mxu0 0.0
  %774 = vmatpush1.msra.mxu0 0.0
  %775 = vmatprep.subr.mxu0 0.0
  %776 = vmatpush1.msra.mxu0 0.0
  %777 = vmatprep.subr.mxu0 0.0
  %778 = vmatpush1.msra.mxu0 0.0
  %779 = vmatprep.subr.mxu0 0.0
  %780 = vmatpush1.msra.mxu0 0.0
  %781 = vmatprep.subr.mxu0 0.0
  %782 = vmatpush1.msra.mxu0 0.0
  %783 = vmatprep.subr.mxu0 0.0
  %784 = vmatpush1.msra.mxu0 0.0
  %785 = vmatprep.subr.mxu0 0.0
  %786 = vmatpush1.msra.mxu0 0.0
  %787 = vmatprep.subr.mxu0 0.0
  %788 = vmatpush1.msra.mxu0 0.0
  %789 = vmatprep.subr.mxu0 0.0
  %790 = vmatpush1.msra.mxu0 0.0
  %791 = vmatprep.subr.mxu0 0.0
  %792 = vmatpush1.msra.mxu0 0.0
  %793 = vmatprep.subr.mxu0 0.0
  %794 = vmatpush1.msra.mxu0 0.0
  %795 = vmatprep.subr.mxu0 0.0
  %796 = vmatpush1.msra.mxu0 0.0
  %797 = vmatprep.subr.mxu0 0.0
  %798 = vmatpush1.msra.mxu0 0.0
  %799 = vmatprep.mubr.f32.mxu0 0.0
  %800 = vmatmul.mubr.f32.gmra.mrb[0].mxu0 %v731
  %v801 = vpop.f32.mrb[0].mxu0
  %v802 = vadd.f32 0.0, %v801
  %v803 = vpop.f32.mrb[0].mxu0
  %804 = vmatprep.mubr.f32.mxu0 0.0
  %805 = vmatmul.mubr.f32.gmra.mrb[0].mxu0 %v733
  %v806 = vpop.f32.mrb[0].mxu0
  %v807 = vadd.f32 0.0, %v806
  %v808 = vpop.f32.mrb[0].mxu0
  %809 = vdwg.mxu0
  %v810 = vadd.f32 %v729, %v802
  %v811 = vadd.f32 %v730, %v807
  %v812 = vxor.u32 %v810, 2147483648
  %v813 = vxor.u32 %v811, 2147483648
  %v814 = vmul.f32 %v812, 1.442695
  %v815 = vpow.pop %v814
  %v816 = vmul.f32 %v813, 1.442695
  %v817 = vpow.pop %v816
  %v818 = vadd.f32 %v815, 1.0
  %v819 = vadd.f32 %v817, 1.0
  %v820 = vrcp.pop %v818
  %v821 = vmul.f32 1.0, %v820
  %v822 = vrcp.pop %v819
  %v823 = vmul.f32 1.0, %v822
  %v824 = vtanh.pop %v810
  %v825 = vtanh.pop %v811
  %v826 = vmul.f32 %v821, %v703
  %v827 = vmul.f32 %v823, %v704
  %830 = vrot.lane.b32.xlu0 %v824, 64
  %v831 = vpop.permute.xlu0 %830
  %832 = vrot.lane.b32.xlu0 %v825, 64
  %v833 = vpop.permute.xlu0 %832
  %v836 = vmul.f32 %v821, %v831
  %v837 = vmul.f32 %v823, %v833
  %840 = vrot.lane.b32.xlu0 %v836, 32
  %v841 = vpop.permute.xlu0 %840
  %842 = vrot.lane.b32.xlu0 %v837, 32
  %v843 = vpop.permute.xlu0 %842
  %v846 = vadd.f32 %v826, %v841
  %v847 = vadd.f32 %v827, %v843
  %v848 = vtanh.pop %v846
  %v849 = vtanh.pop %v847
  %852 = vrot.lane.b32.xlu0 %v848, 64
  %v853 = vpop.permute.xlu0 %852
  %854 = vrot.lane.b32.xlu0 %v849, 64
  %v855 = vpop.permute.xlu0 %854
  %v858 = vmul.f32 %v821, %v853
  %v859 = vmul.f32 %v823, %v855
  %862 = vrot.lane.b32.xlu0 %v858, 32
  %v863 = vpop.permute.xlu0 %862
  %864 = vrot.lane.b32.xlu0 %v859, 32
  %v865 = vpop.permute.xlu0 %864
  %s868 = scalar_lea.vmem %s2, 80
  %869 = vst.msk [vmem:[%s868] sm:$0xff] %vm17, %v863
  %870 = vst.msk [vmem:[%s868 + $0x8] sm:$0xff] %vm17, %v865
  %s871 = scalar_lea.vmem %s0, 96
  %v872 = vld [vmem:[%s871] sm:$0xff]
  %v873 = vld [vmem:[%s871 + $0x8] sm:$0xff]
  %v874 = vsel %vm17, %v863, 0
  %v876 = vsel %vm17, %v865, 0
  %878 = vmatprep.subr.mxu0 0.0
  %879 = vmatpush1.msra.mxu0 %v11
  %880 = vmatprep.subr.mxu0 0.0
  %881 = vmatpush1.msra.mxu0 %v12
  %882 = vmatprep.subr.mxu0 0.0
  %883 = vmatpush1.msra.mxu0 %v13
  %884 = vmatprep.subr.mxu0 0.0
  %885 = vmatpush1.msra.mxu0 %v14
  %886 = vmatprep.subr.mxu0 0.0
  %887 = vmatpush1.msra.mxu0 0.0
  %888 = vmatprep.subr.mxu0 0.0
  %889 = vmatpush1.msra.mxu0 0.0
  %890 = vmatprep.subr.mxu0 0.0
  %891 = vmatpush1.msra.mxu0 0.0
  %892 = vmatprep.subr.mxu0 0.0
  %893 = vmatpush1.msra.mxu0 0.0
  %894 = vmatprep.subr.mxu0 0.0
  %895 = vmatpush1.msra.mxu0 0.0
  %896 = vmatprep.subr.mxu0 0.0
  %897 = vmatpush1.msra.mxu0 0.0
  %898 = vmatprep.subr.mxu0 0.0
  %899 = vmatpush1.msra.mxu0 0.0
  %900 = vmatprep.subr.mxu0 0.0
  %901 = vmatpush1.msra.mxu0 0.0
  %902 = vmatprep.subr.mxu0 0.0
  %903 = vmatpush1.msra.mxu0 0.0
  %904 = vmatprep.subr.mxu0 0.0
  %905 = vmatpush1.msra.mxu0 0.0
  %906 = vmatprep.subr.mxu0 0.0
  %907 = vmatpush1.msra.mxu0 0.0
  %908 = vmatprep.subr.mxu0 0.0
  %909 = vmatpush1.msra.mxu0 0.0
  %910 = vmatprep.subr.mxu0 0.0
  %911 = vmatpush1.msra.mxu0 0.0
  %912 = vmatprep.subr.mxu0 0.0
  %913 = vmatpush1.msra.mxu0 0.0
  %914 = vmatprep.subr.mxu0 0.0
  %915 = vmatpush1.msra.mxu0 0.0
  %916 = vmatprep.subr.mxu0 0.0
  %917 = vmatpush1.msra.mxu0 0.0
  %918 = vmatprep.subr.mxu0 0.0
  %919 = vmatpush1.msra.mxu0 0.0
  %920 = vmatprep.subr.mxu0 0.0
  %921 = vmatpush1.msra.mxu0 0.0
  %922 = vmatprep.subr.mxu0 0.0
  %923 = vmatpush1.msra.mxu0 0.0
  %924 = vmatprep.subr.mxu0 0.0
  %925 = vmatpush1.msra.mxu0 0.0
  %926 = vmatprep.subr.mxu0 0.0
  %927 = vmatpush1.msra.mxu0 0.0
  %928 = vmatprep.subr.mxu0 0.0
  %929 = vmatpush1.msra.mxu0 0.0
  %930 = vmatprep.subr.mxu0 0.0
  %931 = vmatpush1.msra.mxu0 0.0
  %932 = vmatprep.subr.mxu0 0.0
  %933 = vmatpush1.msra.mxu0 0.0
  %934 = vmatprep.subr.mxu0 0.0
  %935 = vmatpush1.msra.mxu0 0.0
  %936 = vmatprep.subr.mxu0 0.0
  %937 = vmatpush1.msra.mxu0 0.0
  %938 = vmatprep.subr.mxu0 0.0
  %939 = vmatpush1.msra.mxu0 0.0
  %940 = vmatprep.subr.mxu0 0.0
  %941 = vmatpush1.msra.mxu0 0.0
  %942 = vmatprep.mubr.f32.mxu0 0.0
  %943 = vmatmul.mubr.f32.gmra.mrb[0].mxu0 %v874
  %v944 = vpop.f32.mrb[0].mxu0
  %v945 = vadd.f32 0.0, %v944
  %v946 = vpop.f32.mrb[0].mxu0
  %947 = vmatprep.mubr.f32.mxu0 0.0
  %948 = vmatmul.mubr.f32.gmra.mrb[0].mxu0 %v876
  %v949 = vpop.f32.mrb[0].mxu0
  %v950 = vadd.f32 0.0, %v949
  %v951 = vpop.f32.mrb[0].mxu0
  %952 = vdwg.mxu0
  %v953 = vadd.f32 %v872, %v945
  %v954 = vadd.f32 %v873, %v950
  %v955 = vxor.u32 %v953, 2147483648
  %v956 = vxor.u32 %v954, 2147483648
  %v957 = vmul.f32 %v955, 1.442695
  %v958 = vpow.pop %v957
  %v959 = vmul.f32 %v956, 1.442695
  %v960 = vpow.pop %v959
  %v961 = vadd.f32 %v958, 1.0
  %v962 = vadd.f32 %v960, 1.0
  %v963 = vrcp.pop %v961
  %v964 = vmul.f32 1.0, %v963
  %v965 = vrcp.pop %v962
  %v966 = vmul.f32 1.0, %v965
  %v967 = vtanh.pop %v953
  %v968 = vtanh.pop %v954
  %v969 = vmul.f32 %v964, %v846
  %v970 = vmul.f32 %v966, %v847
  %973 = vrot.lane.b32.xlu0 %v967, 64
  %v974 = vpop.permute.xlu0 %973
  %975 = vrot.lane.b32.xlu0 %v968, 64
  %v976 = vpop.permute.xlu0 %975
  %v979 = vmul.f32 %v964, %v974
  %v980 = vmul.f32 %v966, %v976
  %983 = vrot.lane.b32.xlu0 %v979, 32
  %v984 = vpop.permute.xlu0 %983
  %985 = vrot.lane.b32.xlu0 %v980, 32
  %v986 = vpop.permute.xlu0 %985
  %v989 = vadd.f32 %v969, %v984
  %v990 = vadd.f32 %v970, %v986
  %v991 = vtanh.pop %v989
  %v992 = vtanh.pop %v990
  %995 = vrot.lane.b32.xlu0 %v991, 64
  %v996 = vpop.permute.xlu0 %995
  %997 = vrot.lane.b32.xlu0 %v992, 64
  %v998 = vpop.permute.xlu0 %997
  %v1001 = vmul.f32 %v964, %v996
  %v1002 = vmul.f32 %v966, %v998
  %1005 = vrot.lane.b32.xlu0 %v1001, 32
  %v1006 = vpop.permute.xlu0 %1005
  %1007 = vrot.lane.b32.xlu0 %v1002, 32
  %v1008 = vpop.permute.xlu0 %1007
  %s1011 = scalar_lea.vmem %s2, 96
  %1012 = vst.msk [vmem:[%s1011] sm:$0xff] %vm17, %v1006
  %1013 = vst.msk [vmem:[%s1011 + $0x8] sm:$0xff] %vm17, %v1008
  %s1014 = scalar_lea.vmem %s0, 112
  %v1015 = vld [vmem:[%s1014] sm:$0xff]
  %v1016 = vld [vmem:[%s1014 + $0x8] sm:$0xff]
  %v1017 = vsel %vm17, %v1006, 0
  %v1019 = vsel %vm17, %v1008, 0
  %1021 = vmatprep.subr.mxu0 0.0
  %1022 = vmatpush1.msra.mxu0 %v11
  %1023 = vmatprep.subr.mxu0 0.0
  %1024 = vmatpush1.msra.mxu0 %v12
  %1025 = vmatprep.subr.mxu0 0.0
  %1026 = vmatpush1.msra.mxu0 %v13
  %1027 = vmatprep.subr.mxu0 0.0
  %1028 = vmatpush1.msra.mxu0 %v14
  %1029 = vmatprep.subr.mxu0 0.0
  %1030 = vmatpush1.msra.mxu0 0.0
  %1031 = vmatprep.subr.mxu0 0.0
  %1032 = vmatpush1.msra.mxu0 0.0
  %1033 = vmatprep.subr.mxu0 0.0
  %1034 = vmatpush1.msra.mxu0 0.0
  %1035 = vmatprep.subr.mxu0 0.0
  %1036 = vmatpush1.msra.mxu0 0.0
  %1037 = vmatprep.subr.mxu0 0.0
  %1038 = vmatpush1.msra.mxu0 0.0
  %1039 = vmatprep.subr.mxu0 0.0
  %1040 = vmatpush1.msra.mxu0 0.0
  %1041 = vmatprep.subr.mxu0 0.0
  %1042 = vmatpush1.msra.mxu0 0.0
  %1043 = vmatprep.subr.mxu0 0.0
  %1044 = vmatpush1.msra.mxu0 0.0
  %1045 = vmatprep.subr.mxu0 0.0
  %1046 = vmatpush1.msra.mxu0 0.0
  %1047 = vmatprep.subr.mxu0 0.0
  %1048 = vmatpush1.msra.mxu0 0.0
  %1049 = vmatprep.subr.mxu0 0.0
  %1050 = vmatpush1.msra.mxu0 0.0
  %1051 = vmatprep.subr.mxu0 0.0
  %1052 = vmatpush1.msra.mxu0 0.0
  %1053 = vmatprep.subr.mxu0 0.0
  %1054 = vmatpush1.msra.mxu0 0.0
  %1055 = vmatprep.subr.mxu0 0.0
  %1056 = vmatpush1.msra.mxu0 0.0
  %1057 = vmatprep.subr.mxu0 0.0
  %1058 = vmatpush1.msra.mxu0 0.0
  %1059 = vmatprep.subr.mxu0 0.0
  %1060 = vmatpush1.msra.mxu0 0.0
  %1061 = vmatprep.subr.mxu0 0.0
  %1062 = vmatpush1.msra.mxu0 0.0
  %1063 = vmatprep.subr.mxu0 0.0
  %1064 = vmatpush1.msra.mxu0 0.0
  %1065 = vmatprep.subr.mxu0 0.0
  %1066 = vmatpush1.msra.mxu0 0.0
  %1067 = vmatprep.subr.mxu0 0.0
  %1068 = vmatpush1.msra.mxu0 0.0
  %1069 = vmatprep.subr.mxu0 0.0
  %1070 = vmatpush1.msra.mxu0 0.0
  %1071 = vmatprep.subr.mxu0 0.0
  %1072 = vmatpush1.msra.mxu0 0.0
  %1073 = vmatprep.subr.mxu0 0.0
  %1074 = vmatpush1.msra.mxu0 0.0
  %1075 = vmatprep.subr.mxu0 0.0
  %1076 = vmatpush1.msra.mxu0 0.0
  %1077 = vmatprep.subr.mxu0 0.0
  %1078 = vmatpush1.msra.mxu0 0.0
  %1079 = vmatprep.subr.mxu0 0.0
  %1080 = vmatpush1.msra.mxu0 0.0
  %1081 = vmatprep.subr.mxu0 0.0
  %1082 = vmatpush1.msra.mxu0 0.0
  %1083 = vmatprep.subr.mxu0 0.0
  %1084 = vmatpush1.msra.mxu0 0.0
  %1085 = vmatprep.mubr.f32.mxu0 0.0
  %1086 = vmatmul.mubr.f32.gmra.mrb[0].mxu0 %v1017
  %v1087 = vpop.f32.mrb[0].mxu0
  %v1088 = vadd.f32 0.0, %v1087
  %v1089 = vpop.f32.mrb[0].mxu0
  %1090 = vmatprep.mubr.f32.mxu0 0.0
  %1091 = vmatmul.mubr.f32.gmra.mrb[0].mxu0 %v1019
  %v1092 = vpop.f32.mrb[0].mxu0
  %v1093 = vadd.f32 0.0, %v1092
  %v1094 = vpop.f32.mrb[0].mxu0
  %1095 = vdwg.mxu0
  %v1096 = vadd.f32 %v1015, %v1088
  %v1097 = vadd.f32 %v1016, %v1093
  %v1098 = vxor.u32 %v1096, 2147483648
  %v1099 = vxor.u32 %v1097, 2147483648
  %v1100 = vmul.f32 %v1098, 1.442695
  %v1101 = vpow.pop %v1100
  %v1102 = vmul.f32 %v1099, 1.442695
  %v1103 = vpow.pop %v1102
  %v1104 = vadd.f32 %v1101, 1.0
  %v1105 = vadd.f32 %v1103, 1.0
  %v1106 = vrcp.pop %v1104
  %v1107 = vmul.f32 1.0, %v1106
  %v1108 = vrcp.pop %v1105
  %v1109 = vmul.f32 1.0, %v1108
  %v1110 = vtanh.pop %v1096
  %v1111 = vtanh.pop %v1097
  %v1112 = vmul.f32 %v1107, %v989
  %v1113 = vmul.f32 %v1109, %v990
  %1116 = vrot.lane.b32.xlu0 %v1110, 64
  %v1117 = vpop.permute.xlu0 %1116
  %1118 = vrot.lane.b32.xlu0 %v1111, 64
  %v1119 = vpop.permute.xlu0 %1118
  %v1122 = vmul.f32 %v1107, %v1117
  %v1123 = vmul.f32 %v1109, %v1119
  %1126 = vrot.lane.b32.xlu0 %v1122, 32
  %v1127 = vpop.permute.xlu0 %1126
  %1128 = vrot.lane.b32.xlu0 %v1123, 32
  %v1129 = vpop.permute.xlu0 %1128
  %v1132 = vadd.f32 %v1112, %v1127
  %v1133 = vadd.f32 %v1113, %v1129
  %v1134 = vtanh.pop %v1132
  %v1135 = vtanh.pop %v1133
  %1138 = vrot.lane.b32.xlu0 %v1134, 64
  %v1139 = vpop.permute.xlu0 %1138
  %1140 = vrot.lane.b32.xlu0 %v1135, 64
  %v1141 = vpop.permute.xlu0 %1140
  %v1144 = vmul.f32 %v1107, %v1139
  %v1145 = vmul.f32 %v1109, %v1141
  %1148 = vrot.lane.b32.xlu0 %v1144, 32
  %v1149 = vpop.permute.xlu0 %1148
  %1150 = vrot.lane.b32.xlu0 %v1145, 32
  %v1151 = vpop.permute.xlu0 %1150
  %s1154 = scalar_lea.vmem %s2, 112
  %1155 = vst.msk [vmem:[%s1154] sm:$0xff] %vm17, %v1149
  %1156 = vst.msk [vmem:[%s1154 + $0x8] sm:$0xff] %vm17, %v1151
  // Predicated region
  $region10: #{_lambda_.46} parent=0 // pred_check
    _
  $region11: #{_lambda_.46} parent=0 // pred_check_branch
    %1158 = sbr.rel (0) target = $region13
  $region12: #{_lambda_.46} parent=0 // pred_region
    _
  $region13: #{_lambda_.46} parent=0 // pred_fallthru
    _
  // Predicated region
  $region14: #{_lambda_.46} parent=0 // pred_check
    _
  $region15: #{_lambda_.46} parent=0 // pred_check_branch
    %1160 = sbr.rel (0) target = $region17
  $region16: #{_lambda_.46} parent=0 // pred_region
    _
  $region17: #{_lambda_.46} parent=0 // pred_fallthru
    _

// kernel: _lambda_.49
$region0: #{_lambda_.49}
  #allocation0 [shape = 'u32[]', space=smem, size = 0x4, offset = 0x4, fixed_abs, tag = 'smem constant byte address 0x4 - core index']
  #allocation1 [shape = 'u32[144,128]{1,0:T(1,128)}', space=vmem, size = 0x12000, scoped, tag = 'internal scratch']
  #allocation2 [shape = 'f32[1,1]{1,0:T(1,128)S(1)}', space=vmem, size = 0x200, scoped, tag = 'scoped memory for _lambda_.49']
  %s0 = inlined_call_operand.vmem [shape: f32[128,16], index: 0, kind: input, shape index: {}]
  %s1 = inlined_call_operand.vmem [shape: f32[16,48], index: 1, kind: input, shape index: {}]
  %s2 = inlined_call_operand.vmem [shape: f32[1,48], index: 2, kind: input, shape index: {}]
  %s3 = inlined_call_operand.<no memory space> [shape: f32[1,1], index: 3, kind: input, shape index: {}]
  %s4 = inlined_call_operand.vmem [shape: f32[128,48], index: 4, kind: output, shape index: {}]
  %s5 = sld [smem:[#allocation0]]
  $region26: #{_lambda_.49} parent=0
    _
  %s7 = ssub.s32 1, %s5
  %s8 = scalar_select 0, %s7, %s5
  %v9 = vstv %s3
  %10 = vst [vmem:[#allocation2] sm:$0x1] %v9
  // Predicated region
  $region2: #{_lambda_.49} parent=0 // pred_check
    _
  $region3: #{_lambda_.49} parent=0 // pred_check_branch
    %12 = sbr.rel (0) target = $region5
  $region4: #{_lambda_.49} parent=0 // pred_region
    _
  $region5: #{_lambda_.49} parent=0 // pred_fallthru
    _
  // Predicated region
  $region6: #{_lambda_.49} parent=0 // pred_check
    _
  $region7: #{_lambda_.49} parent=0 // pred_check_branch
    %14 = sbr.rel (0) target = $region9
  $region8: #{_lambda_.49} parent=0 // pred_region
    _
  $region9: #{_lambda_.49} parent=0 // pred_fallthru
    _
  // Predicated region
  $region10: #{_lambda_.49} parent=0 // pred_check
    _
  $region11: #{_lambda_.49} parent=0 // pred_check_branch
    %16 = sbr.rel (0) target = $region13
  $region12: #{_lambda_.49} parent=0 // pred_region
    _
  $region13: #{_lambda_.49} parent=0 // pred_fallthru
    _
  // Predicated region
  $region14: #{_lambda_.49} parent=0 // pred_check
    _
  $region15: #{_lambda_.49} parent=0 // pred_check_branch
    %18 = sbr.rel (0) target = $region17
  $region16: #{_lambda_.49} parent=0 // pred_region
    _
  $region17: #{_lambda_.49} parent=0 // pred_fallthru
    _
  %v19 = vld [vmem:[%s0] sm:$0xff]
  %v20 = vld [vmem:[%s0 + $0x8] sm:$0xff]
  %v21 = vld [vmem:[%s0 + $0x10] sm:$0xff]
  %v22 = vld [vmem:[%s0 + $0x18] sm:$0xff]
  %v23 = vld [vmem:[%s0 + $0x20] sm:$0xff]
  %v24 = vld [vmem:[%s0 + $0x28] sm:$0xff]
  %v25 = vld [vmem:[%s0 + $0x30] sm:$0xff]
  %v26 = vld [vmem:[%s0 + $0x38] sm:$0xff]
  %v27 = vld [vmem:[%s0 + $0x40] sm:$0xff]
  %v28 = vld [vmem:[%s0 + $0x48] sm:$0xff]
  %v29 = vld [vmem:[%s0 + $0x50] sm:$0xff]
  %v30 = vld [vmem:[%s0 + $0x58] sm:$0xff]
  %v31 = vld [vmem:[%s0 + $0x60] sm:$0xff]
  %v32 = vld [vmem:[%s0 + $0x68] sm:$0xff]
  %v33 = vld [vmem:[%s0 + $0x70] sm:$0xff]
  %v34 = vld [vmem:[%s0 + $0x78] sm:$0xff]
  %v35 = vld [vmem:[%s1] sm:$0xff]
  %v36 = vld [vmem:[%s1 + $0x8] sm:$0xff]
  %v37 = vld [vmem:[%s2] sm:$0x1]
  %v39 = vlaneseq
  %v40 = vshrl.u32 %v39, 7
  %v41 = vsub.s32 0, %v40
  %v42 = vrot.slane %v37, %v41
  %vm44 = vcmask 130048
  %v46 = vsel %vm44, %v19, 0
  %v49 = vsel %vm44, %v20, 0
  %v52 = vsel %vm44, %v21, 0
  %v55 = vsel %vm44, %v22, 0
  %v58 = vsel %vm44, %v23, 0
  %v61 = vsel %vm44, %v24, 0
  %v64 = vsel %vm44, %v25, 0
  %v67 = vsel %vm44, %v26, 0
  %v70 = vsel %vm44, %v27, 0
  %v73 = vsel %vm44, %v28, 0
  %v76 = vsel %vm44, %v29, 0
  %v79 = vsel %vm44, %v30, 0
  %v82 = vsel %vm44, %v31, 0
  %v85 = vsel %vm44, %v32, 0
  %v88 = vsel %vm44, %v33, 0
  %v91 = vsel %vm44, %v34, 0
  %93 = vmatprep.subr.mxu0 0.0
  %94 = vmatpush1.msra.mxu0 %v35
  %95 = vmatprep.subr.mxu0 0.0
  %96 = vmatpush1.msra.mxu0 %v36
  %97 = vmatprep.subr.mxu0 0.0
  %98 = vmatpush1.msra.mxu0 0.0
  %99 = vmatprep.subr.mxu0 0.0
  %100 = vmatpush1.msra.mxu0 0.0
  %101 = vmatprep.subr.mxu0 0.0
  %102 = vmatpush1.msra.mxu0 0.0
  %103 = vmatprep.subr.mxu0 0.0
  %104 = vmatpush1.msra.mxu0 0.0
  %105 = vmatprep.subr.mxu0 0.0
  %106 = vmatpush1.msra.mxu0 0.0
  %107 = vmatprep.subr.mxu0 0.0
  %108 = vmatpush1.msra.mxu0 0.0
  %109 = vmatprep.subr.mxu0 0.0
  %110 = vmatpush1.msra.mxu0 0.0
  %111 = vmatprep.subr.mxu0 0.0
  %112 = vmatpush1.msra.mxu0 0.0
  %113 = vmatprep.subr.mxu0 0.0
  %114 = vmatpush1.msra.mxu0 0.0
  %115 = vmatprep.subr.mxu0 0.0
  %116 = vmatpush1.msra.mxu0 0.0
  %117 = vmatprep.subr.mxu0 0.0
  %118 = vmatpush1.msra.mxu0 0.0
  %119 = vmatprep.subr.mxu0 0.0
  %120 = vmatpush1.msra.mxu0 0.0
  %121 = vmatprep.subr.mxu0 0.0
  %122 = vmatpush1.msra.mxu0 0.0
  %123 = vmatprep.subr.mxu0 0.0
  %124 = vmatpush1.msra.mxu0 0.0
  %125 = vmatprep.subr.mxu0 0.0
  %126 = vmatpush1.msra.mxu0 0.0
  %127 = vmatprep.subr.mxu0 0.0
  %128 = vmatpush1.msra.mxu0 0.0
  %129 = vmatprep.subr.mxu0 0.0
  %130 = vmatpush1.msra.mxu0 0.0
  %131 = vmatprep.subr.mxu0 0.0
  %132 = vmatpush1.msra.mxu0 0.0
  %133 = vmatprep.subr.mxu0 0.0
  %134 = vmatpush1.msra.mxu0 0.0
  %135 = vmatprep.subr.mxu0 0.0
  %136 = vmatpush1.msra.mxu0 0.0
  %137 = vmatprep.subr.mxu0 0.0
  %138 = vmatpush1.msra.mxu0 0.0
  %139 = vmatprep.subr.mxu0 0.0
  %140 = vmatpush1.msra.mxu0 0.0
  %141 = vmatprep.subr.mxu0 0.0
  %142 = vmatpush1.msra.mxu0 0.0
  %143 = vmatprep.subr.mxu0 0.0
  %144 = vmatpush1.msra.mxu0 0.0
  %145 = vmatprep.subr.mxu0 0.0
  %146 = vmatpush1.msra.mxu0 0.0
  %147 = vmatprep.subr.mxu0 0.0
  %148 = vmatpush1.msra.mxu0 0.0
  %149 = vmatprep.subr.mxu0 0.0
  %150 = vmatpush1.msra.mxu0 0.0
  %151 = vmatprep.subr.mxu0 0.0
  %152 = vmatpush1.msra.mxu0 0.0
  %153 = vmatprep.subr.mxu0 0.0
  %154 = vmatpush1.msra.mxu0 0.0
  %155 = vmatprep.subr.mxu0 0.0
  %156 = vmatpush1.msra.mxu0 0.0
  %157 = vmatprep.mubr.f32.mxu0 0.0
  %158 = vmatmul.mubr.f32.gmra.mrb[0].mxu0 %v46
  %v159 = vpop.f32.mrb[0].mxu0
  %v160 = vadd.f32 %v42, %v159
  %v161 = vpop.f32.mrb[0].mxu0
  %162 = vmatprep.mubr.f32.mxu0 0.0
  %163 = vmatmul.mubr.f32.gmra.mrb[0].mxu0 %v49
  %v164 = vpop.f32.mrb[0].mxu0
  %v165 = vadd.f32 %v42, %v164
  %v166 = vpop.f32.mrb[0].mxu0
  %167 = vmatprep.mubr.f32.mxu0 0.0
  %168 = vmatmul.mubr.f32.gmra.mrb[0].mxu0 %v52
  %v169 = vpop.f32.mrb[0].mxu0
  %v170 = vadd.f32 %v42, %v169
  %v171 = vpop.f32.mrb[0].mxu0
  %172 = vmatprep.mubr.f32.mxu0 0.0
  %173 = vmatmul.mubr.f32.gmra.mrb[0].mxu0 %v55
  %v174 = vpop.f32.mrb[0].mxu0
  %v175 = vadd.f32 %v42, %v174
  %v176 = vpop.f32.mrb[0].mxu0
  %177 = vmatprep.mubr.f32.mxu0 0.0
  %178 = vmatmul.mubr.f32.gmra.mrb[0].mxu0 %v58
  %v179 = vpop.f32.mrb[0].mxu0
  %v180 = vadd.f32 %v42, %v179
  %v181 = vpop.f32.mrb[0].mxu0
  %182 = vmatprep.mubr.f32.mxu0 0.0
  %183 = vmatmul.mubr.f32.gmra.mrb[0].mxu0 %v61
  %v184 = vpop.f32.mrb[0].mxu0
  %v185 = vadd.f32 %v42, %v184
  %v186 = vpop.f32.mrb[0].mxu0
  %187 = vmatprep.mubr.f32.mxu0 0.0
  %188 = vmatmul.mubr.f32.gmra.mrb[0].mxu0 %v64
  %v189 = vpop.f32.mrb[0].mxu0
  %v190 = vadd.f32 %v42, %v189
  %v191 = vpop.f32.mrb[0].mxu0
  %192 = vmatprep.mubr.f32.mxu0 0.0
  %193 = vmatmul.mubr.f32.gmra.mrb[0].mxu0 %v67
  %v194 = vpop.f32.mrb[0].mxu0
  %v195 = vadd.f32 %v42, %v194
  %v196 = vpop.f32.mrb[0].mxu0
  %197 = vmatprep.mubr.f32.mxu0 0.0
  %198 = vmatmul.mubr.f32.gmra.mrb[0].mxu0 %v70
  %v199 = vpop.f32.mrb[0].mxu0
  %v200 = vadd.f32 %v42, %v199
  %v201 = vpop.f32.mrb[0].mxu0
  %202 = vmatprep.mubr.f32.mxu0 0.0
  %203 = vmatmul.mubr.f32.gmra.mrb[0].mxu0 %v73
  %v204 = vpop.f32.mrb[0].mxu0
  %v205 = vadd.f32 %v42, %v204
  %v206 = vpop.f32.mrb[0].mxu0
  %207 = vmatprep.mubr.f32.mxu0 0.0
  %208 = vmatmul.mubr.f32.gmra.mrb[0].mxu0 %v76
  %v209 = vpop.f32.mrb[0].mxu0
  %v210 = vadd.f32 %v42, %v209
  %v211 = vpop.f32.mrb[0].mxu0
  %212 = vmatprep.mubr.f32.mxu0 0.0
  %213 = vmatmul.mubr.f32.gmra.mrb[0].mxu0 %v79
  %v214 = vpop.f32.mrb[0].mxu0
  %v215 = vadd.f32 %v42, %v214
  %v216 = vpop.f32.mrb[0].mxu0
  %217 = vmatprep.mubr.f32.mxu0 0.0
  %218 = vmatmul.mubr.f32.gmra.mrb[0].mxu0 %v82
  %v219 = vpop.f32.mrb[0].mxu0
  %v220 = vadd.f32 %v42, %v219
  %v221 = vpop.f32.mrb[0].mxu0
  %222 = vmatprep.mubr.f32.mxu0 0.0
  %223 = vmatmul.mubr.f32.gmra.mrb[0].mxu0 %v85
  %v224 = vpop.f32.mrb[0].mxu0
  %v225 = vadd.f32 %v42, %v224
  %v226 = vpop.f32.mrb[0].mxu0
  %227 = vmatprep.mubr.f32.mxu0 0.0
  %228 = vmatmul.mubr.f32.gmra.mrb[0].mxu0 %v88
  %v229 = vpop.f32.mrb[0].mxu0
  %v230 = vadd.f32 %v42, %v229
  %v231 = vpop.f32.mrb[0].mxu0
  %232 = vmatprep.mubr.f32.mxu0 0.0
  %233 = vmatmul.mubr.f32.gmra.mrb[0].mxu0 %v91
  %v234 = vpop.f32.mrb[0].mxu0
  %v235 = vadd.f32 %v42, %v234
  %v236 = vpop.f32.mrb[0].mxu0
  %237 = vdwg.mxu0
  %v238 = vld [vmem:[#allocation2] sm:$0x1]
  %vm239 = vcmp.ge.f32.partialorder %v160, 0.0
  %vm240 = vcmp.ge.f32.partialorder %v165, 0.0
  %vm241 = vcmp.ge.f32.partialorder %v170, 0.0
  %vm242 = vcmp.ge.f32.partialorder %v175, 0.0
  %vm243 = vcmp.ge.f32.partialorder %v180, 0.0
  %vm244 = vcmp.ge.f32.partialorder %v185, 0.0
  %vm245 = vcmp.ge.f32.partialorder %v190, 0.0
  %vm246 = vcmp.ge.f32.partialorder %v195, 0.0
  %vm247 = vcmp.ge.f32.partialorder %v200, 0.0
  %vm248 = vcmp.ge.f32.partialorder %v205, 0.0
  %vm249 = vcmp.ge.f32.partialorder %v210, 0.0
  %vm250 = vcmp.ge.f32.partialorder %v215, 0.0
  %vm251 = vcmp.ge.f32.partialorder %v220, 0.0
  %vm252 = vcmp.ge.f32.partialorder %v225, 0.0
  %vm253 = vcmp.ge.f32.partialorder %v230, 0.0
  %vm254 = vcmp.ge.f32.partialorder %v235, 0.0
  %v256 = vlaneseq
  %v257 = vshrl.u32 %v256, 7
  %v258 = vsub.s32 0, %v257
  %v259 = vrot.slane %v238, %v258
  %260 = vset.pattern.permute.xlu0 0
  %261 = vperm.xlu0 %260, %v259
  %v262 = vpop.permute.xlu0 %261
  %v264 = vmul.f32 %v160, %v262
  %v265 = vmul.f32 %v165, %v262
  %v266 = vmul.f32 %v170, %v262
  %v267 = vmul.f32 %v175, %v262
  %v268 = vmul.f32 %v180, %v262
  %v269 = vmul.f32 %v185, %v262
  %v270 = vmul.f32 %v190, %v262
  %v271 = vmul.f32 %v195, %v262
  %v272 = vmul.f32 %v200, %v262
  %v273 = vmul.f32 %v205, %v262
  %v274 = vmul.f32 %v210, %v262
  %v275 = vmul.f32 %v215, %v262
  %v276 = vmul.f32 %v220, %v262
  %v277 = vmul.f32 %v225, %v262
  %v278 = vmul.f32 %v230, %v262
  %v279 = vmul.f32 %v235, %v262
  %v280 = vsel %vm239, %v160, %v264
  %v281 = vsel %vm240, %v165, %v265
  %v282 = vsel %vm241, %v170, %v266
  %v283 = vsel %vm242, %v175, %v267
  %v284 = vsel %vm243, %v180, %v268
  %v285 = vsel %vm244, %v185, %v269
  %v286 = vsel %vm245, %v190, %v270
  %v287 = vsel %vm246, %v195, %v271
  %v288 = vsel %vm247, %v200, %v272
  %v289 = vsel %vm248, %v205, %v273
  %v290 = vsel %vm249, %v210, %v274
  %v291 = vsel %vm250, %v215, %v275
  %v292 = vsel %vm251, %v220, %v276
  %v293 = vsel %vm252, %v225, %v277
  %v294 = vsel %vm253, %v230, %v278
  %v295 = vsel %vm254, %v235, %v279
  %vm296 = vcmask 392192
  %297 = vst.msk [vmem:[%s4] sm:$0xff] %vm296, %v280
  %298 = vst.msk [vmem:[%s4 + $0x8] sm:$0xff] %vm296, %v281
  %299 = vst.msk [vmem:[%s4 + $0x10] sm:$0xff] %vm296, %v282
  %300 = vst.msk [vmem:[%s4 + $0x18] sm:$0xff] %vm296, %v283
  %301 = vst.msk [vmem:[%s4 + $0x20] sm:$0xff] %vm296, %v284
  %302 = vst.msk [vmem:[%s4 + $0x28] sm:$0xff] %vm296, %v285
  %303 = vst.msk [vmem:[%s4 + $0x30] sm:$0xff] %vm296, %v286
  %304 = vst.msk [vmem:[%s4 + $0x38] sm:$0xff] %vm296, %v287
  %305 = vst.msk [vmem:[%s4 + $0x40] sm:$0xff] %vm296, %v288
  %306 = vst.msk [vmem:[%s4 + $0x48] sm:$0xff] %vm296, %v289
  %307 = vst.msk [vmem:[%s4 + $0x50] sm:$0xff] %vm296, %v290
  %308 = vst.msk [vmem:[%s4 + $0x58] sm:$0xff] %vm296, %v291
  %309 = vst.msk [vmem:[%s4 + $0x60] sm:$0xff] %vm296, %v292
  %310 = vst.msk [vmem:[%s4 + $0x68] sm:$0xff] %vm296, %v293
  %311 = vst.msk [vmem:[%s4 + $0x70] sm:$0xff] %vm296, %v294
  %312 = vst.msk [vmem:[%s4 + $0x78] sm:$0xff] %vm296, %v295
  // Predicated region
  $region18: #{_lambda_.49} parent=0 // pred_check
    _
  $region19: #{_lambda_.49} parent=0 // pred_check_branch
    %314 = sbr.rel (0) target = $region21
  $region20: #{_lambda_.49} parent=0 // pred_region
    _
  $region21: #{_lambda_.49} parent=0 // pred_fallthru
    _
  // Predicated region
  $region22: #{_lambda_.49} parent=0 // pred_check
    _
  $region23: #{_lambda_.49} parent=0 // pred_check_branch
    %316 = sbr.rel (0) target = $region25
  $region24: #{_lambda_.49} parent=0 // pred_region
    _
  $region25: #{_lambda_.49} parent=0 // pred_fallthru
    _

// kernel: _lambda_.50
$region0: #{_lambda_.50}
  #allocation0 [shape = 'u32[]', space=smem, size = 0x4, offset = 0x4, fixed_abs, tag = 'smem constant byte address 0x4 - core index']
  #allocation1 [shape = 'u32[144,128]{1,0:T(1,128)}', space=vmem, size = 0x12000, scoped, tag = 'internal scratch']
  #allocation2 [shape = 'f32[1,1]{1,0:T(1,128)S(1)}', space=vmem, size = 0x200, scoped, tag = 'scoped memory for _lambda_.50']
  %s0 = inlined_call_operand.vmem [shape: f32[64,48], index: 0, kind: input, shape index: {}]
  %s1 = inlined_call_operand.vmem [shape: f32[48,48], index: 1, kind: input, shape index: {}]
  %s2 = inlined_call_operand.vmem [shape: f32[1,48], index: 2, kind: input, shape index: {}]
  %s3 = inlined_call_operand.<no memory space> [shape: f32[1,1], index: 3, kind: input, shape index: {}]
  %s4 = inlined_call_operand.vmem [shape: f32[64,48], index: 4, kind: output, shape index: {}]
  %s5 = sld [smem:[#allocation0]]
  $region26: #{_lambda_.50} parent=0
    _
  %s7 = ssub.s32 1, %s5
  %s8 = scalar_select 0, %s7, %s5
  %v9 = vstv %s3
  %10 = vst [vmem:[#allocation2] sm:$0x1] %v9
  // Predicated region
  $region2: #{_lambda_.50} parent=0 // pred_check
    _
  $region3: #{_lambda_.50} parent=0 // pred_check_branch
    %12 = sbr.rel (0) target = $region5
  $region4: #{_lambda_.50} parent=0 // pred_region
    _
  $region5: #{_lambda_.50} parent=0 // pred_fallthru
    _
  // Predicated region
  $region6: #{_lambda_.50} parent=0 // pred_check
    _
  $region7: #{_lambda_.50} parent=0 // pred_check_branch
    %14 = sbr.rel (0) target = $region9
  $region8: #{_lambda_.50} parent=0 // pred_region
    _
  $region9: #{_lambda_.50} parent=0 // pred_fallthru
    _
  // Predicated region
  $region10: #{_lambda_.50} parent=0 // pred_check
    _
  $region11: #{_lambda_.50} parent=0 // pred_check_branch
    %16 = sbr.rel (0) target = $region13
  $region12: #{_lambda_.50} parent=0 // pred_region
    _
  $region13: #{_lambda_.50} parent=0 // pred_fallthru
    _
  // Predicated region
  $region14: #{_lambda_.50} parent=0 // pred_check
    _
  $region15: #{_lambda_.50} parent=0 // pred_check_branch
    %18 = sbr.rel (0) target = $region17
  $region16: #{_lambda_.50} parent=0 // pred_region
    _
  $region17: #{_lambda_.50} parent=0 // pred_fallthru
    _
  %v19 = vld [vmem:[%s0] sm:$0xff]
  %v20 = vld [vmem:[%s0 + $0x8] sm:$0xff]
  %v21 = vld [vmem:[%s0 + $0x10] sm:$0xff]
  %v22 = vld [vmem:[%s0 + $0x18] sm:$0xff]
  %v23 = vld [vmem:[%s0 + $0x20] sm:$0xff]
  %v24 = vld [vmem:[%s0 + $0x28] sm:$0xff]
  %v25 = vld [vmem:[%s0 + $0x30] sm:$0xff]
  %v26 = vld [vmem:[%s0 + $0x38] sm:$0xff]
  %v27 = vld [vmem:[%s1] sm:$0xff]
  %v28 = vld [vmem:[%s1 + $0x8] sm:$0xff]
  %v29 = vld [vmem:[%s1 + $0x10] sm:$0xff]
  %v30 = vld [vmem:[%s1 + $0x18] sm:$0xff]
  %v31 = vld [vmem:[%s1 + $0x20] sm:$0xff]
  %v32 = vld [vmem:[%s1 + $0x28] sm:$0xff]
  %v33 = vld [vmem:[%s2] sm:$0x1]
  %v35 = vlaneseq
  %v36 = vshrl.u32 %v35, 7
  %v37 = vsub.s32 0, %v36
  %v38 = vrot.slane %v33, %v37
  %vm40 = vcmask 392192
  %v42 = vsel %vm40, %v19, 0
  %v45 = vsel %vm40, %v20, 0
  %v48 = vsel %vm40, %v21, 0
  %v51 = vsel %vm40, %v22, 0
  %v54 = vsel %vm40, %v23, 0
  %v57 = vsel %vm40, %v24, 0
  %v60 = vsel %vm40, %v25, 0
  %v63 = vsel %vm40, %v26, 0
  %65 = vmatprep.subr.mxu0 0.0
  %66 = vmatpush1.msra.mxu0 %v27
  %67 = vmatprep.subr.mxu0 0.0
  %68 = vmatpush1.msra.mxu0 %v28
  %69 = vmatprep.subr.mxu0 0.0
  %70 = vmatpush1.msra.mxu0 %v29
  %71 = vmatprep.subr.mxu0 0.0
  %72 = vmatpush1.msra.mxu0 %v30
  %73 = vmatprep.subr.mxu0 0.0
  %74 = vmatpush1.msra.mxu0 %v31
  %75 = vmatprep.subr.mxu0 0.0
  %76 = vmatpush1.msra.mxu0 %v32
  %77 = vmatprep.subr.mxu0 0.0
  %78 = vmatpush1.msra.mxu0 0.0
  %79 = vmatprep.subr.mxu0 0.0
  %80 = vmatpush1.msra.mxu0 0.0
  %81 = vmatprep.subr.mxu0 0.0
  %82 = vmatpush1.msra.mxu0 0.0
  %83 = vmatprep.subr.mxu0 0.0
  %84 = vmatpush1.msra.mxu0 0.0
  %85 = vmatprep.subr.mxu0 0.0
  %86 = vmatpush1.msra.mxu0 0.0
  %87 = vmatprep.subr.mxu0 0.0
  %88 = vmatpush1.msra.mxu0 0.0
  %89 = vmatprep.subr.mxu0 0.0
  %90 = vmatpush1.msra.mxu0 0.0
  %91 = vmatprep.subr.mxu0 0.0
  %92 = vmatpush1.msra.mxu0 0.0
  %93 = vmatprep.subr.mxu0 0.0
  %94 = vmatpush1.msra.mxu0 0.0
  %95 = vmatprep.subr.mxu0 0.0
  %96 = vmatpush1.msra.mxu0 0.0
  %97 = vmatprep.subr.mxu0 0.0
  %98 = vmatpush1.msra.mxu0 0.0
  %99 = vmatprep.subr.mxu0 0.0
  %100 = vmatpush1.msra.mxu0 0.0
  %101 = vmatprep.subr.mxu0 0.0
  %102 = vmatpush1.msra.mxu0 0.0
  %103 = vmatprep.subr.mxu0 0.0
  %104 = vmatpush1.msra.mxu0 0.0
  %105 = vmatprep.subr.mxu0 0.0
  %106 = vmatpush1.msra.mxu0 0.0
  %107 = vmatprep.subr.mxu0 0.0
  %108 = vmatpush1.msra.mxu0 0.0
  %109 = vmatprep.subr.mxu0 0.0
  %110 = vmatpush1.msra.mxu0 0.0
  %111 = vmatprep.subr.mxu0 0.0
  %112 = vmatpush1.msra.mxu0 0.0
  %113 = vmatprep.subr.mxu0 0.0
  %114 = vmatpush1.msra.mxu0 0.0
  %115 = vmatprep.subr.mxu0 0.0
  %116 = vmatpush1.msra.mxu0 0.0
  %117 = vmatprep.subr.mxu0 0.0
  %118 = vmatpush1.msra.mxu0 0.0
  %119 = vmatprep.subr.mxu0 0.0
  %120 = vmatpush1.msra.mxu0 0.0
  %121 = vmatprep.subr.mxu0 0.0
  %122 = vmatpush1.msra.mxu0 0.0
  %123 = vmatprep.subr.mxu0 0.0
  %124 = vmatpush1.msra.mxu0 0.0
  %125 = vmatprep.subr.mxu0 0.0
  %126 = vmatpush1.msra.mxu0 0.0
  %127 = vmatprep.subr.mxu0 0.0
  %128 = vmatpush1.msra.mxu0 0.0
  %129 = vmatprep.mubr.f32.mxu0 0.0
  %130 = vmatmul.mubr.f32.gmra.mrb[0].mxu0 %v42
  %v131 = vpop.f32.mrb[0].mxu0
  %v132 = vadd.f32 %v38, %v131
  %v133 = vpop.f32.mrb[0].mxu0
  %134 = vmatprep.mubr.f32.mxu0 0.0
  %135 = vmatmul.mubr.f32.gmra.mrb[0].mxu0 %v45
  %v136 = vpop.f32.mrb[0].mxu0
  %v137 = vadd.f32 %v38, %v136
  %v138 = vpop.f32.mrb[0].mxu0
  %139 = vmatprep.mubr.f32.mxu0 0.0
  %140 = vmatmul.mubr.f32.gmra.mrb[0].mxu0 %v48
  %v141 = vpop.f32.mrb[0].mxu0
  %v142 = vadd.f32 %v38, %v141
  %v143 = vpop.f32.mrb[0].mxu0
  %144 = vmatprep.mubr.f32.mxu0 0.0
  %145 = vmatmul.mubr.f32.gmra.mrb[0].mxu0 %v51
  %v146 = vpop.f32.mrb[0].mxu0
  %v147 = vadd.f32 %v38, %v146
  %v148 = vpop.f32.mrb[0].mxu0
  %149 = vmatprep.mubr.f32.mxu0 0.0
  %150 = vmatmul.mubr.f32.gmra.mrb[0].mxu0 %v54
  %v151 = vpop.f32.mrb[0].mxu0
  %v152 = vadd.f32 %v38, %v151
  %v153 = vpop.f32.mrb[0].mxu0
  %154 = vmatprep.mubr.f32.mxu0 0.0
  %155 = vmatmul.mubr.f32.gmra.mrb[0].mxu0 %v57
  %v156 = vpop.f32.mrb[0].mxu0
  %v157 = vadd.f32 %v38, %v156
  %v158 = vpop.f32.mrb[0].mxu0
  %159 = vmatprep.mubr.f32.mxu0 0.0
  %160 = vmatmul.mubr.f32.gmra.mrb[0].mxu0 %v60
  %v161 = vpop.f32.mrb[0].mxu0
  %v162 = vadd.f32 %v38, %v161
  %v163 = vpop.f32.mrb[0].mxu0
  %164 = vmatprep.mubr.f32.mxu0 0.0
  %165 = vmatmul.mubr.f32.gmra.mrb[0].mxu0 %v63
  %v166 = vpop.f32.mrb[0].mxu0
  %v167 = vadd.f32 %v38, %v166
  %v168 = vpop.f32.mrb[0].mxu0
  %169 = vdwg.mxu0
  %v170 = vld [vmem:[#allocation2] sm:$0x1]
  %vm171 = vcmp.ge.f32.partialorder %v132, 0.0
  %vm172 = vcmp.ge.f32.partialorder %v137, 0.0
  %vm173 = vcmp.ge.f32.partialorder %v142, 0.0
  %vm174 = vcmp.ge.f32.partialorder %v147, 0.0
  %vm175 = vcmp.ge.f32.partialorder %v152, 0.0
  %vm176 = vcmp.ge.f32.partialorder %v157, 0.0
  %vm177 = vcmp.ge.f32.partialorder %v162, 0.0
  %vm178 = vcmp.ge.f32.partialorder %v167, 0.0
  %v180 = vlaneseq
  %v181 = vshrl.u32 %v180, 7
  %v182 = vsub.s32 0, %v181
  %v183 = vrot.slane %v170, %v182
  %184 = vset.pattern.permute.xlu0 0
  %185 = vperm.xlu0 %184, %v183
  %v186 = vpop.permute.xlu0 %185
  %v188 = vmul.f32 %v132, %v186
  %v189 = vmul.f32 %v137, %v186
  %v190 = vmul.f32 %v142, %v186
  %v191 = vmul.f32 %v147, %v186
  %v192 = vmul.f32 %v152, %v186
  %v193 = vmul.f32 %v157, %v186
  %v194 = vmul.f32 %v162, %v186
  %v195 = vmul.f32 %v167, %v186
  %v196 = vsel %vm171, %v132, %v188
  %v197 = vsel %vm172, %v137, %v189
  %v198 = vsel %vm173, %v142, %v190
  %v199 = vsel %vm174, %v147, %v191
  %v200 = vsel %vm175, %v152, %v192
  %v201 = vsel %vm176, %v157, %v193
  %v202 = vsel %vm177, %v162, %v194
  %v203 = vsel %vm178, %v167, %v195
  %204 = vst.msk [vmem:[%s4] sm:$0xff] %vm40, %v196
  %205 = vst.msk [vmem:[%s4 + $0x8] sm:$0xff] %vm40, %v197
  %206 = vst.msk [vmem:[%s4 + $0x10] sm:$0xff] %vm40, %v198
  %207 = vst.msk [vmem:[%s4 + $0x18] sm:$0xff] %vm40, %v199
  %208 = vst.msk [vmem:[%s4 + $0x20] sm:$0xff] %vm40, %v200
  %209 = vst.msk [vmem:[%s4 + $0x28] sm:$0xff] %vm40, %v201
  %210 = vst.msk [vmem:[%s4 + $0x30] sm:$0xff] %vm40, %v202
  %211 = vst.msk [vmem:[%s4 + $0x38] sm:$0xff] %vm40, %v203
  // Predicated region
  $region18: #{_lambda_.50} parent=0 // pred_check
    _
  $region19: #{_lambda_.50} parent=0 // pred_check_branch
    %213 = sbr.rel (0) target = $region21
  $region20: #{_lambda_.50} parent=0 // pred_region
    _
  $region21: #{_lambda_.50} parent=0 // pred_fallthru
    _
  // Predicated region
  $region22: #{_lambda_.50} parent=0 // pred_check
    _
  $region23: #{_lambda_.50} parent=0 // pred_check_branch
    %215 = sbr.rel (0) target = $region25
  $region24: #{_lambda_.50} parent=0 // pred_region
    _
  $region25: #{_lambda_.50} parent=0 // pred_fallthru
    _

// kernel: _lambda_.51
$region0: #{_lambda_.51}
  #allocation0 [shape = 'u32[]', space=smem, size = 0x4, offset = 0x4, fixed_abs, tag = 'smem constant byte address 0x4 - core index']
  #allocation1 [shape = 'u32[144,128]{1,0:T(1,128)}', space=vmem, size = 0x12000, scoped, tag = 'internal scratch']
  #allocation2 [shape = 'f32[1,1]{1,0:T(1,128)S(1)}', space=vmem, size = 0x200, scoped, tag = 'scoped memory for _lambda_.51']
  %s0 = inlined_call_operand.vmem [shape: f32[128,96], index: 0, kind: input, shape index: {}]
  %s1 = inlined_call_operand.vmem [shape: f32[96,16], index: 1, kind: input, shape index: {}]
  %s2 = inlined_call_operand.vmem [shape: f32[1,16], index: 2, kind: input, shape index: {}]
  %s3 = inlined_call_operand.<no memory space> [shape: f32[1,1], index: 3, kind: input, shape index: {}]
  %s4 = inlined_call_operand.vmem [shape: f32[128,16], index: 4, kind: output, shape index: {}]
  %s5 = sld [smem:[#allocation0]]
  $region26: #{_lambda_.51} parent=0
    _
  %s7 = ssub.s32 1, %s5
  %s8 = scalar_select 0, %s7, %s5
  %v9 = vstv %s3
  %10 = vst [vmem:[#allocation2] sm:$0x1] %v9
  // Predicated region
  $region2: #{_lambda_.51} parent=0 // pred_check
    _
  $region3: #{_lambda_.51} parent=0 // pred_check_branch
    %12 = sbr.rel (0) target = $region5
  $region4: #{_lambda_.51} parent=0 // pred_region
    _
  $region5: #{_lambda_.51} parent=0 // pred_fallthru
    _
  // Predicated region
  $region6: #{_lambda_.51} parent=0 // pred_check
    _
  $region7: #{_lambda_.51} parent=0 // pred_check_branch
    %14 = sbr.rel (0) target = $region9
  $region8: #{_lambda_.51} parent=0 // pred_region
    _
  $region9: #{_lambda_.51} parent=0 // pred_fallthru
    _
  // Predicated region
  $region10: #{_lambda_.51} parent=0 // pred_check
    _
  $region11: #{_lambda_.51} parent=0 // pred_check_branch
    %16 = sbr.rel (0) target = $region13
  $region12: #{_lambda_.51} parent=0 // pred_region
    _
  $region13: #{_lambda_.51} parent=0 // pred_fallthru
    _
  // Predicated region
  $region14: #{_lambda_.51} parent=0 // pred_check
    _
  $region15: #{_lambda_.51} parent=0 // pred_check_branch
    %18 = sbr.rel (0) target = $region17
  $region16: #{_lambda_.51} parent=0 // pred_region
    _
  $region17: #{_lambda_.51} parent=0 // pred_fallthru
    _
  %v19 = vld [vmem:[%s0] sm:$0xff]
  %v20 = vld [vmem:[%s0 + $0x8] sm:$0xff]
  %v21 = vld [vmem:[%s0 + $0x10] sm:$0xff]
  %v22 = vld [vmem:[%s0 + $0x18] sm:$0xff]
  %v23 = vld [vmem:[%s0 + $0x20] sm:$0xff]
  %v24 = vld [vmem:[%s0 + $0x28] sm:$0xff]
  %v25 = vld [vmem:[%s0 + $0x30] sm:$0xff]
  %v26 = vld [vmem:[%s0 + $0x38] sm:$0xff]
  %v27 = vld [vmem:[%s0 + $0x40] sm:$0xff]
  %v28 = vld [vmem:[%s0 + $0x48] sm:$0xff]
  %v29 = vld [vmem:[%s0 + $0x50] sm:$0xff]
  %v30 = vld [vmem:[%s0 + $0x58] sm:$0xff]
  %v31 = vld [vmem:[%s0 + $0x60] sm:$0xff]
  %v32 = vld [vmem:[%s0 + $0x68] sm:$0xff]
  %v33 = vld [vmem:[%s0 + $0x70] sm:$0xff]
  %v34 = vld [vmem:[%s0 + $0x78] sm:$0xff]
  %v35 = vld [vmem:[%s1] sm:$0xff]
  %v36 = vld [vmem:[%s1 + $0x8] sm:$0xff]
  %v37 = vld [vmem:[%s1 + $0x10] sm:$0xff]
  %v38 = vld [vmem:[%s1 + $0x18] sm:$0xff]
  %v39 = vld [vmem:[%s1 + $0x20] sm:$0xff]
  %v40 = vld [vmem:[%s1 + $0x28] sm:$0xff]
  %v41 = vld [vmem:[%s1 + $0x30] sm:$0xff]
  %v42 = vld [vmem:[%s1 + $0x38] sm:$0xff]
  %v43 = vld [vmem:[%s1 + $0x40] sm:$0xff]
  %v44 = vld [vmem:[%s1 + $0x48] sm:$0xff]
  %v45 = vld [vmem:[%s1 + $0x50] sm:$0xff]
  %v46 = vld [vmem:[%s1 + $0x58] sm:$0xff]
  %v47 = vld [vmem:[%s2] sm:$0x1]
  %v49 = vlaneseq
  %v50 = vshrl.u32 %v49, 7
  %v51 = vsub.s32 0, %v50
  %v52 = vrot.slane %v47, %v51
  %vm54 = vcmask 785408
  %v56 = vsel %vm54, %v19, 0
  %v59 = vsel %vm54, %v20, 0
  %v62 = vsel %vm54, %v21, 0
  %v65 = vsel %vm54, %v22, 0
  %v68 = vsel %vm54, %v23, 0
  %v71 = vsel %vm54, %v24, 0
  %v74 = vsel %vm54, %v25, 0
  %v77 = vsel %vm54, %v26, 0
  %v80 = vsel %vm54, %v27, 0
  %v83 = vsel %vm54, %v28, 0
  %v86 = vsel %vm54, %v29, 0
  %v89 = vsel %vm54, %v30, 0
  %v92 = vsel %vm54, %v31, 0
  %v95 = vsel %vm54, %v32, 0
  %v98 = vsel %vm54, %v33, 0
  %v101 = vsel %vm54, %v34, 0
  %103 = vmatprep.subr.mxu0 0.0
  %104 = vmatpush1.msra.mxu0 %v35
  %105 = vmatprep.subr.mxu0 0.0
  %106 = vmatpush1.msra.mxu0 %v36
  %107 = vmatprep.subr.mxu0 0.0
  %108 = vmatpush1.msra.mxu0 %v37
  %109 = vmatprep.subr.mxu0 0.0
  %110 = vmatpush1.msra.mxu0 %v38
  %111 = vmatprep.subr.mxu0 0.0
  %112 = vmatpush1.msra.mxu0 %v39
  %113 = vmatprep.subr.mxu0 0.0
  %114 = vmatpush1.msra.mxu0 %v40
  %115 = vmatprep.subr.mxu0 0.0
  %116 = vmatpush1.msra.mxu0 %v41
  %117 = vmatprep.subr.mxu0 0.0
  %118 = vmatpush1.msra.mxu0 %v42
  %119 = vmatprep.subr.mxu0 0.0
  %120 = vmatpush1.msra.mxu0 %v43
  %121 = vmatprep.subr.mxu0 0.0
  %122 = vmatpush1.msra.mxu0 %v44
  %123 = vmatprep.subr.mxu0 0.0
  %124 = vmatpush1.msra.mxu0 %v45
  %125 = vmatprep.subr.mxu0 0.0
  %126 = vmatpush1.msra.mxu0 %v46
  %127 = vmatprep.subr.mxu0 0.0
  %128 = vmatpush1.msra.mxu0 0.0
  %129 = vmatprep.subr.mxu0 0.0
  %130 = vmatpush1.msra.mxu0 0.0
  %131 = vmatprep.subr.mxu0 0.0
  %132 = vmatpush1.msra.mxu0 0.0
  %133 = vmatprep.subr.mxu0 0.0
  %134 = vmatpush1.msra.mxu0 0.0
  %135 = vmatprep.subr.mxu0 0.0
  %136 = vmatpush1.msra.mxu0 0.0
  %137 = vmatprep.subr.mxu0 0.0
  %138 = vmatpush1.msra.mxu0 0.0
  %139 = vmatprep.subr.mxu0 0.0
  %140 = vmatpush1.msra.mxu0 0.0
  %141 = vmatprep.subr.mxu0 0.0
  %142 = vmatpush1.msra.mxu0 0.0
  %143 = vmatprep.subr.mxu0 0.0
  %144 = vmatpush1.msra.mxu0 0.0
  %145 = vmatprep.subr.mxu0 0.0
  %146 = vmatpush1.msra.mxu0 0.0
  %147 = vmatprep.subr.mxu0 0.0
  %148 = vmatpush1.msra.mxu0 0.0
  %149 = vmatprep.subr.mxu0 0.0
  %150 = vmatpush1.msra.mxu0 0.0
  %151 = vmatprep.subr.mxu0 0.0
  %152 = vmatpush1.msra.mxu0 0.0
  %153 = vmatprep.subr.mxu0 0.0
  %154 = vmatpush1.msra.mxu0 0.0
  %155 = vmatprep.subr.mxu0 0.0
  %156 = vmatpush1.msra.mxu0 0.0
  %157 = vmatprep.subr.mxu0 0.0
  %158 = vmatpush1.msra.mxu0 0.0
  %159 = vmatprep.subr.mxu0 0.0
  %160 = vmatpush1.msra.mxu0 0.0
  %161 = vmatprep.subr.mxu0 0.0
  %162 = vmatpush1.msra.mxu0 0.0
  %163 = vmatprep.subr.mxu0 0.0
  %164 = vmatpush1.msra.mxu0 0.0
  %165 = vmatprep.subr.mxu0 0.0
  %166 = vmatpush1.msra.mxu0 0.0
  %167 = vmatprep.mubr.f32.mxu0 0.0
  %168 = vmatmul.mubr.f32.gmra.mrb[0].mxu0 %v56
  %v169 = vpop.f32.mrb[0].mxu0
  %v170 = vadd.f32 %v52, %v169
  %v171 = vpop.f32.mrb[0].mxu0
  %172 = vmatprep.mubr.f32.mxu0 0.0
  %173 = vmatmul.mubr.f32.gmra.mrb[0].mxu0 %v59
  %v174 = vpop.f32.mrb[0].mxu0
  %v175 = vadd.f32 %v52, %v174
  %v176 = vpop.f32.mrb[0].mxu0
  %177 = vmatprep.mubr.f32.mxu0 0.0
  %178 = vmatmul.mubr.f32.gmra.mrb[0].mxu0 %v62
  %v179 = vpop.f32.mrb[0].mxu0
  %v180 = vadd.f32 %v52, %v179
  %v181 = vpop.f32.mrb[0].mxu0
  %182 = vmatprep.mubr.f32.mxu0 0.0
  %183 = vmatmul.mubr.f32.gmra.mrb[0].mxu0 %v65
  %v184 = vpop.f32.mrb[0].mxu0
  %v185 = vadd.f32 %v52, %v184
  %v186 = vpop.f32.mrb[0].mxu0
  %187 = vmatprep.mubr.f32.mxu0 0.0
  %188 = vmatmul.mubr.f32.gmra.mrb[0].mxu0 %v68
  %v189 = vpop.f32.mrb[0].mxu0
  %v190 = vadd.f32 %v52, %v189
  %v191 = vpop.f32.mrb[0].mxu0
  %192 = vmatprep.mubr.f32.mxu0 0.0
  %193 = vmatmul.mubr.f32.gmra.mrb[0].mxu0 %v71
  %v194 = vpop.f32.mrb[0].mxu0
  %v195 = vadd.f32 %v52, %v194
  %v196 = vpop.f32.mrb[0].mxu0
  %197 = vmatprep.mubr.f32.mxu0 0.0
  %198 = vmatmul.mubr.f32.gmra.mrb[0].mxu0 %v74
  %v199 = vpop.f32.mrb[0].mxu0
  %v200 = vadd.f32 %v52, %v199
  %v201 = vpop.f32.mrb[0].mxu0
  %202 = vmatprep.mubr.f32.mxu0 0.0
  %203 = vmatmul.mubr.f32.gmra.mrb[0].mxu0 %v77
  %v204 = vpop.f32.mrb[0].mxu0
  %v205 = vadd.f32 %v52, %v204
  %v206 = vpop.f32.mrb[0].mxu0
  %207 = vmatprep.mubr.f32.mxu0 0.0
  %208 = vmatmul.mubr.f32.gmra.mrb[0].mxu0 %v80
  %v209 = vpop.f32.mrb[0].mxu0
  %v210 = vadd.f32 %v52, %v209
  %v211 = vpop.f32.mrb[0].mxu0
  %212 = vmatprep.mubr.f32.mxu0 0.0
  %213 = vmatmul.mubr.f32.gmra.mrb[0].mxu0 %v83
  %v214 = vpop.f32.mrb[0].mxu0
  %v215 = vadd.f32 %v52, %v214
  %v216 = vpop.f32.mrb[0].mxu0
  %217 = vmatprep.mubr.f32.mxu0 0.0
  %218 = vmatmul.mubr.f32.gmra.mrb[0].mxu0 %v86
  %v219 = vpop.f32.mrb[0].mxu0
  %v220 = vadd.f32 %v52, %v219
  %v221 = vpop.f32.mrb[0].mxu0
  %222 = vmatprep.mubr.f32.mxu0 0.0
  %223 = vmatmul.mubr.f32.gmra.mrb[0].mxu0 %v89
  %v224 = vpop.f32.mrb[0].mxu0
  %v225 = vadd.f32 %v52, %v224
  %v226 = vpop.f32.mrb[0].mxu0
  %227 = vmatprep.mubr.f32.mxu0 0.0
  %228 = vmatmul.mubr.f32.gmra.mrb[0].mxu0 %v92
  %v229 = vpop.f32.mrb[0].mxu0
  %v230 = vadd.f32 %v52, %v229
  %v231 = vpop.f32.mrb[0].mxu0
  %232 = vmatprep.mubr.f32.mxu0 0.0
  %233 = vmatmul.mubr.f32.gmra.mrb[0].mxu0 %v95
  %v234 = vpop.f32.mrb[0].mxu0
  %v235 = vadd.f32 %v52, %v234
  %v236 = vpop.f32.mrb[0].mxu0
  %237 = vmatprep.mubr.f32.mxu0 0.0
  %238 = vmatmul.mubr.f32.gmra.mrb[0].mxu0 %v98
  %v239 = vpop.f32.mrb[0].mxu0
  %v240 = vadd.f32 %v52, %v239
  %v241 = vpop.f32.mrb[0].mxu0
  %242 = vmatprep.mubr.f32.mxu0 0.0
  %243 = vmatmul.mubr.f32.gmra.mrb[0].mxu0 %v101
  %v244 = vpop.f32.mrb[0].mxu0
  %v245 = vadd.f32 %v52, %v244
  %v246 = vpop.f32.mrb[0].mxu0
  %247 = vdwg.mxu0
  %v248 = vld [vmem:[#allocation2] sm:$0x1]
  %vm249 = vcmp.ge.f32.partialorder %v170, 0.0
  %vm250 = vcmp.ge.f32.partialorder %v175, 0.0
  %vm251 = vcmp.ge.f32.partialorder %v180, 0.0
  %vm252 = vcmp.ge.f32.partialorder %v185, 0.0
  %vm253 = vcmp.ge.f32.partialorder %v190, 0.0
  %vm254 = vcmp.ge.f32.partialorder %v195, 0.0
  %vm255 = vcmp.ge.f32.partialorder %v200, 0.0
  %vm256 = vcmp.ge.f32.partialorder %v205, 0.0
  %vm257 = vcmp.ge.f32.partialorder %v210, 0.0
  %vm258 = vcmp.ge.f32.partialorder %v215, 0.0
  %vm259 = vcmp.ge.f32.partialorder %v220, 0.0
  %vm260 = vcmp.ge.f32.partialorder %v225, 0.0
  %vm261 = vcmp.ge.f32.partialorder %v230, 0.0
  %vm262 = vcmp.ge.f32.partialorder %v235, 0.0
  %vm263 = vcmp.ge.f32.partialorder %v240, 0.0
  %vm264 = vcmp.ge.f32.partialorder %v245, 0.0
  %v266 = vlaneseq
  %v267 = vshrl.u32 %v266, 7
  %v268 = vsub.s32 0, %v267
  %v269 = vrot.slane %v248, %v268
  %270 = vset.pattern.permute.xlu0 0
  %271 = vperm.xlu0 %270, %v269
  %v272 = vpop.permute.xlu0 %271
  %v274 = vmul.f32 %v170, %v272
  %v275 = vmul.f32 %v175, %v272
  %v276 = vmul.f32 %v180, %v272
  %v277 = vmul.f32 %v185, %v272
  %v278 = vmul.f32 %v190, %v272
  %v279 = vmul.f32 %v195, %v272
  %v280 = vmul.f32 %v200, %v272
  %v281 = vmul.f32 %v205, %v272
  %v282 = vmul.f32 %v210, %v272
  %v283 = vmul.f32 %v215, %v272
  %v284 = vmul.f32 %v220, %v272
  %v285 = vmul.f32 %v225, %v272
  %v286 = vmul.f32 %v230, %v272
  %v287 = vmul.f32 %v235, %v272
  %v288 = vmul.f32 %v240, %v272
  %v289 = vmul.f32 %v245, %v272
  %v290 = vsel %vm249, %v170, %v274
  %v291 = vsel %vm250, %v175, %v275
  %v292 = vsel %vm251, %v180, %v276
  %v293 = vsel %vm252, %v185, %v277
  %v294 = vsel %vm253, %v190, %v278
  %v295 = vsel %vm254, %v195, %v279
  %v296 = vsel %vm255, %v200, %v280
  %v297 = vsel %vm256, %v205, %v281
  %v298 = vsel %vm257, %v210, %v282
  %v299 = vsel %vm258, %v215, %v283
  %v300 = vsel %vm259, %v220, %v284
  %v301 = vsel %vm260, %v225, %v285
  %v302 = vsel %vm261, %v230, %v286
  %v303 = vsel %vm262, %v235, %v287
  %v304 = vsel %vm263, %v240, %v288
  %v305 = vsel %vm264, %v245, %v289
  %vm306 = vcmask 130048
  %307 = vst.msk [vmem:[%s4] sm:$0xff] %vm306, %v290
  %308 = vst.msk [vmem:[%s4 + $0x8] sm:$0xff] %vm306, %v291
  %309 = vst.msk [vmem:[%s4 + $0x10] sm:$0xff] %vm306, %v292
  %310 = vst.msk [vmem:[%s4 + $0x18] sm:$0xff] %vm306, %v293
  %311 = vst.msk [vmem:[%s4 + $0x20] sm:$0xff] %vm306, %v294
  %312 = vst.msk [vmem:[%s4 + $0x28] sm:$0xff] %vm306, %v295
  %313 = vst.msk [vmem:[%s4 + $0x30] sm:$0xff] %vm306, %v296
  %314 = vst.msk [vmem:[%s4 + $0x38] sm:$0xff] %vm306, %v297
  %315 = vst.msk [vmem:[%s4 + $0x40] sm:$0xff] %vm306, %v298
  %316 = vst.msk [vmem:[%s4 + $0x48] sm:$0xff] %vm306, %v299
  %317 = vst.msk [vmem:[%s4 + $0x50] sm:$0xff] %vm306, %v300
  %318 = vst.msk [vmem:[%s4 + $0x58] sm:$0xff] %vm306, %v301
  %319 = vst.msk [vmem:[%s4 + $0x60] sm:$0xff] %vm306, %v302
  %320 = vst.msk [vmem:[%s4 + $0x68] sm:$0xff] %vm306, %v303
  %321 = vst.msk [vmem:[%s4 + $0x70] sm:$0xff] %vm306, %v304
  %322 = vst.msk [vmem:[%s4 + $0x78] sm:$0xff] %vm306, %v305
  // Predicated region
  $region18: #{_lambda_.51} parent=0 // pred_check
    _
  $region19: #{_lambda_.51} parent=0 // pred_check_branch
    %324 = sbr.rel (0) target = $region21
  $region20: #{_lambda_.51} parent=0 // pred_region
    _
  $region21: #{_lambda_.51} parent=0 // pred_fallthru
    _
  // Predicated region
  $region22: #{_lambda_.51} parent=0 // pred_check
    _
  $region23: #{_lambda_.51} parent=0 // pred_check_branch
    %326 = sbr.rel (0) target = $region25
  $region24: #{_lambda_.51} parent=0 // pred_region
    _
  $region25: #{_lambda_.51} parent=0 // pred_fallthru
    _

// kernel: _lambda_.53
$region0: #{_lambda_.53}
  #allocation0 [shape = 'u32[]', space=smem, size = 0x4, offset = 0x4, fixed_abs, tag = 'smem constant byte address 0x4 - core index']
  #allocation1 [shape = 'u32[144,128]{1,0:T(1,128)}', space=vmem, size = 0x12000, scoped, tag = 'internal scratch']
  %s0 = inlined_call_operand.vmem [shape: f32[128,16], index: 0, kind: input, shape index: {}]
  %s1 = inlined_call_operand.vmem [shape: f32[16,32], index: 1, kind: input, shape index: {}]
  %s2 = inlined_call_operand.vmem [shape: f32[1,32], index: 2, kind: input, shape index: {}]
  %s3 = inlined_call_operand.vmem [shape: f32[128,32], index: 3, kind: output, shape index: {}]
  %s4 = sld [smem:[#allocation0]]
  $region22: #{_lambda_.53} parent=0
    _
  %s6 = ssub.s32 1, %s4
  %s7 = scalar_select 0, %s6, %s4
  // Predicated region
  $region2: #{_lambda_.53} parent=0 // pred_check
    _
  $region3: #{_lambda_.53} parent=0 // pred_check_branch
    %9 = sbr.rel (0) target = $region5
  $region4: #{_lambda_.53} parent=0 // pred_region
    _
  $region5: #{_lambda_.53} parent=0 // pred_fallthru
    _
  // Predicated region
  $region6: #{_lambda_.53} parent=0 // pred_check
    _
  $region7: #{_lambda_.53} parent=0 // pred_check_branch
    %11 = sbr.rel (0) target = $region9
  $region8: #{_lambda_.53} parent=0 // pred_region
    _
  $region9: #{_lambda_.53} parent=0 // pred_fallthru
    _
  // Predicated region
  $region10: #{_lambda_.53} parent=0 // pred_check
    _
  $region11: #{_lambda_.53} parent=0 // pred_check_branch
    %13 = sbr.rel (0) target = $region13
  $region12: #{_lambda_.53} parent=0 // pred_region
    _
  $region13: #{_lambda_.53} parent=0 // pred_fallthru
    _
  %v14 = vld [vmem:[%s0] sm:$0xff]
  %v15 = vld [vmem:[%s0 + $0x8] sm:$0xff]
  %v16 = vld [vmem:[%s0 + $0x10] sm:$0xff]
  %v17 = vld [vmem:[%s0 + $0x18] sm:$0xff]
  %v18 = vld [vmem:[%s0 + $0x20] sm:$0xff]
  %v19 = vld [vmem:[%s0 + $0x28] sm:$0xff]
  %v20 = vld [vmem:[%s0 + $0x30] sm:$0xff]
  %v21 = vld [vmem:[%s0 + $0x38] sm:$0xff]
  %v22 = vld [vmem:[%s0 + $0x40] sm:$0xff]
  %v23 = vld [vmem:[%s0 + $0x48] sm:$0xff]
  %v24 = vld [vmem:[%s0 + $0x50] sm:$0xff]
  %v25 = vld [vmem:[%s0 + $0x58] sm:$0xff]
  %v26 = vld [vmem:[%s0 + $0x60] sm:$0xff]
  %v27 = vld [vmem:[%s0 + $0x68] sm:$0xff]
  %v28 = vld [vmem:[%s0 + $0x70] sm:$0xff]
  %v29 = vld [vmem:[%s0 + $0x78] sm:$0xff]
  %v30 = vld [vmem:[%s1] sm:$0xff]
  %v31 = vld [vmem:[%s1 + $0x8] sm:$0xff]
  %v32 = vld [vmem:[%s2] sm:$0x1]
  %v34 = vlaneseq
  %v35 = vshrl.u32 %v34, 7
  %v36 = vsub.s32 0, %v35
  %v37 = vrot.slane %v32, %v36
  %vm39 = vcmask 130048
  %v41 = vsel %vm39, %v14, 0
  %v44 = vsel %vm39, %v15, 0
  %v47 = vsel %vm39, %v16, 0
  %v50 = vsel %vm39, %v17, 0
  %v53 = vsel %vm39, %v18, 0
  %v56 = vsel %vm39, %v19, 0
  %v59 = vsel %vm39, %v20, 0
  %v62 = vsel %vm39, %v21, 0
  %v65 = vsel %vm39, %v22, 0
  %v68 = vsel %vm39, %v23, 0
  %v71 = vsel %vm39, %v24, 0
  %v74 = vsel %vm39, %v25, 0
  %v77 = vsel %vm39, %v26, 0
  %v80 = vsel %vm39, %v27, 0
  %v83 = vsel %vm39, %v28, 0
  %v86 = vsel %vm39, %v29, 0
  %88 = vmatprep.subr.mxu0 0.0
  %89 = vmatpush1.msra.mxu0 %v30
  %90 = vmatprep.subr.mxu0 0.0
  %91 = vmatpush1.msra.mxu0 %v31
  %92 = vmatprep.subr.mxu0 0.0
  %93 = vmatpush1.msra.mxu0 0.0
  %94 = vmatprep.subr.mxu0 0.0
  %95 = vmatpush1.msra.mxu0 0.0
  %96 = vmatprep.subr.mxu0 0.0
  %97 = vmatpush1.msra.mxu0 0.0
  %98 = vmatprep.subr.mxu0 0.0
  %99 = vmatpush1.msra.mxu0 0.0
  %100 = vmatprep.subr.mxu0 0.0
  %101 = vmatpush1.msra.mxu0 0.0
  %102 = vmatprep.subr.mxu0 0.0
  %103 = vmatpush1.msra.mxu0 0.0
  %104 = vmatprep.subr.mxu0 0.0
  %105 = vmatpush1.msra.mxu0 0.0
  %106 = vmatprep.subr.mxu0 0.0
  %107 = vmatpush1.msra.mxu0 0.0
  %108 = vmatprep.subr.mxu0 0.0
  %109 = vmatpush1.msra.mxu0 0.0
  %110 = vmatprep.subr.mxu0 0.0
  %111 = vmatpush1.msra.mxu0 0.0
  %112 = vmatprep.subr.mxu0 0.0
  %113 = vmatpush1.msra.mxu0 0.0
  %114 = vmatprep.subr.mxu0 0.0
  %115 = vmatpush1.msra.mxu0 0.0
  %116 = vmatprep.subr.mxu0 0.0
  %117 = vmatpush1.msra.mxu0 0.0
  %118 = vmatprep.subr.mxu0 0.0
  %119 = vmatpush1.msra.mxu0 0.0
  %120 = vmatprep.subr.mxu0 0.0
  %121 = vmatpush1.msra.mxu0 0.0
  %122 = vmatprep.subr.mxu0 0.0
  %123 = vmatpush1.msra.mxu0 0.0
  %124 = vmatprep.subr.mxu0 0.0
  %125 = vmatpush1.msra.mxu0 0.0
  %126 = vmatprep.subr.mxu0 0.0
  %127 = vmatpush1.msra.mxu0 0.0
  %128 = vmatprep.subr.mxu0 0.0
  %129 = vmatpush1.msra.mxu0 0.0
  %130 = vmatprep.subr.mxu0 0.0
  %131 = vmatpush1.msra.mxu0 0.0
  %132 = vmatprep.subr.mxu0 0.0
  %133 = vmatpush1.msra.mxu0 0.0
  %134 = vmatprep.subr.mxu0 0.0
  %135 = vmatpush1.msra.mxu0 0.0
  %136 = vmatprep.subr.mxu0 0.0
  %137 = vmatpush1.msra.mxu0 0.0
  %138 = vmatprep.subr.mxu0 0.0
  %139 = vmatpush1.msra.mxu0 0.0
  %140 = vmatprep.subr.mxu0 0.0
  %141 = vmatpush1.msra.mxu0 0.0
  %142 = vmatprep.subr.mxu0 0.0
  %143 = vmatpush1.msra.mxu0 0.0
  %144 = vmatprep.subr.mxu0 0.0
  %145 = vmatpush1.msra.mxu0 0.0
  %146 = vmatprep.subr.mxu0 0.0
  %147 = vmatpush1.msra.mxu0 0.0
  %148 = vmatprep.subr.mxu0 0.0
  %149 = vmatpush1.msra.mxu0 0.0
  %150 = vmatprep.subr.mxu0 0.0
  %151 = vmatpush1.msra.mxu0 0.0
  %152 = vmatprep.mubr.f32.mxu0 0.0
  %153 = vmatmul.mubr.f32.gmra.mrb[0].mxu0 %v41
  %v154 = vpop.f32.mrb[0].mxu0
  %v155 = vadd.f32 %v37, %v154
  %v156 = vpop.f32.mrb[0].mxu0
  %157 = vmatprep.mubr.f32.mxu0 0.0
  %158 = vmatmul.mubr.f32.gmra.mrb[0].mxu0 %v44
  %v159 = vpop.f32.mrb[0].mxu0
  %v160 = vadd.f32 %v37, %v159
  %v161 = vpop.f32.mrb[0].mxu0
  %162 = vmatprep.mubr.f32.mxu0 0.0
  %163 = vmatmul.mubr.f32.gmra.mrb[0].mxu0 %v47
  %v164 = vpop.f32.mrb[0].mxu0
  %v165 = vadd.f32 %v37, %v164
  %v166 = vpop.f32.mrb[0].mxu0
  %167 = vmatprep.mubr.f32.mxu0 0.0
  %168 = vmatmul.mubr.f32.gmra.mrb[0].mxu0 %v50
  %v169 = vpop.f32.mrb[0].mxu0
  %v170 = vadd.f32 %v37, %v169
  %v171 = vpop.f32.mrb[0].mxu0
  %172 = vmatprep.mubr.f32.mxu0 0.0
  %173 = vmatmul.mubr.f32.gmra.mrb[0].mxu0 %v53
  %v174 = vpop.f32.mrb[0].mxu0
  %v175 = vadd.f32 %v37, %v174
  %v176 = vpop.f32.mrb[0].mxu0
  %177 = vmatprep.mubr.f32.mxu0 0.0
  %178 = vmatmul.mubr.f32.gmra.mrb[0].mxu0 %v56
  %v179 = vpop.f32.mrb[0].mxu0
  %v180 = vadd.f32 %v37, %v179
  %v181 = vpop.f32.mrb[0].mxu0
  %182 = vmatprep.mubr.f32.mxu0 0.0
  %183 = vmatmul.mubr.f32.gmra.mrb[0].mxu0 %v59
  %v184 = vpop.f32.mrb[0].mxu0
  %v185 = vadd.f32 %v37, %v184
  %v186 = vpop.f32.mrb[0].mxu0
  %187 = vmatprep.mubr.f32.mxu0 0.0
  %188 = vmatmul.mubr.f32.gmra.mrb[0].mxu0 %v62
  %v189 = vpop.f32.mrb[0].mxu0
  %v190 = vadd.f32 %v37, %v189
  %v191 = vpop.f32.mrb[0].mxu0
  %192 = vmatprep.mubr.f32.mxu0 0.0
  %193 = vmatmul.mubr.f32.gmra.mrb[0].mxu0 %v65
  %v194 = vpop.f32.mrb[0].mxu0
  %v195 = vadd.f32 %v37, %v194
  %v196 = vpop.f32.mrb[0].mxu0
  %197 = vmatprep.mubr.f32.mxu0 0.0
  %198 = vmatmul.mubr.f32.gmra.mrb[0].mxu0 %v68
  %v199 = vpop.f32.mrb[0].mxu0
  %v200 = vadd.f32 %v37, %v199
  %v201 = vpop.f32.mrb[0].mxu0
  %202 = vmatprep.mubr.f32.mxu0 0.0
  %203 = vmatmul.mubr.f32.gmra.mrb[0].mxu0 %v71
  %v204 = vpop.f32.mrb[0].mxu0
  %v205 = vadd.f32 %v37, %v204
  %v206 = vpop.f32.mrb[0].mxu0
  %207 = vmatprep.mubr.f32.mxu0 0.0
  %208 = vmatmul.mubr.f32.gmra.mrb[0].mxu0 %v74
  %v209 = vpop.f32.mrb[0].mxu0
  %v210 = vadd.f32 %v37, %v209
  %v211 = vpop.f32.mrb[0].mxu0
  %212 = vmatprep.mubr.f32.mxu0 0.0
  %213 = vmatmul.mubr.f32.gmra.mrb[0].mxu0 %v77
  %v214 = vpop.f32.mrb[0].mxu0
  %v215 = vadd.f32 %v37, %v214
  %v216 = vpop.f32.mrb[0].mxu0
  %217 = vmatprep.mubr.f32.mxu0 0.0
  %218 = vmatmul.mubr.f32.gmra.mrb[0].mxu0 %v80
  %v219 = vpop.f32.mrb[0].mxu0
  %v220 = vadd.f32 %v37, %v219
  %v221 = vpop.f32.mrb[0].mxu0
  %222 = vmatprep.mubr.f32.mxu0 0.0
  %223 = vmatmul.mubr.f32.gmra.mrb[0].mxu0 %v83
  %v224 = vpop.f32.mrb[0].mxu0
  %v225 = vadd.f32 %v37, %v224
  %v226 = vpop.f32.mrb[0].mxu0
  %227 = vmatprep.mubr.f32.mxu0 0.0
  %228 = vmatmul.mubr.f32.gmra.mrb[0].mxu0 %v86
  %v229 = vpop.f32.mrb[0].mxu0
  %v230 = vadd.f32 %v37, %v229
  %v231 = vpop.f32.mrb[0].mxu0
  %232 = vdwg.mxu0
  %vm233 = vcmask 261120
  %234 = vst.msk [vmem:[%s3] sm:$0xff] %vm233, %v155
  %235 = vst.msk [vmem:[%s3 + $0x8] sm:$0xff] %vm233, %v160
  %236 = vst.msk [vmem:[%s3 + $0x10] sm:$0xff] %vm233, %v165
  %237 = vst.msk [vmem:[%s3 + $0x18] sm:$0xff] %vm233, %v170
  %238 = vst.msk [vmem:[%s3 + $0x20] sm:$0xff] %vm233, %v175
  %239 = vst.msk [vmem:[%s3 + $0x28] sm:$0xff] %vm233, %v180
  %240 = vst.msk [vmem:[%s3 + $0x30] sm:$0xff] %vm233, %v185
  %241 = vst.msk [vmem:[%s3 + $0x38] sm:$0xff] %vm233, %v190
  %242 = vst.msk [vmem:[%s3 + $0x40] sm:$0xff] %vm233, %v195
  %243 = vst.msk [vmem:[%s3 + $0x48] sm:$0xff] %vm233, %v200
  %244 = vst.msk [vmem:[%s3 + $0x50] sm:$0xff] %vm233, %v205
  %245 = vst.msk [vmem:[%s3 + $0x58] sm:$0xff] %vm233, %v210
  %246 = vst.msk [vmem:[%s3 + $0x60] sm:$0xff] %vm233, %v215
  %247 = vst.msk [vmem:[%s3 + $0x68] sm:$0xff] %vm233, %v220
  %248 = vst.msk [vmem:[%s3 + $0x70] sm:$0xff] %vm233, %v225
  %249 = vst.msk [vmem:[%s3 + $0x78] sm:$0xff] %vm233, %v230
  // Predicated region
  $region14: #{_lambda_.53} parent=0 // pred_check
    _
  $region15: #{_lambda_.53} parent=0 // pred_check_branch
    %251 = sbr.rel (0) target = $region17
  $region16: #{_lambda_.53} parent=0 // pred_region
    _
  $region17: #{_lambda_.53} parent=0 // pred_fallthru
    _
  // Predicated region
  $region18: #{_lambda_.53} parent=0 // pred_check
    _
  $region19: #{_lambda_.53} parent=0 // pred_check_branch
    %253 = sbr.rel (0) target = $region21
  $region20: #{_lambda_.53} parent=0 // pred_region
    _
  $region21: #{_lambda_.53} parent=0 // pred_fallthru
    _

// kernel: _lambda_.54
$region0: #{_lambda_.54}
  #allocation0 [shape = 'u32[]', space=smem, size = 0x4, offset = 0x4, fixed_abs, tag = 'smem constant byte address 0x4 - core index']
  #allocation1 [shape = 'u32[144,128]{1,0:T(1,128)}', space=vmem, size = 0x12000, scoped, tag = 'internal scratch']
  %s0 = inlined_call_operand.vmem [shape: f32[80,16], index: 0, kind: input, shape index: {}]
  %s1 = inlined_call_operand.vmem [shape: f32[16,16], index: 1, kind: input, shape index: {}]
  %s2 = inlined_call_operand.vmem [shape: f32[1,16], index: 2, kind: input, shape index: {}]
  %s3 = inlined_call_operand.vmem [shape: f32[80,16], index: 3, kind: output, shape index: {}]
  %s4 = sld [smem:[#allocation0]]
  $region22: #{_lambda_.54} parent=0
    _
  %s6 = ssub.s32 1, %s4
  %s7 = scalar_select 0, %s6, %s4
  // Predicated region
  $region2: #{_lambda_.54} parent=0 // pred_check
    _
  $region3: #{_lambda_.54} parent=0 // pred_check_branch
    %9 = sbr.rel (0) target = $region5
  $region4: #{_lambda_.54} parent=0 // pred_region
    _
  $region5: #{_lambda_.54} parent=0 // pred_fallthru
    _
  // Predicated region
  $region6: #{_lambda_.54} parent=0 // pred_check
    _
  $region7: #{_lambda_.54} parent=0 // pred_check_branch
    %11 = sbr.rel (0) target = $region9
  $region8: #{_lambda_.54} parent=0 // pred_region
    _
  $region9: #{_lambda_.54} parent=0 // pred_fallthru
    _
  // Predicated region
  $region10: #{_lambda_.54} parent=0 // pred_check
    _
  $region11: #{_lambda_.54} parent=0 // pred_check_branch
    %13 = sbr.rel (0) target = $region13
  $region12: #{_lambda_.54} parent=0 // pred_region
    _
  $region13: #{_lambda_.54} parent=0 // pred_fallthru
    _
  %v14 = vld [vmem:[%s0] sm:$0xff]
  %v15 = vld [vmem:[%s0 + $0x8] sm:$0xff]
  %v16 = vld [vmem:[%s0 + $0x10] sm:$0xff]
  %v17 = vld [vmem:[%s0 + $0x18] sm:$0xff]
  %v18 = vld [vmem:[%s0 + $0x20] sm:$0xff]
  %v19 = vld [vmem:[%s0 + $0x28] sm:$0xff]
  %v20 = vld [vmem:[%s0 + $0x30] sm:$0xff]
  %v21 = vld [vmem:[%s0 + $0x38] sm:$0xff]
  %v22 = vld [vmem:[%s0 + $0x40] sm:$0xff]
  %v23 = vld [vmem:[%s0 + $0x48] sm:$0xff]
  %v24 = vld [vmem:[%s1] sm:$0xff]
  %v25 = vld [vmem:[%s1 + $0x8] sm:$0xff]
  %v26 = vld [vmem:[%s2] sm:$0x1]
  %v28 = vlaneseq
  %v29 = vshrl.u32 %v28, 7
  %v30 = vsub.s32 0, %v29
  %v31 = vrot.slane %v26, %v30
  %vm33 = vcmask 130048
  %v35 = vsel %vm33, %v14, 0
  %v38 = vsel %vm33, %v15, 0
  %v41 = vsel %vm33, %v16, 0
  %v44 = vsel %vm33, %v17, 0
  %v47 = vsel %vm33, %v18, 0
  %v50 = vsel %vm33, %v19, 0
  %v53 = vsel %vm33, %v20, 0
  %v56 = vsel %vm33, %v21, 0
  %v59 = vsel %vm33, %v22, 0
  %v62 = vsel %vm33, %v23, 0
  %64 = vmatprep.subr.mxu0 0.0
  %65 = vmatpush1.msra.mxu0 %v24
  %66 = vmatprep.subr.mxu0 0.0
  %67 = vmatpush1.msra.mxu0 %v25
  %68 = vmatprep.subr.mxu0 0.0
  %69 = vmatpush1.msra.mxu0 0.0
  %70 = vmatprep.subr.mxu0 0.0
  %71 = vmatpush1.msra.mxu0 0.0
  %72 = vmatprep.subr.mxu0 0.0
  %73 = vmatpush1.msra.mxu0 0.0
  %74 = vmatprep.subr.mxu0 0.0
  %75 = vmatpush1.msra.mxu0 0.0
  %76 = vmatprep.subr.mxu0 0.0
  %77 = vmatpush1.msra.mxu0 0.0
  %78 = vmatprep.subr.mxu0 0.0
  %79 = vmatpush1.msra.mxu0 0.0
  %80 = vmatprep.subr.mxu0 0.0
  %81 = vmatpush1.msra.mxu0 0.0
  %82 = vmatprep.subr.mxu0 0.0
  %83 = vmatpush1.msra.mxu0 0.0
  %84 = vmatprep.subr.mxu0 0.0
  %85 = vmatpush1.msra.mxu0 0.0
  %86 = vmatprep.subr.mxu0 0.0
  %87 = vmatpush1.msra.mxu0 0.0
  %88 = vmatprep.subr.mxu0 0.0
  %89 = vmatpush1.msra.mxu0 0.0
  %90 = vmatprep.subr.mxu0 0.0
  %91 = vmatpush1.msra.mxu0 0.0
  %92 = vmatprep.subr.mxu0 0.0
  %93 = vmatpush1.msra.mxu0 0.0
  %94 = vmatprep.subr.mxu0 0.0
  %95 = vmatpush1.msra.mxu0 0.0
  %96 = vmatprep.subr.mxu0 0.0
  %97 = vmatpush1.msra.mxu0 0.0
  %98 = vmatprep.subr.mxu0 0.0
  %99 = vmatpush1.msra.mxu0 0.0
  %100 = vmatprep.subr.mxu0 0.0
  %101 = vmatpush1.msra.mxu0 0.0
  %102 = vmatprep.subr.mxu0 0.0
  %103 = vmatpush1.msra.mxu0 0.0
  %104 = vmatprep.subr.mxu0 0.0
  %105 = vmatpush1.msra.mxu0 0.0
  %106 = vmatprep.subr.mxu0 0.0
  %107 = vmatpush1.msra.mxu0 0.0
  %108 = vmatprep.subr.mxu0 0.0
  %109 = vmatpush1.msra.mxu0 0.0
  %110 = vmatprep.subr.mxu0 0.0
  %111 = vmatpush1.msra.mxu0 0.0
  %112 = vmatprep.subr.mxu0 0.0
  %113 = vmatpush1.msra.mxu0 0.0
  %114 = vmatprep.subr.mxu0 0.0
  %115 = vmatpush1.msra.mxu0 0.0
  %116 = vmatprep.subr.mxu0 0.0
  %117 = vmatpush1.msra.mxu0 0.0
  %118 = vmatprep.subr.mxu0 0.0
  %119 = vmatpush1.msra.mxu0 0.0
  %120 = vmatprep.subr.mxu0 0.0
  %121 = vmatpush1.msra.mxu0 0.0
  %122 = vmatprep.subr.mxu0 0.0
  %123 = vmatpush1.msra.mxu0 0.0
  %124 = vmatprep.subr.mxu0 0.0
  %125 = vmatpush1.msra.mxu0 0.0
  %126 = vmatprep.subr.mxu0 0.0
  %127 = vmatpush1.msra.mxu0 0.0
  %128 = vmatprep.mubr.f32.mxu0 0.0
  %129 = vmatmul.mubr.f32.gmra.mrb[0].mxu0 %v35
  %v130 = vpop.f32.mrb[0].mxu0
  %v131 = vadd.f32 %v31, %v130
  %v132 = vpop.f32.mrb[0].mxu0
  %133 = vmatprep.mubr.f32.mxu0 0.0
  %134 = vmatmul.mubr.f32.gmra.mrb[0].mxu0 %v38
  %v135 = vpop.f32.mrb[0].mxu0
  %v136 = vadd.f32 %v31, %v135
  %v137 = vpop.f32.mrb[0].mxu0
  %138 = vmatprep.mubr.f32.mxu0 0.0
  %139 = vmatmul.mubr.f32.gmra.mrb[0].mxu0 %v41
  %v140 = vpop.f32.mrb[0].mxu0
  %v141 = vadd.f32 %v31, %v140
  %v142 = vpop.f32.mrb[0].mxu0
  %143 = vmatprep.mubr.f32.mxu0 0.0
  %144 = vmatmul.mubr.f32.gmra.mrb[0].mxu0 %v44
  %v145 = vpop.f32.mrb[0].mxu0
  %v146 = vadd.f32 %v31, %v145
  %v147 = vpop.f32.mrb[0].mxu0
  %148 = vmatprep.mubr.f32.mxu0 0.0
  %149 = vmatmul.mubr.f32.gmra.mrb[0].mxu0 %v47
  %v150 = vpop.f32.mrb[0].mxu0
  %v151 = vadd.f32 %v31, %v150
  %v152 = vpop.f32.mrb[0].mxu0
  %153 = vmatprep.mubr.f32.mxu0 0.0
  %154 = vmatmul.mubr.f32.gmra.mrb[0].mxu0 %v50
  %v155 = vpop.f32.mrb[0].mxu0
  %v156 = vadd.f32 %v31, %v155
  %v157 = vpop.f32.mrb[0].mxu0
  %158 = vmatprep.mubr.f32.mxu0 0.0
  %159 = vmatmul.mubr.f32.gmra.mrb[0].mxu0 %v53
  %v160 = vpop.f32.mrb[0].mxu0
  %v161 = vadd.f32 %v31, %v160
  %v162 = vpop.f32.mrb[0].mxu0
  %163 = vmatprep.mubr.f32.mxu0 0.0
  %164 = vmatmul.mubr.f32.gmra.mrb[0].mxu0 %v56
  %v165 = vpop.f32.mrb[0].mxu0
  %v166 = vadd.f32 %v31, %v165
  %v167 = vpop.f32.mrb[0].mxu0
  %168 = vmatprep.mubr.f32.mxu0 0.0
  %169 = vmatmul.mubr.f32.gmra.mrb[0].mxu0 %v59
  %v170 = vpop.f32.mrb[0].mxu0
  %v171 = vadd.f32 %v31, %v170
  %v172 = vpop.f32.mrb[0].mxu0
  %173 = vmatprep.mubr.f32.mxu0 0.0
  %174 = vmatmul.mubr.f32.gmra.mrb[0].mxu0 %v62
  %v175 = vpop.f32.mrb[0].mxu0
  %v176 = vadd.f32 %v31, %v175
  %v177 = vpop.f32.mrb[0].mxu0
  %178 = vdwg.mxu0
  %179 = vst.msk [vmem:[%s3] sm:$0xff] %vm33, %v131
  %180 = vst.msk [vmem:[%s3 + $0x8] sm:$0xff] %vm33, %v136
  %181 = vst.msk [vmem:[%s3 + $0x10] sm:$0xff] %vm33, %v141
  %182 = vst.msk [vmem:[%s3 + $0x18] sm:$0xff] %vm33, %v146
  %183 = vst.msk [vmem:[%s3 + $0x20] sm:$0xff] %vm33, %v151
  %184 = vst.msk [vmem:[%s3 + $0x28] sm:$0xff] %vm33, %v156
  %185 = vst.msk [vmem:[%s3 + $0x30] sm:$0xff] %vm33, %v161
  %186 = vst.msk [vmem:[%s3 + $0x38] sm:$0xff] %vm33, %v166
  %187 = vst.msk [vmem:[%s3 + $0x40] sm:$0xff] %vm33, %v171
  %188 = vst.msk [vmem:[%s3 + $0x48] sm:$0xff] %vm33, %v176
  // Predicated region
  $region14: #{_lambda_.54} parent=0 // pred_check
    _
  $region15: #{_lambda_.54} parent=0 // pred_check_branch
    %190 = sbr.rel (0) target = $region17
  $region16: #{_lambda_.54} parent=0 // pred_region
    _
  $region17: #{_lambda_.54} parent=0 // pred_fallthru
    _
  // Predicated region
  $region18: #{_lambda_.54} parent=0 // pred_check
    _
  $region19: #{_lambda_.54} parent=0 // pred_check_branch
    %192 = sbr.rel (0) target = $region21
  $region20: #{_lambda_.54} parent=0 // pred_region
    _
  $region21: #{_lambda_.54} parent=0 // pred_fallthru
    _

// kernel: _lambda_.61
$region0: #{_lambda_.61}
  #allocation0 [shape = 'u32[]', space=smem, size = 0x4, offset = 0x4, fixed_abs, tag = 'smem constant byte address 0x4 - core index']
  #allocation1 [shape = 'u32[144,128]{1,0:T(1,128)}', space=vmem, size = 0x12000, scoped, tag = 'internal scratch']
  %s0 = inlined_call_operand.vmem [shape: f32[40,80], index: 0, kind: input, shape index: {}]
  %s1 = inlined_call_operand.vmem [shape: f32[40,80], index: 1, kind: input, shape index: {}]
  %s2 = inlined_call_operand.vmem [shape: f32[80,16], index: 2, kind: input, shape index: {}]
  %s3 = inlined_call_operand.vmem [shape: f32[40,16], index: 3, kind: output, shape index: {}]
  %s4 = sld [smem:[#allocation0]]
  $region22: #{_lambda_.61} parent=0
    _
  %s6 = ssub.s32 1, %s4
  %s7 = scalar_select 0, %s6, %s4
  // Predicated region
  $region2: #{_lambda_.61} parent=0 // pred_check
    _
  $region3: #{_lambda_.61} parent=0 // pred_check_branch
    %9 = sbr.rel (0) target = $region5
  $region4: #{_lambda_.61} parent=0 // pred_region
    _
  $region5: #{_lambda_.61} parent=0 // pred_fallthru
    _
  // Predicated region
  $region6: #{_lambda_.61} parent=0 // pred_check
    _
  $region7: #{_lambda_.61} parent=0 // pred_check_branch
    %11 = sbr.rel (0) target = $region9
  $region8: #{_lambda_.61} parent=0 // pred_region
    _
  $region9: #{_lambda_.61} parent=0 // pred_fallthru
    _
  // Predicated region
  $region10: #{_lambda_.61} parent=0 // pred_check
    _
  $region11: #{_lambda_.61} parent=0 // pred_check_branch
    %13 = sbr.rel (0) target = $region13
  $region12: #{_lambda_.61} parent=0 // pred_region
    _
  $region13: #{_lambda_.61} parent=0 // pred_fallthru
    _
  %v14 = vld [vmem:[%s0] sm:$0xff]
  %v15 = vld [vmem:[%s0 + $0x8] sm:$0xff]
  %v16 = vld [vmem:[%s0 + $0x10] sm:$0xff]
  %v17 = vld [vmem:[%s0 + $0x18] sm:$0xff]
  %v18 = vld [vmem:[%s0 + $0x20] sm:$0xff]
  %v19 = vld [vmem:[%s1] sm:$0xff]
  %v20 = vld [vmem:[%s1 + $0x8] sm:$0xff]
  %v21 = vld [vmem:[%s1 + $0x10] sm:$0xff]
  %v22 = vld [vmem:[%s1 + $0x18] sm:$0xff]
  %v23 = vld [vmem:[%s1 + $0x20] sm:$0xff]
  %v24 = vmul.f32 %v14, %v19
  %v25 = vmul.f32 %v15, %v20
  %v26 = vmul.f32 %v16, %v21
  %v27 = vmul.f32 %v17, %v22
  %v28 = vmul.f32 %v18, %v23
  %v29 = vld [vmem:[%s2] sm:$0xff]
  %v30 = vld [vmem:[%s2 + $0x8] sm:$0xff]
  %v31 = vld [vmem:[%s2 + $0x10] sm:$0xff]
  %v32 = vld [vmem:[%s2 + $0x18] sm:$0xff]
  %v33 = vld [vmem:[%s2 + $0x20] sm:$0xff]
  %v34 = vld [vmem:[%s2 + $0x28] sm:$0xff]
  %v35 = vld [vmem:[%s2 + $0x30] sm:$0xff]
  %v36 = vld [vmem:[%s2 + $0x38] sm:$0xff]
  %v37 = vld [vmem:[%s2 + $0x40] sm:$0xff]
  %v38 = vld [vmem:[%s2 + $0x48] sm:$0xff]
  %vm39 = vcmask 654336
  %v41 = vsel %vm39, %v24, 0
  %v44 = vsel %vm39, %v25, 0
  %v47 = vsel %vm39, %v26, 0
  %v50 = vsel %vm39, %v27, 0
  %v53 = vsel %vm39, %v28, 0
  %55 = vmatprep.subr.mxu0 0.0
  %56 = vmatpush1.msra.mxu0 %v29
  %57 = vmatprep.subr.mxu0 0.0
  %58 = vmatpush1.msra.mxu0 %v30
  %59 = vmatprep.subr.mxu0 0.0
  %60 = vmatpush1.msra.mxu0 %v31
  %61 = vmatprep.subr.mxu0 0.0
  %62 = vmatpush1.msra.mxu0 %v32
  %63 = vmatprep.subr.mxu0 0.0
  %64 = vmatpush1.msra.mxu0 %v33
  %65 = vmatprep.subr.mxu0 0.0
  %66 = vmatpush1.msra.mxu0 %v34
  %67 = vmatprep.subr.mxu0 0.0
  %68 = vmatpush1.msra.mxu0 %v35
  %69 = vmatprep.subr.mxu0 0.0
  %70 = vmatpush1.msra.mxu0 %v36
  %71 = vmatprep.subr.mxu0 0.0
  %72 = vmatpush1.msra.mxu0 %v37
  %73 = vmatprep.subr.mxu0 0.0
  %74 = vmatpush1.msra.mxu0 %v38
  %75 = vmatprep.subr.mxu0 0.0
  %76 = vmatpush1.msra.mxu0 0.0
  %77 = vmatprep.subr.mxu0 0.0
  %78 = vmatpush1.msra.mxu0 0.0
  %79 = vmatprep.subr.mxu0 0.0
  %80 = vmatpush1.msra.mxu0 0.0
  %81 = vmatprep.subr.mxu0 0.0
  %82 = vmatpush1.msra.mxu0 0.0
  %83 = vmatprep.subr.mxu0 0.0
  %84 = vmatpush1.msra.mxu0 0.0
  %85 = vmatprep.subr.mxu0 0.0
  %86 = vmatpush1.msra.mxu0 0.0
  %87 = vmatprep.subr.mxu0 0.0
  %88 = vmatpush1.msra.mxu0 0.0
  %89 = vmatprep.subr.mxu0 0.0
  %90 = vmatpush1.msra.mxu0 0.0
  %91 = vmatprep.subr.mxu0 0.0
  %92 = vmatpush1.msra.mxu0 0.0
  %93 = vmatprep.subr.mxu0 0.0
  %94 = vmatpush1.msra.mxu0 0.0
  %95 = vmatprep.subr.mxu0 0.0
  %96 = vmatpush1.msra.mxu0 0.0
  %97 = vmatprep.subr.mxu0 0.0
  %98 = vmatpush1.msra.mxu0 0.0
  %99 = vmatprep.subr.mxu0 0.0
  %100 = vmatpush1.msra.mxu0 0.0
  %101 = vmatprep.subr.mxu0 0.0
  %102 = vmatpush1.msra.mxu0 0.0
  %103 = vmatprep.subr.mxu0 0.0
  %104 = vmatpush1.msra.mxu0 0.0
  %105 = vmatprep.subr.mxu0 0.0
  %106 = vmatpush1.msra.mxu0 0.0
  %107 = vmatprep.subr.mxu0 0.0
  %108 = vmatpush1.msra.mxu0 0.0
  %109 = vmatprep.subr.mxu0 0.0
  %110 = vmatpush1.msra.mxu0 0.0
  %111 = vmatprep.subr.mxu0 0.0
  %112 = vmatpush1.msra.mxu0 0.0
  %113 = vmatprep.subr.mxu0 0.0
  %114 = vmatpush1.msra.mxu0 0.0
  %115 = vmatprep.subr.mxu0 0.0
  %116 = vmatpush1.msra.mxu0 0.0
  %117 = vmatprep.subr.mxu0 0.0
  %118 = vmatpush1.msra.mxu0 0.0
  %119 = vmatprep.mubr.f32.mxu0 0.0
  %120 = vmatmul.mubr.f32.gmra.mrb[0].mxu0 %v41
  %v121 = vpop.f32.mrb[0].mxu0
  %v122 = vadd.f32 0.0, %v121
  %v123 = vpop.f32.mrb[0].mxu0
  %124 = vmatprep.mubr.f32.mxu0 0.0
  %125 = vmatmul.mubr.f32.gmra.mrb[0].mxu0 %v44
  %v126 = vpop.f32.mrb[0].mxu0
  %v127 = vadd.f32 0.0, %v126
  %v128 = vpop.f32.mrb[0].mxu0
  %129 = vmatprep.mubr.f32.mxu0 0.0
  %130 = vmatmul.mubr.f32.gmra.mrb[0].mxu0 %v47
  %v131 = vpop.f32.mrb[0].mxu0
  %v132 = vadd.f32 0.0, %v131
  %v133 = vpop.f32.mrb[0].mxu0
  %134 = vmatprep.mubr.f32.mxu0 0.0
  %135 = vmatmul.mubr.f32.gmra.mrb[0].mxu0 %v50
  %v136 = vpop.f32.mrb[0].mxu0
  %v137 = vadd.f32 0.0, %v136
  %v138 = vpop.f32.mrb[0].mxu0
  %139 = vmatprep.mubr.f32.mxu0 0.0
  %140 = vmatmul.mubr.f32.gmra.mrb[0].mxu0 %v53
  %v141 = vpop.f32.mrb[0].mxu0
  %v142 = vadd.f32 0.0, %v141
  %v143 = vpop.f32.mrb[0].mxu0
  %144 = vdwg.mxu0
  %vm145 = vcmask 130048
  %146 = vst.msk [vmem:[%s3] sm:$0xff] %vm145, %v122
  %147 = vst.msk [vmem:[%s3 + $0x8] sm:$0xff] %vm145, %v127
  %148 = vst.msk [vmem:[%s3 + $0x10] sm:$0xff] %vm145, %v132
  %149 = vst.msk [vmem:[%s3 + $0x18] sm:$0xff] %vm145, %v137
  %150 = vst.msk [vmem:[%s3 + $0x20] sm:$0xff] %vm145, %v142
  // Predicated region
  $region14: #{_lambda_.61} parent=0 // pred_check
    _
  $region15: #{_lambda_.61} parent=0 // pred_check_branch
    %152 = sbr.rel (0) target = $region17
  $region16: #{_lambda_.61} parent=0 // pred_region
    _
  $region17: #{_lambda_.61} parent=0 // pred_fallthru
    _
  // Predicated region
  $region18: #{_lambda_.61} parent=0 // pred_check
    _
  $region19: #{_lambda_.61} parent=0 // pred_check_branch
    %154 = sbr.rel (0) target = $region21
  $region20: #{_lambda_.61} parent=0 // pred_region
    _
  $region21: #{_lambda_.61} parent=0 // pred_fallthru
    _

</llo_original>
